<compile_context>
chip_gen: v7x
topology: tpu7x:2x2x1
jax: 0.10.0
libtpu: 0.0.40
codegen_flags: <defaults>
</compile_context>

<pallas_src>
import functools
import math

import jax
import jax.numpy as jnp
import numpy as np
from jax.experimental import pallas as pl
from jax.experimental.pallas import tpu as pltpu


# ---------------------------------------------------------------------------
# Pass A: LN1 + fused QKV projection (once per token row).
# ---------------------------------------------------------------------------
def _qkv_projection_kernel(x_ref, ln1g_ref, ln1b_ref, wqkv_ref, bqkv_ref,
                           q_ref, k_ref, v_ref):
    f32, bf16 = jnp.float32, jnp.bfloat16
    x = x_ref[0].astype(f32)                               # (Tt, C)
    C = x.shape[1]
    H, Dh = q_ref.shape[1], q_ref.shape[3]

    mu = jnp.mean(x, axis=-1, keepdims=True)
    var = jnp.mean(jnp.square(x - mu), axis=-1, keepdims=True)
    h = (x - mu) * jax.lax.rsqrt(var + 1e-5) * ln1g_ref[...] + ln1b_ref[...]

    # Fused QKV projection (bf16 operands, f32 accumulation).  The 1/sqrt(Dh)
    # scale is folded into the Q columns of wqkv / bqkv host-side (prepare_params).
    qkv = (jnp.dot(h.astype(bf16), wqkv_ref[...], preferred_element_type=f32)
           + bqkv_ref[...]).astype(bf16)                   # (Tt, 3C) -> bf16 right away

    # Head-major writeback: done once per row; attention pass never re-layouts.
    for hh in range(H):
        lo = hh * Dh
        q_ref[0, hh] = qkv[:, lo:lo + Dh]
        k_ref[0, hh] = qkv[:, C + lo:C + lo + Dh]
        v_ref[0, hh] = qkv[:, 2 * C + lo:2 * C + lo + Dh]


# ---------------------------------------------------------------------------
# Pass B: attention (head = innermost grid axis) + out-proj + residuals + LN2 + FFN.
# ---------------------------------------------------------------------------
def _attn_ffn_kernel(x_ref, amask_ref, q_ref, k_ref, v_ref,
                     woh_ref, bo_ref, ln2g_ref, ln2b_ref,
                     w1_ref, b1_ref, w2_ref, b2_ref,
                     o_ref, acc_ref):
    f32, bf16 = jnp.float32, jnp.bfloat16
    TQ = x_ref.shape[1]
    T = k_ref.shape[2]
    h_idx = pl.program_id(2)
    n_heads = pl.num_programs(2)

    @pl.when(h_idx == 0)
    def _init():
        acc_ref[...] = jnp.zeros_like(acc_ref)

    qh = q_ref[0, 0]                                       # (TQ, Dh) bf16, pre-scaled
    kh = k_ref[0, 0]                                       # (T,  Dh) bf16
    # trans_b matmul on the MXU: no value-level K transpose through the XLU.
    s = jax.lax.dot_general(qh, kh, (((1,), (1,)), ((), ())),
                            preferred_element_type=f32)    # (TQ, T)

    am = amask_ref[0].astype(f32)                          # (1, T) padding mask
    q_start = pl.program_id(1) * TQ
    rows = q_start + jax.lax.broadcasted_iota(jnp.int32, (TQ, T), 0)
    cols = jax.lax.broadcasted_iota(jnp.int32, (TQ, T), 1)
    s = jnp.where(cols <= rows, s, -jnp.inf) + (1.0 - am) * jnp.finfo(f32).min

    m = jnp.max(s, axis=-1, keepdims=True)
    p = jnp.exp(s - m)
    rinv = pl.reciprocal(jnp.sum(p, axis=-1, keepdims=True), approx=True)
    pv = jnp.dot(p.astype(bf16), v_ref[0, 0], preferred_element_type=f32)  # (TQ, Dh)
    pv = (pv * rinv).astype(bf16)
    # This head's slice of the output projection, accumulated in f32.
    acc_ref[...] += jnp.dot(pv, woh_ref[0], preferred_element_type=f32)    # (TQ, C)

    @pl.when(h_idx == n_heads - 1)
    def _finish():
        x_tile = x_ref[0].astype(f32)                      # (TQ, C)
        x2 = x_tile + acc_ref[...] + bo_ref[...]           # residual 1 (+ out-proj bias)
        mu = jnp.mean(x2, axis=-1, keepdims=True)
        var = jnp.mean(jnp.square(x2 - mu), axis=-1, keepdims=True)
        h2 = (x2 - mu) * jax.lax.rsqrt(var + 1e-5) * ln2g_ref[...] + ln2b_ref[...]
        z = jnp.dot(h2.astype(bf16), w1_ref[...], preferred_element_type=f32) + b1_ref[...]
        z = 0.5 * z * (1.0 + jnp.tanh(math.sqrt(2.0 / math.pi)
                                      * (z + 0.044715 * (z * z * z))))
        y = jnp.dot(z.astype(bf16), w2_ref[...], preferred_element_type=f32) + b2_ref[...]
        o_ref[0] = (x2 + y).astype(o_ref.dtype)            # residual 2, lane-dense store


# ---------------------------------------------------------------------------
# Build-time helpers (chip-aware, cached).
# ---------------------------------------------------------------------------
def _tpu_vmem_capacity():
    try:
        return int(pltpu.get_tpu_info().vmem_capacity_bytes)
    except Exception:                                      # noqa: BLE001
        return 128 * 1024 * 1024                           # v5e/v6e default assumption


def _vmem_limit(est_bytes):
    cap = _tpu_vmem_capacity()
    return int(min(max(int(est_bytes), 32 * 1024 * 1024), int(0.9 * cap)))


def _pick_q_tile(t_pad, small_vmem):
    # Smaller tiles when VMEM is tight (v7x: 64 MiB, and 2 TCs need >= 2 q-tiles).
    candidates = (256, 128) if small_vmem else (512, 256, 128)
    for c in candidates:
        if t_pad > c and t_pad % c == 0:
            return c
    return t_pad


def _invariant_spec(shape, single_buffer):
    zeros = (0,) * len(shape)
    if single_buffer:
        # Grid-invariant weights: single-buffer to halve their VMEM footprint (v7x).
        return pl.BlockSpec(shape, lambda *args, _z=zeros: _z,
                            pipeline_mode=pl.Buffered(1))
    return pl.BlockSpec(shape, lambda *args, _z=zeros: _z)


@functools.lru_cache(maxsize=None)
def _build_decoder_block_fn(B, T, C, H, out_dtype_name, small_vmem):
    out_dtype = jnp.dtype(out_dtype_name)
    Dh = C // H
    T_pad = ((T + 127) // 128) * 128       # lane-dense score/mask tiles
    q_tile = _pick_q_tile(T_pad, small_vmem)
    single_buffer = small_vmem
    buf = 1 if single_buffer else 2

    # ---- Pass A call -------------------------------------------------------
    w_a = buf * (2 * C * 4 + C * 3 * C * 2 + 3 * C * 4)
    io_a = 2 * (q_tile * C * 4) + 2 * 3 * (H * q_tile * Dh * 2)
    inter_a = q_tile * C * 4 + q_tile * 3 * C * 6
    qkv_call = pl.pallas_call(
        _qkv_projection_kernel,
        out_shape=tuple(jax.ShapeDtypeStruct((B, H, T_pad, Dh), jnp.bfloat16)
                        for _ in range(3)),
        grid=(B, T_pad // q_tile),
        in_specs=[
            pl.BlockSpec((1, q_tile, C), lambda b, i: (b, i, 0)),
            _invariant_spec((1, C), single_buffer),
            _invariant_spec((1, C), single_buffer),
            _invariant_spec((C, 3 * C), single_buffer),
            _invariant_spec((1, 3 * C), single_buffer),
        ],
        out_specs=tuple(pl.BlockSpec((1, H, q_tile, Dh), lambda b, i: (b, 0, i, 0))
                        for _ in range(3)),
        compiler_params=pltpu.CompilerParams(
            dimension_semantics=("parallel", "parallel"),
            vmem_limit_bytes=_vmem_limit(1.5 * (w_a + io_a + inter_a))),
    )

    # ---- Pass B call -------------------------------------------------------
    w_b = buf * ((C * 4 * C + 4 * C * C) * 2 + 4 * C * 4 + 6 * C * 4)
    io_b = (2 * 2 * (q_tile * C * 4) + 2 * T_pad * 4
            + 2 * (q_tile * Dh * 2) + 4 * (T_pad * Dh * 2) + 2 * (Dh * C * 2))
    inter_b = 2 * q_tile * T_pad * 4 + q_tile * 4 * C * 4 + 4 * q_tile * C * 4
    attn_call = pl.pallas_call(
        _attn_ffn_kernel,
        out_shape=jax.ShapeDtypeStruct((B, T_pad, C), out_dtype),
        grid=(B, T_pad // q_tile, H),
        in_specs=[
            pl.BlockSpec((1, q_tile, C), lambda b, i, h: (b, i, 0)),        # x
            pl.BlockSpec((1, 1, T_pad), lambda b, i, h: (b, 0, 0)),         # padding mask
            pl.BlockSpec((1, 1, q_tile, Dh), lambda b, i, h: (b, h, i, 0)), # Q (head h)
            pl.BlockSpec((1, 1, T_pad, Dh), lambda b, i, h: (b, h, 0, 0)),  # K (head h)
            pl.BlockSpec((1, 1, T_pad, Dh), lambda b, i, h: (b, h, 0, 0)),  # V (head h)
            pl.BlockSpec((1, Dh, C), lambda b, i, h: (h, 0, 0)),            # Wo slice h
            _invariant_spec((1, C), single_buffer),                         # bo
            _invariant_spec((1, C), single_buffer),                         # ln2 gamma
            _invariant_spec((1, C), single_buffer),                         # ln2 beta
            _invariant_spec((C, 4 * C), single_buffer),                     # W1
            _invariant_spec((1, 4 * C), single_buffer),                     # b1
            _invariant_spec((4 * C, C), single_buffer),                     # W2
            _invariant_spec((1, C), single_buffer),                         # b2
        ],
        out_specs=pl.BlockSpec((1, q_tile, C), lambda b, i, h: (b, i, 0)),
        scratch_shapes=[pltpu.VMEM((q_tile, C), jnp.float32)],
        compiler_params=pltpu.CompilerParams(
            dimension_semantics=("parallel", "parallel", "arbitrary"),
            vmem_limit_bytes=_vmem_limit(1.5 * (w_b + io_b + inter_b + q_tile * C * 4))),
    )

    def run(x, amask, ln1g, ln1b, wqkv, bqkv, woh, bo, ln2g, ln2b, w1, b1, w2, b2):
        if T_pad != T:
            x = jnp.pad(x, ((0, 0), (0, T_pad - T), (0, 0)))
            amask = jnp.pad(amask, ((0, 0), (0, T_pad - T)))
        am3 = amask.reshape(B, 1, T_pad).astype(jnp.float32)
        q, k, v = qkv_call(x, ln1g, ln1b, wqkv, bqkv)
        out = attn_call(x, am3, q, k, v, woh, bo, ln2g, ln2b, w1, b1, w2, b2)
        return out[:, :T] if T_pad != T else out

    return jax.jit(run)


# ---------------------------------------------------------------------------
# Host-side parameter prep (done once) + user-facing wrapper.
# ---------------------------------------------------------------------------
def prepare_params(params, n_heads):
    """Fold 1/sqrt(Dh) into the Q projection, cast matmul weights to bf16 once,
    and reshape the output projection to head-major (H, Dh, C)."""
    ln1g, ln1b, wqkv, bqkv, wo, bo, ln2g, ln2b, w1, b1, w2, b2 = params
    C = wo.shape[0]
    Dh = C // n_heads
    scale = 1.0 / math.sqrt(Dh)
    wqkv = wqkv.at[:, :C].multiply(scale)
    bqkv = bqkv.at[:, :C].multiply(scale)
    bf16 = jnp.bfloat16
    woh = wo.reshape(n_heads, Dh, C).astype(bf16)
    return (ln1g, ln1b, wqkv.astype(bf16), bqkv,
            woh, bo, ln2g, ln2b,
            w1.astype(bf16), b1, w2.astype(bf16), b2)


def transformer_decoder_block(x, attention_mask, kparams, n_heads):
    """x: (B, T, C); attention_mask: (B, T) of 1.0/0.0; kparams from prepare_params."""
    B, T, C = x.shape
    assert C % n_heads == 0
    small_vmem = _tpu_vmem_capacity() <= 96 * 1024 * 1024      # v7x-class part
    fn = _build_decoder_block_fn(B, T, C, n_heads, jnp.dtype(x.dtype).name, small_vmem)
    return fn(x, attention_mask, *kparams)


# ---------------------------------------------------------------------------
# Synthetic weights + pure-JAX reference (eval mode) for validation.
# ---------------------------------------------------------------------------
def make_params(key, C):
    """Deterministic synthetic weights. Linear weights stored as (in, out), f32."""
    ks = jax.random.split(key, 12)
    s = 0.02
    ln1g = jnp.ones((1, C), jnp.float32)
    ln1b = jnp.zeros((1, C), jnp.float32)
    wqkv = jax.random.normal(ks[0], (C, 3 * C), jnp.float32) * s
    bqkv = jax.random.normal(ks[1], (1, 3 * C), jnp.float32) * s
    wo = jax.random.normal(ks[2], (C, C), jnp.float32) * s
    bo = jax.random.normal(ks[3], (1, C), jnp.float32) * s
    ln2g = jnp.ones((1, C), jnp.float32)
    ln2b = jnp.zeros((1, C), jnp.float32)
    w1 = jax.random.normal(ks[4], (C, 4 * C), jnp.float32) * s
    b1 = jax.random.normal(ks[5], (1, 4 * C), jnp.float32) * s
    w2 = jax.random.normal(ks[6], (4 * C, C), jnp.float32) * s
    b2 = jax.random.normal(ks[7], (1, C), jnp.float32) * s
    return (ln1g, ln1b, wqkv, bqkv, wo, bo, ln2g, ln2b, w1, b1, w2, b2)


def reference(x, amask, params, H):
    ln1g, ln1b, wqkv, bqkv, wo, bo, ln2g, ln2b, w1, b1, w2, b2 = params
    B, T, C = x.shape
    Dh = C // H

    def ln(v, g, bt):
        mu = v.mean(-1, keepdims=True)
        var = ((v - mu) ** 2).mean(-1, keepdims=True)
        return (v - mu) / jnp.sqrt(var + 1e-5) * g + bt

    h = ln(x, ln1g, ln1b)
    qkv = h @ wqkv + bqkv
    Q, K, V = jnp.split(qkv, 3, axis=-1)
    Q = Q.reshape(B, T, H, Dh).transpose(0, 2, 1, 3)
    K = K.reshape(B, T, H, Dh).transpose(0, 2, 1, 3)
    V = V.reshape(B, T, H, Dh).transpose(0, 2, 1, 3)
    att = (Q @ jnp.swapaxes(K, -1, -2)) / math.sqrt(Dh)
    causal = jnp.tril(jnp.ones((T, T)))
    att = jnp.where(causal == 0, -jnp.inf, att)
    att = att + (1.0 - amask)[:, None, None, :] * jnp.finfo(jnp.float32).min
    att = jax.nn.softmax(att, axis=-1)
    wv = (att @ V).transpose(0, 2, 1, 3).reshape(B, T, C)
    x2 = x + (wv @ wo + bo)
    h2 = ln(x2, ln2g, ln2b)
    z = h2 @ w1 + b1
    z = 0.5 * z * (1.0 + jnp.tanh(math.sqrt(2.0 / math.pi) * (z + 0.044715 * z ** 3)))
    z = z @ w2 + b2
    return x2 + z


if __name__ == "__main__":
    # Small but TPU-friendly demo: C is a multiple of 128 (lane-dense (TQ, C) tiles).
    B, T, C, H = 2, 16, 128, 8
    key = jax.random.PRNGKey(0)
    kx, kp = jax.random.split(key)
    x = jax.random.normal(kx, (B, T, C), jnp.float32)
    attention_mask = jnp.ones((B, T), jnp.float32)
    params = make_params(kp, C)
    kparams = prepare_params(params, H)          # bf16 cast + scale fold, once

    out = transformer_decoder_block(x, attention_mask, kparams, n_heads=H)
    out = jax.block_until_ready(out)

    ref = reference(x, attention_mask, params, H)
    # bf16 matmul operands (f32 accumulation) + approx reciprocal -> looser tolerance.
    np.testing.assert_allclose(np.asarray(out), np.asarray(ref), rtol=2e-2, atol=2e-2)
    print("KERNEL_OK")
</pallas_src>

<mosaic_0001>
module attributes {stable_mosaic.version = 11 : i64} {
  func.func @_attn_ffn_kernel(%arg0: i32, %arg1: i32, %arg2: i32, %arg3: memref<1x128x128xf32, #tpu.memory_space<vmem>>, %arg4: memref<1x1x128xf32, #tpu.memory_space<vmem>>, %arg5: memref<1x1x128x16xbf16, #tpu.memory_space<vmem>>, %arg6: memref<1x1x128x16xbf16, #tpu.memory_space<vmem>>, %arg7: memref<1x1x128x16xbf16, #tpu.memory_space<vmem>>, %arg8: memref<1x16x128xbf16, #tpu.memory_space<vmem>>, %arg9: memref<1x128xf32, #tpu.memory_space<vmem>>, %arg10: memref<1x128xf32, #tpu.memory_space<vmem>>, %arg11: memref<1x128xf32, #tpu.memory_space<vmem>>, %arg12: memref<128x512xbf16, #tpu.memory_space<vmem>>, %arg13: memref<1x512xf32, #tpu.memory_space<vmem>>, %arg14: memref<512x128xbf16, #tpu.memory_space<vmem>>, %arg15: memref<1x128xf32, #tpu.memory_space<vmem>>, %arg16: memref<1x128x128xf32, #tpu.memory_space<vmem>>, %arg17: memref<128x128xf32, #tpu.memory_space<vmem>>) attributes {dimension_semantics = [#tpu.dimension_semantics<parallel>, #tpu.dimension_semantics<parallel>, #tpu.dimension_semantics<arbitrary>], iteration_bounds = array<i64: 2, 1, 8>, scalar_prefetch = 0 : i64, scratch_operands = 1 : i64, tpu.core_type = #tpu.core_type<tc>, window_params = [{transform_indices = @transform_0, window_bounds = array<i64: 1, 128, 128>}, {transform_indices = @transform_1, window_bounds = array<i64: 1, 1, 128>}, {transform_indices = @transform_2, window_bounds = array<i64: 1, 1, 128, 16>}, {transform_indices = @transform_3, window_bounds = array<i64: 1, 1, 128, 16>}, {transform_indices = @transform_4, window_bounds = array<i64: 1, 1, 128, 16>}, {transform_indices = @transform_5, window_bounds = array<i64: 1, 16, 128>}, {pipeline_mode = #tpu.pipeline_mode<synchronous>, transform_indices = @transform_6, window_bounds = array<i64: 1, 128>}, {pipeline_mode = #tpu.pipeline_mode<synchronous>, transform_indices = @transform_7, window_bounds = array<i64: 1, 128>}, {pipeline_mode = #tpu.pipeline_mode<synchronous>, transform_indices = @transform_8, window_bounds = array<i64: 1, 128>}, {pipeline_mode = #tpu.pipeline_mode<synchronous>, transform_indices = @transform_9, window_bounds = array<i64: 128, 512>}, {pipeline_mode = #tpu.pipeline_mode<synchronous>, transform_indices = @transform_10, window_bounds = array<i64: 1, 512>}, {pipeline_mode = #tpu.pipeline_mode<synchronous>, transform_indices = @transform_11, window_bounds = array<i64: 512, 128>}, {pipeline_mode = #tpu.pipeline_mode<synchronous>, transform_indices = @transform_12, window_bounds = array<i64: 1, 128>}, {transform_indices = @transform_13, window_bounds = array<i64: 1, 128, 128>}]} {
    %c0_i32 = arith.constant 0 : i32
    %0 = arith.cmpi eq, %arg2, %c0_i32 : i32
    %1 = arith.extui %0 : i1 to i32
    %c0_i32_0 = arith.constant 0 : i32
    %2 = arith.cmpi ne, %1, %c0_i32_0 : i32
    scf.if %2 {
      %cst_30 = arith.constant 0.000000e+00 : f32
      %48 = vector.broadcast %cst_30 : f32 to vector<128x128xf32>
      %c0_31 = arith.constant 0 : index
      %c0_32 = arith.constant 0 : index
      %49 = vector.load %arg17[%c0_31, %c0_32] : memref<128x128xf32, #tpu.memory_space<vmem>>, vector<128x128xf32>
      tpu.vector_store %arg17[%c0_31, %c0_32], %48 {strides = array<i32>} : memref<128x128xf32, #tpu.memory_space<vmem>>, vector<128x128xf32>,
    } else {
    }
    %c0 = arith.constant 0 : index
    %c0_1 = arith.constant 0 : index
    %c0_2 = arith.constant 0 : index
    %c0_3 = arith.constant 0 : index
    %3 = vector.load %arg5[%c0, %c0_1, %c0_2, %c0_3] : memref<1x1x128x16xbf16, #tpu.memory_space<vmem>>, vector<1x1x128x16xbf16>
    %4 = vector.shape_cast %3 : vector<1x1x128x16xbf16> to vector<128x16xbf16>
    %c0_4 = arith.constant 0 : index
    %c0_5 = arith.constant 0 : index
    %c0_6 = arith.constant 0 : index
    %c0_7 = arith.constant 0 : index
    %5 = vector.load %arg6[%c0_4, %c0_5, %c0_6, %c0_7] : memref<1x1x128x16xbf16, #tpu.memory_space<vmem>>, vector<1x1x128x16xbf16>
    %6 = vector.shape_cast %5 : vector<1x1x128x16xbf16> to vector<128x16xbf16>
    %cst = arith.constant dense<0.000000e+00> : vector<128x128xf32>
    %7 = tpu.matmul %4, %6, %cst {dimension_numbers = #tpu.dot_dimension_numbers<[1], [1], [0], [0], [0, 0, 1, 0], [], []>} : vector<128x16xbf16>, vector<128x16xbf16>, vector<128x128xf32> -> vector<128x128xf32>
    %c0_8 = arith.constant 0 : index
    %c0_9 = arith.constant 0 : index
    %c0_10 = arith.constant 0 : index
    %8 = vector.load %arg4[%c0_8, %c0_9, %c0_10] : memref<1x1x128xf32, #tpu.memory_space<vmem>>, vector<1x1x128xf32>
    %9 = vector.shape_cast %8 : vector<1x1x128xf32> to vector<1x128xf32>
    %c128_i32 = arith.constant 128 : i32
    %10 = arith.muli %arg1, %c128_i32 : i32
    %11 = tpu.iota {dimensions = array<i32: 0>} : vector<128x128xi32>
    %12 = vector.broadcast %10 : i32 to vector<128x128xi32>
    %13 = arith.addi %12, %11 : vector<128x128xi32>
    %14 = tpu.iota {dimensions = array<i32: 1>} : vector<128x128xi32>
    %15 = arith.cmpi sle, %14, %13 : vector<128x128xi32>
    %cst_11 = arith.constant 0xFF800000 : f32
    %16 = vector.broadcast %cst_11 : f32 to vector<128x128xf32>
    %17 = arith.select %15, %7, %16 : vector<128x128xi1>, vector<128x128xf32>
    %cst_12 = arith.constant 1.000000e+00 : f32
    %18 = vector.broadcast %cst_12 : f32 to vector<1x128xf32>
    %19 = arith.subf %18, %9 : vector<1x128xf32>
    %cst_13 = arith.constant -3.40282347E+38 : f32
    %20 = vector.broadcast %cst_13 : f32 to vector<1x128xf32>
    %21 = arith.mulf %19, %20 : vector<1x128xf32>
    %22 = vector.broadcast %21 : vector<1x128xf32> to vector<128x128xf32>
    %23 = arith.addf %17, %22 : vector<128x128xf32>
    %cst_14 = arith.constant dense<0xFF800000> : vector<128xf32>
    %24 = vector.multi_reduction <maximumf>, %23, %cst_14 [1] : vector<128x128xf32> to vector<128xf32>
    %25 = vector.shape_cast %24 : vector<128xf32> to vector<128x1xf32>
    %26 = vector.broadcast %25 : vector<128x1xf32> to vector<128x128xf32>
    %27 = arith.subf %23, %26 : vector<128x128xf32>
    %28 = math.exp %27 : vector<128x128xf32>
    %cst_15 = arith.constant dense<0.000000e+00> : vector<128xf32>
    %29 = vector.multi_reduction <add>, %28, %cst_15 [1] : vector<128x128xf32> to vector<128xf32>
    %30 = vector.shape_cast %29 : vector<128xf32> to vector<128x1xf32>
    %31 = tpu.reciprocal %30 {approx = true} : vector<128x1xf32> -> vector<128x1xf32>
    %32 = arith.truncf %28 : vector<128x128xf32> to vector<128x128xbf16>
    %c0_16 = arith.constant 0 : index
    %c0_17 = arith.constant 0 : index
    %c0_18 = arith.constant 0 : index
    %c0_19 = arith.constant 0 : index
    %33 = vector.load %arg7[%c0_16, %c0_17, %c0_18, %c0_19] : memref<1x1x128x16xbf16, #tpu.memory_space<vmem>>, vector<1x1x128x16xbf16>
    %34 = vector.shape_cast %33 : vector<1x1x128x16xbf16> to vector<128x16xbf16>
    %cst_20 = arith.constant dense<0.000000e+00> : vector<128x16xf32>
    %35 = tpu.matmul %32, %34, %cst_20 {dimension_numbers = #tpu.dot_dimension_numbers<[1], [0], [0], [1], [0, 0, 1, 1], [], []>} : vector<128x128xbf16>, vector<128x16xbf16>, vector<128x16xf32> -> vector<128x16xf32>
    %36 = vector.broadcast %31 : vector<128x1xf32> to vector<128x16xf32>
    %37 = arith.mulf %35, %36 : vector<128x16xf32>
    %38 = arith.truncf %37 : vector<128x16xf32> to vector<128x16xbf16>
    %c0_21 = arith.constant 0 : index
    %c0_22 = arith.constant 0 : index
    %39 = vector.load %arg17[%c0_21, %c0_22] : memref<128x128xf32, #tpu.memory_space<vmem>>, vector<128x128xf32>
    %c0_23 = arith.constant 0 : index
    %c0_24 = arith.constant 0 : index
    %c0_25 = arith.constant 0 : index
    %40 = vector.load %arg8[%c0_23, %c0_24, %c0_25] : memref<1x16x128xbf16, #tpu.memory_space<vmem>>, vector<1x16x128xbf16>
    %41 = vector.shape_cast %40 : vector<1x16x128xbf16> to vector<16x128xbf16>
    %cst_26 = arith.constant dense<0.000000e+00> : vector<128x128xf32>
    %42 = tpu.matmul %38, %41, %cst_26 {dimension_numbers = #tpu.dot_dimension_numbers<[1], [0], [0], [1], [0, 0, 1, 1], [], []>} : vector<128x16xbf16>, vector<16x128xbf16>, vector<128x128xf32> -> vector<128x128xf32>
    %43 = arith.addf %39, %42 : vector<128x128xf32>
    %c0_27 = arith.constant 0 : index
    %c0_28 = arith.constant 0 : index
    %44 = vector.load %arg17[%c0_27, %c0_28] : memref<128x128xf32, #tpu.memory_space<vmem>>, vector<128x128xf32>
    tpu.vector_store %arg17[%c0_27, %c0_28], %43 {strides = array<i32>} : memref<128x128xf32, #tpu.memory_space<vmem>>, vector<128x128xf32>,
    %c7_i32 = arith.constant 7 : i32
    %45 = arith.cmpi eq, %arg2, %c7_i32 : i32
    %46 = arith.extui %45 : i1 to i32
    %c0_i32_29 = arith.constant 0 : i32
    %47 = arith.cmpi ne, %46, %c0_i32_29 : i32
    scf.if %47 {
      %c0_30 = arith.constant 0 : index
      %c0_31 = arith.constant 0 : index
      %c0_32 = arith.constant 0 : index
      %48 = vector.load %arg3[%c0_30, %c0_31, %c0_32] : memref<1x128x128xf32, #tpu.memory_space<vmem>>, vector<1x128x128xf32>
      %49 = vector.shape_cast %48 : vector<1x128x128xf32> to vector<128x128xf32>
      %c0_33 = arith.constant 0 : index
      %c0_34 = arith.constant 0 : index
      %50 = vector.load %arg17[%c0_33, %c0_34] : memref<128x128xf32, #tpu.memory_space<vmem>>, vector<128x128xf32>
      %51 = arith.addf %49, %50 : vector<128x128xf32>
      %c0_35 = arith.constant 0 : index
      %c0_36 = arith.constant 0 : index
      %52 = vector.load %arg9[%c0_35, %c0_36] : memref<1x128xf32, #tpu.memory_space<vmem>>, vector<1x128xf32>
      %53 = vector.broadcast %52 : vector<1x128xf32> to vector<128x128xf32>
      %54 = arith.addf %51, %53 : vector<128x128xf32>
      %cst_37 = arith.constant dense<0.000000e+00> : vector<128xf32>
      %55 = vector.multi_reduction <add>, %54, %cst_37 [1] : vector<128x128xf32> to vector<128xf32>
      %56 = vector.shape_cast %55 : vector<128xf32> to vector<128x1xf32>
      %cst_38 = arith.constant 1.280000e+02 : f32
      %57 = vector.broadcast %cst_38 : f32 to vector<128x1xf32>
      %58 = arith.divf %56, %57 : vector<128x1xf32>
      %59 = vector.broadcast %58 : vector<128x1xf32> to vector<128x128xf32>
      %60 = arith.subf %54, %59 : vector<128x128xf32>
      %61 = arith.mulf %60, %60 : vector<128x128xf32>
      %cst_39 = arith.constant dense<0.000000e+00> : vector<128xf32>
      %62 = vector.multi_reduction <add>, %61, %cst_39 [1] : vector<128x128xf32> to vector<128xf32>
      %63 = vector.shape_cast %62 : vector<128xf32> to vector<128x1xf32>
      %cst_40 = arith.constant 1.280000e+02 : f32
      %64 = vector.broadcast %cst_40 : f32 to vector<128x1xf32>
      %65 = arith.divf %63, %64 : vector<128x1xf32>
      %66 = vector.broadcast %58 : vector<128x1xf32> to vector<128x128xf32>
      %67 = arith.subf %54, %66 : vector<128x128xf32>
      %cst_41 = arith.constant 9.99999974E-6 : f32
      %68 = vector.broadcast %cst_41 : f32 to vector<128x1xf32>
      %69 = arith.addf %65, %68 : vector<128x1xf32>
      %70 = math.rsqrt %69 : vector<128x1xf32>
      %71 = vector.broadcast %70 : vector<128x1xf32> to vector<128x128xf32>
      %72 = arith.mulf %67, %71 : vector<128x128xf32>
      %c0_42 = arith.constant 0 : index
      %c0_43 = arith.constant 0 : index
      %73 = vector.load %arg10[%c0_42, %c0_43] : memref<1x128xf32, #tpu.memory_space<vmem>>, vector<1x128xf32>
      %74 = vector.broadcast %73 : vector<1x128xf32> to vector<128x128xf32>
      %75 = arith.mulf %72, %74 : vector<128x128xf32>
      %c0_44 = arith.constant 0 : index
      %c0_45 = arith.constant 0 : index
      %76 = vector.load %arg11[%c0_44, %c0_45] : memref<1x128xf32, #tpu.memory_space<vmem>>, vector<1x128xf32>
      %77 = vector.broadcast %76 : vector<1x128xf32> to vector<128x128xf32>
      %78 = arith.addf %75, %77 : vector<128x128xf32>
      %79 = arith.truncf %78 : vector<128x128xf32> to vector<128x128xbf16>
      %c0_46 = arith.constant 0 : index
      %c0_47 = arith.constant 0 : index
      %80 = vector.load %arg12[%c0_46, %c0_47] : memref<128x512xbf16, #tpu.memory_space<vmem>>, vector<128x512xbf16>
      %cst_48 = arith.constant dense<0.000000e+00> : vector<128x512xf32>
      %81 = tpu.matmul %79, %80, %cst_48 {dimension_numbers = #tpu.dot_dimension_numbers<[1], [0], [0], [1], [0, 0, 1, 1], [], []>} : vector<128x128xbf16>, vector<128x512xbf16>, vector<128x512xf32> -> vector<128x512xf32>
      %c0_49 = arith.constant 0 : index
      %c0_50 = arith.constant 0 : index
      %82 = vector.load %arg13[%c0_49, %c0_50] : memref<1x512xf32, #tpu.memory_space<vmem>>, vector<1x512xf32>
      %83 = vector.broadcast %82 : vector<1x512xf32> to vector<128x512xf32>
      %84 = arith.addf %81, %83 : vector<128x512xf32>
      %cst_51 = arith.constant 5.000000e-01 : f32
      %85 = vector.broadcast %cst_51 : f32 to vector<128x512xf32>
      %86 = arith.mulf %85, %84 : vector<128x512xf32>
      %87 = arith.mulf %84, %84 : vector<128x512xf32>
      %88 = arith.mulf %87, %84 : vector<128x512xf32>
      %cst_52 = arith.constant 4.471500e-02 : f32
      %89 = vector.broadcast %cst_52 : f32 to vector<128x512xf32>
      %90 = arith.mulf %89, %88 : vector<128x512xf32>
      %91 = arith.addf %84, %90 : vector<128x512xf32>
      %cst_53 = arith.constant 0.797884583 : f32
      %92 = vector.broadcast %cst_53 : f32 to vector<128x512xf32>
      %93 = arith.mulf %92, %91 : vector<128x512xf32>
      %94 = math.tanh %93 : vector<128x512xf32>
      %cst_54 = arith.constant 1.000000e+00 : f32
      %95 = vector.broadcast %cst_54 : f32 to vector<128x512xf32>
      %96 = arith.addf %95, %94 : vector<128x512xf32>
      %97 = arith.mulf %86, %96 : vector<128x512xf32>
      %98 = arith.truncf %97 : vector<128x512xf32> to vector<128x512xbf16>
      %c0_55 = arith.constant 0 : index
      %c0_56 = arith.constant 0 : index
      %99 = vector.load %arg14[%c0_55, %c0_56] : memref<512x128xbf16, #tpu.memory_space<vmem>>, vector<512x128xbf16>
      %cst_57 = arith.constant dense<0.000000e+00> : vector<128x128xf32>
      %100 = tpu.matmul %98, %99, %cst_57 {dimension_numbers = #tpu.dot_dimension_numbers<[1], [0], [0], [1], [0, 0, 1, 1], [], []>} : vector<128x512xbf16>, vector<512x128xbf16>, vector<128x128xf32> -> vector<128x128xf32>
      %c0_58 = arith.constant 0 : index
      %c0_59 = arith.constant 0 : index
      %101 = vector.load %arg15[%c0_58, %c0_59] : memref<1x128xf32, #tpu.memory_space<vmem>>, vector<1x128xf32>
      %102 = vector.broadcast %101 : vector<1x128xf32> to vector<128x128xf32>
      %103 = arith.addf %100, %102 : vector<128x128xf32>
      %104 = arith.addf %54, %103 : vector<128x128xf32>
      %c0_60 = arith.constant 0 : index
      %c0_61 = arith.constant 0 : index
      %c0_62 = arith.constant 0 : index
      %105 = vector.load %arg16[%c0_60, %c0_61, %c0_62] : memref<1x128x128xf32, #tpu.memory_space<vmem>>, vector<1x128x128xf32>
      %106 = vector.shape_cast %105 : vector<1x128x128xf32> to vector<128x128xf32>
      %107 = vector.shape_cast %104 : vector<128x128xf32> to vector<1x128x128xf32>
      tpu.vector_store %arg16[%c0_60, %c0_61, %c0_62], %107 {strides = array<i32>} : memref<1x128x128xf32, #tpu.memory_space<vmem>>, vector<1x128x128xf32>,
    } else {
    }
    return
  }
  func.func @transform_0(%arg0: i32, %arg1: i32, %arg2: i32) -> (i32, i32, i32) {
    %c0_i32 = arith.constant 0 : i32
    %c0_i32_0 = arith.constant 0 : i32
    return %arg0, %arg1, %c0_i32 : i32, i32, i32
  }
  func.func @transform_1(%arg0: i32, %arg1: i32, %arg2: i32) -> (i32, i32, i32) {
    %c0_i32 = arith.constant 0 : i32
    %c0_i32_0 = arith.constant 0 : i32
    %c0_i32_1 = arith.constant 0 : i32
    return %arg0, %c0_i32, %c0_i32_0 : i32, i32, i32
  }
  func.func @transform_2(%arg0: i32, %arg1: i32, %arg2: i32) -> (i32, i32, i32, i32) {
    %c0_i32 = arith.constant 0 : i32
    %c0_i32_0 = arith.constant 0 : i32
    return %arg0, %arg2, %arg1, %c0_i32 : i32, i32, i32, i32
  }
  func.func @transform_3(%arg0: i32, %arg1: i32, %arg2: i32) -> (i32, i32, i32, i32) {
    %c0_i32 = arith.constant 0 : i32
    %c0_i32_0 = arith.constant 0 : i32
    %c0_i32_1 = arith.constant 0 : i32
    return %arg0, %arg2, %c0_i32, %c0_i32_0 : i32, i32, i32, i32
  }
  func.func @transform_4(%arg0: i32, %arg1: i32, %arg2: i32) -> (i32, i32, i32, i32) {
    %c0_i32 = arith.constant 0 : i32
    %c0_i32_0 = arith.constant 0 : i32
    %c0_i32_1 = arith.constant 0 : i32
    return %arg0, %arg2, %c0_i32, %c0_i32_0 : i32, i32, i32, i32
  }
  func.func @transform_5(%arg0: i32, %arg1: i32, %arg2: i32) -> (i32, i32, i32) {
    %c0_i32 = arith.constant 0 : i32
    %c0_i32_0 = arith.constant 0 : i32
    %c0_i32_1 = arith.constant 0 : i32
    return %arg2, %c0_i32, %c0_i32_0 : i32, i32, i32
  }
  func.func @transform_6(%arg0: i32, %arg1: i32, %arg2: i32) -> (i32, i32) {
    %c0_i32 = arith.constant 0 : i32
    %c0_i32_0 = arith.constant 0 : i32
    %c0_i32_1 = arith.constant 0 : i32
    return %c0_i32, %c0_i32_0 : i32, i32
  }
  func.func @transform_7(%arg0: i32, %arg1: i32, %arg2: i32) -> (i32, i32) {
    %c0_i32 = arith.constant 0 : i32
    %c0_i32_0 = arith.constant 0 : i32
    %c0_i32_1 = arith.constant 0 : i32
    return %c0_i32, %c0_i32_0 : i32, i32
  }
  func.func @transform_8(%arg0: i32, %arg1: i32, %arg2: i32) -> (i32, i32) {
    %c0_i32 = arith.constant 0 : i32
    %c0_i32_0 = arith.constant 0 : i32
    %c0_i32_1 = arith.constant 0 : i32
    return %c0_i32, %c0_i32_0 : i32, i32
  }
  func.func @transform_9(%arg0: i32, %arg1: i32, %arg2: i32) -> (i32, i32) {
    %c0_i32 = arith.constant 0 : i32
    %c0_i32_0 = arith.constant 0 : i32
    %c0_i32_1 = arith.constant 0 : i32
    return %c0_i32, %c0_i32_0 : i32, i32
  }
  func.func @transform_10(%arg0: i32, %arg1: i32, %arg2: i32) -> (i32, i32) {
    %c0_i32 = arith.constant 0 : i32
    %c0_i32_0 = arith.constant 0 : i32
    %c0_i32_1 = arith.constant 0 : i32
    return %c0_i32, %c0_i32_0 : i32, i32
  }
  func.func @transform_11(%arg0: i32, %arg1: i32, %arg2: i32) -> (i32, i32) {
    %c0_i32 = arith.constant 0 : i32
    %c0_i32_0 = arith.constant 0 : i32
    %c0_i32_1 = arith.constant 0 : i32
    return %c0_i32, %c0_i32_0 : i32, i32
  }
  func.func @transform_12(%arg0: i32, %arg1: i32, %arg2: i32) -> (i32, i32) {
    %c0_i32 = arith.constant 0 : i32
    %c0_i32_0 = arith.constant 0 : i32
    %c0_i32_1 = arith.constant 0 : i32
    return %c0_i32, %c0_i32_0 : i32, i32
  }
  func.func @transform_13(%arg0: i32, %arg1: i32, %arg2: i32) -> (i32, i32, i32) {
    %c0_i32 = arith.constant 0 : i32
    %c0_i32_0 = arith.constant 0 : i32
    return %arg0, %arg1, %c0_i32 : i32, i32, i32
  }
}

module attributes {stable_mosaic.version = 11 : i64} {
  func.func @_qkv_projection_kernel(%arg0: i32, %arg1: i32, %arg2: memref<1x128x128xf32, #tpu.memory_space<vmem>>, %arg3: memref<1x128xf32, #tpu.memory_space<vmem>>, %arg4: memref<1x128xf32, #tpu.memory_space<vmem>>, %arg5: memref<128x384xbf16, #tpu.memory_space<vmem>>, %arg6: memref<1x384xf32, #tpu.memory_space<vmem>>, %arg7: memref<1x8x128x16xbf16, #tpu.memory_space<vmem>>, %arg8: memref<1x8x128x16xbf16, #tpu.memory_space<vmem>>, %arg9: memref<1x8x128x16xbf16, #tpu.memory_space<vmem>>) attributes {dimension_semantics = [#tpu.dimension_semantics<parallel>, #tpu.dimension_semantics<parallel>], iteration_bounds = array<i64: 2, 1>, scalar_prefetch = 0 : i64, scratch_operands = 0 : i64, tpu.core_type = #tpu.core_type<tc>, window_params = [{transform_indices = @transform_0, window_bounds = array<i64: 1, 128, 128>}, {pipeline_mode = #tpu.pipeline_mode<synchronous>, transform_indices = @transform_1, window_bounds = array<i64: 1, 128>}, {pipeline_mode = #tpu.pipeline_mode<synchronous>, transform_indices = @transform_2, window_bounds = array<i64: 1, 128>}, {pipeline_mode = #tpu.pipeline_mode<synchronous>, transform_indices = @transform_3, window_bounds = array<i64: 128, 384>}, {pipeline_mode = #tpu.pipeline_mode<synchronous>, transform_indices = @transform_4, window_bounds = array<i64: 1, 384>}, {transform_indices = @transform_5, window_bounds = array<i64: 1, 8, 128, 16>}, {transform_indices = @transform_6, window_bounds = array<i64: 1, 8, 128, 16>}, {transform_indices = @transform_7, window_bounds = array<i64: 1, 8, 128, 16>}]} {
    %c0 = arith.constant 0 : index
    %c0_0 = arith.constant 0 : index
    %c0_1 = arith.constant 0 : index
    %0 = vector.load %arg2[%c0, %c0_0, %c0_1] : memref<1x128x128xf32, #tpu.memory_space<vmem>>, vector<1x128x128xf32>
    %1 = vector.shape_cast %0 : vector<1x128x128xf32> to vector<128x128xf32>
    %cst = arith.constant dense<0.000000e+00> : vector<128xf32>
    %2 = vector.multi_reduction <add>, %1, %cst [1] : vector<128x128xf32> to vector<128xf32>
    %3 = vector.shape_cast %2 : vector<128xf32> to vector<128x1xf32>
    %cst_2 = arith.constant 1.280000e+02 : f32
    %4 = vector.broadcast %cst_2 : f32 to vector<128x1xf32>
    %5 = arith.divf %3, %4 : vector<128x1xf32>
    %6 = vector.broadcast %5 : vector<128x1xf32> to vector<128x128xf32>
    %7 = arith.subf %1, %6 : vector<128x128xf32>
    %8 = arith.mulf %7, %7 : vector<128x128xf32>
    %cst_3 = arith.constant dense<0.000000e+00> : vector<128xf32>
    %9 = vector.multi_reduction <add>, %8, %cst_3 [1] : vector<128x128xf32> to vector<128xf32>
    %10 = vector.shape_cast %9 : vector<128xf32> to vector<128x1xf32>
    %cst_4 = arith.constant 1.280000e+02 : f32
    %11 = vector.broadcast %cst_4 : f32 to vector<128x1xf32>
    %12 = arith.divf %10, %11 : vector<128x1xf32>
    %13 = vector.broadcast %5 : vector<128x1xf32> to vector<128x128xf32>
    %14 = arith.subf %1, %13 : vector<128x128xf32>
    %cst_5 = arith.constant 9.99999974E-6 : f32
    %15 = vector.broadcast %cst_5 : f32 to vector<128x1xf32>
    %16 = arith.addf %12, %15 : vector<128x1xf32>
    %17 = math.rsqrt %16 : vector<128x1xf32>
    %18 = vector.broadcast %17 : vector<128x1xf32> to vector<128x128xf32>
    %19 = arith.mulf %14, %18 : vector<128x128xf32>
    %c0_6 = arith.constant 0 : index
    %c0_7 = arith.constant 0 : index
    %20 = vector.load %arg3[%c0_6, %c0_7] : memref<1x128xf32, #tpu.memory_space<vmem>>, vector<1x128xf32>
    %21 = vector.broadcast %20 : vector<1x128xf32> to vector<128x128xf32>
    %22 = arith.mulf %19, %21 : vector<128x128xf32>
    %c0_8 = arith.constant 0 : index
    %c0_9 = arith.constant 0 : index
    %23 = vector.load %arg4[%c0_8, %c0_9] : memref<1x128xf32, #tpu.memory_space<vmem>>, vector<1x128xf32>
    %24 = vector.broadcast %23 : vector<1x128xf32> to vector<128x128xf32>
    %25 = arith.addf %22, %24 : vector<128x128xf32>
    %26 = arith.truncf %25 : vector<128x128xf32> to vector<128x128xbf16>
    %c0_10 = arith.constant 0 : index
    %c0_11 = arith.constant 0 : index
    %27 = vector.load %arg5[%c0_10, %c0_11] : memref<128x384xbf16, #tpu.memory_space<vmem>>, vector<128x384xbf16>
    %cst_12 = arith.constant dense<0.000000e+00> : vector<128x384xf32>
    %28 = tpu.matmul %26, %27, %cst_12 {dimension_numbers = #tpu.dot_dimension_numbers<[1], [0], [0], [1], [0, 0, 1, 1], [], []>} : vector<128x128xbf16>, vector<128x384xbf16>, vector<128x384xf32> -> vector<128x384xf32>
    %c0_13 = arith.constant 0 : index
    %c0_14 = arith.constant 0 : index
    %29 = vector.load %arg6[%c0_13, %c0_14] : memref<1x384xf32, #tpu.memory_space<vmem>>, vector<1x384xf32>
    %30 = vector.broadcast %29 : vector<1x384xf32> to vector<128x384xf32>
    %31 = arith.addf %28, %30 : vector<128x384xf32>
    %32 = arith.truncf %31 : vector<128x384xf32> to vector<128x384xbf16>
    %33 = vector.extract_strided_slice %32 {offsets = [0, 0], sizes = [128, 16], strides = [1, 1]} : vector<128x384xbf16> to vector<128x16xbf16>
    %c0_15 = arith.constant 0 : index
    %c0_16 = arith.constant 0 : index
    %c0_17 = arith.constant 0 : index
    %c0_18 = arith.constant 0 : index
    %34 = vector.load %arg7[%c0_15, %c0_16, %c0_17, %c0_18] : memref<1x8x128x16xbf16, #tpu.memory_space<vmem>>, vector<1x1x128x16xbf16>
    %35 = vector.shape_cast %34 : vector<1x1x128x16xbf16> to vector<128x16xbf16>
    %36 = vector.shape_cast %33 : vector<128x16xbf16> to vector<1x1x128x16xbf16>
    tpu.vector_store %arg7[%c0_15, %c0_16, %c0_17, %c0_18], %36 {strides = array<i32>} : memref<1x8x128x16xbf16, #tpu.memory_space<vmem>>, vector<1x1x128x16xbf16>,
    %37 = vector.extract_strided_slice %32 {offsets = [0, 128], sizes = [128, 16], strides = [1, 1]} : vector<128x384xbf16> to vector<128x16xbf16>
    %c0_19 = arith.constant 0 : index
    %c0_20 = arith.constant 0 : index
    %c0_21 = arith.constant 0 : index
    %c0_22 = arith.constant 0 : index
    %38 = vector.load %arg8[%c0_19, %c0_20, %c0_21, %c0_22] : memref<1x8x128x16xbf16, #tpu.memory_space<vmem>>, vector<1x1x128x16xbf16>
    %39 = vector.shape_cast %38 : vector<1x1x128x16xbf16> to vector<128x16xbf16>
    %40 = vector.shape_cast %37 : vector<128x16xbf16> to vector<1x1x128x16xbf16>
    tpu.vector_store %arg8[%c0_19, %c0_20, %c0_21, %c0_22], %40 {strides = array<i32>} : memref<1x8x128x16xbf16, #tpu.memory_space<vmem>>, vector<1x1x128x16xbf16>,
    %41 = vector.extract_strided_slice %32 {offsets = [0, 256], sizes = [128, 16], strides = [1, 1]} : vector<128x384xbf16> to vector<128x16xbf16>
    %c0_23 = arith.constant 0 : index
    %c0_24 = arith.constant 0 : index
    %c0_25 = arith.constant 0 : index
    %c0_26 = arith.constant 0 : index
    %42 = vector.load %arg9[%c0_23, %c0_24, %c0_25, %c0_26] : memref<1x8x128x16xbf16, #tpu.memory_space<vmem>>, vector<1x1x128x16xbf16>
    %43 = vector.shape_cast %42 : vector<1x1x128x16xbf16> to vector<128x16xbf16>
    %44 = vector.shape_cast %41 : vector<128x16xbf16> to vector<1x1x128x16xbf16>
    tpu.vector_store %arg9[%c0_23, %c0_24, %c0_25, %c0_26], %44 {strides = array<i32>} : memref<1x8x128x16xbf16, #tpu.memory_space<vmem>>, vector<1x1x128x16xbf16>,
    %45 = vector.extract_strided_slice %32 {offsets = [0, 16], sizes = [128, 16], strides = [1, 1]} : vector<128x384xbf16> to vector<128x16xbf16>
    %c0_27 = arith.constant 0 : index
    %c1 = arith.constant 1 : index
    %c0_28 = arith.constant 0 : index
    %c0_29 = arith.constant 0 : index
    %46 = vector.load %arg7[%c0_27, %c1, %c0_28, %c0_29] : memref<1x8x128x16xbf16, #tpu.memory_space<vmem>>, vector<1x1x128x16xbf16>
    %47 = vector.shape_cast %46 : vector<1x1x128x16xbf16> to vector<128x16xbf16>
    %48 = vector.shape_cast %45 : vector<128x16xbf16> to vector<1x1x128x16xbf16>
    tpu.vector_store %arg7[%c0_27, %c1, %c0_28, %c0_29], %48 {strides = array<i32>} : memref<1x8x128x16xbf16, #tpu.memory_space<vmem>>, vector<1x1x128x16xbf16>,
    %49 = vector.extract_strided_slice %32 {offsets = [0, 144], sizes = [128, 16], strides = [1, 1]} : vector<128x384xbf16> to vector<128x16xbf16>
    %c0_30 = arith.constant 0 : index
    %c1_31 = arith.constant 1 : index
    %c0_32 = arith.constant 0 : index
    %c0_33 = arith.constant 0 : index
    %50 = vector.load %arg8[%c0_30, %c1_31, %c0_32, %c0_33] : memref<1x8x128x16xbf16, #tpu.memory_space<vmem>>, vector<1x1x128x16xbf16>
    %51 = vector.shape_cast %50 : vector<1x1x128x16xbf16> to vector<128x16xbf16>
    %52 = vector.shape_cast %49 : vector<128x16xbf16> to vector<1x1x128x16xbf16>
    tpu.vector_store %arg8[%c0_30, %c1_31, %c0_32, %c0_33], %52 {strides = array<i32>} : memref<1x8x128x16xbf16, #tpu.memory_space<vmem>>, vector<1x1x128x16xbf16>,
    %53 = vector.extract_strided_slice %32 {offsets = [0, 272], sizes = [128, 16], strides = [1, 1]} : vector<128x384xbf16> to vector<128x16xbf16>
    %c0_34 = arith.constant 0 : index
    %c1_35 = arith.constant 1 : index
    %c0_36 = arith.constant 0 : index
    %c0_37 = arith.constant 0 : index
    %54 = vector.load %arg9[%c0_34, %c1_35, %c0_36, %c0_37] : memref<1x8x128x16xbf16, #tpu.memory_space<vmem>>, vector<1x1x128x16xbf16>
    %55 = vector.shape_cast %54 : vector<1x1x128x16xbf16> to vector<128x16xbf16>
    %56 = vector.shape_cast %53 : vector<128x16xbf16> to vector<1x1x128x16xbf16>
    tpu.vector_store %arg9[%c0_34, %c1_35, %c0_36, %c0_37], %56 {strides = array<i32>} : memref<1x8x128x16xbf16, #tpu.memory_space<vmem>>, vector<1x1x128x16xbf16>,
    %57 = vector.extract_strided_slice %32 {offsets = [0, 32], sizes = [128, 16], strides = [1, 1]} : vector<128x384xbf16> to vector<128x16xbf16>
    %c0_38 = arith.constant 0 : index
    %c2 = arith.constant 2 : index
    %c0_39 = arith.constant 0 : index
    %c0_40 = arith.constant 0 : index
    %58 = vector.load %arg7[%c0_38, %c2, %c0_39, %c0_40] : memref<1x8x128x16xbf16, #tpu.memory_space<vmem>>, vector<1x1x128x16xbf16>
    %59 = vector.shape_cast %58 : vector<1x1x128x16xbf16> to vector<128x16xbf16>
    %60 = vector.shape_cast %57 : vector<128x16xbf16> to vector<1x1x128x16xbf16>
    tpu.vector_store %arg7[%c0_38, %c2, %c0_39, %c0_40], %60 {strides = array<i32>} : memref<1x8x128x16xbf16, #tpu.memory_space<vmem>>, vector<1x1x128x16xbf16>,
    %61 = vector.extract_strided_slice %32 {offsets = [0, 160], sizes = [128, 16], strides = [1, 1]} : vector<128x384xbf16> to vector<128x16xbf16>
    %c0_41 = arith.constant 0 : index
    %c2_42 = arith.constant 2 : index
    %c0_43 = arith.constant 0 : index
    %c0_44 = arith.constant 0 : index
    %62 = vector.load %arg8[%c0_41, %c2_42, %c0_43, %c0_44] : memref<1x8x128x16xbf16, #tpu.memory_space<vmem>>, vector<1x1x128x16xbf16>
    %63 = vector.shape_cast %62 : vector<1x1x128x16xbf16> to vector<128x16xbf16>
    %64 = vector.shape_cast %61 : vector<128x16xbf16> to vector<1x1x128x16xbf16>
    tpu.vector_store %arg8[%c0_41, %c2_42, %c0_43, %c0_44], %64 {strides = array<i32>} : memref<1x8x128x16xbf16, #tpu.memory_space<vmem>>, vector<1x1x128x16xbf16>,
    %65 = vector.extract_strided_slice %32 {offsets = [0, 288], sizes = [128, 16], strides = [1, 1]} : vector<128x384xbf16> to vector<128x16xbf16>
    %c0_45 = arith.constant 0 : index
    %c2_46 = arith.constant 2 : index
    %c0_47 = arith.constant 0 : index
    %c0_48 = arith.constant 0 : index
    %66 = vector.load %arg9[%c0_45, %c2_46, %c0_47, %c0_48] : memref<1x8x128x16xbf16, #tpu.memory_space<vmem>>, vector<1x1x128x16xbf16>
    %67 = vector.shape_cast %66 : vector<1x1x128x16xbf16> to vector<128x16xbf16>
    %68 = vector.shape_cast %65 : vector<128x16xbf16> to vector<1x1x128x16xbf16>
    tpu.vector_store %arg9[%c0_45, %c2_46, %c0_47, %c0_48], %68 {strides = array<i32>} : memref<1x8x128x16xbf16, #tpu.memory_space<vmem>>, vector<1x1x128x16xbf16>,
    %69 = vector.extract_strided_slice %32 {offsets = [0, 48], sizes = [128, 16], strides = [1, 1]} : vector<128x384xbf16> to vector<128x16xbf16>
    %c0_49 = arith.constant 0 : index
    %c3 = arith.constant 3 : index
    %c0_50 = arith.constant 0 : index
    %c0_51 = arith.constant 0 : index
    %70 = vector.load %arg7[%c0_49, %c3, %c0_50, %c0_51] : memref<1x8x128x16xbf16, #tpu.memory_space<vmem>>, vector<1x1x128x16xbf16>
    %71 = vector.shape_cast %70 : vector<1x1x128x16xbf16> to vector<128x16xbf16>
    %72 = vector.shape_cast %69 : vector<128x16xbf16> to vector<1x1x128x16xbf16>
    tpu.vector_store %arg7[%c0_49, %c3, %c0_50, %c0_51], %72 {strides = array<i32>} : memref<1x8x128x16xbf16, #tpu.memory_space<vmem>>, vector<1x1x128x16xbf16>,
    %73 = vector.extract_strided_slice %32 {offsets = [0, 176], sizes = [128, 16], strides = [1, 1]} : vector<128x384xbf16> to vector<128x16xbf16>
    %c0_52 = arith.constant 0 : index
    %c3_53 = arith.constant 3 : index
    %c0_54 = arith.constant 0 : index
    %c0_55 = arith.constant 0 : index
    %74 = vector.load %arg8[%c0_52, %c3_53, %c0_54, %c0_55] : memref<1x8x128x16xbf16, #tpu.memory_space<vmem>>, vector<1x1x128x16xbf16>
    %75 = vector.shape_cast %74 : vector<1x1x128x16xbf16> to vector<128x16xbf16>
    %76 = vector.shape_cast %73 : vector<128x16xbf16> to vector<1x1x128x16xbf16>
    tpu.vector_store %arg8[%c0_52, %c3_53, %c0_54, %c0_55], %76 {strides = array<i32>} : memref<1x8x128x16xbf16, #tpu.memory_space<vmem>>, vector<1x1x128x16xbf16>,
    %77 = vector.extract_strided_slice %32 {offsets = [0, 304], sizes = [128, 16], strides = [1, 1]} : vector<128x384xbf16> to vector<128x16xbf16>
    %c0_56 = arith.constant 0 : index
    %c3_57 = arith.constant 3 : index
    %c0_58 = arith.constant 0 : index
    %c0_59 = arith.constant 0 : index
    %78 = vector.load %arg9[%c0_56, %c3_57, %c0_58, %c0_59] : memref<1x8x128x16xbf16, #tpu.memory_space<vmem>>, vector<1x1x128x16xbf16>
    %79 = vector.shape_cast %78 : vector<1x1x128x16xbf16> to vector<128x16xbf16>
    %80 = vector.shape_cast %77 : vector<128x16xbf16> to vector<1x1x128x16xbf16>
    tpu.vector_store %arg9[%c0_56, %c3_57, %c0_58, %c0_59], %80 {strides = array<i32>} : memref<1x8x128x16xbf16, #tpu.memory_space<vmem>>, vector<1x1x128x16xbf16>,
    %81 = vector.extract_strided_slice %32 {offsets = [0, 64], sizes = [128, 16], strides = [1, 1]} : vector<128x384xbf16> to vector<128x16xbf16>
    %c0_60 = arith.constant 0 : index
    %c4 = arith.constant 4 : index
    %c0_61 = arith.constant 0 : index
    %c0_62 = arith.constant 0 : index
    %82 = vector.load %arg7[%c0_60, %c4, %c0_61, %c0_62] : memref<1x8x128x16xbf16, #tpu.memory_space<vmem>>, vector<1x1x128x16xbf16>
    %83 = vector.shape_cast %82 : vector<1x1x128x16xbf16> to vector<128x16xbf16>
    %84 = vector.shape_cast %81 : vector<128x16xbf16> to vector<1x1x128x16xbf16>
    tpu.vector_store %arg7[%c0_60, %c4, %c0_61, %c0_62], %84 {strides = array<i32>} : memref<1x8x128x16xbf16, #tpu.memory_space<vmem>>, vector<1x1x128x16xbf16>,
    %85 = vector.extract_strided_slice %32 {offsets = [0, 192], sizes = [128, 16], strides = [1, 1]} : vector<128x384xbf16> to vector<128x16xbf16>
    %c0_63 = arith.constant 0 : index
    %c4_64 = arith.constant 4 : index
    %c0_65 = arith.constant 0 : index
    %c0_66 = arith.constant 0 : index
    %86 = vector.load %arg8[%c0_63, %c4_64, %c0_65, %c0_66] : memref<1x8x128x16xbf16, #tpu.memory_space<vmem>>, vector<1x1x128x16xbf16>
    %87 = vector.shape_cast %86 : vector<1x1x128x16xbf16> to vector<128x16xbf16>
    %88 = vector.shape_cast %85 : vector<128x16xbf16> to vector<1x1x128x16xbf16>
    tpu.vector_store %arg8[%c0_63, %c4_64, %c0_65, %c0_66], %88 {strides = array<i32>} : memref<1x8x128x16xbf16, #tpu.memory_space<vmem>>, vector<1x1x128x16xbf16>,
    %89 = vector.extract_strided_slice %32 {offsets = [0, 320], sizes = [128, 16], strides = [1, 1]} : vector<128x384xbf16> to vector<128x16xbf16>
    %c0_67 = arith.constant 0 : index
    %c4_68 = arith.constant 4 : index
    %c0_69 = arith.constant 0 : index
    %c0_70 = arith.constant 0 : index
    %90 = vector.load %arg9[%c0_67, %c4_68, %c0_69, %c0_70] : memref<1x8x128x16xbf16, #tpu.memory_space<vmem>>, vector<1x1x128x16xbf16>
    %91 = vector.shape_cast %90 : vector<1x1x128x16xbf16> to vector<128x16xbf16>
    %92 = vector.shape_cast %89 : vector<128x16xbf16> to vector<1x1x128x16xbf16>
    tpu.vector_store %arg9[%c0_67, %c4_68, %c0_69, %c0_70], %92 {strides = array<i32>} : memref<1x8x128x16xbf16, #tpu.memory_space<vmem>>, vector<1x1x128x16xbf16>,
    %93 = vector.extract_strided_slice %32 {offsets = [0, 80], sizes = [128, 16], strides = [1, 1]} : vector<128x384xbf16> to vector<128x16xbf16>
    %c0_71 = arith.constant 0 : index
    %c5 = arith.constant 5 : index
    %c0_72 = arith.constant 0 : index
    %c0_73 = arith.constant 0 : index
    %94 = vector.load %arg7[%c0_71, %c5, %c0_72, %c0_73] : memref<1x8x128x16xbf16, #tpu.memory_space<vmem>>, vector<1x1x128x16xbf16>
    %95 = vector.shape_cast %94 : vector<1x1x128x16xbf16> to vector<128x16xbf16>
    %96 = vector.shape_cast %93 : vector<128x16xbf16> to vector<1x1x128x16xbf16>
    tpu.vector_store %arg7[%c0_71, %c5, %c0_72, %c0_73], %96 {strides = array<i32>} : memref<1x8x128x16xbf16, #tpu.memory_space<vmem>>, vector<1x1x128x16xbf16>,
    %97 = vector.extract_strided_slice %32 {offsets = [0, 208], sizes = [128, 16], strides = [1, 1]} : vector<128x384xbf16> to vector<128x16xbf16>
    %c0_74 = arith.constant 0 : index
    %c5_75 = arith.constant 5 : index
    %c0_76 = arith.constant 0 : index
    %c0_77 = arith.constant 0 : index
    %98 = vector.load %arg8[%c0_74, %c5_75, %c0_76, %c0_77] : memref<1x8x128x16xbf16, #tpu.memory_space<vmem>>, vector<1x1x128x16xbf16>
    %99 = vector.shape_cast %98 : vector<1x1x128x16xbf16> to vector<128x16xbf16>
    %100 = vector.shape_cast %97 : vector<128x16xbf16> to vector<1x1x128x16xbf16>
    tpu.vector_store %arg8[%c0_74, %c5_75, %c0_76, %c0_77], %100 {strides = array<i32>} : memref<1x8x128x16xbf16, #tpu.memory_space<vmem>>, vector<1x1x128x16xbf16>,
    %101 = vector.extract_strided_slice %32 {offsets = [0, 336], sizes = [128, 16], strides = [1, 1]} : vector<128x384xbf16> to vector<128x16xbf16>
    %c0_78 = arith.constant 0 : index
    %c5_79 = arith.constant 5 : index
    %c0_80 = arith.constant 0 : index
    %c0_81 = arith.constant 0 : index
    %102 = vector.load %arg9[%c0_78, %c5_79, %c0_80, %c0_81] : memref<1x8x128x16xbf16, #tpu.memory_space<vmem>>, vector<1x1x128x16xbf16>
    %103 = vector.shape_cast %102 : vector<1x1x128x16xbf16> to vector<128x16xbf16>
    %104 = vector.shape_cast %101 : vector<128x16xbf16> to vector<1x1x128x16xbf16>
    tpu.vector_store %arg9[%c0_78, %c5_79, %c0_80, %c0_81], %104 {strides = array<i32>} : memref<1x8x128x16xbf16, #tpu.memory_space<vmem>>, vector<1x1x128x16xbf16>,
    %105 = vector.extract_strided_slice %32 {offsets = [0, 96], sizes = [128, 16], strides = [1, 1]} : vector<128x384xbf16> to vector<128x16xbf16>
    %c0_82 = arith.constant 0 : index
    %c6 = arith.constant 6 : index
    %c0_83 = arith.constant 0 : index
    %c0_84 = arith.constant 0 : index
    %106 = vector.load %arg7[%c0_82, %c6, %c0_83, %c0_84] : memref<1x8x128x16xbf16, #tpu.memory_space<vmem>>, vector<1x1x128x16xbf16>
    %107 = vector.shape_cast %106 : vector<1x1x128x16xbf16> to vector<128x16xbf16>
    %108 = vector.shape_cast %105 : vector<128x16xbf16> to vector<1x1x128x16xbf16>
    tpu.vector_store %arg7[%c0_82, %c6, %c0_83, %c0_84], %108 {strides = array<i32>} : memref<1x8x128x16xbf16, #tpu.memory_space<vmem>>, vector<1x1x128x16xbf16>,
    %109 = vector.extract_strided_slice %32 {offsets = [0, 224], sizes = [128, 16], strides = [1, 1]} : vector<128x384xbf16> to vector<128x16xbf16>
    %c0_85 = arith.constant 0 : index
    %c6_86 = arith.constant 6 : index
    %c0_87 = arith.constant 0 : index
    %c0_88 = arith.constant 0 : index
    %110 = vector.load %arg8[%c0_85, %c6_86, %c0_87, %c0_88] : memref<1x8x128x16xbf16, #tpu.memory_space<vmem>>, vector<1x1x128x16xbf16>
    %111 = vector.shape_cast %110 : vector<1x1x128x16xbf16> to vector<128x16xbf16>
    %112 = vector.shape_cast %109 : vector<128x16xbf16> to vector<1x1x128x16xbf16>
    tpu.vector_store %arg8[%c0_85, %c6_86, %c0_87, %c0_88], %112 {strides = array<i32>} : memref<1x8x128x16xbf16, #tpu.memory_space<vmem>>, vector<1x1x128x16xbf16>,
    %113 = vector.extract_strided_slice %32 {offsets = [0, 352], sizes = [128, 16], strides = [1, 1]} : vector<128x384xbf16> to vector<128x16xbf16>
    %c0_89 = arith.constant 0 : index
    %c6_90 = arith.constant 6 : index
    %c0_91 = arith.constant 0 : index
    %c0_92 = arith.constant 0 : index
    %114 = vector.load %arg9[%c0_89, %c6_90, %c0_91, %c0_92] : memref<1x8x128x16xbf16, #tpu.memory_space<vmem>>, vector<1x1x128x16xbf16>
    %115 = vector.shape_cast %114 : vector<1x1x128x16xbf16> to vector<128x16xbf16>
    %116 = vector.shape_cast %113 : vector<128x16xbf16> to vector<1x1x128x16xbf16>
    tpu.vector_store %arg9[%c0_89, %c6_90, %c0_91, %c0_92], %116 {strides = array<i32>} : memref<1x8x128x16xbf16, #tpu.memory_space<vmem>>, vector<1x1x128x16xbf16>,
    %117 = vector.extract_strided_slice %32 {offsets = [0, 112], sizes = [128, 16], strides = [1, 1]} : vector<128x384xbf16> to vector<128x16xbf16>
    %c0_93 = arith.constant 0 : index
    %c7 = arith.constant 7 : index
    %c0_94 = arith.constant 0 : index
    %c0_95 = arith.constant 0 : index
    %118 = vector.load %arg7[%c0_93, %c7, %c0_94, %c0_95] : memref<1x8x128x16xbf16, #tpu.memory_space<vmem>>, vector<1x1x128x16xbf16>
    %119 = vector.shape_cast %118 : vector<1x1x128x16xbf16> to vector<128x16xbf16>
    %120 = vector.shape_cast %117 : vector<128x16xbf16> to vector<1x1x128x16xbf16>
    tpu.vector_store %arg7[%c0_93, %c7, %c0_94, %c0_95], %120 {strides = array<i32>} : memref<1x8x128x16xbf16, #tpu.memory_space<vmem>>, vector<1x1x128x16xbf16>,
    %121 = vector.extract_strided_slice %32 {offsets = [0, 240], sizes = [128, 16], strides = [1, 1]} : vector<128x384xbf16> to vector<128x16xbf16>
    %c0_96 = arith.constant 0 : index
    %c7_97 = arith.constant 7 : index
    %c0_98 = arith.constant 0 : index
    %c0_99 = arith.constant 0 : index
    %122 = vector.load %arg8[%c0_96, %c7_97, %c0_98, %c0_99] : memref<1x8x128x16xbf16, #tpu.memory_space<vmem>>, vector<1x1x128x16xbf16>
    %123 = vector.shape_cast %122 : vector<1x1x128x16xbf16> to vector<128x16xbf16>
    %124 = vector.shape_cast %121 : vector<128x16xbf16> to vector<1x1x128x16xbf16>
    tpu.vector_store %arg8[%c0_96, %c7_97, %c0_98, %c0_99], %124 {strides = array<i32>} : memref<1x8x128x16xbf16, #tpu.memory_space<vmem>>, vector<1x1x128x16xbf16>,
    %125 = vector.extract_strided_slice %32 {offsets = [0, 368], sizes = [128, 16], strides = [1, 1]} : vector<128x384xbf16> to vector<128x16xbf16>
    %c0_100 = arith.constant 0 : index
    %c7_101 = arith.constant 7 : index
    %c0_102 = arith.constant 0 : index
    %c0_103 = arith.constant 0 : index
    %126 = vector.load %arg9[%c0_100, %c7_101, %c0_102, %c0_103] : memref<1x8x128x16xbf16, #tpu.memory_space<vmem>>, vector<1x1x128x16xbf16>
    %127 = vector.shape_cast %126 : vector<1x1x128x16xbf16> to vector<128x16xbf16>
    %128 = vector.shape_cast %125 : vector<128x16xbf16> to vector<1x1x128x16xbf16>
    tpu.vector_store %arg9[%c0_100, %c7_101, %c0_102, %c0_103], %128 {strides = array<i32>} : memref<1x8x128x16xbf16, #tpu.memory_space<vmem>>, vector<1x1x128x16xbf16>,
    return
  }
  func.func @transform_0(%arg0: i32, %arg1: i32) -> (i32, i32, i32) {
    %c0_i32 = arith.constant 0 : i32
    %c0_i32_0 = arith.constant 0 : i32
    return %arg0, %arg1, %c0_i32 : i32, i32, i32
  }
  func.func @transform_1(%arg0: i32, %arg1: i32) -> (i32, i32) {
    %c0_i32 = arith.constant 0 : i32
    %c0_i32_0 = arith.constant 0 : i32
    %c0_i32_1 = arith.constant 0 : i32
    return %c0_i32, %c0_i32_0 : i32, i32
  }
  func.func @transform_2(%arg0: i32, %arg1: i32) -> (i32, i32) {
    %c0_i32 = arith.constant 0 : i32
    %c0_i32_0 = arith.constant 0 : i32
    %c0_i32_1 = arith.constant 0 : i32
    return %c0_i32, %c0_i32_0 : i32, i32
  }
  func.func @transform_3(%arg0: i32, %arg1: i32) -> (i32, i32) {
    %c0_i32 = arith.constant 0 : i32
    %c0_i32_0 = arith.constant 0 : i32
    %c0_i32_1 = arith.constant 0 : i32
    return %c0_i32, %c0_i32_0 : i32, i32
  }
  func.func @transform_4(%arg0: i32, %arg1: i32) -> (i32, i32) {
    %c0_i32 = arith.constant 0 : i32
    %c0_i32_0 = arith.constant 0 : i32
    %c0_i32_1 = arith.constant 0 : i32
    return %c0_i32, %c0_i32_0 : i32, i32
  }
  func.func @transform_5(%arg0: i32, %arg1: i32) -> (i32, i32, i32, i32) {
    %c0_i32 = arith.constant 0 : i32
    %c0_i32_0 = arith.constant 0 : i32
    %c0_i32_1 = arith.constant 0 : i32
    return %arg0, %c0_i32, %arg1, %c0_i32_0 : i32, i32, i32, i32
  }
  func.func @transform_6(%arg0: i32, %arg1: i32) -> (i32, i32, i32, i32) {
    %c0_i32 = arith.constant 0 : i32
    %c0_i32_0 = arith.constant 0 : i32
    %c0_i32_1 = arith.constant 0 : i32
    return %arg0, %c0_i32, %arg1, %c0_i32_0 : i32, i32, i32, i32
  }
  func.func @transform_7(%arg0: i32, %arg1: i32) -> (i32, i32, i32, i32) {
    %c0_i32 = arith.constant 0 : i32
    %c0_i32_0 = arith.constant 0 : i32
    %c0_i32_1 = arith.constant 0 : i32
    return %arg0, %c0_i32, %arg1, %c0_i32_0 : i32, i32, i32, i32
  }
}

</mosaic_0001>

<llo_original>
// kernel: run.3
$region0: #{run.3}
  #allocation0 [shape = 'u32[]', space=smem, size = 0x4, offset = 0x4, fixed_abs, tag = 'smem constant byte address 0x4 - core index']
  #allocation1 [shape = 'u32[144,128]{1,0:T(1,128)}', space=vmem, size = 0x12000, scoped, tag = 'internal scratch']
  #allocation2 [shape = 'f32[128,128]{1,0:T(8,128)}', space=vmem, size = 0x10000, scoped, tag = 'scratch operand']
  %s0 = inlined_call_operand.vmem [shape: f32[2,128,128], index: 0, kind: input, shape index: {}]
  %s1 = inlined_call_operand.vmem [shape: f32[2,1,128], index: 1, kind: input, shape index: {}]
  %s2 = inlined_call_operand.vmem [shape: bf16[2,8,128,16], index: 2, kind: input, shape index: {}]
  %s3 = inlined_call_operand.vmem [shape: bf16[2,8,128,16], index: 3, kind: input, shape index: {}]
  %s4 = inlined_call_operand.vmem [shape: bf16[2,8,128,16], index: 4, kind: input, shape index: {}]
  %s5 = inlined_call_operand.vmem [shape: bf16[8,16,128], index: 5, kind: input, shape index: {}]
  %s6 = inlined_call_operand.vmem [shape: f32[1,128], index: 6, kind: input, shape index: {}]
  %s7 = inlined_call_operand.vmem [shape: f32[1,128], index: 7, kind: input, shape index: {}]
  %s8 = inlined_call_operand.vmem [shape: f32[1,128], index: 8, kind: input, shape index: {}]
  %s9 = inlined_call_operand.vmem [shape: bf16[128,512], index: 9, kind: input, shape index: {}]
  %s10 = inlined_call_operand.vmem [shape: f32[1,512], index: 10, kind: input, shape index: {}]
  %s11 = inlined_call_operand.vmem [shape: bf16[512,128], index: 11, kind: input, shape index: {}]
  %s12 = inlined_call_operand.vmem [shape: f32[1,128], index: 12, kind: input, shape index: {}]
  %s13 = inlined_call_operand.vmem [shape: f32[2,128,128], index: 13, kind: output, shape index: {}]
  %s14 = sld [smem:[#allocation0]]
  $region93: #{run.3} parent=0
    _
  %s16 = ssub.s32 1, %s14
  %s17 = scalar_select 0, %s16, %s14
  loop: start=0, step=1, limit=18
  $region2: #{run.3} parent=0 // loop_pre_header
    _
  $region3: #{run.3} parent=0 // loop_header
    %s19 = sphi 0, %s23
    %p20 = scmp.ge.s32.totalorder %s19, 18
    %s26 = sphi 0, %s45
    %s27 = sphi 0, %s41
    %s28 = sphi 0, %s37
    %s29 = sphi 0, %s26
    %s30 = sphi 0, %s27
    %s31 = sphi 0, %s28
    %s32 = sphi 0, %s29
    %s33 = sphi 0, %s30
    %s34 = sphi 0, %s31
    %s50 = sphi 0, %s52
    %s53 = sphi 0, %s50
    %s54 = sphi 0, %s53
    %s70 = sphi 0, %s54
    %s76 = sphi 0, %s78
    %s79 = sphi 0, %s76
    %s80 = sphi 0, %s79
    %s96 = sphi 0, %s80
    %s106 = sphi 0, %s108
    %s109 = sphi 0, %s106
    %s110 = sphi 0, %s109
    %s126 = sphi 0, %s110
    %s134 = sphi 0, %s136
    %s137 = sphi 0, %s134
    %s138 = sphi 0, %s137
    %s154 = sphi 0, %s138
    %s162 = sphi 0, %s164
    %s165 = sphi 0, %s162
    %s166 = sphi 0, %s165
    %s182 = sphi 0, %s166
    %s188 = sphi 0, %s190
    %s191 = sphi 0, %s188
    %s192 = sphi 0, %s191
    %s208 = sphi 0, %s192
    %s212 = sphi 0, %s212
    %s214 = sphi 0, %s212
    %s215 = sphi 0, %s214
    %s229 = sphi 0, %s215
    %s233 = sphi 0, %s233
    %s235 = sphi 0, %s233
    %s236 = sphi 0, %s235
    %s250 = sphi 0, %s236
    %s254 = sphi 0, %s254
    %s256 = sphi 0, %s254
    %s257 = sphi 0, %s256
    %s271 = sphi 0, %s257
    %s275 = sphi 0, %s275
    %s277 = sphi 0, %s275
    %s278 = sphi 0, %s277
    %s292 = sphi 0, %s278
    %s296 = sphi 0, %s296
    %s298 = sphi 0, %s296
    %s299 = sphi 0, %s298
    %s313 = sphi 0, %s299
    %s317 = sphi 0, %s317
    %s319 = sphi 0, %s317
    %s320 = sphi 0, %s319
    %s334 = sphi 0, %s320
    %s338 = sphi 0, %s338
    %s340 = sphi 0, %s338
    %s341 = sphi 0, %s340
    %s355 = sphi 0, %s341
    %s363 = sphi 0, %s365
    %s366 = sphi 0, %s363
    %s367 = sphi 0, %s366
    %s383 = sphi 0, %s367
  $region4: #{run.3} parent=0 // loop_header_branch
    %22 = sbr.rel (%p20) target = $region8
  $region5: #{run.3} parent=0 // loop_body
    %s24 = ssub.s32 %s19, 1
    %s25 = ssub.s32 %s19, 2
    %s35 = sadd.s32 1, %s28
    %p36 = scmp.ge.s32.totalorder %s35, 8
    %s37 = scalar_select %p36, 0, %s35
    %s38 = sadd.s32 1, %s27
    %s39 = scalar_select %p36, %s38, %s27
    %p40 = scmp.ge.s32.totalorder %s39, 1
    %s41 = scalar_select %p40, 0, %s39
    %s42 = sadd.s32 1, %s26
    %s43 = scalar_select %p40, %s42, %s26
    %p44 = scmp.ge.s32.totalorder %s43, 2
    %s45 = scalar_select %p44, 0, %s43
    %s46 = ssub.s32 %s26, %s45
    %s47 = ssub.s32 %s27, %s41
    %s48 = sor.u32 %s46, %s47
    %p49 = scmp.eq.s32.totalorder %s48, 0
    %s51 = sadd.s32 %s50, 1
    %s52 = scalar_select %p49, %s50, %s51
    %p55 = pneg %p49
    %p56 = scmp.eq.s32.totalorder %s19, 15
    %p57 = por %p55, %p56
    %p58 = scmp.ne.s32.totalorder %s50, %s53
    %p59 = scmp.eq.s32.totalorder %s19, 0
    %p60 = por %p58, %p59
    %p61 = scmp.ne.s32.totalorder %s50, %s53
    %p62 = scmp.eq.s32.totalorder %s24, 15
    %p63 = por %p61, %p62
    %p64 = scmp.ne.s32.totalorder %s53, %s54
    %p65 = scmp.eq.s32.totalorder %s24, 0
    %p66 = por %p64, %p65
    %p67 = scmp.ne.s32.totalorder %s53, %s54
    %p68 = scmp.eq.s32.totalorder %s25, 15
    %p69 = por %p67, %p68
    %p71 = scmp.ne.s32.totalorder %s54, %s70
    %p72 = scmp.eq.s32.totalorder %s25, 0
    %p73 = por %p71, %p72
    %s74 = ssub.s32 %s26, %s45
    %p75 = scmp.eq.s32.totalorder %s74, 0
    %s77 = sadd.s32 %s76, 1
    %s78 = scalar_select %p75, %s76, %s77
    %p81 = pneg %p75
    %p82 = scmp.eq.s32.totalorder %s19, 15
    %p83 = por %p81, %p82
    %p84 = scmp.ne.s32.totalorder %s76, %s79
    %p85 = scmp.eq.s32.totalorder %s19, 0
    %p86 = por %p84, %p85
    %p87 = scmp.ne.s32.totalorder %s76, %s79
    %p88 = scmp.eq.s32.totalorder %s24, 15
    %p89 = por %p87, %p88
    %p90 = scmp.ne.s32.totalorder %s79, %s80
    %p91 = scmp.eq.s32.totalorder %s24, 0
    %p92 = por %p90, %p91
    %p93 = scmp.ne.s32.totalorder %s79, %s80
    %p94 = scmp.eq.s32.totalorder %s25, 15
    %p95 = por %p93, %p94
    %p97 = scmp.ne.s32.totalorder %s80, %s96
    %p98 = scmp.eq.s32.totalorder %s25, 0
    %p99 = por %p97, %p98
    %s100 = ssub.s32 %s26, %s45
    %s101 = ssub.s32 %s28, %s37
    %s102 = sor.u32 %s100, %s101
    %s103 = ssub.s32 %s27, %s41
    %s104 = sor.u32 %s102, %s103
    %p105 = scmp.eq.s32.totalorder %s104, 0
    %s107 = sadd.s32 %s106, 1
    %s108 = scalar_select %p105, %s106, %s107
    %p111 = pneg %p105
    %p112 = scmp.eq.s32.totalorder %s19, 15
    %p113 = por %p111, %p112
    %p114 = scmp.ne.s32.totalorder %s106, %s109
    %p115 = scmp.eq.s32.totalorder %s19, 0
    %p116 = por %p114, %p115
    %p117 = scmp.ne.s32.totalorder %s106, %s109
    %p118 = scmp.eq.s32.totalorder %s24, 15
    %p119 = por %p117, %p118
    %p120 = scmp.ne.s32.totalorder %s109, %s110
    %p121 = scmp.eq.s32.totalorder %s24, 0
    %p122 = por %p120, %p121
    %p123 = scmp.ne.s32.totalorder %s109, %s110
    %p124 = scmp.eq.s32.totalorder %s25, 15
    %p125 = por %p123, %p124
    %p127 = scmp.ne.s32.totalorder %s110, %s126
    %p128 = scmp.eq.s32.totalorder %s25, 0
    %p129 = por %p127, %p128
    %s130 = ssub.s32 %s26, %s45
    %s131 = ssub.s32 %s28, %s37
    %s132 = sor.u32 %s130, %s131
    %p133 = scmp.eq.s32.totalorder %s132, 0
    %s135 = sadd.s32 %s134, 1
    %s136 = scalar_select %p133, %s134, %s135
    %p139 = pneg %p133
    %p140 = scmp.eq.s32.totalorder %s19, 15
    %p141 = por %p139, %p140
    %p142 = scmp.ne.s32.totalorder %s134, %s137
    %p143 = scmp.eq.s32.totalorder %s19, 0
    %p144 = por %p142, %p143
    %p145 = scmp.ne.s32.totalorder %s134, %s137
    %p146 = scmp.eq.s32.totalorder %s24, 15
    %p147 = por %p145, %p146
    %p148 = scmp.ne.s32.totalorder %s137, %s138
    %p149 = scmp.eq.s32.totalorder %s24, 0
    %p150 = por %p148, %p149
    %p151 = scmp.ne.s32.totalorder %s137, %s138
    %p152 = scmp.eq.s32.totalorder %s25, 15
    %p153 = por %p151, %p152
    %p155 = scmp.ne.s32.totalorder %s138, %s154
    %p156 = scmp.eq.s32.totalorder %s25, 0
    %p157 = por %p155, %p156
    %s158 = ssub.s32 %s26, %s45
    %s159 = ssub.s32 %s28, %s37
    %s160 = sor.u32 %s158, %s159
    %p161 = scmp.eq.s32.totalorder %s160, 0
    %s163 = sadd.s32 %s162, 1
    %s164 = scalar_select %p161, %s162, %s163
    %p167 = pneg %p161
    %p168 = scmp.eq.s32.totalorder %s19, 15
    %p169 = por %p167, %p168
    %p170 = scmp.ne.s32.totalorder %s162, %s165
    %p171 = scmp.eq.s32.totalorder %s19, 0
    %p172 = por %p170, %p171
    %p173 = scmp.ne.s32.totalorder %s162, %s165
    %p174 = scmp.eq.s32.totalorder %s24, 15
    %p175 = por %p173, %p174
    %p176 = scmp.ne.s32.totalorder %s165, %s166
    %p177 = scmp.eq.s32.totalorder %s24, 0
    %p178 = por %p176, %p177
    %p179 = scmp.ne.s32.totalorder %s165, %s166
    %p180 = scmp.eq.s32.totalorder %s25, 15
    %p181 = por %p179, %p180
    %p183 = scmp.ne.s32.totalorder %s166, %s182
    %p184 = scmp.eq.s32.totalorder %s25, 0
    %p185 = por %p183, %p184
    %s186 = ssub.s32 %s28, %s37
    %p187 = scmp.eq.s32.totalorder %s186, 0
    %s189 = sadd.s32 %s188, 1
    %s190 = scalar_select %p187, %s188, %s189
    %p193 = pneg %p187
    %p194 = scmp.eq.s32.totalorder %s19, 15
    %p195 = por %p193, %p194
    %p196 = scmp.ne.s32.totalorder %s188, %s191
    %p197 = scmp.eq.s32.totalorder %s19, 0
    %p198 = por %p196, %p197
    %p199 = scmp.ne.s32.totalorder %s188, %s191
    %p200 = scmp.eq.s32.totalorder %s24, 15
    %p201 = por %p199, %p200
    %p202 = scmp.ne.s32.totalorder %s191, %s192
    %p203 = scmp.eq.s32.totalorder %s24, 0
    %p204 = por %p202, %p203
    %p205 = scmp.ne.s32.totalorder %s191, %s192
    %p206 = scmp.eq.s32.totalorder %s25, 15
    %p207 = por %p205, %p206
    %p209 = scmp.ne.s32.totalorder %s192, %s208
    %p210 = scmp.eq.s32.totalorder %s25, 0
    %p211 = por %p209, %p210
    %s213 = sadd.s32 %s212, 1
    %p216 = scmp.eq.s32.totalorder %s19, 15
    %p217 = scmp.ne.s32.totalorder %s212, %s214
    %p218 = scmp.eq.s32.totalorder %s19, 0
    %p219 = por %p217, %p218
    %p220 = scmp.ne.s32.totalorder %s212, %s214
    %p221 = scmp.eq.s32.totalorder %s24, 15
    %p222 = por %p220, %p221
    %p223 = scmp.ne.s32.totalorder %s214, %s215
    %p224 = scmp.eq.s32.totalorder %s24, 0
    %p225 = por %p223, %p224
    %p226 = scmp.ne.s32.totalorder %s214, %s215
    %p227 = scmp.eq.s32.totalorder %s25, 15
    %p228 = por %p226, %p227
    %p230 = scmp.ne.s32.totalorder %s215, %s229
    %p231 = scmp.eq.s32.totalorder %s25, 0
    %p232 = por %p230, %p231
    %s234 = sadd.s32 %s233, 1
    %p237 = scmp.eq.s32.totalorder %s19, 15
    %p238 = scmp.ne.s32.totalorder %s233, %s235
    %p239 = scmp.eq.s32.totalorder %s19, 0
    %p240 = por %p238, %p239
    %p241 = scmp.ne.s32.totalorder %s233, %s235
    %p242 = scmp.eq.s32.totalorder %s24, 15
    %p243 = por %p241, %p242
    %p244 = scmp.ne.s32.totalorder %s235, %s236
    %p245 = scmp.eq.s32.totalorder %s24, 0
    %p246 = por %p244, %p245
    %p247 = scmp.ne.s32.totalorder %s235, %s236
    %p248 = scmp.eq.s32.totalorder %s25, 15
    %p249 = por %p247, %p248
    %p251 = scmp.ne.s32.totalorder %s236, %s250
    %p252 = scmp.eq.s32.totalorder %s25, 0
    %p253 = por %p251, %p252
    %s255 = sadd.s32 %s254, 1
    %p258 = scmp.eq.s32.totalorder %s19, 15
    %p259 = scmp.ne.s32.totalorder %s254, %s256
    %p260 = scmp.eq.s32.totalorder %s19, 0
    %p261 = por %p259, %p260
    %p262 = scmp.ne.s32.totalorder %s254, %s256
    %p263 = scmp.eq.s32.totalorder %s24, 15
    %p264 = por %p262, %p263
    %p265 = scmp.ne.s32.totalorder %s256, %s257
    %p266 = scmp.eq.s32.totalorder %s24, 0
    %p267 = por %p265, %p266
    %p268 = scmp.ne.s32.totalorder %s256, %s257
    %p269 = scmp.eq.s32.totalorder %s25, 15
    %p270 = por %p268, %p269
    %p272 = scmp.ne.s32.totalorder %s257, %s271
    %p273 = scmp.eq.s32.totalorder %s25, 0
    %p274 = por %p272, %p273
    %s276 = sadd.s32 %s275, 1
    %p279 = scmp.eq.s32.totalorder %s19, 15
    %p280 = scmp.ne.s32.totalorder %s275, %s277
    %p281 = scmp.eq.s32.totalorder %s19, 0
    %p282 = por %p280, %p281
    %p283 = scmp.ne.s32.totalorder %s275, %s277
    %p284 = scmp.eq.s32.totalorder %s24, 15
    %p285 = por %p283, %p284
    %p286 = scmp.ne.s32.totalorder %s277, %s278
    %p287 = scmp.eq.s32.totalorder %s24, 0
    %p288 = por %p286, %p287
    %p289 = scmp.ne.s32.totalorder %s277, %s278
    %p290 = scmp.eq.s32.totalorder %s25, 15
    %p291 = por %p289, %p290
    %p293 = scmp.ne.s32.totalorder %s278, %s292
    %p294 = scmp.eq.s32.totalorder %s25, 0
    %p295 = por %p293, %p294
    %s297 = sadd.s32 %s296, 1
    %p300 = scmp.eq.s32.totalorder %s19, 15
    %p301 = scmp.ne.s32.totalorder %s296, %s298
    %p302 = scmp.eq.s32.totalorder %s19, 0
    %p303 = por %p301, %p302
    %p304 = scmp.ne.s32.totalorder %s296, %s298
    %p305 = scmp.eq.s32.totalorder %s24, 15
    %p306 = por %p304, %p305
    %p307 = scmp.ne.s32.totalorder %s298, %s299
    %p308 = scmp.eq.s32.totalorder %s24, 0
    %p309 = por %p307, %p308
    %p310 = scmp.ne.s32.totalorder %s298, %s299
    %p311 = scmp.eq.s32.totalorder %s25, 15
    %p312 = por %p310, %p311
    %p314 = scmp.ne.s32.totalorder %s299, %s313
    %p315 = scmp.eq.s32.totalorder %s25, 0
    %p316 = por %p314, %p315
    %s318 = sadd.s32 %s317, 1
    %p321 = scmp.eq.s32.totalorder %s19, 15
    %p322 = scmp.ne.s32.totalorder %s317, %s319
    %p323 = scmp.eq.s32.totalorder %s19, 0
    %p324 = por %p322, %p323
    %p325 = scmp.ne.s32.totalorder %s317, %s319
    %p326 = scmp.eq.s32.totalorder %s24, 15
    %p327 = por %p325, %p326
    %p328 = scmp.ne.s32.totalorder %s319, %s320
    %p329 = scmp.eq.s32.totalorder %s24, 0
    %p330 = por %p328, %p329
    %p331 = scmp.ne.s32.totalorder %s319, %s320
    %p332 = scmp.eq.s32.totalorder %s25, 15
    %p333 = por %p331, %p332
    %p335 = scmp.ne.s32.totalorder %s320, %s334
    %p336 = scmp.eq.s32.totalorder %s25, 0
    %p337 = por %p335, %p336
    %s339 = sadd.s32 %s338, 1
    %p342 = scmp.eq.s32.totalorder %s19, 15
    %p343 = scmp.ne.s32.totalorder %s338, %s340
    %p344 = scmp.eq.s32.totalorder %s19, 0
    %p345 = por %p343, %p344
    %p346 = scmp.ne.s32.totalorder %s338, %s340
    %p347 = scmp.eq.s32.totalorder %s24, 15
    %p348 = por %p346, %p347
    %p349 = scmp.ne.s32.totalorder %s340, %s341
    %p350 = scmp.eq.s32.totalorder %s24, 0
    %p351 = por %p349, %p350
    %p352 = scmp.ne.s32.totalorder %s340, %s341
    %p353 = scmp.eq.s32.totalorder %s25, 15
    %p354 = por %p352, %p353
    %p356 = scmp.ne.s32.totalorder %s341, %s355
    %p357 = scmp.eq.s32.totalorder %s25, 0
    %p358 = por %p356, %p357
    %s359 = ssub.s32 %s26, %s45
    %s360 = ssub.s32 %s27, %s41
    %s361 = sor.u32 %s359, %s360
    %p362 = scmp.eq.s32.totalorder %s361, 0
    %s364 = sadd.s32 %s363, 1
    %s365 = scalar_select %p362, %s363, %s364
    %p368 = pneg %p362
    %p369 = scmp.eq.s32.totalorder %s19, 15
    %p370 = por %p368, %p369
    %p371 = scmp.ne.s32.totalorder %s363, %s366
    %p372 = scmp.eq.s32.totalorder %s19, 0
    %p373 = por %p371, %p372
    %p374 = scmp.ne.s32.totalorder %s363, %s366
    %p375 = scmp.eq.s32.totalorder %s24, 15
    %p376 = por %p374, %p375
    %p377 = scmp.ne.s32.totalorder %s366, %s367
    %p378 = scmp.eq.s32.totalorder %s24, 0
    %p379 = por %p377, %p378
    %p380 = scmp.ne.s32.totalorder %s366, %s367
    %p381 = scmp.eq.s32.totalorder %s25, 15
    %p382 = por %p380, %p381
    %p384 = scmp.ne.s32.totalorder %s367, %s383
    %p385 = scmp.eq.s32.totalorder %s25, 0
    %p386 = por %p384, %p385
    %p387 = scmp.le.s32.totalorder 1, %s19
    %p388 = scmp.lt.s32.totalorder %s19, 17
    %p389 = pnand %p387, %p388
    %p390 = pneg %p389
    // Predicated region
    $region9: #{run.3} parent=5 // pred_check
      _
    $region10: #{run.3} parent=5 // pred_check_branch
      %392 = sbr.rel (%p389) target = $region12
    $region11: #{run.3} parent=5 // pred_region
      %s393 = ssub.s32 %s19, 1
      // Predicated region
      $region13: #{run.3} parent=11 // pred_check
        %p394 = pneg %p225
      $region14: #{run.3} parent=11 // pred_check_branch
        %396 = sbr.rel (%p394) target = $region16
      $region15: #{run.3} parent=11 // pred_region
        _
      $region16: #{run.3} parent=11 // pred_fallthru
        _
      // Predicated region
      $region17: #{run.3} parent=11 // pred_check
        %p397 = pneg %p246
      $region18: #{run.3} parent=11 // pred_check_branch
        %399 = sbr.rel (%p397) target = $region20
      $region19: #{run.3} parent=11 // pred_region
        _
      $region20: #{run.3} parent=11 // pred_fallthru
        _
      // Predicated region
      $region21: #{run.3} parent=11 // pred_check
        %p400 = pneg %p267
      $region22: #{run.3} parent=11 // pred_check_branch
        %402 = sbr.rel (%p400) target = $region24
      $region23: #{run.3} parent=11 // pred_region
        _
      $region24: #{run.3} parent=11 // pred_fallthru
        _
      // Predicated region
      $region25: #{run.3} parent=11 // pred_check
        %p403 = pneg %p288
      $region26: #{run.3} parent=11 // pred_check_branch
        %405 = sbr.rel (%p403) target = $region28
      $region27: #{run.3} parent=11 // pred_region
        _
      $region28: #{run.3} parent=11 // pred_fallthru
        _
      // Predicated region
      $region29: #{run.3} parent=11 // pred_check
        %p406 = pneg %p309
      $region30: #{run.3} parent=11 // pred_check_branch
        %408 = sbr.rel (%p406) target = $region32
      $region31: #{run.3} parent=11 // pred_region
        _
      $region32: #{run.3} parent=11 // pred_fallthru
        _
      // Predicated region
      $region33: #{run.3} parent=11 // pred_check
        %p409 = pneg %p330
      $region34: #{run.3} parent=11 // pred_check_branch
        %411 = sbr.rel (%p409) target = $region36
      $region35: #{run.3} parent=11 // pred_region
        _
      $region36: #{run.3} parent=11 // pred_fallthru
        _
      // Predicated region
      $region37: #{run.3} parent=11 // pred_check
        %p412 = pneg %p351
      $region38: #{run.3} parent=11 // pred_check_branch
        %414 = sbr.rel (%p412) target = $region40
      $region39: #{run.3} parent=11 // pred_region
        _
      $region40: #{run.3} parent=11 // pred_fallthru
        _
    $region12: #{run.3} parent=5 // pred_fallthru
      _
    %p415 = scmp.lt.s32.totalorder %s19, 16
    // Predicated region
    $region41: #{run.3} parent=5 // pred_check
      %p416 = pneg %p415
    $region42: #{run.3} parent=5 // pred_check_branch
      %418 = sbr.rel (%p416) target = $region44
    $region43: #{run.3} parent=5 // pred_region
      // Predicated region
      $region45: #{run.3} parent=43 // pred_check
        %p419 = pneg %p60
      $region46: #{run.3} parent=43 // pred_check_branch
        %421 = sbr.rel (%p419) target = $region48
      $region47: #{run.3} parent=43 // pred_region
        %s422 = smul.u32 16, %s27
        %p423 = scmp.lt.s32.totalorder %s26, 1
        %s424 = scalar_select %p423, %s26, 1
        %p425 = scmp.lt.s32.totalorder %s422, 15
        %s426 = scalar_select %p425, %s422, 15
        %s427 = smul.addr %s424, 16
        %s428 = sadd.s32 %s426, %s427
        %s429 = smul.addr %s428, 8
        %s430 = scalar_lea.vmem %s0, %s429
        %s431 = smul.u32 16, %s27
      $region48: #{run.3} parent=43 // pred_fallthru
        _
      // Predicated region
      $region49: #{run.3} parent=43 // pred_check
        %p432 = pneg %p86
      $region50: #{run.3} parent=43 // pred_check_branch
        %434 = sbr.rel (%p432) target = $region52
      $region51: #{run.3} parent=43 // pred_region
        %p435 = scmp.lt.s32.totalorder %s26, 1
        %s436 = scalar_select %p435, %s26, 1
        %s437 = scalar_lea.vmem %s1, %s436
      $region52: #{run.3} parent=43 // pred_fallthru
        _
      // Predicated region
      $region53: #{run.3} parent=43 // pred_check
        %p438 = pneg %p116
      $region54: #{run.3} parent=43 // pred_check_branch
        %440 = sbr.rel (%p438) target = $region56
      $region55: #{run.3} parent=43 // pred_region
        %s441 = smul.u32 16, %s27
        %p442 = scmp.lt.s32.totalorder %s26, 1
        %s443 = scalar_select %p442, %s26, 1
        %p444 = scmp.lt.s32.totalorder %s28, 7
        %s445 = scalar_select %p444, %s28, 7
        %p446 = scmp.lt.s32.totalorder %s441, 15
        %s447 = scalar_select %p446, %s441, 15
        %s448 = smul.addr %s445, 16
        %s449 = sadd.s32 %s447, %s448
        %s450 = smul.addr %s443, 128
        %s451 = sadd.s32 %s449, %s450
        %s452 = smul.addr %s451, 4
        %s453 = scalar_lea.vmem %s2, %s452
        %s454 = smul.u32 16, %s27
      $region56: #{run.3} parent=43 // pred_fallthru
        _
      // Predicated region
      $region57: #{run.3} parent=43 // pred_check
        %p455 = pneg %p144
      $region58: #{run.3} parent=43 // pred_check_branch
        %457 = sbr.rel (%p455) target = $region60
      $region59: #{run.3} parent=43 // pred_region
        %p458 = scmp.lt.s32.totalorder %s26, 1
        %s459 = scalar_select %p458, %s26, 1
        %p460 = scmp.lt.s32.totalorder %s28, 7
        %s461 = scalar_select %p460, %s28, 7
        %s462 = smul.addr %s461, 16
        %s463 = smul.addr %s459, 128
        %s464 = sadd.s32 %s462, %s463
        %s465 = smul.addr %s464, 4
        %s466 = scalar_lea.vmem %s3, %s465
      $region60: #{run.3} parent=43 // pred_fallthru
        _
      // Predicated region
      $region61: #{run.3} parent=43 // pred_check
        %p467 = pneg %p172
      $region62: #{run.3} parent=43 // pred_check_branch
        %469 = sbr.rel (%p467) target = $region64
      $region63: #{run.3} parent=43 // pred_region
        %p470 = scmp.lt.s32.totalorder %s26, 1
        %s471 = scalar_select %p470, %s26, 1
        %p472 = scmp.lt.s32.totalorder %s28, 7
        %s473 = scalar_select %p472, %s28, 7
        %s474 = smul.addr %s473, 16
        %s475 = smul.addr %s471, 128
        %s476 = sadd.s32 %s474, %s475
        %s477 = smul.addr %s476, 4
        %s478 = scalar_lea.vmem %s4, %s477
      $region64: #{run.3} parent=43 // pred_fallthru
        _
      // Predicated region
      $region65: #{run.3} parent=43 // pred_check
        %p479 = pneg %p198
      $region66: #{run.3} parent=43 // pred_check_branch
        %481 = sbr.rel (%p479) target = $region68
      $region67: #{run.3} parent=43 // pred_region
        %p482 = scmp.lt.s32.totalorder %s28, 7
        %s483 = scalar_select %p482, %s28, 7
        %s484 = smul.addr %s483, 2
        %s485 = smul.addr %s484, 4
        %s486 = scalar_lea.vmem %s5, %s485
      $region68: #{run.3} parent=43 // pred_fallthru
        _
    $region44: #{run.3} parent=5 // pred_fallthru
      _
    %p487 = scmp.le.s32.totalorder 1, %s19
    %p488 = scmp.lt.s32.totalorder %s19, 17
    %p489 = pnand %p487, %p488
    %p490 = pneg %p489
    // Predicated region
    $region69: #{run.3} parent=5 // pred_check
      _
    $region70: #{run.3} parent=5 // pred_check_branch
      %492 = sbr.rel (%p489) target = $region72
    $region71: #{run.3} parent=5 // pred_region
      %s493 = ssub.s32 %s19, 1
      %s494 = smul.u32 16, %s30
      %p495 = scmp.lt.s32.totalorder %s29, 1
      %s496 = scalar_select %p495, %s29, 1
      %p497 = scmp.lt.s32.totalorder %s494, 15
      %s498 = scalar_select %p497, %s494, 15
      %s499 = smul.addr %s496, 16
      %s500 = sadd.s32 %s498, %s499
      %s501 = smul.addr %s500, 8
      %s502 = scalar_lea.vmem %s0, %s501
      %p503 = pneg %p66
      %p504 = pneg %p63
      %p505 = scmp.lt.s32.totalorder %s29, 1
      %s506 = scalar_select %p505, %s29, 1
      %s507 = scalar_lea.vmem %s1, %s506
      %p508 = pneg %p92
      %p509 = pneg %p89
      %s510 = smul.u32 16, %s30
      %p511 = scmp.lt.s32.totalorder %s29, 1
      %s512 = scalar_select %p511, %s29, 1
      %p513 = scmp.lt.s32.totalorder %s31, 7
      %s514 = scalar_select %p513, %s31, 7
      %p515 = scmp.lt.s32.totalorder %s510, 15
      %s516 = scalar_select %p515, %s510, 15
      %s517 = smul.addr %s514, 16
      %s518 = sadd.s32 %s516, %s517
      %s519 = smul.addr %s512, 128
      %s520 = sadd.s32 %s518, %s519
      %s521 = smul.addr %s520, 4
      %s522 = scalar_lea.vmem %s2, %s521
      %p523 = pneg %p122
      %p524 = pneg %p119
      %p525 = scmp.lt.s32.totalorder %s29, 1
      %s526 = scalar_select %p525, %s29, 1
      %p527 = scmp.lt.s32.totalorder %s31, 7
      %s528 = scalar_select %p527, %s31, 7
      %s529 = smul.addr %s528, 16
      %s530 = smul.addr %s526, 128
      %s531 = sadd.s32 %s529, %s530
      %s532 = smul.addr %s531, 4
      %s533 = scalar_lea.vmem %s3, %s532
      %p534 = pneg %p150
      %p535 = pneg %p147
      %p536 = scmp.lt.s32.totalorder %s29, 1
      %s537 = scalar_select %p536, %s29, 1
      %p538 = scmp.lt.s32.totalorder %s31, 7
      %s539 = scalar_select %p538, %s31, 7
      %s540 = smul.addr %s539, 16
      %s541 = smul.addr %s537, 128
      %s542 = sadd.s32 %s540, %s541
      %s543 = smul.addr %s542, 4
      %s544 = scalar_lea.vmem %s4, %s543
      %p545 = pneg %p178
      %p546 = pneg %p175
      %p547 = scmp.lt.s32.totalorder %s31, 7
      %s548 = scalar_select %p547, %s31, 7
      %s549 = smul.addr %s548, 2
      %s550 = smul.addr %s549, 4
      %s551 = scalar_lea.vmem %s5, %s550
      %p552 = pneg %p204
      %p553 = pneg %p201
      %p554 = pneg %p225
      %p555 = pneg %p222
      %p556 = pneg %p246
      %p557 = pneg %p243
      %p558 = pneg %p267
      %p559 = pneg %p264
      %p560 = pneg %p288
      %p561 = pneg %p285
      %p562 = pneg %p309
      %p563 = pneg %p306
      %p564 = pneg %p330
      %p565 = pneg %p327
      %p566 = pneg %p351
      %p567 = pneg %p348
      %p568 = pneg %p379
      %p569 = pneg %p376
      %s570 = smul.u32 16, %s30
      %p571 = scmp.lt.s32.totalorder %s29, 1
      %s572 = scalar_select %p571, %s29, 1
      %p573 = scmp.lt.s32.totalorder %s570, 15
      %s574 = scalar_select %p573, %s570, 15
      %s575 = smul.addr %s572, 16
      %s576 = sadd.s32 %s574, %s575
      %s577 = smul.addr %s576, 8
      %s578 = scalar_lea.vmem %s13, %s577
      %s579 = smul.u32 16, %s30
      %p580 = scmp.lt.s32.totalorder %s29, 1
      %s581 = scalar_select %p580, %s29, 1
      %p582 = scmp.lt.s32.totalorder %s579, 15
      %s583 = scalar_select %p582, %s579, 15
      %s584 = smul.addr %s581, 16
      %s585 = sadd.s32 %s583, %s584
      %s586 = smul.addr %s585, 8
      %s587 = scalar_lea.vmem %s0, %s586
      %s588 = smul.u32 16, %s30
      %p589 = scmp.lt.s32.totalorder %s29, 1
      %s590 = scalar_select %p589, %s29, 1
      %s591 = scalar_lea.vmem %s1, %s590
      %s592 = smul.u32 16, %s30
      %p593 = scmp.lt.s32.totalorder %s29, 1
      %s594 = scalar_select %p593, %s29, 1
      %p595 = scmp.lt.s32.totalorder %s31, 7
      %s596 = scalar_select %p595, %s31, 7
      %p597 = scmp.lt.s32.totalorder %s592, 15
      %s598 = scalar_select %p597, %s592, 15
      %s599 = smul.addr %s596, 16
      %s600 = sadd.s32 %s598, %s599
      %s601 = smul.addr %s594, 128
      %s602 = sadd.s32 %s600, %s601
      %s603 = smul.addr %s602, 4
      %s604 = scalar_lea.vmem %s2, %s603
      %s605 = smul.u32 16, %s30
      %p606 = scmp.lt.s32.totalorder %s29, 1
      %s607 = scalar_select %p606, %s29, 1
      %p608 = scmp.lt.s32.totalorder %s31, 7
      %s609 = scalar_select %p608, %s31, 7
      %s610 = smul.addr %s609, 16
      %s611 = smul.addr %s607, 128
      %s612 = sadd.s32 %s610, %s611
      %s613 = smul.addr %s612, 4
      %s614 = scalar_lea.vmem %s3, %s613
      %p615 = scmp.lt.s32.totalorder %s29, 1
      %s616 = scalar_select %p615, %s29, 1
      %p617 = scmp.lt.s32.totalorder %s31, 7
      %s618 = scalar_select %p617, %s31, 7
      %s619 = smul.addr %s618, 16
      %s620 = smul.addr %s616, 128
      %s621 = sadd.s32 %s619, %s620
      %s622 = smul.addr %s621, 4
      %s623 = scalar_lea.vmem %s4, %s622
      %p624 = scmp.lt.s32.totalorder %s31, 7
      %s625 = scalar_select %p624, %s31, 7
      %s626 = smul.addr %s625, 2
      %s627 = smul.addr %s626, 4
      %s628 = scalar_lea.vmem %s5, %s627
      %s629 = smul.u32 16, %s30
      %p630 = scmp.lt.s32.totalorder %s29, 1
      %s631 = scalar_select %p630, %s29, 1
      %p632 = scmp.lt.s32.totalorder %s629, 15
      %s633 = scalar_select %p632, %s629, 15
      %s634 = smul.addr %s631, 16
      %s635 = sadd.s32 %s633, %s634
      %s636 = smul.addr %s635, 8
      %s637 = scalar_lea.vmem %s13, %s636
      %s638 = smul.u32 16, %s30
      %p640 = scmp.eq.s32.totalorder %s31, 0
      // Predicated region
      $region73: #{run.3} parent=71 // pred_check
        %p641 = pneg %p640
      $region74: #{run.3} parent=71 // pred_check_branch
        %643 = sbr.rel (%p641) target = $region76
      $region75: #{run.3} parent=71 // pred_region
        %644 = vst [vmem:[#allocation2] sm:$0xff] 0.0
        %645 = vst [vmem:[#allocation2 + $0x8] sm:$0xff] 0.0
        %646 = vst [vmem:[#allocation2 + $0x10] sm:$0xff] 0.0
        %647 = vst [vmem:[#allocation2 + $0x18] sm:$0xff] 0.0
        %648 = vst [vmem:[#allocation2 + $0x20] sm:$0xff] 0.0
        %649 = vst [vmem:[#allocation2 + $0x28] sm:$0xff] 0.0
        %650 = vst [vmem:[#allocation2 + $0x30] sm:$0xff] 0.0
        %651 = vst [vmem:[#allocation2 + $0x38] sm:$0xff] 0.0
        %652 = vst [vmem:[#allocation2 + $0x40] sm:$0xff] 0.0
        %653 = vst [vmem:[#allocation2 + $0x48] sm:$0xff] 0.0
        %654 = vst [vmem:[#allocation2 + $0x50] sm:$0xff] 0.0
        %655 = vst [vmem:[#allocation2 + $0x58] sm:$0xff] 0.0
        %656 = vst [vmem:[#allocation2 + $0x60] sm:$0xff] 0.0
        %657 = vst [vmem:[#allocation2 + $0x68] sm:$0xff] 0.0
        %658 = vst [vmem:[#allocation2 + $0x70] sm:$0xff] 0.0
        %659 = vst [vmem:[#allocation2 + $0x78] sm:$0xff] 0.0
      $region76: #{run.3} parent=71 // pred_fallthru
        _
      %v660 = vld [vmem:[%s604] sm:$0xf]
      %v661 = vld [vmem:[%s604 + $0x4] sm:$0xf]
      %v662 = vld [vmem:[%s604 + $0x8] sm:$0xf]
      %v663 = vld [vmem:[%s604 + $0xc] sm:$0xf]
      %v664 = vld [vmem:[%s604 + $0x10] sm:$0xf]
      %v665 = vld [vmem:[%s604 + $0x14] sm:$0xf]
      %v666 = vld [vmem:[%s604 + $0x18] sm:$0xf]
      %v667 = vld [vmem:[%s604 + $0x1c] sm:$0xf]
      %v668 = vld [vmem:[%s604 + $0x20] sm:$0xf]
      %v669 = vld [vmem:[%s604 + $0x24] sm:$0xf]
      %v670 = vld [vmem:[%s604 + $0x28] sm:$0xf]
      %v671 = vld [vmem:[%s604 + $0x2c] sm:$0xf]
      %v672 = vld [vmem:[%s604 + $0x30] sm:$0xf]
      %v673 = vld [vmem:[%s604 + $0x34] sm:$0xf]
      %v674 = vld [vmem:[%s604 + $0x38] sm:$0xf]
      %v675 = vld [vmem:[%s604 + $0x3c] sm:$0xf]
      %v676 = vld [vmem:[%s614] sm:$0xf]
      %v677 = vld [vmem:[%s614 + $0x4] sm:$0xf]
      %v678 = vld [vmem:[%s614 + $0x8] sm:$0xf]
      %v679 = vld [vmem:[%s614 + $0xc] sm:$0xf]
      %v680 = vld [vmem:[%s614 + $0x10] sm:$0xf]
      %v681 = vld [vmem:[%s614 + $0x14] sm:$0xf]
      %v682 = vld [vmem:[%s614 + $0x18] sm:$0xf]
      %v683 = vld [vmem:[%s614 + $0x1c] sm:$0xf]
      %v684 = vld [vmem:[%s614 + $0x20] sm:$0xf]
      %v685 = vld [vmem:[%s614 + $0x24] sm:$0xf]
      %v686 = vld [vmem:[%s614 + $0x28] sm:$0xf]
      %v687 = vld [vmem:[%s614 + $0x2c] sm:$0xf]
      %v688 = vld [vmem:[%s614 + $0x30] sm:$0xf]
      %v689 = vld [vmem:[%s614 + $0x34] sm:$0xf]
      %v690 = vld [vmem:[%s614 + $0x38] sm:$0xf]
      %v691 = vld [vmem:[%s614 + $0x3c] sm:$0xf]
      %v708 = vunpack.c.l.b16 %v660
      %v709 = vunpack.c.l.b16 %v661
      %v710 = vunpack.c.l.b16 %v662
      %v711 = vunpack.c.l.b16 %v663
      %v712 = vunpack.c.l.b16 %v664
      %v713 = vunpack.c.l.b16 %v665
      %v714 = vunpack.c.l.b16 %v666
      %v715 = vunpack.c.l.b16 %v667
      %v716 = vunpack.c.l.b16 %v668
      %v717 = vunpack.c.l.b16 %v669
      %v718 = vunpack.c.l.b16 %v670
      %v719 = vunpack.c.l.b16 %v671
      %v720 = vunpack.c.l.b16 %v672
      %v721 = vunpack.c.l.b16 %v673
      %v722 = vunpack.c.l.b16 %v674
      %v723 = vunpack.c.l.b16 %v675
      %v724 = vpack.c.b16 %v709, %v708
      %v725 = vpack.c.b16 %v711, %v710
      %v726 = vpack.c.b16 %v713, %v712
      %v727 = vpack.c.b16 %v715, %v714
      %v728 = vpack.c.b16 %v717, %v716
      %v729 = vpack.c.b16 %v719, %v718
      %v730 = vpack.c.b16 %v721, %v720
      %v731 = vpack.c.b16 %v723, %v722
      %v748 = vunpack.c.l.b16 %v676
      %v749 = vunpack.c.l.b16 %v677
      %v750 = vunpack.c.l.b16 %v678
      %v751 = vunpack.c.l.b16 %v679
      %v752 = vunpack.c.l.b16 %v680
      %v753 = vunpack.c.l.b16 %v681
      %v754 = vunpack.c.l.b16 %v682
      %v755 = vunpack.c.l.b16 %v683
      %v756 = vunpack.c.l.b16 %v684
      %v757 = vunpack.c.l.b16 %v685
      %v758 = vunpack.c.l.b16 %v686
      %v759 = vunpack.c.l.b16 %v687
      %v760 = vunpack.c.l.b16 %v688
      %v761 = vunpack.c.l.b16 %v689
      %v762 = vunpack.c.l.b16 %v690
      %v763 = vunpack.c.l.b16 %v691
      %v764 = vpack.c.b16 %v749, %v748
      %v765 = vpack.c.b16 %v751, %v750
      %v766 = vpack.c.b16 %v753, %v752
      %v767 = vpack.c.b16 %v755, %v754
      %v768 = vpack.c.b16 %v757, %v756
      %v769 = vpack.c.b16 %v759, %v758
      %v770 = vpack.c.b16 %v761, %v760
      %v771 = vpack.c.b16 %v763, %v762
      %vm772 = vcmask 130048
      %v774 = vsel %vm772, %v724, 0
      %v777 = vsel %vm772, %v725, 0
      %v780 = vsel %vm772, %v726, 0
      %v783 = vsel %vm772, %v727, 0
      %v786 = vsel %vm772, %v728, 0
      %v789 = vsel %vm772, %v729, 0
      %v792 = vsel %vm772, %v730, 0
      %v795 = vsel %vm772, %v731, 0
      %v798 = vsel %vm772, %v764, 0
      %v801 = vsel %vm772, %v765, 0
      %v804 = vsel %vm772, %v766, 0
      %v807 = vsel %vm772, %v767, 0
      %v810 = vsel %vm772, %v768, 0
      %v813 = vsel %vm772, %v769, 0
      %v816 = vsel %vm772, %v770, 0
      %v819 = vsel %vm772, %v771, 0
      %821 = vmatprep.subr.bf16.mxu0 0
      %822 = vmatpush1.bf16.xpose.msra.mxu0 %v798
      %823 = vmatprep.subr.bf16.mxu0 0
      %824 = vmatpush1.bf16.xpose.msra.mxu0 %v801
      %825 = vmatprep.subr.bf16.mxu0 0
      %826 = vmatpush1.bf16.xpose.msra.mxu0 %v804
      %827 = vmatprep.subr.bf16.mxu0 0
      %828 = vmatpush1.bf16.xpose.msra.mxu0 %v807
      %829 = vmatprep.subr.bf16.mxu0 0
      %830 = vmatpush1.bf16.xpose.msra.mxu0 %v810
      %831 = vmatprep.subr.bf16.mxu0 0
      %832 = vmatpush1.bf16.xpose.msra.mxu0 %v813
      %833 = vmatprep.subr.bf16.mxu0 0
      %834 = vmatpush1.bf16.xpose.msra.mxu0 %v816
      %835 = vmatprep.subr.bf16.mxu0 0
      %836 = vmatpush1.bf16.xpose.msra.mxu0 %v819
      %837 = vmatprep.subr.bf16.mxu0 0
      %838 = vmatpush1.bf16.xpose.msra.mxu0 0
      %839 = vmatprep.subr.bf16.mxu0 0
      %840 = vmatpush1.bf16.xpose.msra.mxu0 0
      %841 = vmatprep.subr.bf16.mxu0 0
      %842 = vmatpush1.bf16.xpose.msra.mxu0 0
      %843 = vmatprep.subr.bf16.mxu0 0
      %844 = vmatpush1.bf16.xpose.msra.mxu0 0
      %845 = vmatprep.subr.bf16.mxu0 0
      %846 = vmatpush1.bf16.xpose.msra.mxu0 0
      %847 = vmatprep.subr.bf16.mxu0 0
      %848 = vmatpush1.bf16.xpose.msra.mxu0 0
      %849 = vmatprep.subr.bf16.mxu0 0
      %850 = vmatpush1.bf16.xpose.msra.mxu0 0
      %851 = vmatprep.subr.bf16.mxu0 0
      %852 = vmatpush1.bf16.xpose.msra.mxu0 0
      %853 = vmatprep.mubr.bf16.mxu0 0
      %854 = vmatmul.mubr.bf16.gmra.mrb[0].mxu0 %v774
      %v855 = vpop.f32.mrb[0].mxu0
      %v856 = vadd.f32 0.0, %v855
      %v857 = vpop.f32.mrb[0].mxu0
      %v858 = vpop.f32.mrb[0].mxu0
      %v859 = vadd.f32 0.0, %v858
      %v860 = vpop.f32.mrb[0].mxu0
      %861 = vmatprep.mubr.bf16.mxu0 0
      %862 = vmatmul.mubr.bf16.gmra.mrb[0].mxu0 %v777
      %v863 = vpop.f32.mrb[0].mxu0
      %v864 = vadd.f32 0.0, %v863
      %v865 = vpop.f32.mrb[0].mxu0
      %v866 = vpop.f32.mrb[0].mxu0
      %v867 = vadd.f32 0.0, %v866
      %v868 = vpop.f32.mrb[0].mxu0
      %869 = vmatprep.mubr.bf16.mxu0 0
      %870 = vmatmul.mubr.bf16.gmra.mrb[0].mxu0 %v780
      %v871 = vpop.f32.mrb[0].mxu0
      %v872 = vadd.f32 0.0, %v871
      %v873 = vpop.f32.mrb[0].mxu0
      %v874 = vpop.f32.mrb[0].mxu0
      %v875 = vadd.f32 0.0, %v874
      %v876 = vpop.f32.mrb[0].mxu0
      %877 = vmatprep.mubr.bf16.mxu0 0
      %878 = vmatmul.mubr.bf16.gmra.mrb[0].mxu0 %v783
      %v879 = vpop.f32.mrb[0].mxu0
      %v880 = vadd.f32 0.0, %v879
      %v881 = vpop.f32.mrb[0].mxu0
      %v882 = vpop.f32.mrb[0].mxu0
      %v883 = vadd.f32 0.0, %v882
      %v884 = vpop.f32.mrb[0].mxu0
      %885 = vmatprep.mubr.bf16.mxu0 0
      %886 = vmatmul.mubr.bf16.gmra.mrb[0].mxu0 %v786
      %v887 = vpop.f32.mrb[0].mxu0
      %v888 = vadd.f32 0.0, %v887
      %v889 = vpop.f32.mrb[0].mxu0
      %v890 = vpop.f32.mrb[0].mxu0
      %v891 = vadd.f32 0.0, %v890
      %v892 = vpop.f32.mrb[0].mxu0
      %893 = vmatprep.mubr.bf16.mxu0 0
      %894 = vmatmul.mubr.bf16.gmra.mrb[0].mxu0 %v789
      %v895 = vpop.f32.mrb[0].mxu0
      %v896 = vadd.f32 0.0, %v895
      %v897 = vpop.f32.mrb[0].mxu0
      %v898 = vpop.f32.mrb[0].mxu0
      %v899 = vadd.f32 0.0, %v898
      %v900 = vpop.f32.mrb[0].mxu0
      %901 = vmatprep.mubr.bf16.mxu0 0
      %902 = vmatmul.mubr.bf16.gmra.mrb[0].mxu0 %v792
      %v903 = vpop.f32.mrb[0].mxu0
      %v904 = vadd.f32 0.0, %v903
      %v905 = vpop.f32.mrb[0].mxu0
      %v906 = vpop.f32.mrb[0].mxu0
      %v907 = vadd.f32 0.0, %v906
      %v908 = vpop.f32.mrb[0].mxu0
      %909 = vmatprep.mubr.bf16.mxu0 0
      %910 = vmatmul.mubr.bf16.gmra.mrb[0].mxu0 %v795
      %v911 = vpop.f32.mrb[0].mxu0
      %v912 = vadd.f32 0.0, %v911
      %v913 = vpop.f32.mrb[0].mxu0
      %v914 = vpop.f32.mrb[0].mxu0
      %v915 = vadd.f32 0.0, %v914
      %v916 = vpop.f32.mrb[0].mxu0
      %917 = vdwg.mxu0
      %v918 = vld [vmem:[%s591] sm:$0x1]
      %s919 = smul.u32 %s30, 128
      %v920 = vlaneseq
      %v921 = vshrl.u32 %v920, 7
      %v922 = vadd.s32 %v921, 8
      %v923 = vadd.s32 %v921, 16
      %v924 = vadd.s32 %v921, 24
      %v925 = vadd.s32 %v921, 32
      %v926 = vadd.s32 %v921, 40
      %v927 = vadd.s32 %v921, 48
      %v928 = vadd.s32 %v921, 56
      %v929 = vadd.s32 %v921, 64
      %v930 = vadd.s32 %v921, 72
      %v931 = vadd.s32 %v921, 80
      %v932 = vadd.s32 %v921, 88
      %v933 = vadd.s32 %v921, 96
      %v934 = vadd.s32 %v921, 104
      %v935 = vadd.s32 %v921, 112
      %v936 = vadd.s32 %v921, 120
      %v937 = vstv %s919
      %v938 = vadd.s32 %v937, %v921
      %v939 = vadd.s32 %v937, %v922
      %v940 = vadd.s32 %v937, %v923
      %v941 = vadd.s32 %v937, %v924
      %v942 = vadd.s32 %v937, %v925
      %v943 = vadd.s32 %v937, %v926
      %v944 = vadd.s32 %v937, %v927
      %v945 = vadd.s32 %v937, %v928
      %v946 = vadd.s32 %v937, %v929
      %v947 = vadd.s32 %v937, %v930
      %v948 = vadd.s32 %v937, %v931
      %v949 = vadd.s32 %v937, %v932
      %v950 = vadd.s32 %v937, %v933
      %v951 = vadd.s32 %v937, %v934
      %v952 = vadd.s32 %v937, %v935
      %v953 = vadd.s32 %v937, %v936
      %v954 = vlaneseq
      %v955 = vand.u32 %v954, 127
      %vm956 = vcmp.le.s32.totalorder %v955, %v938
      %vm957 = vcmp.le.s32.totalorder %v955, %v939
      %vm958 = vcmp.le.s32.totalorder %v955, %v940
      %vm959 = vcmp.le.s32.totalorder %v955, %v941
      %vm960 = vcmp.le.s32.totalorder %v955, %v942
      %vm961 = vcmp.le.s32.totalorder %v955, %v943
      %vm962 = vcmp.le.s32.totalorder %v955, %v944
      %vm963 = vcmp.le.s32.totalorder %v955, %v945
      %vm964 = vcmp.le.s32.totalorder %v955, %v946
      %vm965 = vcmp.le.s32.totalorder %v955, %v947
      %vm966 = vcmp.le.s32.totalorder %v955, %v948
      %vm967 = vcmp.le.s32.totalorder %v955, %v949
      %vm968 = vcmp.le.s32.totalorder %v955, %v950
      %vm969 = vcmp.le.s32.totalorder %v955, %v951
      %vm970 = vcmp.le.s32.totalorder %v955, %v952
      %vm971 = vcmp.le.s32.totalorder %v955, %v953
      %v972 = vsel %vm956, %v856, -inf
      %v973 = vsel %vm957, %v859, -inf
      %v974 = vsel %vm958, %v864, -inf
      %v975 = vsel %vm959, %v867, -inf
      %v976 = vsel %vm960, %v872, -inf
      %v977 = vsel %vm961, %v875, -inf
      %v978 = vsel %vm962, %v880, -inf
      %v979 = vsel %vm963, %v883, -inf
      %v980 = vsel %vm964, %v888, -inf
      %v981 = vsel %vm965, %v891, -inf
      %v982 = vsel %vm966, %v896, -inf
      %v983 = vsel %vm967, %v899, -inf
      %v984 = vsel %vm968, %v904, -inf
      %v985 = vsel %vm969, %v907, -inf
      %v986 = vsel %vm970, %v912, -inf
      %v987 = vsel %vm971, %v915, -inf
      %v988 = vsub.f32 1.0, %v918
      %v989 = vmul.f32 %v988, -3.4028235e+38
      %v991 = vlaneseq
      %v992 = vshrl.u32 %v991, 7
      %v993 = vsub.s32 0, %v992
      %v994 = vrot.slane %v989, %v993
      %v996 = vadd.f32 %v972, %v994
      %v997 = vadd.f32 %v973, %v994
      %v998 = vadd.f32 %v974, %v994
      %v999 = vadd.f32 %v975, %v994
      %v1000 = vadd.f32 %v976, %v994
      %v1001 = vadd.f32 %v977, %v994
      %v1002 = vadd.f32 %v978, %v994
      %v1003 = vadd.f32 %v979, %v994
      %v1004 = vadd.f32 %v980, %v994
      %v1005 = vadd.f32 %v981, %v994
      %v1006 = vadd.f32 %v982, %v994
      %v1007 = vadd.f32 %v983, %v994
      %v1008 = vadd.f32 %v984, %v994
      %v1009 = vadd.f32 %v985, %v994
      %v1010 = vadd.f32 %v986, %v994
      %v1011 = vadd.f32 %v987, %v994
      %1012 = vmax.xlane.f32.xlu0 %v996
      %v1013 = vpop.xlane.xlu0 %1012
      %1014 = vmax.xlane.f32.xlu0 %v997
      %v1015 = vpop.xlane.xlu0 %1014
      %1016 = vmax.xlane.f32.xlu0 %v998
      %v1017 = vpop.xlane.xlu0 %1016
      %1018 = vmax.xlane.f32.xlu0 %v999
      %v1019 = vpop.xlane.xlu0 %1018
      %1020 = vmax.xlane.f32.xlu0 %v1000
      %v1021 = vpop.xlane.xlu0 %1020
      %1022 = vmax.xlane.f32.xlu0 %v1001
      %v1023 = vpop.xlane.xlu0 %1022
      %1024 = vmax.xlane.f32.xlu0 %v1002
      %v1025 = vpop.xlane.xlu0 %1024
      %1026 = vmax.xlane.f32.xlu0 %v1003
      %v1027 = vpop.xlane.xlu0 %1026
      %1028 = vmax.xlane.f32.xlu0 %v1004
      %v1029 = vpop.xlane.xlu0 %1028
      %1030 = vmax.xlane.f32.xlu0 %v1005
      %v1031 = vpop.xlane.xlu0 %1030
      %1032 = vmax.xlane.f32.xlu0 %v1006
      %v1033 = vpop.xlane.xlu0 %1032
      %1034 = vmax.xlane.f32.xlu0 %v1007
      %v1035 = vpop.xlane.xlu0 %1034
      %1036 = vmax.xlane.f32.xlu0 %v1008
      %v1037 = vpop.xlane.xlu0 %1036
      %1038 = vmax.xlane.f32.xlu0 %v1009
      %v1039 = vpop.xlane.xlu0 %1038
      %1040 = vmax.xlane.f32.xlu0 %v1010
      %v1041 = vpop.xlane.xlu0 %1040
      %1042 = vmax.xlane.f32.xlu0 %v1011
      %v1043 = vpop.xlane.xlu0 %1042
      %v1044 = vsub.f32 %v996, %v1013
      %v1045 = vsub.f32 %v997, %v1015
      %v1046 = vsub.f32 %v998, %v1017
      %v1047 = vsub.f32 %v999, %v1019
      %v1048 = vsub.f32 %v1000, %v1021
      %v1049 = vsub.f32 %v1001, %v1023
      %v1050 = vsub.f32 %v1002, %v1025
      %v1051 = vsub.f32 %v1003, %v1027
      %v1052 = vsub.f32 %v1004, %v1029
      %v1053 = vsub.f32 %v1005, %v1031
      %v1054 = vsub.f32 %v1006, %v1033
      %v1055 = vsub.f32 %v1007, %v1035
      %v1056 = vsub.f32 %v1008, %v1037
      %v1057 = vsub.f32 %v1009, %v1039
      %v1058 = vsub.f32 %v1010, %v1041
      %v1059 = vsub.f32 %v1011, %v1043
      %v1060 = vmul.f32 %v1044, 1.442695
      %v1061 = vpow.pop %v1060
      %v1062 = vmul.f32 %v1045, 1.442695
      %v1063 = vpow.pop %v1062
      %v1064 = vmul.f32 %v1046, 1.442695
      %v1065 = vpow.pop %v1064
      %v1066 = vmul.f32 %v1047, 1.442695
      %v1067 = vpow.pop %v1066
      %v1068 = vmul.f32 %v1048, 1.442695
      %v1069 = vpow.pop %v1068
      %v1070 = vmul.f32 %v1049, 1.442695
      %v1071 = vpow.pop %v1070
      %v1072 = vmul.f32 %v1050, 1.442695
      %v1073 = vpow.pop %v1072
      %v1074 = vmul.f32 %v1051, 1.442695
      %v1075 = vpow.pop %v1074
      %v1076 = vmul.f32 %v1052, 1.442695
      %v1077 = vpow.pop %v1076
      %v1078 = vmul.f32 %v1053, 1.442695
      %v1079 = vpow.pop %v1078
      %v1080 = vmul.f32 %v1054, 1.442695
      %v1081 = vpow.pop %v1080
      %v1082 = vmul.f32 %v1055, 1.442695
      %v1083 = vpow.pop %v1082
      %v1084 = vmul.f32 %v1056, 1.442695
      %v1085 = vpow.pop %v1084
      %v1086 = vmul.f32 %v1057, 1.442695
      %v1087 = vpow.pop %v1086
      %v1088 = vmul.f32 %v1058, 1.442695
      %v1089 = vpow.pop %v1088
      %v1090 = vmul.f32 %v1059, 1.442695
      %v1091 = vpow.pop %v1090
      %1092 = vadd.xlane.f32.xlu0 %v1061
      %v1093 = vpop.xlane.xlu0 %1092
      %1094 = vadd.xlane.f32.xlu0 %v1063
      %v1095 = vpop.xlane.xlu0 %1094
      %1096 = vadd.xlane.f32.xlu0 %v1065
      %v1097 = vpop.xlane.xlu0 %1096
      %1098 = vadd.xlane.f32.xlu0 %v1067
      %v1099 = vpop.xlane.xlu0 %1098
      %1100 = vadd.xlane.f32.xlu0 %v1069
      %v1101 = vpop.xlane.xlu0 %1100
      %1102 = vadd.xlane.f32.xlu0 %v1071
      %v1103 = vpop.xlane.xlu0 %1102
      %1104 = vadd.xlane.f32.xlu0 %v1073
      %v1105 = vpop.xlane.xlu0 %1104
      %1106 = vadd.xlane.f32.xlu0 %v1075
      %v1107 = vpop.xlane.xlu0 %1106
      %1108 = vadd.xlane.f32.xlu0 %v1077
      %v1109 = vpop.xlane.xlu0 %1108
      %1110 = vadd.xlane.f32.xlu0 %v1079
      %v1111 = vpop.xlane.xlu0 %1110
      %1112 = vadd.xlane.f32.xlu0 %v1081
      %v1113 = vpop.xlane.xlu0 %1112
      %1114 = vadd.xlane.f32.xlu0 %v1083
      %v1115 = vpop.xlane.xlu0 %1114
      %1116 = vadd.xlane.f32.xlu0 %v1085
      %v1117 = vpop.xlane.xlu0 %1116
      %1118 = vadd.xlane.f32.xlu0 %v1087
      %v1119 = vpop.xlane.xlu0 %1118
      %1120 = vadd.xlane.f32.xlu0 %v1089
      %v1121 = vpop.xlane.xlu0 %1120
      %1122 = vadd.xlane.f32.xlu0 %v1091
      %v1123 = vpop.xlane.xlu0 %1122
      %v1124 = vrcp.pop %v1093
      %v1125 = vrcp.pop %v1095
      %v1126 = vrcp.pop %v1097
      %v1127 = vrcp.pop %v1099
      %v1128 = vrcp.pop %v1101
      %v1129 = vrcp.pop %v1103
      %v1130 = vrcp.pop %v1105
      %v1131 = vrcp.pop %v1107
      %v1132 = vrcp.pop %v1109
      %v1133 = vrcp.pop %v1111
      %v1134 = vrcp.pop %v1113
      %v1135 = vrcp.pop %v1115
      %v1136 = vrcp.pop %v1117
      %v1137 = vrcp.pop %v1119
      %v1138 = vrcp.pop %v1121
      %v1139 = vrcp.pop %v1123
      %v1140 = vpack.c.bf16 %v1063, %v1061
      %v1141 = vpack.c.bf16 %v1067, %v1065
      %v1142 = vpack.c.bf16 %v1071, %v1069
      %v1143 = vpack.c.bf16 %v1075, %v1073
      %v1144 = vpack.c.bf16 %v1079, %v1077
      %v1145 = vpack.c.bf16 %v1083, %v1081
      %v1146 = vpack.c.bf16 %v1087, %v1085
      %v1147 = vpack.c.bf16 %v1091, %v1089
      %v1148 = vld [vmem:[%s623] sm:$0xf]
      %v1149 = vld [vmem:[%s623 + $0x4] sm:$0xf]
      %v1150 = vld [vmem:[%s623 + $0x8] sm:$0xf]
      %v1151 = vld [vmem:[%s623 + $0xc] sm:$0xf]
      %v1152 = vld [vmem:[%s623 + $0x10] sm:$0xf]
      %v1153 = vld [vmem:[%s623 + $0x14] sm:$0xf]
      %v1154 = vld [vmem:[%s623 + $0x18] sm:$0xf]
      %v1155 = vld [vmem:[%s623 + $0x1c] sm:$0xf]
      %v1156 = vld [vmem:[%s623 + $0x20] sm:$0xf]
      %v1157 = vld [vmem:[%s623 + $0x24] sm:$0xf]
      %v1158 = vld [vmem:[%s623 + $0x28] sm:$0xf]
      %v1159 = vld [vmem:[%s623 + $0x2c] sm:$0xf]
      %v1160 = vld [vmem:[%s623 + $0x30] sm:$0xf]
      %v1161 = vld [vmem:[%s623 + $0x34] sm:$0xf]
      %v1162 = vld [vmem:[%s623 + $0x38] sm:$0xf]
      %v1163 = vld [vmem:[%s623 + $0x3c] sm:$0xf]
      %v1180 = vunpack.c.l.b16 %v1148
      %v1181 = vunpack.c.l.b16 %v1149
      %v1182 = vunpack.c.l.b16 %v1150
      %v1183 = vunpack.c.l.b16 %v1151
      %v1184 = vunpack.c.l.b16 %v1152
      %v1185 = vunpack.c.l.b16 %v1153
      %v1186 = vunpack.c.l.b16 %v1154
      %v1187 = vunpack.c.l.b16 %v1155
      %v1188 = vunpack.c.l.b16 %v1156
      %v1189 = vunpack.c.l.b16 %v1157
      %v1190 = vunpack.c.l.b16 %v1158
      %v1191 = vunpack.c.l.b16 %v1159
      %v1192 = vunpack.c.l.b16 %v1160
      %v1193 = vunpack.c.l.b16 %v1161
      %v1194 = vunpack.c.l.b16 %v1162
      %v1195 = vunpack.c.l.b16 %v1163
      %v1196 = vpack.c.b16 %v1181, %v1180
      %v1197 = vpack.c.b16 %v1183, %v1182
      %v1198 = vpack.c.b16 %v1185, %v1184
      %v1199 = vpack.c.b16 %v1187, %v1186
      %v1200 = vpack.c.b16 %v1189, %v1188
      %v1201 = vpack.c.b16 %v1191, %v1190
      %v1202 = vpack.c.b16 %v1193, %v1192
      %v1203 = vpack.c.b16 %v1195, %v1194
      %1212 = vmatprep.subr.bf16.mxu0 0
      %1213 = vmatpush1.bf16.msra.mxu0 %v1196
      %1214 = vmatprep.subr.bf16.mxu0 0
      %1215 = vmatpush1.bf16.msra.mxu0 %v1197
      %1216 = vmatprep.subr.bf16.mxu0 0
      %1217 = vmatpush1.bf16.msra.mxu0 %v1198
      %1218 = vmatprep.subr.bf16.mxu0 0
      %1219 = vmatpush1.bf16.msra.mxu0 %v1199
      %1220 = vmatprep.subr.bf16.mxu0 0
      %1221 = vmatpush1.bf16.msra.mxu0 %v1200
      %1222 = vmatprep.subr.bf16.mxu0 0
      %1223 = vmatpush1.bf16.msra.mxu0 %v1201
      %1224 = vmatprep.subr.bf16.mxu0 0
      %1225 = vmatpush1.bf16.msra.mxu0 %v1202
      %1226 = vmatprep.subr.bf16.mxu0 0
      %1227 = vmatpush1.bf16.msra.mxu0 %v1203
      %1228 = vmatprep.subr.bf16.mxu0 0
      %1229 = vmatpush1.bf16.msra.mxu0 0
      %1230 = vmatprep.subr.bf16.mxu0 0
      %1231 = vmatpush1.bf16.msra.mxu0 0
      %1232 = vmatprep.subr.bf16.mxu0 0
      %1233 = vmatpush1.bf16.msra.mxu0 0
      %1234 = vmatprep.subr.bf16.mxu0 0
      %1235 = vmatpush1.bf16.msra.mxu0 0
      %1236 = vmatprep.subr.bf16.mxu0 0
      %1237 = vmatpush1.bf16.msra.mxu0 0
      %1238 = vmatprep.subr.bf16.mxu0 0
      %1239 = vmatpush1.bf16.msra.mxu0 0
      %1240 = vmatprep.subr.bf16.mxu0 0
      %1241 = vmatpush1.bf16.msra.mxu0 0
      %1242 = vmatprep.subr.bf16.mxu0 0
      %1243 = vmatpush1.bf16.msra.mxu0 0
      %1244 = vmatprep.mubr.bf16.mxu0 0
      %1245 = vmatmul.mubr.bf16.gmra.mrb[0].mxu0 %v1140
      %v1246 = vpop.f32.mrb[0].mxu0
      %v1247 = vadd.f32 0.0, %v1246
      %v1248 = vpop.f32.mrb[0].mxu0
      %v1249 = vpop.f32.mrb[0].mxu0
      %v1250 = vadd.f32 0.0, %v1249
      %v1251 = vpop.f32.mrb[0].mxu0
      %1252 = vmatprep.mubr.bf16.mxu0 0
      %1253 = vmatmul.mubr.bf16.gmra.mrb[0].mxu0 %v1141
      %v1254 = vpop.f32.mrb[0].mxu0
      %v1255 = vadd.f32 0.0, %v1254
      %v1256 = vpop.f32.mrb[0].mxu0
      %v1257 = vpop.f32.mrb[0].mxu0
      %v1258 = vadd.f32 0.0, %v1257
      %v1259 = vpop.f32.mrb[0].mxu0
      %1260 = vmatprep.mubr.bf16.mxu0 0
      %1261 = vmatmul.mubr.bf16.gmra.mrb[0].mxu0 %v1142
      %v1262 = vpop.f32.mrb[0].mxu0
      %v1263 = vadd.f32 0.0, %v1262
      %v1264 = vpop.f32.mrb[0].mxu0
      %v1265 = vpop.f32.mrb[0].mxu0
      %v1266 = vadd.f32 0.0, %v1265
      %v1267 = vpop.f32.mrb[0].mxu0
      %1268 = vmatprep.mubr.bf16.mxu0 0
      %1269 = vmatmul.mubr.bf16.gmra.mrb[0].mxu0 %v1143
      %v1270 = vpop.f32.mrb[0].mxu0
      %v1271 = vadd.f32 0.0, %v1270
      %v1272 = vpop.f32.mrb[0].mxu0
      %v1273 = vpop.f32.mrb[0].mxu0
      %v1274 = vadd.f32 0.0, %v1273
      %v1275 = vpop.f32.mrb[0].mxu0
      %1276 = vmatprep.mubr.bf16.mxu0 0
      %1277 = vmatmul.mubr.bf16.gmra.mrb[0].mxu0 %v1144
      %v1278 = vpop.f32.mrb[0].mxu0
      %v1279 = vadd.f32 0.0, %v1278
      %v1280 = vpop.f32.mrb[0].mxu0
      %v1281 = vpop.f32.mrb[0].mxu0
      %v1282 = vadd.f32 0.0, %v1281
      %v1283 = vpop.f32.mrb[0].mxu0
      %1284 = vmatprep.mubr.bf16.mxu0 0
      %1285 = vmatmul.mubr.bf16.gmra.mrb[0].mxu0 %v1145
      %v1286 = vpop.f32.mrb[0].mxu0
      %v1287 = vadd.f32 0.0, %v1286
      %v1288 = vpop.f32.mrb[0].mxu0
      %v1289 = vpop.f32.mrb[0].mxu0
      %v1290 = vadd.f32 0.0, %v1289
      %v1291 = vpop.f32.mrb[0].mxu0
      %1292 = vmatprep.mubr.bf16.mxu0 0
      %1293 = vmatmul.mubr.bf16.gmra.mrb[0].mxu0 %v1146
      %v1294 = vpop.f32.mrb[0].mxu0
      %v1295 = vadd.f32 0.0, %v1294
      %v1296 = vpop.f32.mrb[0].mxu0
      %v1297 = vpop.f32.mrb[0].mxu0
      %v1298 = vadd.f32 0.0, %v1297
      %v1299 = vpop.f32.mrb[0].mxu0
      %1300 = vmatprep.mubr.bf16.mxu0 0
      %1301 = vmatmul.mubr.bf16.gmra.mrb[0].mxu0 %v1147
      %v1302 = vpop.f32.mrb[0].mxu0
      %v1303 = vadd.f32 0.0, %v1302
      %v1304 = vpop.f32.mrb[0].mxu0
      %v1305 = vpop.f32.mrb[0].mxu0
      %v1306 = vadd.f32 0.0, %v1305
      %v1307 = vpop.f32.mrb[0].mxu0
      %1308 = vdwg.mxu0
      %v1309 = vmul.f32 %v1247, %v1124
      %v1310 = vmul.f32 %v1250, %v1125
      %v1311 = vmul.f32 %v1255, %v1126
      %v1312 = vmul.f32 %v1258, %v1127
      %v1313 = vmul.f32 %v1263, %v1128
      %v1314 = vmul.f32 %v1266, %v1129
      %v1315 = vmul.f32 %v1271, %v1130
      %v1316 = vmul.f32 %v1274, %v1131
      %v1317 = vmul.f32 %v1279, %v1132
      %v1318 = vmul.f32 %v1282, %v1133
      %v1319 = vmul.f32 %v1287, %v1134
      %v1320 = vmul.f32 %v1290, %v1135
      %v1321 = vmul.f32 %v1295, %v1136
      %v1322 = vmul.f32 %v1298, %v1137
      %v1323 = vmul.f32 %v1303, %v1138
      %v1324 = vmul.f32 %v1306, %v1139
      %v1325 = vpack.c.bf16 %v1310, %v1309
      %v1326 = vpack.c.bf16 %v1312, %v1311
      %v1327 = vpack.c.bf16 %v1314, %v1313
      %v1328 = vpack.c.bf16 %v1316, %v1315
      %v1329 = vpack.c.bf16 %v1318, %v1317
      %v1330 = vpack.c.bf16 %v1320, %v1319
      %v1331 = vpack.c.bf16 %v1322, %v1321
      %v1332 = vpack.c.bf16 %v1324, %v1323
      %v1333 = vld [vmem:[#allocation2] sm:$0xff]
      %v1334 = vld [vmem:[#allocation2 + $0x8] sm:$0xff]
      %v1335 = vld [vmem:[#allocation2 + $0x10] sm:$0xff]
      %v1336 = vld [vmem:[#allocation2 + $0x18] sm:$0xff]
      %v1337 = vld [vmem:[#allocation2 + $0x20] sm:$0xff]
      %v1338 = vld [vmem:[#allocation2 + $0x28] sm:$0xff]
      %v1339 = vld [vmem:[#allocation2 + $0x30] sm:$0xff]
      %v1340 = vld [vmem:[#allocation2 + $0x38] sm:$0xff]
      %v1341 = vld [vmem:[#allocation2 + $0x40] sm:$0xff]
      %v1342 = vld [vmem:[#allocation2 + $0x48] sm:$0xff]
      %v1343 = vld [vmem:[#allocation2 + $0x50] sm:$0xff]
      %v1344 = vld [vmem:[#allocation2 + $0x58] sm:$0xff]
      %v1345 = vld [vmem:[#allocation2 + $0x60] sm:$0xff]
      %v1346 = vld [vmem:[#allocation2 + $0x68] sm:$0xff]
      %v1347 = vld [vmem:[#allocation2 + $0x70] sm:$0xff]
      %v1348 = vld [vmem:[#allocation2 + $0x78] sm:$0xff]
      %v1349 = vld [vmem:[%s628] sm:$0xf]
      %v1350 = vld [vmem:[%s628 + $0x4] sm:$0xf]
      %v1353 = vunpack.c.l.b16 %v1349
      %v1354 = vunpack.c.l.b16 %v1350
      %v1355 = vpack.c.b16 %v1354, %v1353
      %v1358 = vsel %vm772, %v1325, 0
      %v1361 = vsel %vm772, %v1326, 0
      %v1364 = vsel %vm772, %v1327, 0
      %v1367 = vsel %vm772, %v1328, 0
      %v1370 = vsel %vm772, %v1329, 0
      %v1373 = vsel %vm772, %v1330, 0
      %v1376 = vsel %vm772, %v1331, 0
      %v1379 = vsel %vm772, %v1332, 0
      %1381 = vmatprep.subr.bf16.mxu0 0
      %1382 = vmatpush1.bf16.msra.mxu0 %v1355
      %1383 = vmatprep.subr.bf16.mxu0 0
      %1384 = vmatpush1.bf16.msra.mxu0 0
      %1385 = vmatprep.subr.bf16.mxu0 0
      %1386 = vmatpush1.bf16.msra.mxu0 0
      %1387 = vmatprep.subr.bf16.mxu0 0
      %1388 = vmatpush1.bf16.msra.mxu0 0
      %1389 = vmatprep.subr.bf16.mxu0 0
      %1390 = vmatpush1.bf16.msra.mxu0 0
      %1391 = vmatprep.subr.bf16.mxu0 0
      %1392 = vmatpush1.bf16.msra.mxu0 0
      %1393 = vmatprep.subr.bf16.mxu0 0
      %1394 = vmatpush1.bf16.msra.mxu0 0
      %1395 = vmatprep.subr.bf16.mxu0 0
      %1396 = vmatpush1.bf16.msra.mxu0 0
      %1397 = vmatprep.subr.bf16.mxu0 0
      %1398 = vmatpush1.bf16.msra.mxu0 0
      %1399 = vmatprep.subr.bf16.mxu0 0
      %1400 = vmatpush1.bf16.msra.mxu0 0
      %1401 = vmatprep.subr.bf16.mxu0 0
      %1402 = vmatpush1.bf16.msra.mxu0 0
      %1403 = vmatprep.subr.bf16.mxu0 0
      %1404 = vmatpush1.bf16.msra.mxu0 0
      %1405 = vmatprep.subr.bf16.mxu0 0
      %1406 = vmatpush1.bf16.msra.mxu0 0
      %1407 = vmatprep.subr.bf16.mxu0 0
      %1408 = vmatpush1.bf16.msra.mxu0 0
      %1409 = vmatprep.subr.bf16.mxu0 0
      %1410 = vmatpush1.bf16.msra.mxu0 0
      %1411 = vmatprep.subr.bf16.mxu0 0
      %1412 = vmatpush1.bf16.msra.mxu0 0
      %1413 = vmatprep.mubr.bf16.mxu0 0
      %1414 = vmatmul.mubr.bf16.gmra.mrb[0].mxu0 %v1358
      %v1415 = vpop.f32.mrb[0].mxu0
      %v1416 = vadd.f32 0.0, %v1415
      %v1417 = vpop.f32.mrb[0].mxu0
      %v1418 = vpop.f32.mrb[0].mxu0
      %v1419 = vadd.f32 0.0, %v1418
      %v1420 = vpop.f32.mrb[0].mxu0
      %1421 = vmatprep.mubr.bf16.mxu0 0
      %1422 = vmatmul.mubr.bf16.gmra.mrb[0].mxu0 %v1361
      %v1423 = vpop.f32.mrb[0].mxu0
      %v1424 = vadd.f32 0.0, %v1423
      %v1425 = vpop.f32.mrb[0].mxu0
      %v1426 = vpop.f32.mrb[0].mxu0
      %v1427 = vadd.f32 0.0, %v1426
      %v1428 = vpop.f32.mrb[0].mxu0
      %1429 = vmatprep.mubr.bf16.mxu0 0
      %1430 = vmatmul.mubr.bf16.gmra.mrb[0].mxu0 %v1364
      %v1431 = vpop.f32.mrb[0].mxu0
      %v1432 = vadd.f32 0.0, %v1431
      %v1433 = vpop.f32.mrb[0].mxu0
      %v1434 = vpop.f32.mrb[0].mxu0
      %v1435 = vadd.f32 0.0, %v1434
      %v1436 = vpop.f32.mrb[0].mxu0
      %1437 = vmatprep.mubr.bf16.mxu0 0
      %1438 = vmatmul.mubr.bf16.gmra.mrb[0].mxu0 %v1367
      %v1439 = vpop.f32.mrb[0].mxu0
      %v1440 = vadd.f32 0.0, %v1439
      %v1441 = vpop.f32.mrb[0].mxu0
      %v1442 = vpop.f32.mrb[0].mxu0
      %v1443 = vadd.f32 0.0, %v1442
      %v1444 = vpop.f32.mrb[0].mxu0
      %1445 = vmatprep.mubr.bf16.mxu0 0
      %1446 = vmatmul.mubr.bf16.gmra.mrb[0].mxu0 %v1370
      %v1447 = vpop.f32.mrb[0].mxu0
      %v1448 = vadd.f32 0.0, %v1447
      %v1449 = vpop.f32.mrb[0].mxu0
      %v1450 = vpop.f32.mrb[0].mxu0
      %v1451 = vadd.f32 0.0, %v1450
      %v1452 = vpop.f32.mrb[0].mxu0
      %1453 = vmatprep.mubr.bf16.mxu0 0
      %1454 = vmatmul.mubr.bf16.gmra.mrb[0].mxu0 %v1373
      %v1455 = vpop.f32.mrb[0].mxu0
      %v1456 = vadd.f32 0.0, %v1455
      %v1457 = vpop.f32.mrb[0].mxu0
      %v1458 = vpop.f32.mrb[0].mxu0
      %v1459 = vadd.f32 0.0, %v1458
      %v1460 = vpop.f32.mrb[0].mxu0
      %1461 = vmatprep.mubr.bf16.mxu0 0
      %1462 = vmatmul.mubr.bf16.gmra.mrb[0].mxu0 %v1376
      %v1463 = vpop.f32.mrb[0].mxu0
      %v1464 = vadd.f32 0.0, %v1463
      %v1465 = vpop.f32.mrb[0].mxu0
      %v1466 = vpop.f32.mrb[0].mxu0
      %v1467 = vadd.f32 0.0, %v1466
      %v1468 = vpop.f32.mrb[0].mxu0
      %1469 = vmatprep.mubr.bf16.mxu0 0
      %1470 = vmatmul.mubr.bf16.gmra.mrb[0].mxu0 %v1379
      %v1471 = vpop.f32.mrb[0].mxu0
      %v1472 = vadd.f32 0.0, %v1471
      %v1473 = vpop.f32.mrb[0].mxu0
      %v1474 = vpop.f32.mrb[0].mxu0
      %v1475 = vadd.f32 0.0, %v1474
      %v1476 = vpop.f32.mrb[0].mxu0
      %1477 = vdwg.mxu0
      %v1478 = vadd.f32 %v1333, %v1416
      %v1479 = vadd.f32 %v1334, %v1419
      %v1480 = vadd.f32 %v1335, %v1424
      %v1481 = vadd.f32 %v1336, %v1427
      %v1482 = vadd.f32 %v1337, %v1432
      %v1483 = vadd.f32 %v1338, %v1435
      %v1484 = vadd.f32 %v1339, %v1440
      %v1485 = vadd.f32 %v1340, %v1443
      %v1486 = vadd.f32 %v1341, %v1448
      %v1487 = vadd.f32 %v1342, %v1451
      %v1488 = vadd.f32 %v1343, %v1456
      %v1489 = vadd.f32 %v1344, %v1459
      %v1490 = vadd.f32 %v1345, %v1464
      %v1491 = vadd.f32 %v1346, %v1467
      %v1492 = vadd.f32 %v1347, %v1472
      %v1493 = vadd.f32 %v1348, %v1475
      %1494 = vst [vmem:[#allocation2] sm:$0xff] %v1478
      %1495 = vst [vmem:[#allocation2 + $0x8] sm:$0xff] %v1479
      %1496 = vst [vmem:[#allocation2 + $0x10] sm:$0xff] %v1480
      %1497 = vst [vmem:[#allocation2 + $0x18] sm:$0xff] %v1481
      %1498 = vst [vmem:[#allocation2 + $0x20] sm:$0xff] %v1482
      %1499 = vst [vmem:[#allocation2 + $0x28] sm:$0xff] %v1483
      %1500 = vst [vmem:[#allocation2 + $0x30] sm:$0xff] %v1484
      %1501 = vst [vmem:[#allocation2 + $0x38] sm:$0xff] %v1485
      %1502 = vst [vmem:[#allocation2 + $0x40] sm:$0xff] %v1486
      %1503 = vst [vmem:[#allocation2 + $0x48] sm:$0xff] %v1487
      %1504 = vst [vmem:[#allocation2 + $0x50] sm:$0xff] %v1488
      %1505 = vst [vmem:[#allocation2 + $0x58] sm:$0xff] %v1489
      %1506 = vst [vmem:[#allocation2 + $0x60] sm:$0xff] %v1490
      %1507 = vst [vmem:[#allocation2 + $0x68] sm:$0xff] %v1491
      %1508 = vst [vmem:[#allocation2 + $0x70] sm:$0xff] %v1492
      %1509 = vst [vmem:[#allocation2 + $0x78] sm:$0xff] %v1493
      %p1510 = scmp.eq.s32.totalorder %s31, 7
      // Predicated region
      $region77: #{run.3} parent=71 // pred_check
        %p1511 = pneg %p1510
      $region78: #{run.3} parent=71 // pred_check_branch
        %1513 = sbr.rel (%p1511) target = $region80
      $region79: #{run.3} parent=71 // pred_region
        %v1514 = vld [vmem:[%s587] sm:$0xff]
        %v1515 = vld [vmem:[%s587 + $0x8] sm:$0xff]
        %v1516 = vld [vmem:[%s587 + $0x10] sm:$0xff]
        %v1517 = vld [vmem:[%s587 + $0x18] sm:$0xff]
        %v1518 = vld [vmem:[%s587 + $0x20] sm:$0xff]
        %v1519 = vld [vmem:[%s587 + $0x28] sm:$0xff]
        %v1520 = vld [vmem:[%s587 + $0x30] sm:$0xff]
        %v1521 = vld [vmem:[%s587 + $0x38] sm:$0xff]
        %v1522 = vld [vmem:[%s587 + $0x40] sm:$0xff]
        %v1523 = vld [vmem:[%s587 + $0x48] sm:$0xff]
        %v1524 = vld [vmem:[%s587 + $0x50] sm:$0xff]
        %v1525 = vld [vmem:[%s587 + $0x58] sm:$0xff]
        %v1526 = vld [vmem:[%s587 + $0x60] sm:$0xff]
        %v1527 = vld [vmem:[%s587 + $0x68] sm:$0xff]
        %v1528 = vld [vmem:[%s587 + $0x70] sm:$0xff]
        %v1529 = vld [vmem:[%s587 + $0x78] sm:$0xff]
        %v1530 = vld [vmem:[#allocation2] sm:$0xff]
        %v1531 = vld [vmem:[#allocation2 + $0x8] sm:$0xff]
        %v1532 = vld [vmem:[#allocation2 + $0x10] sm:$0xff]
        %v1533 = vld [vmem:[#allocation2 + $0x18] sm:$0xff]
        %v1534 = vld [vmem:[#allocation2 + $0x20] sm:$0xff]
        %v1535 = vld [vmem:[#allocation2 + $0x28] sm:$0xff]
        %v1536 = vld [vmem:[#allocation2 + $0x30] sm:$0xff]
        %v1537 = vld [vmem:[#allocation2 + $0x38] sm:$0xff]
        %v1538 = vld [vmem:[#allocation2 + $0x40] sm:$0xff]
        %v1539 = vld [vmem:[#allocation2 + $0x48] sm:$0xff]
        %v1540 = vld [vmem:[#allocation2 + $0x50] sm:$0xff]
        %v1541 = vld [vmem:[#allocation2 + $0x58] sm:$0xff]
        %v1542 = vld [vmem:[#allocation2 + $0x60] sm:$0xff]
        %v1543 = vld [vmem:[#allocation2 + $0x68] sm:$0xff]
        %v1544 = vld [vmem:[#allocation2 + $0x70] sm:$0xff]
        %v1545 = vld [vmem:[#allocation2 + $0x78] sm:$0xff]
        %v1546 = vadd.f32 %v1514, %v1530
        %v1547 = vadd.f32 %v1515, %v1531
        %v1548 = vadd.f32 %v1516, %v1532
        %v1549 = vadd.f32 %v1517, %v1533
        %v1550 = vadd.f32 %v1518, %v1534
        %v1551 = vadd.f32 %v1519, %v1535
        %v1552 = vadd.f32 %v1520, %v1536
        %v1553 = vadd.f32 %v1521, %v1537
        %v1554 = vadd.f32 %v1522, %v1538
        %v1555 = vadd.f32 %v1523, %v1539
        %v1556 = vadd.f32 %v1524, %v1540
        %v1557 = vadd.f32 %v1525, %v1541
        %v1558 = vadd.f32 %v1526, %v1542
        %v1559 = vadd.f32 %v1527, %v1543
        %v1560 = vadd.f32 %v1528, %v1544
        %v1561 = vadd.f32 %v1529, %v1545
        %v1562 = vld [vmem:[%s6] sm:$0x1]
        %v1564 = vlaneseq
        %v1565 = vshrl.u32 %v1564, 7
        %v1566 = vsub.s32 0, %v1565
        %v1567 = vrot.slane %v1562, %v1566
        %v1569 = vadd.f32 %v1546, %v1567
        %v1570 = vadd.f32 %v1547, %v1567
        %v1571 = vadd.f32 %v1548, %v1567
        %v1572 = vadd.f32 %v1549, %v1567
        %v1573 = vadd.f32 %v1550, %v1567
        %v1574 = vadd.f32 %v1551, %v1567
        %v1575 = vadd.f32 %v1552, %v1567
        %v1576 = vadd.f32 %v1553, %v1567
        %v1577 = vadd.f32 %v1554, %v1567
        %v1578 = vadd.f32 %v1555, %v1567
        %v1579 = vadd.f32 %v1556, %v1567
        %v1580 = vadd.f32 %v1557, %v1567
        %v1581 = vadd.f32 %v1558, %v1567
        %v1582 = vadd.f32 %v1559, %v1567
        %v1583 = vadd.f32 %v1560, %v1567
        %v1584 = vadd.f32 %v1561, %v1567
        %1585 = vadd.xlane.f32.xlu0 %v1569
        %v1586 = vpop.xlane.xlu0 %1585
        %1587 = vadd.xlane.f32.xlu0 %v1570
        %v1588 = vpop.xlane.xlu0 %1587
        %1589 = vadd.xlane.f32.xlu0 %v1571
        %v1590 = vpop.xlane.xlu0 %1589
        %1591 = vadd.xlane.f32.xlu0 %v1572
        %v1592 = vpop.xlane.xlu0 %1591
        %1593 = vadd.xlane.f32.xlu0 %v1573
        %v1594 = vpop.xlane.xlu0 %1593
        %1595 = vadd.xlane.f32.xlu0 %v1574
        %v1596 = vpop.xlane.xlu0 %1595
        %1597 = vadd.xlane.f32.xlu0 %v1575
        %v1598 = vpop.xlane.xlu0 %1597
        %1599 = vadd.xlane.f32.xlu0 %v1576
        %v1600 = vpop.xlane.xlu0 %1599
        %1601 = vadd.xlane.f32.xlu0 %v1577
        %v1602 = vpop.xlane.xlu0 %1601
        %1603 = vadd.xlane.f32.xlu0 %v1578
        %v1604 = vpop.xlane.xlu0 %1603
        %1605 = vadd.xlane.f32.xlu0 %v1579
        %v1606 = vpop.xlane.xlu0 %1605
        %1607 = vadd.xlane.f32.xlu0 %v1580
        %v1608 = vpop.xlane.xlu0 %1607
        %1609 = vadd.xlane.f32.xlu0 %v1581
        %v1610 = vpop.xlane.xlu0 %1609
        %1611 = vadd.xlane.f32.xlu0 %v1582
        %v1612 = vpop.xlane.xlu0 %1611
        %1613 = vadd.xlane.f32.xlu0 %v1583
        %v1614 = vpop.xlane.xlu0 %1613
        %1615 = vadd.xlane.f32.xlu0 %v1584
        %v1616 = vpop.xlane.xlu0 %1615
        %v1617 = vrcp.pop 128.0
        %v1618 = vmul.f32 %v1586, %v1617
        %v1619 = vmul.f32 %v1588, %v1617
        %v1620 = vmul.f32 %v1590, %v1617
        %v1621 = vmul.f32 %v1592, %v1617
        %v1622 = vmul.f32 %v1594, %v1617
        %v1623 = vmul.f32 %v1596, %v1617
        %v1624 = vmul.f32 %v1598, %v1617
        %v1625 = vmul.f32 %v1600, %v1617
        %v1626 = vmul.f32 %v1602, %v1617
        %v1627 = vmul.f32 %v1604, %v1617
        %v1628 = vmul.f32 %v1606, %v1617
        %v1629 = vmul.f32 %v1608, %v1617
        %v1630 = vmul.f32 %v1610, %v1617
        %v1631 = vmul.f32 %v1612, %v1617
        %v1632 = vmul.f32 %v1614, %v1617
        %v1633 = vmul.f32 %v1616, %v1617
        %v1634 = vsub.f32 %v1569, %v1618
        %v1635 = vsub.f32 %v1570, %v1619
        %v1636 = vsub.f32 %v1571, %v1620
        %v1637 = vsub.f32 %v1572, %v1621
        %v1638 = vsub.f32 %v1573, %v1622
        %v1639 = vsub.f32 %v1574, %v1623
        %v1640 = vsub.f32 %v1575, %v1624
        %v1641 = vsub.f32 %v1576, %v1625
        %v1642 = vsub.f32 %v1577, %v1626
        %v1643 = vsub.f32 %v1578, %v1627
        %v1644 = vsub.f32 %v1579, %v1628
        %v1645 = vsub.f32 %v1580, %v1629
        %v1646 = vsub.f32 %v1581, %v1630
        %v1647 = vsub.f32 %v1582, %v1631
        %v1648 = vsub.f32 %v1583, %v1632
        %v1649 = vsub.f32 %v1584, %v1633
        %v1650 = vmul.f32 %v1634, %v1634
        %v1651 = vmul.f32 %v1635, %v1635
        %v1652 = vmul.f32 %v1636, %v1636
        %v1653 = vmul.f32 %v1637, %v1637
        %v1654 = vmul.f32 %v1638, %v1638
        %v1655 = vmul.f32 %v1639, %v1639
        %v1656 = vmul.f32 %v1640, %v1640
        %v1657 = vmul.f32 %v1641, %v1641
        %v1658 = vmul.f32 %v1642, %v1642
        %v1659 = vmul.f32 %v1643, %v1643
        %v1660 = vmul.f32 %v1644, %v1644
        %v1661 = vmul.f32 %v1645, %v1645
        %v1662 = vmul.f32 %v1646, %v1646
        %v1663 = vmul.f32 %v1647, %v1647
        %v1664 = vmul.f32 %v1648, %v1648
        %v1665 = vmul.f32 %v1649, %v1649
        %1666 = vadd.xlane.f32.xlu0 %v1650
        %v1667 = vpop.xlane.xlu0 %1666
        %1668 = vadd.xlane.f32.xlu0 %v1651
        %v1669 = vpop.xlane.xlu0 %1668
        %1670 = vadd.xlane.f32.xlu0 %v1652
        %v1671 = vpop.xlane.xlu0 %1670
        %1672 = vadd.xlane.f32.xlu0 %v1653
        %v1673 = vpop.xlane.xlu0 %1672
        %1674 = vadd.xlane.f32.xlu0 %v1654
        %v1675 = vpop.xlane.xlu0 %1674
        %1676 = vadd.xlane.f32.xlu0 %v1655
        %v1677 = vpop.xlane.xlu0 %1676
        %1678 = vadd.xlane.f32.xlu0 %v1656
        %v1679 = vpop.xlane.xlu0 %1678
        %1680 = vadd.xlane.f32.xlu0 %v1657
        %v1681 = vpop.xlane.xlu0 %1680
        %1682 = vadd.xlane.f32.xlu0 %v1658
        %v1683 = vpop.xlane.xlu0 %1682
        %1684 = vadd.xlane.f32.xlu0 %v1659
        %v1685 = vpop.xlane.xlu0 %1684
        %1686 = vadd.xlane.f32.xlu0 %v1660
        %v1687 = vpop.xlane.xlu0 %1686
        %1688 = vadd.xlane.f32.xlu0 %v1661
        %v1689 = vpop.xlane.xlu0 %1688
        %1690 = vadd.xlane.f32.xlu0 %v1662
        %v1691 = vpop.xlane.xlu0 %1690
        %1692 = vadd.xlane.f32.xlu0 %v1663
        %v1693 = vpop.xlane.xlu0 %1692
        %1694 = vadd.xlane.f32.xlu0 %v1664
        %v1695 = vpop.xlane.xlu0 %1694
        %1696 = vadd.xlane.f32.xlu0 %v1665
        %v1697 = vpop.xlane.xlu0 %1696
        %v1698 = vmul.f32 %v1667, %v1617
        %v1699 = vmul.f32 %v1669, %v1617
        %v1700 = vmul.f32 %v1671, %v1617
        %v1701 = vmul.f32 %v1673, %v1617
        %v1702 = vmul.f32 %v1675, %v1617
        %v1703 = vmul.f32 %v1677, %v1617
        %v1704 = vmul.f32 %v1679, %v1617
        %v1705 = vmul.f32 %v1681, %v1617
        %v1706 = vmul.f32 %v1683, %v1617
        %v1707 = vmul.f32 %v1685, %v1617
        %v1708 = vmul.f32 %v1687, %v1617
        %v1709 = vmul.f32 %v1689, %v1617
        %v1710 = vmul.f32 %v1691, %v1617
        %v1711 = vmul.f32 %v1693, %v1617
        %v1712 = vmul.f32 %v1695, %v1617
        %v1713 = vmul.f32 %v1697, %v1617
        %v1714 = vadd.f32 %v1698, 1e-05
        %v1715 = vadd.f32 %v1699, 1e-05
        %v1716 = vadd.f32 %v1700, 1e-05
        %v1717 = vadd.f32 %v1701, 1e-05
        %v1718 = vadd.f32 %v1702, 1e-05
        %v1719 = vadd.f32 %v1703, 1e-05
        %v1720 = vadd.f32 %v1704, 1e-05
        %v1721 = vadd.f32 %v1705, 1e-05
        %v1722 = vadd.f32 %v1706, 1e-05
        %v1723 = vadd.f32 %v1707, 1e-05
        %v1724 = vadd.f32 %v1708, 1e-05
        %v1725 = vadd.f32 %v1709, 1e-05
        %v1726 = vadd.f32 %v1710, 1e-05
        %v1727 = vadd.f32 %v1711, 1e-05
        %v1728 = vadd.f32 %v1712, 1e-05
        %v1729 = vadd.f32 %v1713, 1e-05
        %v1730 = vrsqrt.pop %v1714
        %v1731 = vrsqrt.pop %v1715
        %v1732 = vrsqrt.pop %v1716
        %v1733 = vrsqrt.pop %v1717
        %v1734 = vrsqrt.pop %v1718
        %v1735 = vrsqrt.pop %v1719
        %v1736 = vrsqrt.pop %v1720
        %v1737 = vrsqrt.pop %v1721
        %v1738 = vrsqrt.pop %v1722
        %v1739 = vrsqrt.pop %v1723
        %v1740 = vrsqrt.pop %v1724
        %v1741 = vrsqrt.pop %v1725
        %v1742 = vrsqrt.pop %v1726
        %v1743 = vrsqrt.pop %v1727
        %v1744 = vrsqrt.pop %v1728
        %v1745 = vrsqrt.pop %v1729
        %v1746 = vmul.f32 %v1634, %v1730
        %v1747 = vmul.f32 %v1635, %v1731
        %v1748 = vmul.f32 %v1636, %v1732
        %v1749 = vmul.f32 %v1637, %v1733
        %v1750 = vmul.f32 %v1638, %v1734
        %v1751 = vmul.f32 %v1639, %v1735
        %v1752 = vmul.f32 %v1640, %v1736
        %v1753 = vmul.f32 %v1641, %v1737
        %v1754 = vmul.f32 %v1642, %v1738
        %v1755 = vmul.f32 %v1643, %v1739
        %v1756 = vmul.f32 %v1644, %v1740
        %v1757 = vmul.f32 %v1645, %v1741
        %v1758 = vmul.f32 %v1646, %v1742
        %v1759 = vmul.f32 %v1647, %v1743
        %v1760 = vmul.f32 %v1648, %v1744
        %v1761 = vmul.f32 %v1649, %v1745
        %v1762 = vld [vmem:[%s7] sm:$0x1]
        %v1764 = vlaneseq
        %v1765 = vshrl.u32 %v1764, 7
        %v1766 = vsub.s32 0, %v1765
        %v1767 = vrot.slane %v1762, %v1766
        %v1769 = vmul.f32 %v1746, %v1767
        %v1770 = vmul.f32 %v1747, %v1767
        %v1771 = vmul.f32 %v1748, %v1767
        %v1772 = vmul.f32 %v1749, %v1767
        %v1773 = vmul.f32 %v1750, %v1767
        %v1774 = vmul.f32 %v1751, %v1767
        %v1775 = vmul.f32 %v1752, %v1767
        %v1776 = vmul.f32 %v1753, %v1767
        %v1777 = vmul.f32 %v1754, %v1767
        %v1778 = vmul.f32 %v1755, %v1767
        %v1779 = vmul.f32 %v1756, %v1767
        %v1780 = vmul.f32 %v1757, %v1767
        %v1781 = vmul.f32 %v1758, %v1767
        %v1782 = vmul.f32 %v1759, %v1767
        %v1783 = vmul.f32 %v1760, %v1767
        %v1784 = vmul.f32 %v1761, %v1767
        %v1785 = vld [vmem:[%s8] sm:$0x1]
        %v1787 = vlaneseq
        %v1788 = vshrl.u32 %v1787, 7
        %v1789 = vsub.s32 0, %v1788
        %v1790 = vrot.slane %v1785, %v1789
        %v1792 = vadd.f32 %v1769, %v1790
        %v1793 = vadd.f32 %v1770, %v1790
        %v1794 = vadd.f32 %v1771, %v1790
        %v1795 = vadd.f32 %v1772, %v1790
        %v1796 = vadd.f32 %v1773, %v1790
        %v1797 = vadd.f32 %v1774, %v1790
        %v1798 = vadd.f32 %v1775, %v1790
        %v1799 = vadd.f32 %v1776, %v1790
        %v1800 = vadd.f32 %v1777, %v1790
        %v1801 = vadd.f32 %v1778, %v1790
        %v1802 = vadd.f32 %v1779, %v1790
        %v1803 = vadd.f32 %v1780, %v1790
        %v1804 = vadd.f32 %v1781, %v1790
        %v1805 = vadd.f32 %v1782, %v1790
        %v1806 = vadd.f32 %v1783, %v1790
        %v1807 = vadd.f32 %v1784, %v1790
        %v1808 = vpack.c.bf16 %v1793, %v1792
        %v1809 = vpack.c.bf16 %v1795, %v1794
        %v1810 = vpack.c.bf16 %v1797, %v1796
        %v1811 = vpack.c.bf16 %v1799, %v1798
        %v1812 = vpack.c.bf16 %v1801, %v1800
        %v1813 = vpack.c.bf16 %v1803, %v1802
        %v1814 = vpack.c.bf16 %v1805, %v1804
        %v1815 = vpack.c.bf16 %v1807, %v1806
        %v1816 = vld [vmem:[%s9] sm:$0xff]
        %v1817 = vld [vmem:[%s9 + $0x8] sm:$0xff]
        %v1818 = vld [vmem:[%s9 + $0x10] sm:$0xff]
        %v1819 = vld [vmem:[%s9 + $0x18] sm:$0xff]
        %v1820 = vld [vmem:[%s9 + $0x20] sm:$0xff]
        %v1821 = vld [vmem:[%s9 + $0x28] sm:$0xff]
        %v1822 = vld [vmem:[%s9 + $0x30] sm:$0xff]
        %v1823 = vld [vmem:[%s9 + $0x38] sm:$0xff]
        %v1824 = vld [vmem:[%s9 + $0x40] sm:$0xff]
        %v1825 = vld [vmem:[%s9 + $0x48] sm:$0xff]
        %v1826 = vld [vmem:[%s9 + $0x50] sm:$0xff]
        %v1827 = vld [vmem:[%s9 + $0x58] sm:$0xff]
        %v1828 = vld [vmem:[%s9 + $0x60] sm:$0xff]
        %v1829 = vld [vmem:[%s9 + $0x68] sm:$0xff]
        %v1830 = vld [vmem:[%s9 + $0x70] sm:$0xff]
        %v1831 = vld [vmem:[%s9 + $0x78] sm:$0xff]
        %v1832 = vld [vmem:[%s9 + $0x80] sm:$0xff]
        %v1833 = vld [vmem:[%s9 + $0x88] sm:$0xff]
        %v1834 = vld [vmem:[%s9 + $0x90] sm:$0xff]
        %v1835 = vld [vmem:[%s9 + $0x98] sm:$0xff]
        %v1836 = vld [vmem:[%s9 + $0xa0] sm:$0xff]
        %v1837 = vld [vmem:[%s9 + $0xa8] sm:$0xff]
        %v1838 = vld [vmem:[%s9 + $0xb0] sm:$0xff]
        %v1839 = vld [vmem:[%s9 + $0xb8] sm:$0xff]
        %v1840 = vld [vmem:[%s9 + $0xc0] sm:$0xff]
        %v1841 = vld [vmem:[%s9 + $0xc8] sm:$0xff]
        %v1842 = vld [vmem:[%s9 + $0xd0] sm:$0xff]
        %v1843 = vld [vmem:[%s9 + $0xd8] sm:$0xff]
        %v1844 = vld [vmem:[%s9 + $0xe0] sm:$0xff]
        %v1845 = vld [vmem:[%s9 + $0xe8] sm:$0xff]
        %v1846 = vld [vmem:[%s9 + $0xf0] sm:$0xff]
        %v1847 = vld [vmem:[%s9 + $0xf8] sm:$0xff]
        %v1848 = vld [vmem:[%s10] sm:$0xf]
        %v1850 = vlaneseq
        %v1851 = vshrl.u32 %v1850, 7
        %v1852 = vsub.s32 0, %v1851
        %v1853 = vrot.slane %v1848, %v1852
        %v1854 = vlaneseq
        %v1855 = vshrl.u32 %v1854, 7
        %v1856 = vsub.s32 1, %v1855
        %v1857 = vrot.slane %v1848, %v1856
        %v1858 = vlaneseq
        %v1859 = vshrl.u32 %v1858, 7
        %v1860 = vsub.s32 2, %v1859
        %v1861 = vrot.slane %v1848, %v1860
        %v1862 = vlaneseq
        %v1863 = vshrl.u32 %v1862, 7
        %v1864 = vsub.s32 3, %v1863
        %v1865 = vrot.slane %v1848, %v1864
        %v1902 = vunpack.c.l.b16 %v1816
        %v1903 = vunpack.c.h.b16 %v1816
        %v1904 = vunpack.c.l.b16 %v1817
        %v1905 = vunpack.c.h.b16 %v1817
        %v1906 = vunpack.c.l.b16 %v1818
        %v1907 = vunpack.c.h.b16 %v1818
        %v1908 = vunpack.c.l.b16 %v1819
        %v1909 = vunpack.c.h.b16 %v1819
        %v1910 = vunpack.c.l.b16 %v1820
        %v1911 = vunpack.c.h.b16 %v1820
        %v1912 = vunpack.c.l.b16 %v1821
        %v1913 = vunpack.c.h.b16 %v1821
        %v1914 = vunpack.c.l.b16 %v1822
        %v1915 = vunpack.c.h.b16 %v1822
        %v1916 = vunpack.c.l.b16 %v1823
        %v1917 = vunpack.c.h.b16 %v1823
        %v1918 = vunpack.c.l.b16 %v1824
        %v1919 = vunpack.c.h.b16 %v1824
        %v1920 = vunpack.c.l.b16 %v1825
        %v1921 = vunpack.c.h.b16 %v1825
        %v1922 = vunpack.c.l.b16 %v1826
        %v1923 = vunpack.c.h.b16 %v1826
        %v1924 = vunpack.c.l.b16 %v1827
        %v1925 = vunpack.c.h.b16 %v1827
        %v1926 = vunpack.c.l.b16 %v1828
        %v1927 = vunpack.c.h.b16 %v1828
        %v1928 = vunpack.c.l.b16 %v1829
        %v1929 = vunpack.c.h.b16 %v1829
        %v1930 = vunpack.c.l.b16 %v1830
        %v1931 = vunpack.c.h.b16 %v1830
        %v1932 = vunpack.c.l.b16 %v1831
        %v1933 = vunpack.c.h.b16 %v1831
        %v1934 = vunpack.c.l.b16 %v1832
        %v1935 = vunpack.c.h.b16 %v1832
        %v1936 = vunpack.c.l.b16 %v1833
        %v1937 = vunpack.c.h.b16 %v1833
        %v1938 = vunpack.c.l.b16 %v1834
        %v1939 = vunpack.c.h.b16 %v1834
        %v1940 = vunpack.c.l.b16 %v1835
        %v1941 = vunpack.c.h.b16 %v1835
        %v1942 = vunpack.c.l.b16 %v1836
        %v1943 = vunpack.c.h.b16 %v1836
        %v1944 = vunpack.c.l.b16 %v1837
        %v1945 = vunpack.c.h.b16 %v1837
        %v1946 = vunpack.c.l.b16 %v1838
        %v1947 = vunpack.c.h.b16 %v1838
        %v1948 = vunpack.c.l.b16 %v1839
        %v1949 = vunpack.c.h.b16 %v1839
        %v1950 = vunpack.c.l.b16 %v1840
        %v1951 = vunpack.c.h.b16 %v1840
        %v1952 = vunpack.c.l.b16 %v1841
        %v1953 = vunpack.c.h.b16 %v1841
        %v1954 = vunpack.c.l.b16 %v1842
        %v1955 = vunpack.c.h.b16 %v1842
        %v1956 = vunpack.c.l.b16 %v1843
        %v1957 = vunpack.c.h.b16 %v1843
        %v1958 = vunpack.c.l.b16 %v1844
        %v1959 = vunpack.c.h.b16 %v1844
        %v1960 = vunpack.c.l.b16 %v1845
        %v1961 = vunpack.c.h.b16 %v1845
        %v1962 = vunpack.c.l.b16 %v1846
        %v1963 = vunpack.c.h.b16 %v1846
        %v1964 = vunpack.c.l.b16 %v1847
        %v1965 = vunpack.c.h.b16 %v1847
        %v1966 = vpack.c.b16 %v1906, %v1902
        %v1967 = vpack.c.b16 %v1907, %v1903
        %v1968 = vpack.c.b16 %v1908, %v1904
        %v1969 = vpack.c.b16 %v1909, %v1905
        %v1970 = vpack.c.b16 %v1914, %v1910
        %v1971 = vpack.c.b16 %v1915, %v1911
        %v1972 = vpack.c.b16 %v1916, %v1912
        %v1973 = vpack.c.b16 %v1917, %v1913
        %v1974 = vpack.c.b16 %v1922, %v1918
        %v1975 = vpack.c.b16 %v1923, %v1919
        %v1976 = vpack.c.b16 %v1924, %v1920
        %v1977 = vpack.c.b16 %v1925, %v1921
        %v1978 = vpack.c.b16 %v1930, %v1926
        %v1979 = vpack.c.b16 %v1931, %v1927
        %v1980 = vpack.c.b16 %v1932, %v1928
        %v1981 = vpack.c.b16 %v1933, %v1929
        %v1982 = vpack.c.b16 %v1938, %v1934
        %v1983 = vpack.c.b16 %v1939, %v1935
        %v1984 = vpack.c.b16 %v1940, %v1936
        %v1985 = vpack.c.b16 %v1941, %v1937
        %v1986 = vpack.c.b16 %v1946, %v1942
        %v1987 = vpack.c.b16 %v1947, %v1943
        %v1988 = vpack.c.b16 %v1948, %v1944
        %v1989 = vpack.c.b16 %v1949, %v1945
        %v1990 = vpack.c.b16 %v1954, %v1950
        %v1991 = vpack.c.b16 %v1955, %v1951
        %v1992 = vpack.c.b16 %v1956, %v1952
        %v1993 = vpack.c.b16 %v1957, %v1953
        %v1994 = vpack.c.b16 %v1962, %v1958
        %v1995 = vpack.c.b16 %v1963, %v1959
        %v1996 = vpack.c.b16 %v1964, %v1960
        %v1997 = vpack.c.b16 %v1965, %v1961
        %2030 = vmatprep.subr.bf16.mxu0 %v1967
        %2031 = vmatpush1.bf16.msra.mxu0 %v1966
        %2032 = vmatprep.subr.bf16.mxu0 %v1971
        %2033 = vmatpush1.bf16.msra.mxu0 %v1970
        %2034 = vmatprep.subr.bf16.mxu0 %v1975
        %2035 = vmatpush1.bf16.msra.mxu0 %v1974
        %2036 = vmatprep.subr.bf16.mxu0 %v1979
        %2037 = vmatpush1.bf16.msra.mxu0 %v1978
        %2038 = vmatprep.subr.bf16.mxu0 %v1983
        %2039 = vmatpush1.bf16.msra.mxu0 %v1982
        %2040 = vmatprep.subr.bf16.mxu0 %v1987
        %2041 = vmatpush1.bf16.msra.mxu0 %v1986
        %2042 = vmatprep.subr.bf16.mxu0 %v1991
        %2043 = vmatpush1.bf16.msra.mxu0 %v1990
        %2044 = vmatprep.subr.bf16.mxu0 %v1995
        %2045 = vmatpush1.bf16.msra.mxu0 %v1994
        %2046 = vmatprep.subr.bf16.mxu0 0
        %2047 = vmatpush1.bf16.msra.mxu0 0
        %2048 = vmatprep.subr.bf16.mxu0 0
        %2049 = vmatpush1.bf16.msra.mxu0 0
        %2050 = vmatprep.subr.bf16.mxu0 0
        %2051 = vmatpush1.bf16.msra.mxu0 0
        %2052 = vmatprep.subr.bf16.mxu0 0
        %2053 = vmatpush1.bf16.msra.mxu0 0
        %2054 = vmatprep.subr.bf16.mxu0 0
        %2055 = vmatpush1.bf16.msra.mxu0 0
        %2056 = vmatprep.subr.bf16.mxu0 0
        %2057 = vmatpush1.bf16.msra.mxu0 0
        %2058 = vmatprep.subr.bf16.mxu0 0
        %2059 = vmatpush1.bf16.msra.mxu0 0
        %2060 = vmatprep.subr.bf16.mxu0 0
        %2061 = vmatpush1.bf16.msra.mxu0 0
        %2062 = vmatprep.mubr.bf16.mxu0 0
        %2063 = vmatmul.mubr.bf16.gmra.mrb[0].mxu0 %v1808
        %v2064 = vpop.f32.mrb[0].mxu0
        %v2065 = vadd.f32 %v1853, %v2064
        %v2066 = vpop.f32.mrb[0].mxu0
        %v2067 = vadd.f32 %v1857, %v2066
        %v2068 = vpop.f32.mrb[0].mxu0
        %v2069 = vadd.f32 %v1853, %v2068
        %v2070 = vpop.f32.mrb[0].mxu0
        %v2071 = vadd.f32 %v1857, %v2070
        %2072 = vmatprep.mubr.bf16.mxu0 0
        %2073 = vmatmul.mubr.bf16.gmra.mrb[0].mxu0 %v1809
        %v2074 = vpop.f32.mrb[0].mxu0
        %v2075 = vadd.f32 %v1853, %v2074
        %v2076 = vpop.f32.mrb[0].mxu0
        %v2077 = vadd.f32 %v1857, %v2076
        %v2078 = vpop.f32.mrb[0].mxu0
        %v2079 = vadd.f32 %v1853, %v2078
        %v2080 = vpop.f32.mrb[0].mxu0
        %v2081 = vadd.f32 %v1857, %v2080
        %2082 = vmatprep.mubr.bf16.mxu0 0
        %2083 = vmatmul.mubr.bf16.gmra.mrb[0].mxu0 %v1810
        %v2084 = vpop.f32.mrb[0].mxu0
        %v2085 = vadd.f32 %v1853, %v2084
        %v2086 = vpop.f32.mrb[0].mxu0
        %v2087 = vadd.f32 %v1857, %v2086
        %v2088 = vpop.f32.mrb[0].mxu0
        %v2089 = vadd.f32 %v1853, %v2088
        %v2090 = vpop.f32.mrb[0].mxu0
        %v2091 = vadd.f32 %v1857, %v2090
        %2092 = vmatprep.mubr.bf16.mxu0 0
        %2093 = vmatmul.mubr.bf16.gmra.mrb[0].mxu0 %v1811
        %v2094 = vpop.f32.mrb[0].mxu0
        %v2095 = vadd.f32 %v1853, %v2094
        %v2096 = vpop.f32.mrb[0].mxu0
        %v2097 = vadd.f32 %v1857, %v2096
        %v2098 = vpop.f32.mrb[0].mxu0
        %v2099 = vadd.f32 %v1853, %v2098
        %v2100 = vpop.f32.mrb[0].mxu0
        %v2101 = vadd.f32 %v1857, %v2100
        %2102 = vmatprep.mubr.bf16.mxu0 0
        %2103 = vmatmul.mubr.bf16.gmra.mrb[0].mxu0 %v1812
        %v2104 = vpop.f32.mrb[0].mxu0
        %v2105 = vadd.f32 %v1853, %v2104
        %v2106 = vpop.f32.mrb[0].mxu0
        %v2107 = vadd.f32 %v1857, %v2106
        %v2108 = vpop.f32.mrb[0].mxu0
        %v2109 = vadd.f32 %v1853, %v2108
        %v2110 = vpop.f32.mrb[0].mxu0
        %v2111 = vadd.f32 %v1857, %v2110
        %2112 = vmatprep.mubr.bf16.mxu0 0
        %2113 = vmatmul.mubr.bf16.gmra.mrb[0].mxu0 %v1813
        %v2114 = vpop.f32.mrb[0].mxu0
        %v2115 = vadd.f32 %v1853, %v2114
        %v2116 = vpop.f32.mrb[0].mxu0
        %v2117 = vadd.f32 %v1857, %v2116
        %v2118 = vpop.f32.mrb[0].mxu0
        %v2119 = vadd.f32 %v1853, %v2118
        %v2120 = vpop.f32.mrb[0].mxu0
        %v2121 = vadd.f32 %v1857, %v2120
        %2122 = vmatprep.mubr.bf16.mxu0 0
        %2123 = vmatmul.mubr.bf16.gmra.mrb[0].mxu0 %v1814
        %v2124 = vpop.f32.mrb[0].mxu0
        %v2125 = vadd.f32 %v1853, %v2124
        %v2126 = vpop.f32.mrb[0].mxu0
        %v2127 = vadd.f32 %v1857, %v2126
        %v2128 = vpop.f32.mrb[0].mxu0
        %v2129 = vadd.f32 %v1853, %v2128
        %v2130 = vpop.f32.mrb[0].mxu0
        %v2131 = vadd.f32 %v1857, %v2130
        %2132 = vmatprep.mubr.bf16.mxu0 0
        %2133 = vmatmul.mubr.bf16.gmra.mrb[0].mxu0 %v1815
        %v2134 = vpop.f32.mrb[0].mxu0
        %v2135 = vadd.f32 %v1853, %v2134
        %v2136 = vpop.f32.mrb[0].mxu0
        %v2137 = vadd.f32 %v1857, %v2136
        %v2138 = vpop.f32.mrb[0].mxu0
        %v2139 = vadd.f32 %v1853, %v2138
        %v2140 = vpop.f32.mrb[0].mxu0
        %v2141 = vadd.f32 %v1857, %v2140
        %2142 = vdwg.mxu0
        %2143 = vmatprep.subr.bf16.mxu0 %v1969
        %2144 = vmatpush1.bf16.msra.mxu0 %v1968
        %2145 = vmatprep.subr.bf16.mxu0 %v1973
        %2146 = vmatpush1.bf16.msra.mxu0 %v1972
        %2147 = vmatprep.subr.bf16.mxu0 %v1977
        %2148 = vmatpush1.bf16.msra.mxu0 %v1976
        %2149 = vmatprep.subr.bf16.mxu0 %v1981
        %2150 = vmatpush1.bf16.msra.mxu0 %v1980
        %2151 = vmatprep.subr.bf16.mxu0 %v1985
        %2152 = vmatpush1.bf16.msra.mxu0 %v1984
        %2153 = vmatprep.subr.bf16.mxu0 %v1989
        %2154 = vmatpush1.bf16.msra.mxu0 %v1988
        %2155 = vmatprep.subr.bf16.mxu0 %v1993
        %2156 = vmatpush1.bf16.msra.mxu0 %v1992
        %2157 = vmatprep.subr.bf16.mxu0 %v1997
        %2158 = vmatpush1.bf16.msra.mxu0 %v1996
        %2159 = vmatprep.subr.bf16.mxu0 0
        %2160 = vmatpush1.bf16.msra.mxu0 0
        %2161 = vmatprep.subr.bf16.mxu0 0
        %2162 = vmatpush1.bf16.msra.mxu0 0
        %2163 = vmatprep.subr.bf16.mxu0 0
        %2164 = vmatpush1.bf16.msra.mxu0 0
        %2165 = vmatprep.subr.bf16.mxu0 0
        %2166 = vmatpush1.bf16.msra.mxu0 0
        %2167 = vmatprep.subr.bf16.mxu0 0
        %2168 = vmatpush1.bf16.msra.mxu0 0
        %2169 = vmatprep.subr.bf16.mxu0 0
        %2170 = vmatpush1.bf16.msra.mxu0 0
        %2171 = vmatprep.subr.bf16.mxu0 0
        %2172 = vmatpush1.bf16.msra.mxu0 0
        %2173 = vmatprep.subr.bf16.mxu0 0
        %2174 = vmatpush1.bf16.msra.mxu0 0
        %2175 = vmatprep.mubr.bf16.mxu0 0
        %2176 = vmatmul.mubr.bf16.gmra.mrb[0].mxu0 %v1808
        %v2177 = vpop.f32.mrb[0].mxu0
        %v2178 = vadd.f32 %v1861, %v2177
        %v2179 = vpop.f32.mrb[0].mxu0
        %v2180 = vadd.f32 %v1865, %v2179
        %v2181 = vpop.f32.mrb[0].mxu0
        %v2182 = vadd.f32 %v1861, %v2181
        %v2183 = vpop.f32.mrb[0].mxu0
        %v2184 = vadd.f32 %v1865, %v2183
        %2185 = vmatprep.mubr.bf16.mxu0 0
        %2186 = vmatmul.mubr.bf16.gmra.mrb[0].mxu0 %v1809
        %v2187 = vpop.f32.mrb[0].mxu0
        %v2188 = vadd.f32 %v1861, %v2187
        %v2189 = vpop.f32.mrb[0].mxu0
        %v2190 = vadd.f32 %v1865, %v2189
        %v2191 = vpop.f32.mrb[0].mxu0
        %v2192 = vadd.f32 %v1861, %v2191
        %v2193 = vpop.f32.mrb[0].mxu0
        %v2194 = vadd.f32 %v1865, %v2193
        %2195 = vmatprep.mubr.bf16.mxu0 0
        %2196 = vmatmul.mubr.bf16.gmra.mrb[0].mxu0 %v1810
        %v2197 = vpop.f32.mrb[0].mxu0
        %v2198 = vadd.f32 %v1861, %v2197
        %v2199 = vpop.f32.mrb[0].mxu0
        %v2200 = vadd.f32 %v1865, %v2199
        %v2201 = vpop.f32.mrb[0].mxu0
        %v2202 = vadd.f32 %v1861, %v2201
        %v2203 = vpop.f32.mrb[0].mxu0
        %v2204 = vadd.f32 %v1865, %v2203
        %2205 = vmatprep.mubr.bf16.mxu0 0
        %2206 = vmatmul.mubr.bf16.gmra.mrb[0].mxu0 %v1811
        %v2207 = vpop.f32.mrb[0].mxu0
        %v2208 = vadd.f32 %v1861, %v2207
        %v2209 = vpop.f32.mrb[0].mxu0
        %v2210 = vadd.f32 %v1865, %v2209
        %v2211 = vpop.f32.mrb[0].mxu0
        %v2212 = vadd.f32 %v1861, %v2211
        %v2213 = vpop.f32.mrb[0].mxu0
        %v2214 = vadd.f32 %v1865, %v2213
        %2215 = vmatprep.mubr.bf16.mxu0 0
        %2216 = vmatmul.mubr.bf16.gmra.mrb[0].mxu0 %v1812
        %v2217 = vpop.f32.mrb[0].mxu0
        %v2218 = vadd.f32 %v1861, %v2217
        %v2219 = vpop.f32.mrb[0].mxu0
        %v2220 = vadd.f32 %v1865, %v2219
        %v2221 = vpop.f32.mrb[0].mxu0
        %v2222 = vadd.f32 %v1861, %v2221
        %v2223 = vpop.f32.mrb[0].mxu0
        %v2224 = vadd.f32 %v1865, %v2223
        %2225 = vmatprep.mubr.bf16.mxu0 0
        %2226 = vmatmul.mubr.bf16.gmra.mrb[0].mxu0 %v1813
        %v2227 = vpop.f32.mrb[0].mxu0
        %v2228 = vadd.f32 %v1861, %v2227
        %v2229 = vpop.f32.mrb[0].mxu0
        %v2230 = vadd.f32 %v1865, %v2229
        %v2231 = vpop.f32.mrb[0].mxu0
        %v2232 = vadd.f32 %v1861, %v2231
        %v2233 = vpop.f32.mrb[0].mxu0
        %v2234 = vadd.f32 %v1865, %v2233
        %2235 = vmatprep.mubr.bf16.mxu0 0
        %2236 = vmatmul.mubr.bf16.gmra.mrb[0].mxu0 %v1814
        %v2237 = vpop.f32.mrb[0].mxu0
        %v2238 = vadd.f32 %v1861, %v2237
        %v2239 = vpop.f32.mrb[0].mxu0
        %v2240 = vadd.f32 %v1865, %v2239
        %v2241 = vpop.f32.mrb[0].mxu0
        %v2242 = vadd.f32 %v1861, %v2241
        %v2243 = vpop.f32.mrb[0].mxu0
        %v2244 = vadd.f32 %v1865, %v2243
        %2245 = vmatprep.mubr.bf16.mxu0 0
        %2246 = vmatmul.mubr.bf16.gmra.mrb[0].mxu0 %v1815
        %v2247 = vpop.f32.mrb[0].mxu0
        %v2248 = vadd.f32 %v1861, %v2247
        %v2249 = vpop.f32.mrb[0].mxu0
        %v2250 = vadd.f32 %v1865, %v2249
        %v2251 = vpop.f32.mrb[0].mxu0
        %v2252 = vadd.f32 %v1861, %v2251
        %v2253 = vpop.f32.mrb[0].mxu0
        %v2254 = vadd.f32 %v1865, %v2253
        %2255 = vdwg.mxu0
        %v2256 = vmul.f32 %v2065, 0.5
        %v2257 = vmul.f32 %v2067, 0.5
        %v2258 = vmul.f32 %v2178, 0.5
        %v2259 = vmul.f32 %v2180, 0.5
        %v2260 = vmul.f32 %v2069, 0.5
        %v2261 = vmul.f32 %v2071, 0.5
        %v2262 = vmul.f32 %v2182, 0.5
        %v2263 = vmul.f32 %v2184, 0.5
        %v2264 = vmul.f32 %v2075, 0.5
        %v2265 = vmul.f32 %v2077, 0.5
        %v2266 = vmul.f32 %v2188, 0.5
        %v2267 = vmul.f32 %v2190, 0.5
        %v2268 = vmul.f32 %v2079, 0.5
        %v2269 = vmul.f32 %v2081, 0.5
        %v2270 = vmul.f32 %v2192, 0.5
        %v2271 = vmul.f32 %v2194, 0.5
        %v2272 = vmul.f32 %v2085, 0.5
        %v2273 = vmul.f32 %v2087, 0.5
        %v2274 = vmul.f32 %v2198, 0.5
        %v2275 = vmul.f32 %v2200, 0.5
        %v2276 = vmul.f32 %v2089, 0.5
        %v2277 = vmul.f32 %v2091, 0.5
        %v2278 = vmul.f32 %v2202, 0.5
        %v2279 = vmul.f32 %v2204, 0.5
        %v2280 = vmul.f32 %v2095, 0.5
        %v2281 = vmul.f32 %v2097, 0.5
        %v2282 = vmul.f32 %v2208, 0.5
        %v2283 = vmul.f32 %v2210, 0.5
        %v2284 = vmul.f32 %v2099, 0.5
        %v2285 = vmul.f32 %v2101, 0.5
        %v2286 = vmul.f32 %v2212, 0.5
        %v2287 = vmul.f32 %v2214, 0.5
        %v2288 = vmul.f32 %v2105, 0.5
        %v2289 = vmul.f32 %v2107, 0.5
        %v2290 = vmul.f32 %v2218, 0.5
        %v2291 = vmul.f32 %v2220, 0.5
        %v2292 = vmul.f32 %v2109, 0.5
        %v2293 = vmul.f32 %v2111, 0.5
        %v2294 = vmul.f32 %v2222, 0.5
        %v2295 = vmul.f32 %v2224, 0.5
        %v2296 = vmul.f32 %v2115, 0.5
        %v2297 = vmul.f32 %v2117, 0.5
        %v2298 = vmul.f32 %v2228, 0.5
        %v2299 = vmul.f32 %v2230, 0.5
        %v2300 = vmul.f32 %v2119, 0.5
        %v2301 = vmul.f32 %v2121, 0.5
        %v2302 = vmul.f32 %v2232, 0.5
        %v2303 = vmul.f32 %v2234, 0.5
        %v2304 = vmul.f32 %v2125, 0.5
        %v2305 = vmul.f32 %v2127, 0.5
        %v2306 = vmul.f32 %v2238, 0.5
        %v2307 = vmul.f32 %v2240, 0.5
        %v2308 = vmul.f32 %v2129, 0.5
        %v2309 = vmul.f32 %v2131, 0.5
        %v2310 = vmul.f32 %v2242, 0.5
        %v2311 = vmul.f32 %v2244, 0.5
        %v2312 = vmul.f32 %v2135, 0.5
        %v2313 = vmul.f32 %v2137, 0.5
        %v2314 = vmul.f32 %v2248, 0.5
        %v2315 = vmul.f32 %v2250, 0.5
        %v2316 = vmul.f32 %v2139, 0.5
        %v2317 = vmul.f32 %v2141, 0.5
        %v2318 = vmul.f32 %v2252, 0.5
        %v2319 = vmul.f32 %v2254, 0.5
        %v2320 = vmul.f32 %v2065, %v2065
        %v2321 = vmul.f32 %v2067, %v2067
        %v2322 = vmul.f32 %v2178, %v2178
        %v2323 = vmul.f32 %v2180, %v2180
        %v2324 = vmul.f32 %v2069, %v2069
        %v2325 = vmul.f32 %v2071, %v2071
        %v2326 = vmul.f32 %v2182, %v2182
        %v2327 = vmul.f32 %v2184, %v2184
        %v2328 = vmul.f32 %v2075, %v2075
        %v2329 = vmul.f32 %v2077, %v2077
        %v2330 = vmul.f32 %v2188, %v2188
        %v2331 = vmul.f32 %v2190, %v2190
        %v2332 = vmul.f32 %v2079, %v2079
        %v2333 = vmul.f32 %v2081, %v2081
        %v2334 = vmul.f32 %v2192, %v2192
        %v2335 = vmul.f32 %v2194, %v2194
        %v2336 = vmul.f32 %v2085, %v2085
        %v2337 = vmul.f32 %v2087, %v2087
        %v2338 = vmul.f32 %v2198, %v2198
        %v2339 = vmul.f32 %v2200, %v2200
        %v2340 = vmul.f32 %v2089, %v2089
        %v2341 = vmul.f32 %v2091, %v2091
        %v2342 = vmul.f32 %v2202, %v2202
        %v2343 = vmul.f32 %v2204, %v2204
        %v2344 = vmul.f32 %v2095, %v2095
        %v2345 = vmul.f32 %v2097, %v2097
        %v2346 = vmul.f32 %v2208, %v2208
        %v2347 = vmul.f32 %v2210, %v2210
        %v2348 = vmul.f32 %v2099, %v2099
        %v2349 = vmul.f32 %v2101, %v2101
        %v2350 = vmul.f32 %v2212, %v2212
        %v2351 = vmul.f32 %v2214, %v2214
        %v2352 = vmul.f32 %v2105, %v2105
        %v2353 = vmul.f32 %v2107, %v2107
        %v2354 = vmul.f32 %v2218, %v2218
        %v2355 = vmul.f32 %v2220, %v2220
        %v2356 = vmul.f32 %v2109, %v2109
        %v2357 = vmul.f32 %v2111, %v2111
        %v2358 = vmul.f32 %v2222, %v2222
        %v2359 = vmul.f32 %v2224, %v2224
        %v2360 = vmul.f32 %v2115, %v2115
        %v2361 = vmul.f32 %v2117, %v2117
        %v2362 = vmul.f32 %v2228, %v2228
        %v2363 = vmul.f32 %v2230, %v2230
        %v2364 = vmul.f32 %v2119, %v2119
        %v2365 = vmul.f32 %v2121, %v2121
        %v2366 = vmul.f32 %v2232, %v2232
        %v2367 = vmul.f32 %v2234, %v2234
        %v2368 = vmul.f32 %v2125, %v2125
        %v2369 = vmul.f32 %v2127, %v2127
        %v2370 = vmul.f32 %v2238, %v2238
        %v2371 = vmul.f32 %v2240, %v2240
        %v2372 = vmul.f32 %v2129, %v2129
        %v2373 = vmul.f32 %v2131, %v2131
        %v2374 = vmul.f32 %v2242, %v2242
        %v2375 = vmul.f32 %v2244, %v2244
        %v2376 = vmul.f32 %v2135, %v2135
        %v2377 = vmul.f32 %v2137, %v2137
        %v2378 = vmul.f32 %v2248, %v2248
        %v2379 = vmul.f32 %v2250, %v2250
        %v2380 = vmul.f32 %v2139, %v2139
        %v2381 = vmul.f32 %v2141, %v2141
        %v2382 = vmul.f32 %v2252, %v2252
        %v2383 = vmul.f32 %v2254, %v2254
        %v2384 = vmul.f32 %v2320, %v2065
        %v2385 = vmul.f32 %v2321, %v2067
        %v2386 = vmul.f32 %v2322, %v2178
        %v2387 = vmul.f32 %v2323, %v2180
        %v2388 = vmul.f32 %v2324, %v2069
        %v2389 = vmul.f32 %v2325, %v2071
        %v2390 = vmul.f32 %v2326, %v2182
        %v2391 = vmul.f32 %v2327, %v2184
        %v2392 = vmul.f32 %v2328, %v2075
        %v2393 = vmul.f32 %v2329, %v2077
        %v2394 = vmul.f32 %v2330, %v2188
        %v2395 = vmul.f32 %v2331, %v2190
        %v2396 = vmul.f32 %v2332, %v2079
        %v2397 = vmul.f32 %v2333, %v2081
        %v2398 = vmul.f32 %v2334, %v2192
        %v2399 = vmul.f32 %v2335, %v2194
        %v2400 = vmul.f32 %v2336, %v2085
        %v2401 = vmul.f32 %v2337, %v2087
        %v2402 = vmul.f32 %v2338, %v2198
        %v2403 = vmul.f32 %v2339, %v2200
        %v2404 = vmul.f32 %v2340, %v2089
        %v2405 = vmul.f32 %v2341, %v2091
        %v2406 = vmul.f32 %v2342, %v2202
        %v2407 = vmul.f32 %v2343, %v2204
        %v2408 = vmul.f32 %v2344, %v2095
        %v2409 = vmul.f32 %v2345, %v2097
        %v2410 = vmul.f32 %v2346, %v2208
        %v2411 = vmul.f32 %v2347, %v2210
        %v2412 = vmul.f32 %v2348, %v2099
        %v2413 = vmul.f32 %v2349, %v2101
        %v2414 = vmul.f32 %v2350, %v2212
        %v2415 = vmul.f32 %v2351, %v2214
        %v2416 = vmul.f32 %v2352, %v2105
        %v2417 = vmul.f32 %v2353, %v2107
        %v2418 = vmul.f32 %v2354, %v2218
        %v2419 = vmul.f32 %v2355, %v2220
        %v2420 = vmul.f32 %v2356, %v2109
        %v2421 = vmul.f32 %v2357, %v2111
        %v2422 = vmul.f32 %v2358, %v2222
        %v2423 = vmul.f32 %v2359, %v2224
        %v2424 = vmul.f32 %v2360, %v2115
        %v2425 = vmul.f32 %v2361, %v2117
        %v2426 = vmul.f32 %v2362, %v2228
        %v2427 = vmul.f32 %v2363, %v2230
        %v2428 = vmul.f32 %v2364, %v2119
        %v2429 = vmul.f32 %v2365, %v2121
        %v2430 = vmul.f32 %v2366, %v2232
        %v2431 = vmul.f32 %v2367, %v2234
        %v2432 = vmul.f32 %v2368, %v2125
        %v2433 = vmul.f32 %v2369, %v2127
        %v2434 = vmul.f32 %v2370, %v2238
        %v2435 = vmul.f32 %v2371, %v2240
        %v2436 = vmul.f32 %v2372, %v2129
        %v2437 = vmul.f32 %v2373, %v2131
        %v2438 = vmul.f32 %v2374, %v2242
        %v2439 = vmul.f32 %v2375, %v2244
        %v2440 = vmul.f32 %v2376, %v2135
        %v2441 = vmul.f32 %v2377, %v2137
        %v2442 = vmul.f32 %v2378, %v2248
        %v2443 = vmul.f32 %v2379, %v2250
        %v2444 = vmul.f32 %v2380, %v2139
        %v2445 = vmul.f32 %v2381, %v2141
        %v2446 = vmul.f32 %v2382, %v2252
        %v2447 = vmul.f32 %v2383, %v2254
        %v2448 = vmul.f32 %v2384, 0.044715
        %v2449 = vmul.f32 %v2385, 0.044715
        %v2450 = vmul.f32 %v2386, 0.044715
        %v2451 = vmul.f32 %v2387, 0.044715
        %v2452 = vmul.f32 %v2388, 0.044715
        %v2453 = vmul.f32 %v2389, 0.044715
        %v2454 = vmul.f32 %v2390, 0.044715
        %v2455 = vmul.f32 %v2391, 0.044715
        %v2456 = vmul.f32 %v2392, 0.044715
        %v2457 = vmul.f32 %v2393, 0.044715
        %v2458 = vmul.f32 %v2394, 0.044715
        %v2459 = vmul.f32 %v2395, 0.044715
        %v2460 = vmul.f32 %v2396, 0.044715
        %v2461 = vmul.f32 %v2397, 0.044715
        %v2462 = vmul.f32 %v2398, 0.044715
        %v2463 = vmul.f32 %v2399, 0.044715
        %v2464 = vmul.f32 %v2400, 0.044715
        %v2465 = vmul.f32 %v2401, 0.044715
        %v2466 = vmul.f32 %v2402, 0.044715
        %v2467 = vmul.f32 %v2403, 0.044715
        %v2468 = vmul.f32 %v2404, 0.044715
        %v2469 = vmul.f32 %v2405, 0.044715
        %v2470 = vmul.f32 %v2406, 0.044715
        %v2471 = vmul.f32 %v2407, 0.044715
        %v2472 = vmul.f32 %v2408, 0.044715
        %v2473 = vmul.f32 %v2409, 0.044715
        %v2474 = vmul.f32 %v2410, 0.044715
        %v2475 = vmul.f32 %v2411, 0.044715
        %v2476 = vmul.f32 %v2412, 0.044715
        %v2477 = vmul.f32 %v2413, 0.044715
        %v2478 = vmul.f32 %v2414, 0.044715
        %v2479 = vmul.f32 %v2415, 0.044715
        %v2480 = vmul.f32 %v2416, 0.044715
        %v2481 = vmul.f32 %v2417, 0.044715
        %v2482 = vmul.f32 %v2418, 0.044715
        %v2483 = vmul.f32 %v2419, 0.044715
        %v2484 = vmul.f32 %v2420, 0.044715
        %v2485 = vmul.f32 %v2421, 0.044715
        %v2486 = vmul.f32 %v2422, 0.044715
        %v2487 = vmul.f32 %v2423, 0.044715
        %v2488 = vmul.f32 %v2424, 0.044715
        %v2489 = vmul.f32 %v2425, 0.044715
        %v2490 = vmul.f32 %v2426, 0.044715
        %v2491 = vmul.f32 %v2427, 0.044715
        %v2492 = vmul.f32 %v2428, 0.044715
        %v2493 = vmul.f32 %v2429, 0.044715
        %v2494 = vmul.f32 %v2430, 0.044715
        %v2495 = vmul.f32 %v2431, 0.044715
        %v2496 = vmul.f32 %v2432, 0.044715
        %v2497 = vmul.f32 %v2433, 0.044715
        %v2498 = vmul.f32 %v2434, 0.044715
        %v2499 = vmul.f32 %v2435, 0.044715
        %v2500 = vmul.f32 %v2436, 0.044715
        %v2501 = vmul.f32 %v2437, 0.044715
        %v2502 = vmul.f32 %v2438, 0.044715
        %v2503 = vmul.f32 %v2439, 0.044715
        %v2504 = vmul.f32 %v2440, 0.044715
        %v2505 = vmul.f32 %v2441, 0.044715
        %v2506 = vmul.f32 %v2442, 0.044715
        %v2507 = vmul.f32 %v2443, 0.044715
        %v2508 = vmul.f32 %v2444, 0.044715
        %v2509 = vmul.f32 %v2445, 0.044715
        %v2510 = vmul.f32 %v2446, 0.044715
        %v2511 = vmul.f32 %v2447, 0.044715
        %v2512 = vadd.f32 %v2065, %v2448
        %v2513 = vadd.f32 %v2067, %v2449
        %v2514 = vadd.f32 %v2178, %v2450
        %v2515 = vadd.f32 %v2180, %v2451
        %v2516 = vadd.f32 %v2069, %v2452
        %v2517 = vadd.f32 %v2071, %v2453
        %v2518 = vadd.f32 %v2182, %v2454
        %v2519 = vadd.f32 %v2184, %v2455
        %v2520 = vadd.f32 %v2075, %v2456
        %v2521 = vadd.f32 %v2077, %v2457
        %v2522 = vadd.f32 %v2188, %v2458
        %v2523 = vadd.f32 %v2190, %v2459
        %v2524 = vadd.f32 %v2079, %v2460
        %v2525 = vadd.f32 %v2081, %v2461
        %v2526 = vadd.f32 %v2192, %v2462
        %v2527 = vadd.f32 %v2194, %v2463
        %v2528 = vadd.f32 %v2085, %v2464
        %v2529 = vadd.f32 %v2087, %v2465
        %v2530 = vadd.f32 %v2198, %v2466
        %v2531 = vadd.f32 %v2200, %v2467
        %v2532 = vadd.f32 %v2089, %v2468
        %v2533 = vadd.f32 %v2091, %v2469
        %v2534 = vadd.f32 %v2202, %v2470
        %v2535 = vadd.f32 %v2204, %v2471
        %v2536 = vadd.f32 %v2095, %v2472
        %v2537 = vadd.f32 %v2097, %v2473
        %v2538 = vadd.f32 %v2208, %v2474
        %v2539 = vadd.f32 %v2210, %v2475
        %v2540 = vadd.f32 %v2099, %v2476
        %v2541 = vadd.f32 %v2101, %v2477
        %v2542 = vadd.f32 %v2212, %v2478
        %v2543 = vadd.f32 %v2214, %v2479
        %v2544 = vadd.f32 %v2105, %v2480
        %v2545 = vadd.f32 %v2107, %v2481
        %v2546 = vadd.f32 %v2218, %v2482
        %v2547 = vadd.f32 %v2220, %v2483
        %v2548 = vadd.f32 %v2109, %v2484
        %v2549 = vadd.f32 %v2111, %v2485
        %v2550 = vadd.f32 %v2222, %v2486
        %v2551 = vadd.f32 %v2224, %v2487
        %v2552 = vadd.f32 %v2115, %v2488
        %v2553 = vadd.f32 %v2117, %v2489
        %v2554 = vadd.f32 %v2228, %v2490
        %v2555 = vadd.f32 %v2230, %v2491
        %v2556 = vadd.f32 %v2119, %v2492
        %v2557 = vadd.f32 %v2121, %v2493
        %v2558 = vadd.f32 %v2232, %v2494
        %v2559 = vadd.f32 %v2234, %v2495
        %v2560 = vadd.f32 %v2125, %v2496
        %v2561 = vadd.f32 %v2127, %v2497
        %v2562 = vadd.f32 %v2238, %v2498
        %v2563 = vadd.f32 %v2240, %v2499
        %v2564 = vadd.f32 %v2129, %v2500
        %v2565 = vadd.f32 %v2131, %v2501
        %v2566 = vadd.f32 %v2242, %v2502
        %v2567 = vadd.f32 %v2244, %v2503
        %v2568 = vadd.f32 %v2135, %v2504
        %v2569 = vadd.f32 %v2137, %v2505
        %v2570 = vadd.f32 %v2248, %v2506
        %v2571 = vadd.f32 %v2250, %v2507
        %v2572 = vadd.f32 %v2139, %v2508
        %v2573 = vadd.f32 %v2141, %v2509
        %v2574 = vadd.f32 %v2252, %v2510
        %v2575 = vadd.f32 %v2254, %v2511
        %v2576 = vmul.f32 %v2512, 0.7978846
        %v2577 = vmul.f32 %v2513, 0.7978846
        %v2578 = vmul.f32 %v2514, 0.7978846
        %v2579 = vmul.f32 %v2515, 0.7978846
        %v2580 = vmul.f32 %v2516, 0.7978846
        %v2581 = vmul.f32 %v2517, 0.7978846
        %v2582 = vmul.f32 %v2518, 0.7978846
        %v2583 = vmul.f32 %v2519, 0.7978846
        %v2584 = vmul.f32 %v2520, 0.7978846
        %v2585 = vmul.f32 %v2521, 0.7978846
        %v2586 = vmul.f32 %v2522, 0.7978846
        %v2587 = vmul.f32 %v2523, 0.7978846
        %v2588 = vmul.f32 %v2524, 0.7978846
        %v2589 = vmul.f32 %v2525, 0.7978846
        %v2590 = vmul.f32 %v2526, 0.7978846
        %v2591 = vmul.f32 %v2527, 0.7978846
        %v2592 = vmul.f32 %v2528, 0.7978846
        %v2593 = vmul.f32 %v2529, 0.7978846
        %v2594 = vmul.f32 %v2530, 0.7978846
        %v2595 = vmul.f32 %v2531, 0.7978846
        %v2596 = vmul.f32 %v2532, 0.7978846
        %v2597 = vmul.f32 %v2533, 0.7978846
        %v2598 = vmul.f32 %v2534, 0.7978846
        %v2599 = vmul.f32 %v2535, 0.7978846
        %v2600 = vmul.f32 %v2536, 0.7978846
        %v2601 = vmul.f32 %v2537, 0.7978846
        %v2602 = vmul.f32 %v2538, 0.7978846
        %v2603 = vmul.f32 %v2539, 0.7978846
        %v2604 = vmul.f32 %v2540, 0.7978846
        %v2605 = vmul.f32 %v2541, 0.7978846
        %v2606 = vmul.f32 %v2542, 0.7978846
        %v2607 = vmul.f32 %v2543, 0.7978846
        %v2608 = vmul.f32 %v2544, 0.7978846
        %v2609 = vmul.f32 %v2545, 0.7978846
        %v2610 = vmul.f32 %v2546, 0.7978846
        %v2611 = vmul.f32 %v2547, 0.7978846
        %v2612 = vmul.f32 %v2548, 0.7978846
        %v2613 = vmul.f32 %v2549, 0.7978846
        %v2614 = vmul.f32 %v2550, 0.7978846
        %v2615 = vmul.f32 %v2551, 0.7978846
        %v2616 = vmul.f32 %v2552, 0.7978846
        %v2617 = vmul.f32 %v2553, 0.7978846
        %v2618 = vmul.f32 %v2554, 0.7978846
        %v2619 = vmul.f32 %v2555, 0.7978846
        %v2620 = vmul.f32 %v2556, 0.7978846
        %v2621 = vmul.f32 %v2557, 0.7978846
        %v2622 = vmul.f32 %v2558, 0.7978846
        %v2623 = vmul.f32 %v2559, 0.7978846
        %v2624 = vmul.f32 %v2560, 0.7978846
        %v2625 = vmul.f32 %v2561, 0.7978846
        %v2626 = vmul.f32 %v2562, 0.7978846
        %v2627 = vmul.f32 %v2563, 0.7978846
        %v2628 = vmul.f32 %v2564, 0.7978846
        %v2629 = vmul.f32 %v2565, 0.7978846
        %v2630 = vmul.f32 %v2566, 0.7978846
        %v2631 = vmul.f32 %v2567, 0.7978846
        %v2632 = vmul.f32 %v2568, 0.7978846
        %v2633 = vmul.f32 %v2569, 0.7978846
        %v2634 = vmul.f32 %v2570, 0.7978846
        %v2635 = vmul.f32 %v2571, 0.7978846
        %v2636 = vmul.f32 %v2572, 0.7978846
        %v2637 = vmul.f32 %v2573, 0.7978846
        %v2638 = vmul.f32 %v2574, 0.7978846
        %v2639 = vmul.f32 %v2575, 0.7978846
        %v2640 = vtanh.pop %v2576
        %v2641 = vtanh.pop %v2577
        %v2642 = vtanh.pop %v2578
        %v2643 = vtanh.pop %v2579
        %v2644 = vtanh.pop %v2580
        %v2645 = vtanh.pop %v2581
        %v2646 = vtanh.pop %v2582
        %v2647 = vtanh.pop %v2583
        %v2648 = vtanh.pop %v2584
        %v2649 = vtanh.pop %v2585
        %v2650 = vtanh.pop %v2586
        %v2651 = vtanh.pop %v2587
        %v2652 = vtanh.pop %v2588
        %v2653 = vtanh.pop %v2589
        %v2654 = vtanh.pop %v2590
        %v2655 = vtanh.pop %v2591
        %v2656 = vtanh.pop %v2592
        %v2657 = vtanh.pop %v2593
        %v2658 = vtanh.pop %v2594
        %v2659 = vtanh.pop %v2595
        %v2660 = vtanh.pop %v2596
        %v2661 = vtanh.pop %v2597
        %v2662 = vtanh.pop %v2598
        %v2663 = vtanh.pop %v2599
        %v2664 = vtanh.pop %v2600
        %v2665 = vtanh.pop %v2601
        %v2666 = vtanh.pop %v2602
        %v2667 = vtanh.pop %v2603
        %v2668 = vtanh.pop %v2604
        %v2669 = vtanh.pop %v2605
        %v2670 = vtanh.pop %v2606
        %v2671 = vtanh.pop %v2607
        %v2672 = vtanh.pop %v2608
        %v2673 = vtanh.pop %v2609
        %v2674 = vtanh.pop %v2610
        %v2675 = vtanh.pop %v2611
        %v2676 = vtanh.pop %v2612
        %v2677 = vtanh.pop %v2613
        %v2678 = vtanh.pop %v2614
        %v2679 = vtanh.pop %v2615
        %v2680 = vtanh.pop %v2616
        %v2681 = vtanh.pop %v2617
        %v2682 = vtanh.pop %v2618
        %v2683 = vtanh.pop %v2619
        %v2684 = vtanh.pop %v2620
        %v2685 = vtanh.pop %v2621
        %v2686 = vtanh.pop %v2622
        %v2687 = vtanh.pop %v2623
        %v2688 = vtanh.pop %v2624
        %v2689 = vtanh.pop %v2625
        %v2690 = vtanh.pop %v2626
        %v2691 = vtanh.pop %v2627
        %v2692 = vtanh.pop %v2628
        %v2693 = vtanh.pop %v2629
        %v2694 = vtanh.pop %v2630
        %v2695 = vtanh.pop %v2631
        %v2696 = vtanh.pop %v2632
        %v2697 = vtanh.pop %v2633
        %v2698 = vtanh.pop %v2634
        %v2699 = vtanh.pop %v2635
        %v2700 = vtanh.pop %v2636
        %v2701 = vtanh.pop %v2637
        %v2702 = vtanh.pop %v2638
        %v2703 = vtanh.pop %v2639
        %v2704 = vadd.f32 %v2640, 1.0
        %v2705 = vadd.f32 %v2641, 1.0
        %v2706 = vadd.f32 %v2642, 1.0
        %v2707 = vadd.f32 %v2643, 1.0
        %v2708 = vadd.f32 %v2644, 1.0
        %v2709 = vadd.f32 %v2645, 1.0
        %v2710 = vadd.f32 %v2646, 1.0
        %v2711 = vadd.f32 %v2647, 1.0
        %v2712 = vadd.f32 %v2648, 1.0
        %v2713 = vadd.f32 %v2649, 1.0
        %v2714 = vadd.f32 %v2650, 1.0
        %v2715 = vadd.f32 %v2651, 1.0
        %v2716 = vadd.f32 %v2652, 1.0
        %v2717 = vadd.f32 %v2653, 1.0
        %v2718 = vadd.f32 %v2654, 1.0
        %v2719 = vadd.f32 %v2655, 1.0
        %v2720 = vadd.f32 %v2656, 1.0
        %v2721 = vadd.f32 %v2657, 1.0
        %v2722 = vadd.f32 %v2658, 1.0
        %v2723 = vadd.f32 %v2659, 1.0
        %v2724 = vadd.f32 %v2660, 1.0
        %v2725 = vadd.f32 %v2661, 1.0
        %v2726 = vadd.f32 %v2662, 1.0
        %v2727 = vadd.f32 %v2663, 1.0
        %v2728 = vadd.f32 %v2664, 1.0
        %v2729 = vadd.f32 %v2665, 1.0
        %v2730 = vadd.f32 %v2666, 1.0
        %v2731 = vadd.f32 %v2667, 1.0
        %v2732 = vadd.f32 %v2668, 1.0
        %v2733 = vadd.f32 %v2669, 1.0
        %v2734 = vadd.f32 %v2670, 1.0
        %v2735 = vadd.f32 %v2671, 1.0
        %v2736 = vadd.f32 %v2672, 1.0
        %v2737 = vadd.f32 %v2673, 1.0
        %v2738 = vadd.f32 %v2674, 1.0
        %v2739 = vadd.f32 %v2675, 1.0
        %v2740 = vadd.f32 %v2676, 1.0
        %v2741 = vadd.f32 %v2677, 1.0
        %v2742 = vadd.f32 %v2678, 1.0
        %v2743 = vadd.f32 %v2679, 1.0
        %v2744 = vadd.f32 %v2680, 1.0
        %v2745 = vadd.f32 %v2681, 1.0
        %v2746 = vadd.f32 %v2682, 1.0
        %v2747 = vadd.f32 %v2683, 1.0
        %v2748 = vadd.f32 %v2684, 1.0
        %v2749 = vadd.f32 %v2685, 1.0
        %v2750 = vadd.f32 %v2686, 1.0
        %v2751 = vadd.f32 %v2687, 1.0
        %v2752 = vadd.f32 %v2688, 1.0
        %v2753 = vadd.f32 %v2689, 1.0
        %v2754 = vadd.f32 %v2690, 1.0
        %v2755 = vadd.f32 %v2691, 1.0
        %v2756 = vadd.f32 %v2692, 1.0
        %v2757 = vadd.f32 %v2693, 1.0
        %v2758 = vadd.f32 %v2694, 1.0
        %v2759 = vadd.f32 %v2695, 1.0
        %v2760 = vadd.f32 %v2696, 1.0
        %v2761 = vadd.f32 %v2697, 1.0
        %v2762 = vadd.f32 %v2698, 1.0
        %v2763 = vadd.f32 %v2699, 1.0
        %v2764 = vadd.f32 %v2700, 1.0
        %v2765 = vadd.f32 %v2701, 1.0
        %v2766 = vadd.f32 %v2702, 1.0
        %v2767 = vadd.f32 %v2703, 1.0
        %v2768 = vmul.f32 %v2256, %v2704
        %v2769 = vmul.f32 %v2257, %v2705
        %v2770 = vmul.f32 %v2258, %v2706
        %v2771 = vmul.f32 %v2259, %v2707
        %v2772 = vmul.f32 %v2260, %v2708
        %v2773 = vmul.f32 %v2261, %v2709
        %v2774 = vmul.f32 %v2262, %v2710
        %v2775 = vmul.f32 %v2263, %v2711
        %v2776 = vmul.f32 %v2264, %v2712
        %v2777 = vmul.f32 %v2265, %v2713
        %v2778 = vmul.f32 %v2266, %v2714
        %v2779 = vmul.f32 %v2267, %v2715
        %v2780 = vmul.f32 %v2268, %v2716
        %v2781 = vmul.f32 %v2269, %v2717
        %v2782 = vmul.f32 %v2270, %v2718
        %v2783 = vmul.f32 %v2271, %v2719
        %v2784 = vmul.f32 %v2272, %v2720
        %v2785 = vmul.f32 %v2273, %v2721
        %v2786 = vmul.f32 %v2274, %v2722
        %v2787 = vmul.f32 %v2275, %v2723
        %v2788 = vmul.f32 %v2276, %v2724
        %v2789 = vmul.f32 %v2277, %v2725
        %v2790 = vmul.f32 %v2278, %v2726
        %v2791 = vmul.f32 %v2279, %v2727
        %v2792 = vmul.f32 %v2280, %v2728
        %v2793 = vmul.f32 %v2281, %v2729
        %v2794 = vmul.f32 %v2282, %v2730
        %v2795 = vmul.f32 %v2283, %v2731
        %v2796 = vmul.f32 %v2284, %v2732
        %v2797 = vmul.f32 %v2285, %v2733
        %v2798 = vmul.f32 %v2286, %v2734
        %v2799 = vmul.f32 %v2287, %v2735
        %v2800 = vmul.f32 %v2288, %v2736
        %v2801 = vmul.f32 %v2289, %v2737
        %v2802 = vmul.f32 %v2290, %v2738
        %v2803 = vmul.f32 %v2291, %v2739
        %v2804 = vmul.f32 %v2292, %v2740
        %v2805 = vmul.f32 %v2293, %v2741
        %v2806 = vmul.f32 %v2294, %v2742
        %v2807 = vmul.f32 %v2295, %v2743
        %v2808 = vmul.f32 %v2296, %v2744
        %v2809 = vmul.f32 %v2297, %v2745
        %v2810 = vmul.f32 %v2298, %v2746
        %v2811 = vmul.f32 %v2299, %v2747
        %v2812 = vmul.f32 %v2300, %v2748
        %v2813 = vmul.f32 %v2301, %v2749
        %v2814 = vmul.f32 %v2302, %v2750
        %v2815 = vmul.f32 %v2303, %v2751
        %v2816 = vmul.f32 %v2304, %v2752
        %v2817 = vmul.f32 %v2305, %v2753
        %v2818 = vmul.f32 %v2306, %v2754
        %v2819 = vmul.f32 %v2307, %v2755
        %v2820 = vmul.f32 %v2308, %v2756
        %v2821 = vmul.f32 %v2309, %v2757
        %v2822 = vmul.f32 %v2310, %v2758
        %v2823 = vmul.f32 %v2311, %v2759
        %v2824 = vmul.f32 %v2312, %v2760
        %v2825 = vmul.f32 %v2313, %v2761
        %v2826 = vmul.f32 %v2314, %v2762
        %v2827 = vmul.f32 %v2315, %v2763
        %v2828 = vmul.f32 %v2316, %v2764
        %v2829 = vmul.f32 %v2317, %v2765
        %v2830 = vmul.f32 %v2318, %v2766
        %v2831 = vmul.f32 %v2319, %v2767
        %v2832 = vpack.c.bf16 %v2772, %v2768
        %v2833 = vpack.c.bf16 %v2773, %v2769
        %v2834 = vpack.c.bf16 %v2774, %v2770
        %v2835 = vpack.c.bf16 %v2775, %v2771
        %v2836 = vpack.c.bf16 %v2780, %v2776
        %v2837 = vpack.c.bf16 %v2781, %v2777
        %v2838 = vpack.c.bf16 %v2782, %v2778
        %v2839 = vpack.c.bf16 %v2783, %v2779
        %v2840 = vpack.c.bf16 %v2788, %v2784
        %v2841 = vpack.c.bf16 %v2789, %v2785
        %v2842 = vpack.c.bf16 %v2790, %v2786
        %v2843 = vpack.c.bf16 %v2791, %v2787
        %v2844 = vpack.c.bf16 %v2796, %v2792
        %v2845 = vpack.c.bf16 %v2797, %v2793
        %v2846 = vpack.c.bf16 %v2798, %v2794
        %v2847 = vpack.c.bf16 %v2799, %v2795
        %v2848 = vpack.c.bf16 %v2804, %v2800
        %v2849 = vpack.c.bf16 %v2805, %v2801
        %v2850 = vpack.c.bf16 %v2806, %v2802
        %v2851 = vpack.c.bf16 %v2807, %v2803
        %v2852 = vpack.c.bf16 %v2812, %v2808
        %v2853 = vpack.c.bf16 %v2813, %v2809
        %v2854 = vpack.c.bf16 %v2814, %v2810
        %v2855 = vpack.c.bf16 %v2815, %v2811
        %v2856 = vpack.c.bf16 %v2820, %v2816
        %v2857 = vpack.c.bf16 %v2821, %v2817
        %v2858 = vpack.c.bf16 %v2822, %v2818
        %v2859 = vpack.c.bf16 %v2823, %v2819
        %v2860 = vpack.c.bf16 %v2828, %v2824
        %v2861 = vpack.c.bf16 %v2829, %v2825
        %v2862 = vpack.c.bf16 %v2830, %v2826
        %v2863 = vpack.c.bf16 %v2831, %v2827
        %v2864 = vld [vmem:[%s11] sm:$0xf]
        %v2865 = vld [vmem:[%s11 + $0x4] sm:$0xf]
        %v2866 = vld [vmem:[%s11 + $0x8] sm:$0xf]
        %v2867 = vld [vmem:[%s11 + $0xc] sm:$0xf]
        %v2868 = vld [vmem:[%s11 + $0x10] sm:$0xf]
        %v2869 = vld [vmem:[%s11 + $0x14] sm:$0xf]
        %v2870 = vld [vmem:[%s11 + $0x18] sm:$0xf]
        %v2871 = vld [vmem:[%s11 + $0x1c] sm:$0xf]
        %v2872 = vld [vmem:[%s11 + $0x20] sm:$0xf]
        %v2873 = vld [vmem:[%s11 + $0x24] sm:$0xf]
        %v2874 = vld [vmem:[%s11 + $0x28] sm:$0xf]
        %v2875 = vld [vmem:[%s11 + $0x2c] sm:$0xf]
        %v2876 = vld [vmem:[%s11 + $0x30] sm:$0xf]
        %v2877 = vld [vmem:[%s11 + $0x34] sm:$0xf]
        %v2878 = vld [vmem:[%s11 + $0x38] sm:$0xf]
        %v2879 = vld [vmem:[%s11 + $0x3c] sm:$0xf]
        %v2880 = vld [vmem:[%s11 + $0x40] sm:$0xf]
        %v2881 = vld [vmem:[%s11 + $0x44] sm:$0xf]
        %v2882 = vld [vmem:[%s11 + $0x48] sm:$0xf]
        %v2883 = vld [vmem:[%s11 + $0x4c] sm:$0xf]
        %v2884 = vld [vmem:[%s11 + $0x50] sm:$0xf]
        %v2885 = vld [vmem:[%s11 + $0x54] sm:$0xf]
        %v2886 = vld [vmem:[%s11 + $0x58] sm:$0xf]
        %v2887 = vld [vmem:[%s11 + $0x5c] sm:$0xf]
        %v2888 = vld [vmem:[%s11 + $0x60] sm:$0xf]
        %v2889 = vld [vmem:[%s11 + $0x64] sm:$0xf]
        %v2890 = vld [vmem:[%s11 + $0x68] sm:$0xf]
        %v2891 = vld [vmem:[%s11 + $0x6c] sm:$0xf]
        %v2892 = vld [vmem:[%s11 + $0x70] sm:$0xf]
        %v2893 = vld [vmem:[%s11 + $0x74] sm:$0xf]
        %v2894 = vld [vmem:[%s11 + $0x78] sm:$0xf]
        %v2895 = vld [vmem:[%s11 + $0x7c] sm:$0xf]
        %v2896 = vld [vmem:[%s11 + $0x80] sm:$0xf]
        %v2897 = vld [vmem:[%s11 + $0x84] sm:$0xf]
        %v2898 = vld [vmem:[%s11 + $0x88] sm:$0xf]
        %v2899 = vld [vmem:[%s11 + $0x8c] sm:$0xf]
        %v2900 = vld [vmem:[%s11 + $0x90] sm:$0xf]
        %v2901 = vld [vmem:[%s11 + $0x94] sm:$0xf]
        %v2902 = vld [vmem:[%s11 + $0x98] sm:$0xf]
        %v2903 = vld [vmem:[%s11 + $0x9c] sm:$0xf]
        %v2904 = vld [vmem:[%s11 + $0xa0] sm:$0xf]
        %v2905 = vld [vmem:[%s11 + $0xa4] sm:$0xf]
        %v2906 = vld [vmem:[%s11 + $0xa8] sm:$0xf]
        %v2907 = vld [vmem:[%s11 + $0xac] sm:$0xf]
        %v2908 = vld [vmem:[%s11 + $0xb0] sm:$0xf]
        %v2909 = vld [vmem:[%s11 + $0xb4] sm:$0xf]
        %v2910 = vld [vmem:[%s11 + $0xb8] sm:$0xf]
        %v2911 = vld [vmem:[%s11 + $0xbc] sm:$0xf]
        %v2912 = vld [vmem:[%s11 + $0xc0] sm:$0xf]
        %v2913 = vld [vmem:[%s11 + $0xc4] sm:$0xf]
        %v2914 = vld [vmem:[%s11 + $0xc8] sm:$0xf]
        %v2915 = vld [vmem:[%s11 + $0xcc] sm:$0xf]
        %v2916 = vld [vmem:[%s11 + $0xd0] sm:$0xf]
        %v2917 = vld [vmem:[%s11 + $0xd4] sm:$0xf]
        %v2918 = vld [vmem:[%s11 + $0xd8] sm:$0xf]
        %v2919 = vld [vmem:[%s11 + $0xdc] sm:$0xf]
        %v2920 = vld [vmem:[%s11 + $0xe0] sm:$0xf]
        %v2921 = vld [vmem:[%s11 + $0xe4] sm:$0xf]
        %v2922 = vld [vmem:[%s11 + $0xe8] sm:$0xf]
        %v2923 = vld [vmem:[%s11 + $0xec] sm:$0xf]
        %v2924 = vld [vmem:[%s11 + $0xf0] sm:$0xf]
        %v2925 = vld [vmem:[%s11 + $0xf4] sm:$0xf]
        %v2926 = vld [vmem:[%s11 + $0xf8] sm:$0xf]
        %v2927 = vld [vmem:[%s11 + $0xfc] sm:$0xf]
        %v2928 = vld [vmem:[%s12] sm:$0x1]
        %v2930 = vlaneseq
        %v2931 = vshrl.u32 %v2930, 7
        %v2932 = vsub.s32 0, %v2931
        %v2933 = vrot.slane %v2928, %v2932
        %v2999 = vunpack.c.l.b16 %v2864
        %v3000 = vunpack.c.l.b16 %v2865
        %v3001 = vunpack.c.l.b16 %v2866
        %v3002 = vunpack.c.l.b16 %v2867
        %v3003 = vunpack.c.l.b16 %v2868
        %v3004 = vunpack.c.l.b16 %v2869
        %v3005 = vunpack.c.l.b16 %v2870
        %v3006 = vunpack.c.l.b16 %v2871
        %v3007 = vunpack.c.l.b16 %v2872
        %v3008 = vunpack.c.l.b16 %v2873
        %v3009 = vunpack.c.l.b16 %v2874
        %v3010 = vunpack.c.l.b16 %v2875
        %v3011 = vunpack.c.l.b16 %v2876
        %v3012 = vunpack.c.l.b16 %v2877
        %v3013 = vunpack.c.l.b16 %v2878
        %v3014 = vunpack.c.l.b16 %v2879
        %v3015 = vunpack.c.l.b16 %v2880
        %v3016 = vunpack.c.l.b16 %v2881
        %v3017 = vunpack.c.l.b16 %v2882
        %v3018 = vunpack.c.l.b16 %v2883
        %v3019 = vunpack.c.l.b16 %v2884
        %v3020 = vunpack.c.l.b16 %v2885
        %v3021 = vunpack.c.l.b16 %v2886
        %v3022 = vunpack.c.l.b16 %v2887
        %v3023 = vunpack.c.l.b16 %v2888
        %v3024 = vunpack.c.l.b16 %v2889
        %v3025 = vunpack.c.l.b16 %v2890
        %v3026 = vunpack.c.l.b16 %v2891
        %v3027 = vunpack.c.l.b16 %v2892
        %v3028 = vunpack.c.l.b16 %v2893
        %v3029 = vunpack.c.l.b16 %v2894
        %v3030 = vunpack.c.l.b16 %v2895
        %v3031 = vunpack.c.l.b16 %v2896
        %v3032 = vunpack.c.l.b16 %v2897
        %v3033 = vunpack.c.l.b16 %v2898
        %v3034 = vunpack.c.l.b16 %v2899
        %v3035 = vunpack.c.l.b16 %v2900
        %v3036 = vunpack.c.l.b16 %v2901
        %v3037 = vunpack.c.l.b16 %v2902
        %v3038 = vunpack.c.l.b16 %v2903
        %v3039 = vunpack.c.l.b16 %v2904
        %v3040 = vunpack.c.l.b16 %v2905
        %v3041 = vunpack.c.l.b16 %v2906
        %v3042 = vunpack.c.l.b16 %v2907
        %v3043 = vunpack.c.l.b16 %v2908
        %v3044 = vunpack.c.l.b16 %v2909
        %v3045 = vunpack.c.l.b16 %v2910
        %v3046 = vunpack.c.l.b16 %v2911
        %v3047 = vunpack.c.l.b16 %v2912
        %v3048 = vunpack.c.l.b16 %v2913
        %v3049 = vunpack.c.l.b16 %v2914
        %v3050 = vunpack.c.l.b16 %v2915
        %v3051 = vunpack.c.l.b16 %v2916
        %v3052 = vunpack.c.l.b16 %v2917
        %v3053 = vunpack.c.l.b16 %v2918
        %v3054 = vunpack.c.l.b16 %v2919
        %v3055 = vunpack.c.l.b16 %v2920
        %v3056 = vunpack.c.l.b16 %v2921
        %v3057 = vunpack.c.l.b16 %v2922
        %v3058 = vunpack.c.l.b16 %v2923
        %v3059 = vunpack.c.l.b16 %v2924
        %v3060 = vunpack.c.l.b16 %v2925
        %v3061 = vunpack.c.l.b16 %v2926
        %v3062 = vunpack.c.l.b16 %v2927
        %v3063 = vpack.c.b16 %v3000, %v2999
        %v3064 = vpack.c.b16 %v3002, %v3001
        %v3065 = vpack.c.b16 %v3004, %v3003
        %v3066 = vpack.c.b16 %v3006, %v3005
        %v3067 = vpack.c.b16 %v3008, %v3007
        %v3068 = vpack.c.b16 %v3010, %v3009
        %v3069 = vpack.c.b16 %v3012, %v3011
        %v3070 = vpack.c.b16 %v3014, %v3013
        %v3071 = vpack.c.b16 %v3016, %v3015
        %v3072 = vpack.c.b16 %v3018, %v3017
        %v3073 = vpack.c.b16 %v3020, %v3019
        %v3074 = vpack.c.b16 %v3022, %v3021
        %v3075 = vpack.c.b16 %v3024, %v3023
        %v3076 = vpack.c.b16 %v3026, %v3025
        %v3077 = vpack.c.b16 %v3028, %v3027
        %v3078 = vpack.c.b16 %v3030, %v3029
        %v3079 = vpack.c.b16 %v3032, %v3031
        %v3080 = vpack.c.b16 %v3034, %v3033
        %v3081 = vpack.c.b16 %v3036, %v3035
        %v3082 = vpack.c.b16 %v3038, %v3037
        %v3083 = vpack.c.b16 %v3040, %v3039
        %v3084 = vpack.c.b16 %v3042, %v3041
        %v3085 = vpack.c.b16 %v3044, %v3043
        %v3086 = vpack.c.b16 %v3046, %v3045
        %v3087 = vpack.c.b16 %v3048, %v3047
        %v3088 = vpack.c.b16 %v3050, %v3049
        %v3089 = vpack.c.b16 %v3052, %v3051
        %v3090 = vpack.c.b16 %v3054, %v3053
        %v3091 = vpack.c.b16 %v3056, %v3055
        %v3092 = vpack.c.b16 %v3058, %v3057
        %v3093 = vpack.c.b16 %v3060, %v3059
        %v3094 = vpack.c.b16 %v3062, %v3061
        %3127 = vmatprep.subr.bf16.mxu0 0
        %3128 = vmatpush1.bf16.msra.mxu0 %v3063
        %3129 = vmatprep.subr.bf16.mxu0 0
        %3130 = vmatpush1.bf16.msra.mxu0 %v3064
        %3131 = vmatprep.subr.bf16.mxu0 0
        %3132 = vmatpush1.bf16.msra.mxu0 %v3065
        %3133 = vmatprep.subr.bf16.mxu0 0
        %3134 = vmatpush1.bf16.msra.mxu0 %v3066
        %3135 = vmatprep.subr.bf16.mxu0 0
        %3136 = vmatpush1.bf16.msra.mxu0 %v3067
        %3137 = vmatprep.subr.bf16.mxu0 0
        %3138 = vmatpush1.bf16.msra.mxu0 %v3068
        %3139 = vmatprep.subr.bf16.mxu0 0
        %3140 = vmatpush1.bf16.msra.mxu0 %v3069
        %3141 = vmatprep.subr.bf16.mxu0 0
        %3142 = vmatpush1.bf16.msra.mxu0 %v3070
        %3143 = vmatprep.subr.bf16.mxu0 0
        %3144 = vmatpush1.bf16.msra.mxu0 %v3071
        %3145 = vmatprep.subr.bf16.mxu0 0
        %3146 = vmatpush1.bf16.msra.mxu0 %v3072
        %3147 = vmatprep.subr.bf16.mxu0 0
        %3148 = vmatpush1.bf16.msra.mxu0 %v3073
        %3149 = vmatprep.subr.bf16.mxu0 0
        %3150 = vmatpush1.bf16.msra.mxu0 %v3074
        %3151 = vmatprep.subr.bf16.mxu0 0
        %3152 = vmatpush1.bf16.msra.mxu0 %v3075
        %3153 = vmatprep.subr.bf16.mxu0 0
        %3154 = vmatpush1.bf16.msra.mxu0 %v3076
        %3155 = vmatprep.subr.bf16.mxu0 0
        %3156 = vmatpush1.bf16.msra.mxu0 %v3077
        %3157 = vmatprep.subr.bf16.mxu0 0
        %3158 = vmatpush1.bf16.msra.mxu0 %v3078
        %3159 = vmatprep.mubr.bf16.mxu0 %v2833
        %3160 = vmatmul.mubr.bf16.gmra.mrb[0].mxu0 %v2832
        %v3161 = vpop.f32.mrb[0].mxu0
        %v3162 = vadd.f32 %v2933, %v3161
        %v3163 = vpop.f32.mrb[0].mxu0
        %v3164 = vpop.f32.mrb[0].mxu0
        %v3165 = vadd.f32 %v2933, %v3164
        %v3166 = vpop.f32.mrb[0].mxu0
        %3167 = vmatprep.mubr.bf16.mxu0 %v2837
        %3168 = vmatmul.mubr.bf16.gmra.mrb[0].mxu0 %v2836
        %v3169 = vpop.f32.mrb[0].mxu0
        %v3170 = vadd.f32 %v2933, %v3169
        %v3171 = vpop.f32.mrb[0].mxu0
        %v3172 = vpop.f32.mrb[0].mxu0
        %v3173 = vadd.f32 %v2933, %v3172
        %v3174 = vpop.f32.mrb[0].mxu0
        %3175 = vmatprep.mubr.bf16.mxu0 %v2841
        %3176 = vmatmul.mubr.bf16.gmra.mrb[0].mxu0 %v2840
        %v3177 = vpop.f32.mrb[0].mxu0
        %v3178 = vadd.f32 %v2933, %v3177
        %v3179 = vpop.f32.mrb[0].mxu0
        %v3180 = vpop.f32.mrb[0].mxu0
        %v3181 = vadd.f32 %v2933, %v3180
        %v3182 = vpop.f32.mrb[0].mxu0
        %3183 = vmatprep.mubr.bf16.mxu0 %v2845
        %3184 = vmatmul.mubr.bf16.gmra.mrb[0].mxu0 %v2844
        %v3185 = vpop.f32.mrb[0].mxu0
        %v3186 = vadd.f32 %v2933, %v3185
        %v3187 = vpop.f32.mrb[0].mxu0
        %v3188 = vpop.f32.mrb[0].mxu0
        %v3189 = vadd.f32 %v2933, %v3188
        %v3190 = vpop.f32.mrb[0].mxu0
        %3191 = vmatprep.mubr.bf16.mxu0 %v2849
        %3192 = vmatmul.mubr.bf16.gmra.mrb[0].mxu0 %v2848
        %v3193 = vpop.f32.mrb[0].mxu0
        %v3194 = vadd.f32 %v2933, %v3193
        %v3195 = vpop.f32.mrb[0].mxu0
        %v3196 = vpop.f32.mrb[0].mxu0
        %v3197 = vadd.f32 %v2933, %v3196
        %v3198 = vpop.f32.mrb[0].mxu0
        %3199 = vmatprep.mubr.bf16.mxu0 %v2853
        %3200 = vmatmul.mubr.bf16.gmra.mrb[0].mxu0 %v2852
        %v3201 = vpop.f32.mrb[0].mxu0
        %v3202 = vadd.f32 %v2933, %v3201
        %v3203 = vpop.f32.mrb[0].mxu0
        %v3204 = vpop.f32.mrb[0].mxu0
        %v3205 = vadd.f32 %v2933, %v3204
        %v3206 = vpop.f32.mrb[0].mxu0
        %3207 = vmatprep.mubr.bf16.mxu0 %v2857
        %3208 = vmatmul.mubr.bf16.gmra.mrb[0].mxu0 %v2856
        %v3209 = vpop.f32.mrb[0].mxu0
        %v3210 = vadd.f32 %v2933, %v3209
        %v3211 = vpop.f32.mrb[0].mxu0
        %v3212 = vpop.f32.mrb[0].mxu0
        %v3213 = vadd.f32 %v2933, %v3212
        %v3214 = vpop.f32.mrb[0].mxu0
        %3215 = vmatprep.mubr.bf16.mxu0 %v2861
        %3216 = vmatmul.mubr.bf16.gmra.mrb[0].mxu0 %v2860
        %v3217 = vpop.f32.mrb[0].mxu0
        %v3218 = vadd.f32 %v2933, %v3217
        %v3219 = vpop.f32.mrb[0].mxu0
        %v3220 = vpop.f32.mrb[0].mxu0
        %v3221 = vadd.f32 %v2933, %v3220
        %v3222 = vpop.f32.mrb[0].mxu0
        %3223 = vdwg.mxu0
        %3224 = vmatprep.subr.bf16.mxu0 0
        %3225 = vmatpush1.bf16.msra.mxu0 %v3079
        %3226 = vmatprep.subr.bf16.mxu0 0
        %3227 = vmatpush1.bf16.msra.mxu0 %v3080
        %3228 = vmatprep.subr.bf16.mxu0 0
        %3229 = vmatpush1.bf16.msra.mxu0 %v3081
        %3230 = vmatprep.subr.bf16.mxu0 0
        %3231 = vmatpush1.bf16.msra.mxu0 %v3082
        %3232 = vmatprep.subr.bf16.mxu0 0
        %3233 = vmatpush1.bf16.msra.mxu0 %v3083
        %3234 = vmatprep.subr.bf16.mxu0 0
        %3235 = vmatpush1.bf16.msra.mxu0 %v3084
        %3236 = vmatprep.subr.bf16.mxu0 0
        %3237 = vmatpush1.bf16.msra.mxu0 %v3085
        %3238 = vmatprep.subr.bf16.mxu0 0
        %3239 = vmatpush1.bf16.msra.mxu0 %v3086
        %3240 = vmatprep.subr.bf16.mxu0 0
        %3241 = vmatpush1.bf16.msra.mxu0 %v3087
        %3242 = vmatprep.subr.bf16.mxu0 0
        %3243 = vmatpush1.bf16.msra.mxu0 %v3088
        %3244 = vmatprep.subr.bf16.mxu0 0
        %3245 = vmatpush1.bf16.msra.mxu0 %v3089
        %3246 = vmatprep.subr.bf16.mxu0 0
        %3247 = vmatpush1.bf16.msra.mxu0 %v3090
        %3248 = vmatprep.subr.bf16.mxu0 0
        %3249 = vmatpush1.bf16.msra.mxu0 %v3091
        %3250 = vmatprep.subr.bf16.mxu0 0
        %3251 = vmatpush1.bf16.msra.mxu0 %v3092
        %3252 = vmatprep.subr.bf16.mxu0 0
        %3253 = vmatpush1.bf16.msra.mxu0 %v3093
        %3254 = vmatprep.subr.bf16.mxu0 0
        %3255 = vmatpush1.bf16.msra.mxu0 %v3094
        %3256 = vmatprep.mubr.bf16.mxu0 %v2835
        %3257 = vmatmul.mubr.bf16.gmra.mrb[0].mxu0 %v2834
        %v3258 = vpop.f32.mrb[0].mxu0
        %v3259 = vadd.f32 %v3162, %v3258
        %v3260 = vpop.f32.mrb[0].mxu0
        %v3261 = vpop.f32.mrb[0].mxu0
        %v3262 = vadd.f32 %v3165, %v3261
        %v3263 = vpop.f32.mrb[0].mxu0
        %3264 = vmatprep.mubr.bf16.mxu0 %v2839
        %3265 = vmatmul.mubr.bf16.gmra.mrb[0].mxu0 %v2838
        %v3266 = vpop.f32.mrb[0].mxu0
        %v3267 = vadd.f32 %v3170, %v3266
        %v3268 = vpop.f32.mrb[0].mxu0
        %v3269 = vpop.f32.mrb[0].mxu0
        %v3270 = vadd.f32 %v3173, %v3269
        %v3271 = vpop.f32.mrb[0].mxu0
        %3272 = vmatprep.mubr.bf16.mxu0 %v2843
        %3273 = vmatmul.mubr.bf16.gmra.mrb[0].mxu0 %v2842
        %v3274 = vpop.f32.mrb[0].mxu0
        %v3275 = vadd.f32 %v3178, %v3274
        %v3276 = vpop.f32.mrb[0].mxu0
        %v3277 = vpop.f32.mrb[0].mxu0
        %v3278 = vadd.f32 %v3181, %v3277
        %v3279 = vpop.f32.mrb[0].mxu0
        %3280 = vmatprep.mubr.bf16.mxu0 %v2847
        %3281 = vmatmul.mubr.bf16.gmra.mrb[0].mxu0 %v2846
        %v3282 = vpop.f32.mrb[0].mxu0
        %v3283 = vadd.f32 %v3186, %v3282
        %v3284 = vpop.f32.mrb[0].mxu0
        %v3285 = vpop.f32.mrb[0].mxu0
        %v3286 = vadd.f32 %v3189, %v3285
        %v3287 = vpop.f32.mrb[0].mxu0
        %3288 = vmatprep.mubr.bf16.mxu0 %v2851
        %3289 = vmatmul.mubr.bf16.gmra.mrb[0].mxu0 %v2850
        %v3290 = vpop.f32.mrb[0].mxu0
        %v3291 = vadd.f32 %v3194, %v3290
        %v3292 = vpop.f32.mrb[0].mxu0
        %v3293 = vpop.f32.mrb[0].mxu0
        %v3294 = vadd.f32 %v3197, %v3293
        %v3295 = vpop.f32.mrb[0].mxu0
        %3296 = vmatprep.mubr.bf16.mxu0 %v2855
        %3297 = vmatmul.mubr.bf16.gmra.mrb[0].mxu0 %v2854
        %v3298 = vpop.f32.mrb[0].mxu0
        %v3299 = vadd.f32 %v3202, %v3298
        %v3300 = vpop.f32.mrb[0].mxu0
        %v3301 = vpop.f32.mrb[0].mxu0
        %v3302 = vadd.f32 %v3205, %v3301
        %v3303 = vpop.f32.mrb[0].mxu0
        %3304 = vmatprep.mubr.bf16.mxu0 %v2859
        %3305 = vmatmul.mubr.bf16.gmra.mrb[0].mxu0 %v2858
        %v3306 = vpop.f32.mrb[0].mxu0
        %v3307 = vadd.f32 %v3210, %v3306
        %v3308 = vpop.f32.mrb[0].mxu0
        %v3309 = vpop.f32.mrb[0].mxu0
        %v3310 = vadd.f32 %v3213, %v3309
        %v3311 = vpop.f32.mrb[0].mxu0
        %3312 = vmatprep.mubr.bf16.mxu0 %v2863
        %3313 = vmatmul.mubr.bf16.gmra.mrb[0].mxu0 %v2862
        %v3314 = vpop.f32.mrb[0].mxu0
        %v3315 = vadd.f32 %v3218, %v3314
        %v3316 = vpop.f32.mrb[0].mxu0
        %v3317 = vpop.f32.mrb[0].mxu0
        %v3318 = vadd.f32 %v3221, %v3317
        %v3319 = vpop.f32.mrb[0].mxu0
        %3320 = vdwg.mxu0
        %v3321 = vadd.f32 %v1569, %v3259
        %v3322 = vadd.f32 %v1570, %v3262
        %v3323 = vadd.f32 %v1571, %v3267
        %v3324 = vadd.f32 %v1572, %v3270
        %v3325 = vadd.f32 %v1573, %v3275
        %v3326 = vadd.f32 %v1574, %v3278
        %v3327 = vadd.f32 %v1575, %v3283
        %v3328 = vadd.f32 %v1576, %v3286
        %v3329 = vadd.f32 %v1577, %v3291
        %v3330 = vadd.f32 %v1578, %v3294
        %v3331 = vadd.f32 %v1579, %v3299
        %v3332 = vadd.f32 %v1580, %v3302
        %v3333 = vadd.f32 %v1581, %v3307
        %v3334 = vadd.f32 %v1582, %v3310
        %v3335 = vadd.f32 %v1583, %v3315
        %v3336 = vadd.f32 %v1584, %v3318
        %3337 = vst [vmem:[%s637] sm:$0xff] %v3321
        %3338 = vst [vmem:[%s637 + $0x8] sm:$0xff] %v3322
        %3339 = vst [vmem:[%s637 + $0x10] sm:$0xff] %v3323
        %3340 = vst [vmem:[%s637 + $0x18] sm:$0xff] %v3324
        %3341 = vst [vmem:[%s637 + $0x20] sm:$0xff] %v3325
        %3342 = vst [vmem:[%s637 + $0x28] sm:$0xff] %v3326
        %3343 = vst [vmem:[%s637 + $0x30] sm:$0xff] %v3327
        %3344 = vst [vmem:[%s637 + $0x38] sm:$0xff] %v3328
        %3345 = vst [vmem:[%s637 + $0x40] sm:$0xff] %v3329
        %3346 = vst [vmem:[%s637 + $0x48] sm:$0xff] %v3330
        %3347 = vst [vmem:[%s637 + $0x50] sm:$0xff] %v3331
        %3348 = vst [vmem:[%s637 + $0x58] sm:$0xff] %v3332
        %3349 = vst [vmem:[%s637 + $0x60] sm:$0xff] %v3333
        %3350 = vst [vmem:[%s637 + $0x68] sm:$0xff] %v3334
        %3351 = vst [vmem:[%s637 + $0x70] sm:$0xff] %v3335
        %3352 = vst [vmem:[%s637 + $0x78] sm:$0xff] %v3336
      $region80: #{run.3} parent=71 // pred_fallthru
        _
      %s3353 = smul.u32 16, %s30
      %p3354 = scmp.lt.s32.totalorder %s29, 1
      %s3355 = scalar_select %p3354, %s29, 1
      %p3356 = scmp.lt.s32.totalorder %s3353, 15
      %s3357 = scalar_select %p3356, %s3353, 15
      %s3358 = smul.addr %s3355, 16
      %s3359 = sadd.s32 %s3357, %s3358
      %s3360 = smul.addr %s3359, 8
      %s3361 = scalar_lea.vmem %s13, %s3360
      // Predicated region
      $region81: #{run.3} parent=71 // pred_check
        %p3362 = pneg %p376
      $region82: #{run.3} parent=71 // pred_check_branch
        %3364 = sbr.rel (%p3362) target = $region84
      $region83: #{run.3} parent=71 // pred_region
        %s3365 = smul.u32 16, %s30
      $region84: #{run.3} parent=71 // pred_fallthru
        _
    $region72: #{run.3} parent=5 // pred_fallthru
      _
    %p3366 = scmp.le.s32.totalorder 2, %s19
    // Predicated region
    $region85: #{run.3} parent=5 // pred_check
      %p3367 = pneg %p3366
    $region86: #{run.3} parent=5 // pred_check_branch
      %3369 = sbr.rel (%p3367) target = $region88
    $region87: #{run.3} parent=5 // pred_region
      %s3370 = ssub.s32 %s19, 2
      // Predicated region
      $region89: #{run.3} parent=87 // pred_check
        %p3371 = pneg %p382
      $region90: #{run.3} parent=87 // pred_check_branch
        %3373 = sbr.rel (%p3371) target = $region92
      $region91: #{run.3} parent=87 // pred_region
        %s3374 = smul.u32 16, %s33
        %p3375 = scmp.lt.s32.totalorder %s32, 1
        %s3376 = scalar_select %p3375, %s32, 1
        %p3377 = scmp.lt.s32.totalorder %s3374, 15
        %s3378 = scalar_select %p3377, %s3374, 15
        %s3379 = smul.addr %s3376, 16
        %s3380 = sadd.s32 %s3378, %s3379
        %s3381 = smul.addr %s3380, 8
        %s3382 = scalar_lea.vmem %s13, %s3381
      $region92: #{run.3} parent=87 // pred_fallthru
        _
    $region88: #{run.3} parent=5 // pred_fallthru
      _
  $region6: #{run.3} parent=0 // loop_footer
    %s23 = sadd.s32 1, %s19
  $region7: #{run.3} parent=0 // loop_footer_branch
    %18 = sbr.rel target = $region3
  $region8: #{run.3} parent=0 // loop_exit
    _

// kernel: run.2
$region0: #{run.2}
  #allocation0 [shape = 'u32[]', space=smem, size = 0x4, offset = 0x4, fixed_abs, tag = 'smem constant byte address 0x4 - core index']
  #allocation1 [shape = 'u32[144,128]{1,0:T(1,128)}', space=vmem, size = 0x12000, scoped, tag = 'internal scratch']
  %s0 = inlined_call_operand.vmem [shape: f32[2,128,128], index: 0, kind: input, shape index: {}]
  %s1 = inlined_call_operand.vmem [shape: f32[1,128], index: 1, kind: input, shape index: {}]
  %s2 = inlined_call_operand.vmem [shape: f32[1,128], index: 2, kind: input, shape index: {}]
  %s3 = inlined_call_operand.vmem [shape: bf16[128,384], index: 3, kind: input, shape index: {}]
  %s4 = inlined_call_operand.vmem [shape: f32[1,384], index: 4, kind: input, shape index: {}]
  %s5 = inlined_call_operand.vmem [shape: bf16[2,8,128,16], index: 5, kind: output, shape index: {0}]
  %s6 = inlined_call_operand.vmem [shape: bf16[2,8,128,16], index: 6, kind: output, shape index: {1}]
  %s7 = inlined_call_operand.vmem [shape: bf16[2,8,128,16], index: 7, kind: output, shape index: {2}]
  %8 = xla_tuple %s5, %s6, %s7
  %s9 = sld [smem:[#allocation0]]
  $region69: #{run.2} parent=0
    _
  %s11 = ssub.s32 1, %s9
  %s12 = scalar_select 0, %s11, %s9
  loop: start=0, step=1, limit=4
  $region2: #{run.2} parent=0 // loop_pre_header
    _
  $region3: #{run.2} parent=0 // loop_header
    %s14 = sphi 0, %s18
    %p15 = scmp.ge.s32.totalorder %s14, 4
    %s21 = sphi 0, %s33
    %s22 = sphi 0, %s29
    %s23 = sphi 0, %s21
    %s24 = sphi 0, %s22
    %s25 = sphi 0, %s23
    %s26 = sphi 0, %s24
    %s38 = sphi 0, %s40
    %s41 = sphi 0, %s38
    %s42 = sphi 0, %s41
    %s58 = sphi 0, %s42
    %s62 = sphi 0, %s62
    %s64 = sphi 0, %s62
    %s65 = sphi 0, %s64
    %s79 = sphi 0, %s65
    %s83 = sphi 0, %s83
    %s85 = sphi 0, %s83
    %s86 = sphi 0, %s85
    %s100 = sphi 0, %s86
    %s104 = sphi 0, %s104
    %s106 = sphi 0, %s104
    %s107 = sphi 0, %s106
    %s121 = sphi 0, %s107
    %s125 = sphi 0, %s125
    %s127 = sphi 0, %s125
    %s128 = sphi 0, %s127
    %s142 = sphi 0, %s128
    %s150 = sphi 0, %s152
    %s153 = sphi 0, %s150
    %s154 = sphi 0, %s153
    %s170 = sphi 0, %s154
    %s178 = sphi 0, %s180
    %s181 = sphi 0, %s178
    %s182 = sphi 0, %s181
    %s198 = sphi 0, %s182
    %s206 = sphi 0, %s208
    %s209 = sphi 0, %s206
    %s210 = sphi 0, %s209
    %s226 = sphi 0, %s210
  $region4: #{run.2} parent=0 // loop_header_branch
    %17 = sbr.rel (%p15) target = $region8
  $region5: #{run.2} parent=0 // loop_body
    %s19 = ssub.s32 %s14, 1
    %s20 = ssub.s32 %s14, 2
    %s27 = sadd.s32 1, %s22
    %p28 = scmp.ge.s32.totalorder %s27, 1
    %s29 = scalar_select %p28, 0, %s27
    %s30 = sadd.s32 1, %s21
    %s31 = scalar_select %p28, %s30, %s21
    %p32 = scmp.ge.s32.totalorder %s31, 2
    %s33 = scalar_select %p32, 0, %s31
    %s34 = ssub.s32 %s21, %s33
    %s35 = ssub.s32 %s22, %s29
    %s36 = sor.u32 %s34, %s35
    %p37 = scmp.eq.s32.totalorder %s36, 0
    %s39 = sadd.s32 %s38, 1
    %s40 = scalar_select %p37, %s38, %s39
    %p43 = pneg %p37
    %p44 = scmp.eq.s32.totalorder %s14, 1
    %p45 = por %p43, %p44
    %p46 = scmp.ne.s32.totalorder %s38, %s41
    %p47 = scmp.eq.s32.totalorder %s14, 0
    %p48 = por %p46, %p47
    %p49 = scmp.ne.s32.totalorder %s38, %s41
    %p50 = scmp.eq.s32.totalorder %s19, 1
    %p51 = por %p49, %p50
    %p52 = scmp.ne.s32.totalorder %s41, %s42
    %p53 = scmp.eq.s32.totalorder %s19, 0
    %p54 = por %p52, %p53
    %p55 = scmp.ne.s32.totalorder %s41, %s42
    %p56 = scmp.eq.s32.totalorder %s20, 1
    %p57 = por %p55, %p56
    %p59 = scmp.ne.s32.totalorder %s42, %s58
    %p60 = scmp.eq.s32.totalorder %s20, 0
    %p61 = por %p59, %p60
    %s63 = sadd.s32 %s62, 1
    %p66 = scmp.eq.s32.totalorder %s14, 1
    %p67 = scmp.ne.s32.totalorder %s62, %s64
    %p68 = scmp.eq.s32.totalorder %s14, 0
    %p69 = por %p67, %p68
    %p70 = scmp.ne.s32.totalorder %s62, %s64
    %p71 = scmp.eq.s32.totalorder %s19, 1
    %p72 = por %p70, %p71
    %p73 = scmp.ne.s32.totalorder %s64, %s65
    %p74 = scmp.eq.s32.totalorder %s19, 0
    %p75 = por %p73, %p74
    %p76 = scmp.ne.s32.totalorder %s64, %s65
    %p77 = scmp.eq.s32.totalorder %s20, 1
    %p78 = por %p76, %p77
    %p80 = scmp.ne.s32.totalorder %s65, %s79
    %p81 = scmp.eq.s32.totalorder %s20, 0
    %p82 = por %p80, %p81
    %s84 = sadd.s32 %s83, 1
    %p87 = scmp.eq.s32.totalorder %s14, 1
    %p88 = scmp.ne.s32.totalorder %s83, %s85
    %p89 = scmp.eq.s32.totalorder %s14, 0
    %p90 = por %p88, %p89
    %p91 = scmp.ne.s32.totalorder %s83, %s85
    %p92 = scmp.eq.s32.totalorder %s19, 1
    %p93 = por %p91, %p92
    %p94 = scmp.ne.s32.totalorder %s85, %s86
    %p95 = scmp.eq.s32.totalorder %s19, 0
    %p96 = por %p94, %p95
    %p97 = scmp.ne.s32.totalorder %s85, %s86
    %p98 = scmp.eq.s32.totalorder %s20, 1
    %p99 = por %p97, %p98
    %p101 = scmp.ne.s32.totalorder %s86, %s100
    %p102 = scmp.eq.s32.totalorder %s20, 0
    %p103 = por %p101, %p102
    %s105 = sadd.s32 %s104, 1
    %p108 = scmp.eq.s32.totalorder %s14, 1
    %p109 = scmp.ne.s32.totalorder %s104, %s106
    %p110 = scmp.eq.s32.totalorder %s14, 0
    %p111 = por %p109, %p110
    %p112 = scmp.ne.s32.totalorder %s104, %s106
    %p113 = scmp.eq.s32.totalorder %s19, 1
    %p114 = por %p112, %p113
    %p115 = scmp.ne.s32.totalorder %s106, %s107
    %p116 = scmp.eq.s32.totalorder %s19, 0
    %p117 = por %p115, %p116
    %p118 = scmp.ne.s32.totalorder %s106, %s107
    %p119 = scmp.eq.s32.totalorder %s20, 1
    %p120 = por %p118, %p119
    %p122 = scmp.ne.s32.totalorder %s107, %s121
    %p123 = scmp.eq.s32.totalorder %s20, 0
    %p124 = por %p122, %p123
    %s126 = sadd.s32 %s125, 1
    %p129 = scmp.eq.s32.totalorder %s14, 1
    %p130 = scmp.ne.s32.totalorder %s125, %s127
    %p131 = scmp.eq.s32.totalorder %s14, 0
    %p132 = por %p130, %p131
    %p133 = scmp.ne.s32.totalorder %s125, %s127
    %p134 = scmp.eq.s32.totalorder %s19, 1
    %p135 = por %p133, %p134
    %p136 = scmp.ne.s32.totalorder %s127, %s128
    %p137 = scmp.eq.s32.totalorder %s19, 0
    %p138 = por %p136, %p137
    %p139 = scmp.ne.s32.totalorder %s127, %s128
    %p140 = scmp.eq.s32.totalorder %s20, 1
    %p141 = por %p139, %p140
    %p143 = scmp.ne.s32.totalorder %s128, %s142
    %p144 = scmp.eq.s32.totalorder %s20, 0
    %p145 = por %p143, %p144
    %s146 = ssub.s32 %s21, %s33
    %s147 = ssub.s32 %s22, %s29
    %s148 = sor.u32 %s146, %s147
    %p149 = scmp.eq.s32.totalorder %s148, 0
    %s151 = sadd.s32 %s150, 1
    %s152 = scalar_select %p149, %s150, %s151
    %p155 = pneg %p149
    %p156 = scmp.eq.s32.totalorder %s14, 1
    %p157 = por %p155, %p156
    %p158 = scmp.ne.s32.totalorder %s150, %s153
    %p159 = scmp.eq.s32.totalorder %s14, 0
    %p160 = por %p158, %p159
    %p161 = scmp.ne.s32.totalorder %s150, %s153
    %p162 = scmp.eq.s32.totalorder %s19, 1
    %p163 = por %p161, %p162
    %p164 = scmp.ne.s32.totalorder %s153, %s154
    %p165 = scmp.eq.s32.totalorder %s19, 0
    %p166 = por %p164, %p165
    %p167 = scmp.ne.s32.totalorder %s153, %s154
    %p168 = scmp.eq.s32.totalorder %s20, 1
    %p169 = por %p167, %p168
    %p171 = scmp.ne.s32.totalorder %s154, %s170
    %p172 = scmp.eq.s32.totalorder %s20, 0
    %p173 = por %p171, %p172
    %s174 = ssub.s32 %s21, %s33
    %s175 = ssub.s32 %s22, %s29
    %s176 = sor.u32 %s174, %s175
    %p177 = scmp.eq.s32.totalorder %s176, 0
    %s179 = sadd.s32 %s178, 1
    %s180 = scalar_select %p177, %s178, %s179
    %p183 = pneg %p177
    %p184 = scmp.eq.s32.totalorder %s14, 1
    %p185 = por %p183, %p184
    %p186 = scmp.ne.s32.totalorder %s178, %s181
    %p187 = scmp.eq.s32.totalorder %s14, 0
    %p188 = por %p186, %p187
    %p189 = scmp.ne.s32.totalorder %s178, %s181
    %p190 = scmp.eq.s32.totalorder %s19, 1
    %p191 = por %p189, %p190
    %p192 = scmp.ne.s32.totalorder %s181, %s182
    %p193 = scmp.eq.s32.totalorder %s19, 0
    %p194 = por %p192, %p193
    %p195 = scmp.ne.s32.totalorder %s181, %s182
    %p196 = scmp.eq.s32.totalorder %s20, 1
    %p197 = por %p195, %p196
    %p199 = scmp.ne.s32.totalorder %s182, %s198
    %p200 = scmp.eq.s32.totalorder %s20, 0
    %p201 = por %p199, %p200
    %s202 = ssub.s32 %s21, %s33
    %s203 = ssub.s32 %s22, %s29
    %s204 = sor.u32 %s202, %s203
    %p205 = scmp.eq.s32.totalorder %s204, 0
    %s207 = sadd.s32 %s206, 1
    %s208 = scalar_select %p205, %s206, %s207
    %p211 = pneg %p205
    %p212 = scmp.eq.s32.totalorder %s14, 1
    %p213 = por %p211, %p212
    %p214 = scmp.ne.s32.totalorder %s206, %s209
    %p215 = scmp.eq.s32.totalorder %s14, 0
    %p216 = por %p214, %p215
    %p217 = scmp.ne.s32.totalorder %s206, %s209
    %p218 = scmp.eq.s32.totalorder %s19, 1
    %p219 = por %p217, %p218
    %p220 = scmp.ne.s32.totalorder %s209, %s210
    %p221 = scmp.eq.s32.totalorder %s19, 0
    %p222 = por %p220, %p221
    %p223 = scmp.ne.s32.totalorder %s209, %s210
    %p224 = scmp.eq.s32.totalorder %s20, 1
    %p225 = por %p223, %p224
    %p227 = scmp.ne.s32.totalorder %s210, %s226
    %p228 = scmp.eq.s32.totalorder %s20, 0
    %p229 = por %p227, %p228
    %p230 = scmp.le.s32.totalorder 1, %s14
    %p231 = scmp.lt.s32.totalorder %s14, 3
    %p232 = pnand %p230, %p231
    %p233 = pneg %p232
    // Predicated region
    $region9: #{run.2} parent=5 // pred_check
      _
    $region10: #{run.2} parent=5 // pred_check_branch
      %235 = sbr.rel (%p232) target = $region12
    $region11: #{run.2} parent=5 // pred_region
      %s236 = ssub.s32 %s14, 1
      // Predicated region
      $region13: #{run.2} parent=11 // pred_check
        %p237 = pneg %p75
      $region14: #{run.2} parent=11 // pred_check_branch
        %239 = sbr.rel (%p237) target = $region16
      $region15: #{run.2} parent=11 // pred_region
        _
      $region16: #{run.2} parent=11 // pred_fallthru
        _
      // Predicated region
      $region17: #{run.2} parent=11 // pred_check
        %p240 = pneg %p96
      $region18: #{run.2} parent=11 // pred_check_branch
        %242 = sbr.rel (%p240) target = $region20
      $region19: #{run.2} parent=11 // pred_region
        _
      $region20: #{run.2} parent=11 // pred_fallthru
        _
      // Predicated region
      $region21: #{run.2} parent=11 // pred_check
        %p243 = pneg %p117
      $region22: #{run.2} parent=11 // pred_check_branch
        %245 = sbr.rel (%p243) target = $region24
      $region23: #{run.2} parent=11 // pred_region
        _
      $region24: #{run.2} parent=11 // pred_fallthru
        _
      // Predicated region
      $region25: #{run.2} parent=11 // pred_check
        %p246 = pneg %p138
      $region26: #{run.2} parent=11 // pred_check_branch
        %248 = sbr.rel (%p246) target = $region28
      $region27: #{run.2} parent=11 // pred_region
        _
      $region28: #{run.2} parent=11 // pred_fallthru
        _
    $region12: #{run.2} parent=5 // pred_fallthru
      _
    %p249 = scmp.lt.s32.totalorder %s14, 2
    // Predicated region
    $region29: #{run.2} parent=5 // pred_check
      %p250 = pneg %p249
    $region30: #{run.2} parent=5 // pred_check_branch
      %252 = sbr.rel (%p250) target = $region32
    $region31: #{run.2} parent=5 // pred_region
      // Predicated region
      $region33: #{run.2} parent=31 // pred_check
        %p253 = pneg %p48
      $region34: #{run.2} parent=31 // pred_check_branch
        %255 = sbr.rel (%p253) target = $region36
      $region35: #{run.2} parent=31 // pred_region
        %s256 = smul.u32 16, %s22
        %p257 = scmp.lt.s32.totalorder %s21, 1
        %s258 = scalar_select %p257, %s21, 1
        %p259 = scmp.lt.s32.totalorder %s256, 15
        %s260 = scalar_select %p259, %s256, 15
        %s261 = smul.addr %s258, 16
        %s262 = sadd.s32 %s260, %s261
        %s263 = smul.addr %s262, 8
        %s264 = scalar_lea.vmem %s0, %s263
        %s265 = smul.u32 16, %s22
      $region36: #{run.2} parent=31 // pred_fallthru
        _
    $region32: #{run.2} parent=5 // pred_fallthru
      _
    %p266 = scmp.le.s32.totalorder 1, %s14
    %p267 = scmp.lt.s32.totalorder %s14, 3
    %p268 = pnand %p266, %p267
    %p269 = pneg %p268
    // Predicated region
    $region37: #{run.2} parent=5 // pred_check
      _
    $region38: #{run.2} parent=5 // pred_check_branch
      %271 = sbr.rel (%p268) target = $region40
    $region39: #{run.2} parent=5 // pred_region
      %s272 = ssub.s32 %s14, 1
      %s273 = smul.u32 16, %s24
      %p274 = scmp.lt.s32.totalorder %s23, 1
      %s275 = scalar_select %p274, %s23, 1
      %p276 = scmp.lt.s32.totalorder %s273, 15
      %s277 = scalar_select %p276, %s273, 15
      %s278 = smul.addr %s275, 16
      %s279 = sadd.s32 %s277, %s278
      %s280 = smul.addr %s279, 8
      %s281 = scalar_lea.vmem %s0, %s280
      %p282 = pneg %p54
      %p283 = pneg %p51
      %p284 = pneg %p75
      %p285 = pneg %p72
      %p286 = pneg %p96
      %p287 = pneg %p93
      %p288 = pneg %p117
      %p289 = pneg %p114
      %p290 = pneg %p138
      %p291 = pneg %p135
      %p292 = pneg %p166
      %p293 = pneg %p163
      %s294 = smul.u32 16, %s24
      %p295 = scmp.lt.s32.totalorder %s23, 1
      %s296 = scalar_select %p295, %s23, 1
      %p297 = scmp.lt.s32.totalorder %s294, 15
      %s298 = scalar_select %p297, %s294, 15
      %s299 = smul.addr %s296, 128
      %s300 = sadd.s32 %s298, %s299
      %s301 = smul.addr %s300, 4
      %s302 = scalar_lea.vmem %s5, %s301
      %p303 = pneg %p194
      %p304 = pneg %p191
      %s305 = smul.u32 16, %s24
      %p306 = scmp.lt.s32.totalorder %s23, 1
      %s307 = scalar_select %p306, %s23, 1
      %p308 = scmp.lt.s32.totalorder %s305, 15
      %s309 = scalar_select %p308, %s305, 15
      %s310 = smul.addr %s307, 128
      %s311 = sadd.s32 %s309, %s310
      %s312 = smul.addr %s311, 4
      %s313 = scalar_lea.vmem %s6, %s312
      %p314 = pneg %p222
      %p315 = pneg %p219
      %s316 = smul.u32 16, %s24
      %p317 = scmp.lt.s32.totalorder %s23, 1
      %s318 = scalar_select %p317, %s23, 1
      %p319 = scmp.lt.s32.totalorder %s316, 15
      %s320 = scalar_select %p319, %s316, 15
      %s321 = smul.addr %s318, 128
      %s322 = sadd.s32 %s320, %s321
      %s323 = smul.addr %s322, 4
      %s324 = scalar_lea.vmem %s7, %s323
      %s325 = smul.u32 16, %s24
      %p326 = scmp.lt.s32.totalorder %s23, 1
      %s327 = scalar_select %p326, %s23, 1
      %p328 = scmp.lt.s32.totalorder %s325, 15
      %s329 = scalar_select %p328, %s325, 15
      %s330 = smul.addr %s327, 16
      %s331 = sadd.s32 %s329, %s330
      %s332 = smul.addr %s331, 8
      %s333 = scalar_lea.vmem %s0, %s332
      %s334 = smul.u32 16, %s24
      %s335 = smul.u32 16, %s24
      %p336 = scmp.lt.s32.totalorder %s23, 1
      %s337 = scalar_select %p336, %s23, 1
      %p338 = scmp.lt.s32.totalorder %s335, 15
      %s339 = scalar_select %p338, %s335, 15
      %s340 = smul.addr %s337, 128
      %s341 = sadd.s32 %s339, %s340
      %s342 = smul.addr %s341, 4
      %s343 = scalar_lea.vmem %s5, %s342
      %s344 = smul.u32 16, %s24
      %s345 = smul.u32 16, %s24
      %p346 = scmp.lt.s32.totalorder %s23, 1
      %s347 = scalar_select %p346, %s23, 1
      %p348 = scmp.lt.s32.totalorder %s345, 15
      %s349 = scalar_select %p348, %s345, 15
      %s350 = smul.addr %s347, 128
      %s351 = sadd.s32 %s349, %s350
      %s352 = smul.addr %s351, 4
      %s353 = scalar_lea.vmem %s6, %s352
      %s354 = smul.u32 16, %s24
      %s355 = smul.u32 16, %s24
      %p356 = scmp.lt.s32.totalorder %s23, 1
      %s357 = scalar_select %p356, %s23, 1
      %p358 = scmp.lt.s32.totalorder %s355, 15
      %s359 = scalar_select %p358, %s355, 15
      %s360 = smul.addr %s357, 128
      %s361 = sadd.s32 %s359, %s360
      %s362 = smul.addr %s361, 4
      %s363 = scalar_lea.vmem %s7, %s362
      %s364 = smul.u32 16, %s24
      %v366 = vld [vmem:[%s333] sm:$0xff]
      %v367 = vld [vmem:[%s333 + $0x8] sm:$0xff]
      %v368 = vld [vmem:[%s333 + $0x10] sm:$0xff]
      %v369 = vld [vmem:[%s333 + $0x18] sm:$0xff]
      %v370 = vld [vmem:[%s333 + $0x20] sm:$0xff]
      %v371 = vld [vmem:[%s333 + $0x28] sm:$0xff]
      %v372 = vld [vmem:[%s333 + $0x30] sm:$0xff]
      %v373 = vld [vmem:[%s333 + $0x38] sm:$0xff]
      %v374 = vld [vmem:[%s333 + $0x40] sm:$0xff]
      %v375 = vld [vmem:[%s333 + $0x48] sm:$0xff]
      %v376 = vld [vmem:[%s333 + $0x50] sm:$0xff]
      %v377 = vld [vmem:[%s333 + $0x58] sm:$0xff]
      %v378 = vld [vmem:[%s333 + $0x60] sm:$0xff]
      %v379 = vld [vmem:[%s333 + $0x68] sm:$0xff]
      %v380 = vld [vmem:[%s333 + $0x70] sm:$0xff]
      %v381 = vld [vmem:[%s333 + $0x78] sm:$0xff]
      %382 = vadd.xlane.f32.xlu0 %v366
      %v383 = vpop.xlane.xlu0 %382
      %384 = vadd.xlane.f32.xlu0 %v367
      %v385 = vpop.xlane.xlu0 %384
      %386 = vadd.xlane.f32.xlu0 %v368
      %v387 = vpop.xlane.xlu0 %386
      %388 = vadd.xlane.f32.xlu0 %v369
      %v389 = vpop.xlane.xlu0 %388
      %390 = vadd.xlane.f32.xlu0 %v370
      %v391 = vpop.xlane.xlu0 %390
      %392 = vadd.xlane.f32.xlu0 %v371
      %v393 = vpop.xlane.xlu0 %392
      %394 = vadd.xlane.f32.xlu0 %v372
      %v395 = vpop.xlane.xlu0 %394
      %396 = vadd.xlane.f32.xlu0 %v373
      %v397 = vpop.xlane.xlu0 %396
      %398 = vadd.xlane.f32.xlu0 %v374
      %v399 = vpop.xlane.xlu0 %398
      %400 = vadd.xlane.f32.xlu0 %v375
      %v401 = vpop.xlane.xlu0 %400
      %402 = vadd.xlane.f32.xlu0 %v376
      %v403 = vpop.xlane.xlu0 %402
      %404 = vadd.xlane.f32.xlu0 %v377
      %v405 = vpop.xlane.xlu0 %404
      %406 = vadd.xlane.f32.xlu0 %v378
      %v407 = vpop.xlane.xlu0 %406
      %408 = vadd.xlane.f32.xlu0 %v379
      %v409 = vpop.xlane.xlu0 %408
      %410 = vadd.xlane.f32.xlu0 %v380
      %v411 = vpop.xlane.xlu0 %410
      %412 = vadd.xlane.f32.xlu0 %v381
      %v413 = vpop.xlane.xlu0 %412
      %v414 = vrcp.pop 128.0
      %v415 = vmul.f32 %v383, %v414
      %v416 = vmul.f32 %v385, %v414
      %v417 = vmul.f32 %v387, %v414
      %v418 = vmul.f32 %v389, %v414
      %v419 = vmul.f32 %v391, %v414
      %v420 = vmul.f32 %v393, %v414
      %v421 = vmul.f32 %v395, %v414
      %v422 = vmul.f32 %v397, %v414
      %v423 = vmul.f32 %v399, %v414
      %v424 = vmul.f32 %v401, %v414
      %v425 = vmul.f32 %v403, %v414
      %v426 = vmul.f32 %v405, %v414
      %v427 = vmul.f32 %v407, %v414
      %v428 = vmul.f32 %v409, %v414
      %v429 = vmul.f32 %v411, %v414
      %v430 = vmul.f32 %v413, %v414
      %v431 = vsub.f32 %v366, %v415
      %v432 = vsub.f32 %v367, %v416
      %v433 = vsub.f32 %v368, %v417
      %v434 = vsub.f32 %v369, %v418
      %v435 = vsub.f32 %v370, %v419
      %v436 = vsub.f32 %v371, %v420
      %v437 = vsub.f32 %v372, %v421
      %v438 = vsub.f32 %v373, %v422
      %v439 = vsub.f32 %v374, %v423
      %v440 = vsub.f32 %v375, %v424
      %v441 = vsub.f32 %v376, %v425
      %v442 = vsub.f32 %v377, %v426
      %v443 = vsub.f32 %v378, %v427
      %v444 = vsub.f32 %v379, %v428
      %v445 = vsub.f32 %v380, %v429
      %v446 = vsub.f32 %v381, %v430
      %v447 = vmul.f32 %v431, %v431
      %v448 = vmul.f32 %v432, %v432
      %v449 = vmul.f32 %v433, %v433
      %v450 = vmul.f32 %v434, %v434
      %v451 = vmul.f32 %v435, %v435
      %v452 = vmul.f32 %v436, %v436
      %v453 = vmul.f32 %v437, %v437
      %v454 = vmul.f32 %v438, %v438
      %v455 = vmul.f32 %v439, %v439
      %v456 = vmul.f32 %v440, %v440
      %v457 = vmul.f32 %v441, %v441
      %v458 = vmul.f32 %v442, %v442
      %v459 = vmul.f32 %v443, %v443
      %v460 = vmul.f32 %v444, %v444
      %v461 = vmul.f32 %v445, %v445
      %v462 = vmul.f32 %v446, %v446
      %463 = vadd.xlane.f32.xlu0 %v447
      %v464 = vpop.xlane.xlu0 %463
      %465 = vadd.xlane.f32.xlu0 %v448
      %v466 = vpop.xlane.xlu0 %465
      %467 = vadd.xlane.f32.xlu0 %v449
      %v468 = vpop.xlane.xlu0 %467
      %469 = vadd.xlane.f32.xlu0 %v450
      %v470 = vpop.xlane.xlu0 %469
      %471 = vadd.xlane.f32.xlu0 %v451
      %v472 = vpop.xlane.xlu0 %471
      %473 = vadd.xlane.f32.xlu0 %v452
      %v474 = vpop.xlane.xlu0 %473
      %475 = vadd.xlane.f32.xlu0 %v453
      %v476 = vpop.xlane.xlu0 %475
      %477 = vadd.xlane.f32.xlu0 %v454
      %v478 = vpop.xlane.xlu0 %477
      %479 = vadd.xlane.f32.xlu0 %v455
      %v480 = vpop.xlane.xlu0 %479
      %481 = vadd.xlane.f32.xlu0 %v456
      %v482 = vpop.xlane.xlu0 %481
      %483 = vadd.xlane.f32.xlu0 %v457
      %v484 = vpop.xlane.xlu0 %483
      %485 = vadd.xlane.f32.xlu0 %v458
      %v486 = vpop.xlane.xlu0 %485
      %487 = vadd.xlane.f32.xlu0 %v459
      %v488 = vpop.xlane.xlu0 %487
      %489 = vadd.xlane.f32.xlu0 %v460
      %v490 = vpop.xlane.xlu0 %489
      %491 = vadd.xlane.f32.xlu0 %v461
      %v492 = vpop.xlane.xlu0 %491
      %493 = vadd.xlane.f32.xlu0 %v462
      %v494 = vpop.xlane.xlu0 %493
      %v495 = vmul.f32 %v464, %v414
      %v496 = vmul.f32 %v466, %v414
      %v497 = vmul.f32 %v468, %v414
      %v498 = vmul.f32 %v470, %v414
      %v499 = vmul.f32 %v472, %v414
      %v500 = vmul.f32 %v474, %v414
      %v501 = vmul.f32 %v476, %v414
      %v502 = vmul.f32 %v478, %v414
      %v503 = vmul.f32 %v480, %v414
      %v504 = vmul.f32 %v482, %v414
      %v505 = vmul.f32 %v484, %v414
      %v506 = vmul.f32 %v486, %v414
      %v507 = vmul.f32 %v488, %v414
      %v508 = vmul.f32 %v490, %v414
      %v509 = vmul.f32 %v492, %v414
      %v510 = vmul.f32 %v494, %v414
      %v511 = vadd.f32 %v495, 1e-05
      %v512 = vadd.f32 %v496, 1e-05
      %v513 = vadd.f32 %v497, 1e-05
      %v514 = vadd.f32 %v498, 1e-05
      %v515 = vadd.f32 %v499, 1e-05
      %v516 = vadd.f32 %v500, 1e-05
      %v517 = vadd.f32 %v501, 1e-05
      %v518 = vadd.f32 %v502, 1e-05
      %v519 = vadd.f32 %v503, 1e-05
      %v520 = vadd.f32 %v504, 1e-05
      %v521 = vadd.f32 %v505, 1e-05
      %v522 = vadd.f32 %v506, 1e-05
      %v523 = vadd.f32 %v507, 1e-05
      %v524 = vadd.f32 %v508, 1e-05
      %v525 = vadd.f32 %v509, 1e-05
      %v526 = vadd.f32 %v510, 1e-05
      %v527 = vrsqrt.pop %v511
      %v528 = vrsqrt.pop %v512
      %v529 = vrsqrt.pop %v513
      %v530 = vrsqrt.pop %v514
      %v531 = vrsqrt.pop %v515
      %v532 = vrsqrt.pop %v516
      %v533 = vrsqrt.pop %v517
      %v534 = vrsqrt.pop %v518
      %v535 = vrsqrt.pop %v519
      %v536 = vrsqrt.pop %v520
      %v537 = vrsqrt.pop %v521
      %v538 = vrsqrt.pop %v522
      %v539 = vrsqrt.pop %v523
      %v540 = vrsqrt.pop %v524
      %v541 = vrsqrt.pop %v525
      %v542 = vrsqrt.pop %v526
      %v543 = vmul.f32 %v431, %v527
      %v544 = vmul.f32 %v432, %v528
      %v545 = vmul.f32 %v433, %v529
      %v546 = vmul.f32 %v434, %v530
      %v547 = vmul.f32 %v435, %v531
      %v548 = vmul.f32 %v436, %v532
      %v549 = vmul.f32 %v437, %v533
      %v550 = vmul.f32 %v438, %v534
      %v551 = vmul.f32 %v439, %v535
      %v552 = vmul.f32 %v440, %v536
      %v553 = vmul.f32 %v441, %v537
      %v554 = vmul.f32 %v442, %v538
      %v555 = vmul.f32 %v443, %v539
      %v556 = vmul.f32 %v444, %v540
      %v557 = vmul.f32 %v445, %v541
      %v558 = vmul.f32 %v446, %v542
      %v559 = vld [vmem:[%s1] sm:$0x1]
      %v561 = vlaneseq
      %v562 = vshrl.u32 %v561, 7
      %v563 = vsub.s32 0, %v562
      %v564 = vrot.slane %v559, %v563
      %v566 = vmul.f32 %v543, %v564
      %v567 = vmul.f32 %v544, %v564
      %v568 = vmul.f32 %v545, %v564
      %v569 = vmul.f32 %v546, %v564
      %v570 = vmul.f32 %v547, %v564
      %v571 = vmul.f32 %v548, %v564
      %v572 = vmul.f32 %v549, %v564
      %v573 = vmul.f32 %v550, %v564
      %v574 = vmul.f32 %v551, %v564
      %v575 = vmul.f32 %v552, %v564
      %v576 = vmul.f32 %v553, %v564
      %v577 = vmul.f32 %v554, %v564
      %v578 = vmul.f32 %v555, %v564
      %v579 = vmul.f32 %v556, %v564
      %v580 = vmul.f32 %v557, %v564
      %v581 = vmul.f32 %v558, %v564
      %v582 = vld [vmem:[%s2] sm:$0x1]
      %v584 = vlaneseq
      %v585 = vshrl.u32 %v584, 7
      %v586 = vsub.s32 0, %v585
      %v587 = vrot.slane %v582, %v586
      %v589 = vadd.f32 %v566, %v587
      %v590 = vadd.f32 %v567, %v587
      %v591 = vadd.f32 %v568, %v587
      %v592 = vadd.f32 %v569, %v587
      %v593 = vadd.f32 %v570, %v587
      %v594 = vadd.f32 %v571, %v587
      %v595 = vadd.f32 %v572, %v587
      %v596 = vadd.f32 %v573, %v587
      %v597 = vadd.f32 %v574, %v587
      %v598 = vadd.f32 %v575, %v587
      %v599 = vadd.f32 %v576, %v587
      %v600 = vadd.f32 %v577, %v587
      %v601 = vadd.f32 %v578, %v587
      %v602 = vadd.f32 %v579, %v587
      %v603 = vadd.f32 %v580, %v587
      %v604 = vadd.f32 %v581, %v587
      %v605 = vpack.c.bf16 %v590, %v589
      %v606 = vpack.c.bf16 %v592, %v591
      %v607 = vpack.c.bf16 %v594, %v593
      %v608 = vpack.c.bf16 %v596, %v595
      %v609 = vpack.c.bf16 %v598, %v597
      %v610 = vpack.c.bf16 %v600, %v599
      %v611 = vpack.c.bf16 %v602, %v601
      %v612 = vpack.c.bf16 %v604, %v603
      %v613 = vld [vmem:[%s3] sm:$0xff]
      %v614 = vld [vmem:[%s3 + $0x8] sm:$0xf]
      %v615 = vld [vmem:[%s3 + $0xc] sm:$0xff]
      %v616 = vld [vmem:[%s3 + $0x14] sm:$0xf]
      %v617 = vld [vmem:[%s3 + $0x18] sm:$0xff]
      %v618 = vld [vmem:[%s3 + $0x20] sm:$0xf]
      %v619 = vld [vmem:[%s3 + $0x24] sm:$0xff]
      %v620 = vld [vmem:[%s3 + $0x2c] sm:$0xf]
      %v621 = vld [vmem:[%s3 + $0x30] sm:$0xff]
      %v622 = vld [vmem:[%s3 + $0x38] sm:$0xf]
      %v623 = vld [vmem:[%s3 + $0x3c] sm:$0xff]
      %v624 = vld [vmem:[%s3 + $0x44] sm:$0xf]
      %v625 = vld [vmem:[%s3 + $0x48] sm:$0xff]
      %v626 = vld [vmem:[%s3 + $0x50] sm:$0xf]
      %v627 = vld [vmem:[%s3 + $0x54] sm:$0xff]
      %v628 = vld [vmem:[%s3 + $0x5c] sm:$0xf]
      %v629 = vld [vmem:[%s3 + $0x60] sm:$0xff]
      %v630 = vld [vmem:[%s3 + $0x68] sm:$0xf]
      %v631 = vld [vmem:[%s3 + $0x6c] sm:$0xff]
      %v632 = vld [vmem:[%s3 + $0x74] sm:$0xf]
      %v633 = vld [vmem:[%s3 + $0x78] sm:$0xff]
      %v634 = vld [vmem:[%s3 + $0x80] sm:$0xf]
      %v635 = vld [vmem:[%s3 + $0x84] sm:$0xff]
      %v636 = vld [vmem:[%s3 + $0x8c] sm:$0xf]
      %v637 = vld [vmem:[%s3 + $0x90] sm:$0xff]
      %v638 = vld [vmem:[%s3 + $0x98] sm:$0xf]
      %v639 = vld [vmem:[%s3 + $0x9c] sm:$0xff]
      %v640 = vld [vmem:[%s3 + $0xa4] sm:$0xf]
      %v641 = vld [vmem:[%s3 + $0xa8] sm:$0xff]
      %v642 = vld [vmem:[%s3 + $0xb0] sm:$0xf]
      %v643 = vld [vmem:[%s3 + $0xb4] sm:$0xff]
      %v644 = vld [vmem:[%s3 + $0xbc] sm:$0xf]
      %v645 = vld [vmem:[%s4] sm:$0x7]
      %v647 = vlaneseq
      %v648 = vshrl.u32 %v647, 7
      %v649 = vsub.s32 0, %v648
      %v650 = vrot.slane %v645, %v649
      %v651 = vlaneseq
      %v652 = vshrl.u32 %v651, 7
      %v653 = vsub.s32 1, %v652
      %v654 = vrot.slane %v645, %v653
      %v655 = vlaneseq
      %v656 = vshrl.u32 %v655, 7
      %v657 = vsub.s32 2, %v656
      %v658 = vrot.slane %v645, %v657
      %v694 = vunpack.c.l.b16 %v613
      %v695 = vunpack.c.h.b16 %v613
      %v696 = vunpack.c.l.b16 %v614
      %v697 = vunpack.c.l.b16 %v615
      %v698 = vunpack.c.h.b16 %v615
      %v699 = vunpack.c.l.b16 %v616
      %v700 = vunpack.c.l.b16 %v617
      %v701 = vunpack.c.h.b16 %v617
      %v702 = vunpack.c.l.b16 %v618
      %v703 = vunpack.c.l.b16 %v619
      %v704 = vunpack.c.h.b16 %v619
      %v705 = vunpack.c.l.b16 %v620
      %v706 = vunpack.c.l.b16 %v621
      %v707 = vunpack.c.h.b16 %v621
      %v708 = vunpack.c.l.b16 %v622
      %v709 = vunpack.c.l.b16 %v623
      %v710 = vunpack.c.h.b16 %v623
      %v711 = vunpack.c.l.b16 %v624
      %v712 = vunpack.c.l.b16 %v625
      %v713 = vunpack.c.h.b16 %v625
      %v714 = vunpack.c.l.b16 %v626
      %v715 = vunpack.c.l.b16 %v627
      %v716 = vunpack.c.h.b16 %v627
      %v717 = vunpack.c.l.b16 %v628
      %v718 = vunpack.c.l.b16 %v629
      %v719 = vunpack.c.h.b16 %v629
      %v720 = vunpack.c.l.b16 %v630
      %v721 = vunpack.c.l.b16 %v631
      %v722 = vunpack.c.h.b16 %v631
      %v723 = vunpack.c.l.b16 %v632
      %v724 = vunpack.c.l.b16 %v633
      %v725 = vunpack.c.h.b16 %v633
      %v726 = vunpack.c.l.b16 %v634
      %v727 = vunpack.c.l.b16 %v635
      %v728 = vunpack.c.h.b16 %v635
      %v729 = vunpack.c.l.b16 %v636
      %v730 = vunpack.c.l.b16 %v637
      %v731 = vunpack.c.h.b16 %v637
      %v732 = vunpack.c.l.b16 %v638
      %v733 = vunpack.c.l.b16 %v639
      %v734 = vunpack.c.h.b16 %v639
      %v735 = vunpack.c.l.b16 %v640
      %v736 = vunpack.c.l.b16 %v641
      %v737 = vunpack.c.h.b16 %v641
      %v738 = vunpack.c.l.b16 %v642
      %v739 = vunpack.c.l.b16 %v643
      %v740 = vunpack.c.h.b16 %v643
      %v741 = vunpack.c.l.b16 %v644
      %v742 = vpack.c.b16 %v697, %v694
      %v743 = vpack.c.b16 %v698, %v695
      %v744 = vpack.c.b16 %v699, %v696
      %v745 = vpack.c.b16 %v703, %v700
      %v746 = vpack.c.b16 %v704, %v701
      %v747 = vpack.c.b16 %v705, %v702
      %v748 = vpack.c.b16 %v709, %v706
      %v749 = vpack.c.b16 %v710, %v707
      %v750 = vpack.c.b16 %v711, %v708
      %v751 = vpack.c.b16 %v715, %v712
      %v752 = vpack.c.b16 %v716, %v713
      %v753 = vpack.c.b16 %v717, %v714
      %v754 = vpack.c.b16 %v721, %v718
      %v755 = vpack.c.b16 %v722, %v719
      %v756 = vpack.c.b16 %v723, %v720
      %v757 = vpack.c.b16 %v727, %v724
      %v758 = vpack.c.b16 %v728, %v725
      %v759 = vpack.c.b16 %v729, %v726
      %v760 = vpack.c.b16 %v733, %v730
      %v761 = vpack.c.b16 %v734, %v731
      %v762 = vpack.c.b16 %v735, %v732
      %v763 = vpack.c.b16 %v739, %v736
      %v764 = vpack.c.b16 %v740, %v737
      %v765 = vpack.c.b16 %v741, %v738
      %790 = vmatprep.subr.bf16.mxu0 %v743
      %791 = vmatpush1.bf16.msra.mxu0 %v742
      %792 = vmatprep.subr.bf16.mxu0 %v746
      %793 = vmatpush1.bf16.msra.mxu0 %v745
      %794 = vmatprep.subr.bf16.mxu0 %v749
      %795 = vmatpush1.bf16.msra.mxu0 %v748
      %796 = vmatprep.subr.bf16.mxu0 %v752
      %797 = vmatpush1.bf16.msra.mxu0 %v751
      %798 = vmatprep.subr.bf16.mxu0 %v755
      %799 = vmatpush1.bf16.msra.mxu0 %v754
      %800 = vmatprep.subr.bf16.mxu0 %v758
      %801 = vmatpush1.bf16.msra.mxu0 %v757
      %802 = vmatprep.subr.bf16.mxu0 %v761
      %803 = vmatpush1.bf16.msra.mxu0 %v760
      %804 = vmatprep.subr.bf16.mxu0 %v764
      %805 = vmatpush1.bf16.msra.mxu0 %v763
      %806 = vmatprep.subr.bf16.mxu0 0
      %807 = vmatpush1.bf16.msra.mxu0 0
      %808 = vmatprep.subr.bf16.mxu0 0
      %809 = vmatpush1.bf16.msra.mxu0 0
      %810 = vmatprep.subr.bf16.mxu0 0
      %811 = vmatpush1.bf16.msra.mxu0 0
      %812 = vmatprep.subr.bf16.mxu0 0
      %813 = vmatpush1.bf16.msra.mxu0 0
      %814 = vmatprep.subr.bf16.mxu0 0
      %815 = vmatpush1.bf16.msra.mxu0 0
      %816 = vmatprep.subr.bf16.mxu0 0
      %817 = vmatpush1.bf16.msra.mxu0 0
      %818 = vmatprep.subr.bf16.mxu0 0
      %819 = vmatpush1.bf16.msra.mxu0 0
      %820 = vmatprep.subr.bf16.mxu0 0
      %821 = vmatpush1.bf16.msra.mxu0 0
      %822 = vmatprep.mubr.bf16.mxu0 0
      %823 = vmatmul.mubr.bf16.gmra.mrb[0].mxu0 %v605
      %v824 = vpop.f32.mrb[0].mxu0
      %v825 = vadd.f32 %v650, %v824
      %v826 = vpop.f32.mrb[0].mxu0
      %v827 = vadd.f32 %v654, %v826
      %v828 = vpop.f32.mrb[0].mxu0
      %v829 = vadd.f32 %v650, %v828
      %v830 = vpop.f32.mrb[0].mxu0
      %v831 = vadd.f32 %v654, %v830
      %832 = vmatprep.mubr.bf16.mxu0 0
      %833 = vmatmul.mubr.bf16.gmra.mrb[0].mxu0 %v606
      %v834 = vpop.f32.mrb[0].mxu0
      %v835 = vadd.f32 %v650, %v834
      %v836 = vpop.f32.mrb[0].mxu0
      %v837 = vadd.f32 %v654, %v836
      %v838 = vpop.f32.mrb[0].mxu0
      %v839 = vadd.f32 %v650, %v838
      %v840 = vpop.f32.mrb[0].mxu0
      %v841 = vadd.f32 %v654, %v840
      %842 = vmatprep.mubr.bf16.mxu0 0
      %843 = vmatmul.mubr.bf16.gmra.mrb[0].mxu0 %v607
      %v844 = vpop.f32.mrb[0].mxu0
      %v845 = vadd.f32 %v650, %v844
      %v846 = vpop.f32.mrb[0].mxu0
      %v847 = vadd.f32 %v654, %v846
      %v848 = vpop.f32.mrb[0].mxu0
      %v849 = vadd.f32 %v650, %v848
      %v850 = vpop.f32.mrb[0].mxu0
      %v851 = vadd.f32 %v654, %v850
      %852 = vmatprep.mubr.bf16.mxu0 0
      %853 = vmatmul.mubr.bf16.gmra.mrb[0].mxu0 %v608
      %v854 = vpop.f32.mrb[0].mxu0
      %v855 = vadd.f32 %v650, %v854
      %v856 = vpop.f32.mrb[0].mxu0
      %v857 = vadd.f32 %v654, %v856
      %v858 = vpop.f32.mrb[0].mxu0
      %v859 = vadd.f32 %v650, %v858
      %v860 = vpop.f32.mrb[0].mxu0
      %v861 = vadd.f32 %v654, %v860
      %862 = vmatprep.mubr.bf16.mxu0 0
      %863 = vmatmul.mubr.bf16.gmra.mrb[0].mxu0 %v609
      %v864 = vpop.f32.mrb[0].mxu0
      %v865 = vadd.f32 %v650, %v864
      %v866 = vpop.f32.mrb[0].mxu0
      %v867 = vadd.f32 %v654, %v866
      %v868 = vpop.f32.mrb[0].mxu0
      %v869 = vadd.f32 %v650, %v868
      %v870 = vpop.f32.mrb[0].mxu0
      %v871 = vadd.f32 %v654, %v870
      %872 = vmatprep.mubr.bf16.mxu0 0
      %873 = vmatmul.mubr.bf16.gmra.mrb[0].mxu0 %v610
      %v874 = vpop.f32.mrb[0].mxu0
      %v875 = vadd.f32 %v650, %v874
      %v876 = vpop.f32.mrb[0].mxu0
      %v877 = vadd.f32 %v654, %v876
      %v878 = vpop.f32.mrb[0].mxu0
      %v879 = vadd.f32 %v650, %v878
      %v880 = vpop.f32.mrb[0].mxu0
      %v881 = vadd.f32 %v654, %v880
      %882 = vmatprep.mubr.bf16.mxu0 0
      %883 = vmatmul.mubr.bf16.gmra.mrb[0].mxu0 %v611
      %v884 = vpop.f32.mrb[0].mxu0
      %v885 = vadd.f32 %v650, %v884
      %v886 = vpop.f32.mrb[0].mxu0
      %v887 = vadd.f32 %v654, %v886
      %v888 = vpop.f32.mrb[0].mxu0
      %v889 = vadd.f32 %v650, %v888
      %v890 = vpop.f32.mrb[0].mxu0
      %v891 = vadd.f32 %v654, %v890
      %892 = vmatprep.mubr.bf16.mxu0 0
      %893 = vmatmul.mubr.bf16.gmra.mrb[0].mxu0 %v612
      %v894 = vpop.f32.mrb[0].mxu0
      %v895 = vadd.f32 %v650, %v894
      %v896 = vpop.f32.mrb[0].mxu0
      %v897 = vadd.f32 %v654, %v896
      %v898 = vpop.f32.mrb[0].mxu0
      %v899 = vadd.f32 %v650, %v898
      %v900 = vpop.f32.mrb[0].mxu0
      %v901 = vadd.f32 %v654, %v900
      %902 = vdwg.mxu0
      %903 = vmatprep.subr.bf16.mxu0 0
      %904 = vmatpush1.bf16.msra.mxu0 %v744
      %905 = vmatprep.subr.bf16.mxu0 0
      %906 = vmatpush1.bf16.msra.mxu0 %v747
      %907 = vmatprep.subr.bf16.mxu0 0
      %908 = vmatpush1.bf16.msra.mxu0 %v750
      %909 = vmatprep.subr.bf16.mxu0 0
      %910 = vmatpush1.bf16.msra.mxu0 %v753
      %911 = vmatprep.subr.bf16.mxu0 0
      %912 = vmatpush1.bf16.msra.mxu0 %v756
      %913 = vmatprep.subr.bf16.mxu0 0
      %914 = vmatpush1.bf16.msra.mxu0 %v759
      %915 = vmatprep.subr.bf16.mxu0 0
      %916 = vmatpush1.bf16.msra.mxu0 %v762
      %917 = vmatprep.subr.bf16.mxu0 0
      %918 = vmatpush1.bf16.msra.mxu0 %v765
      %919 = vmatprep.subr.bf16.mxu0 0
      %920 = vmatpush1.bf16.msra.mxu0 0
      %921 = vmatprep.subr.bf16.mxu0 0
      %922 = vmatpush1.bf16.msra.mxu0 0
      %923 = vmatprep.subr.bf16.mxu0 0
      %924 = vmatpush1.bf16.msra.mxu0 0
      %925 = vmatprep.subr.bf16.mxu0 0
      %926 = vmatpush1.bf16.msra.mxu0 0
      %927 = vmatprep.subr.bf16.mxu0 0
      %928 = vmatpush1.bf16.msra.mxu0 0
      %929 = vmatprep.subr.bf16.mxu0 0
      %930 = vmatpush1.bf16.msra.mxu0 0
      %931 = vmatprep.subr.bf16.mxu0 0
      %932 = vmatpush1.bf16.msra.mxu0 0
      %933 = vmatprep.subr.bf16.mxu0 0
      %934 = vmatpush1.bf16.msra.mxu0 0
      %935 = vmatprep.mubr.bf16.mxu0 0
      %936 = vmatmul.mubr.bf16.gmra.mrb[0].mxu0 %v605
      %v937 = vpop.f32.mrb[0].mxu0
      %v938 = vadd.f32 %v658, %v937
      %v939 = vpop.f32.mrb[0].mxu0
      %v940 = vpop.f32.mrb[0].mxu0
      %v941 = vadd.f32 %v658, %v940
      %v942 = vpop.f32.mrb[0].mxu0
      %943 = vmatprep.mubr.bf16.mxu0 0
      %944 = vmatmul.mubr.bf16.gmra.mrb[0].mxu0 %v606
      %v945 = vpop.f32.mrb[0].mxu0
      %v946 = vadd.f32 %v658, %v945
      %v947 = vpop.f32.mrb[0].mxu0
      %v948 = vpop.f32.mrb[0].mxu0
      %v949 = vadd.f32 %v658, %v948
      %v950 = vpop.f32.mrb[0].mxu0
      %951 = vmatprep.mubr.bf16.mxu0 0
      %952 = vmatmul.mubr.bf16.gmra.mrb[0].mxu0 %v607
      %v953 = vpop.f32.mrb[0].mxu0
      %v954 = vadd.f32 %v658, %v953
      %v955 = vpop.f32.mrb[0].mxu0
      %v956 = vpop.f32.mrb[0].mxu0
      %v957 = vadd.f32 %v658, %v956
      %v958 = vpop.f32.mrb[0].mxu0
      %959 = vmatprep.mubr.bf16.mxu0 0
      %960 = vmatmul.mubr.bf16.gmra.mrb[0].mxu0 %v608
      %v961 = vpop.f32.mrb[0].mxu0
      %v962 = vadd.f32 %v658, %v961
      %v963 = vpop.f32.mrb[0].mxu0
      %v964 = vpop.f32.mrb[0].mxu0
      %v965 = vadd.f32 %v658, %v964
      %v966 = vpop.f32.mrb[0].mxu0
      %967 = vmatprep.mubr.bf16.mxu0 0
      %968 = vmatmul.mubr.bf16.gmra.mrb[0].mxu0 %v609
      %v969 = vpop.f32.mrb[0].mxu0
      %v970 = vadd.f32 %v658, %v969
      %v971 = vpop.f32.mrb[0].mxu0
      %v972 = vpop.f32.mrb[0].mxu0
      %v973 = vadd.f32 %v658, %v972
      %v974 = vpop.f32.mrb[0].mxu0
      %975 = vmatprep.mubr.bf16.mxu0 0
      %976 = vmatmul.mubr.bf16.gmra.mrb[0].mxu0 %v610
      %v977 = vpop.f32.mrb[0].mxu0
      %v978 = vadd.f32 %v658, %v977
      %v979 = vpop.f32.mrb[0].mxu0
      %v980 = vpop.f32.mrb[0].mxu0
      %v981 = vadd.f32 %v658, %v980
      %v982 = vpop.f32.mrb[0].mxu0
      %983 = vmatprep.mubr.bf16.mxu0 0
      %984 = vmatmul.mubr.bf16.gmra.mrb[0].mxu0 %v611
      %v985 = vpop.f32.mrb[0].mxu0
      %v986 = vadd.f32 %v658, %v985
      %v987 = vpop.f32.mrb[0].mxu0
      %v988 = vpop.f32.mrb[0].mxu0
      %v989 = vadd.f32 %v658, %v988
      %v990 = vpop.f32.mrb[0].mxu0
      %991 = vmatprep.mubr.bf16.mxu0 0
      %992 = vmatmul.mubr.bf16.gmra.mrb[0].mxu0 %v612
      %v993 = vpop.f32.mrb[0].mxu0
      %v994 = vadd.f32 %v658, %v993
      %v995 = vpop.f32.mrb[0].mxu0
      %v996 = vpop.f32.mrb[0].mxu0
      %v997 = vadd.f32 %v658, %v996
      %v998 = vpop.f32.mrb[0].mxu0
      %999 = vdwg.mxu0
      %v1000 = vpack.c.bf16 %v829, %v825
      %v1001 = vpack.c.bf16 %v831, %v827
      %v1002 = vpack.c.bf16 %v941, %v938
      %v1003 = vpack.c.bf16 %v839, %v835
      %v1004 = vpack.c.bf16 %v841, %v837
      %v1005 = vpack.c.bf16 %v949, %v946
      %v1006 = vpack.c.bf16 %v849, %v845
      %v1007 = vpack.c.bf16 %v851, %v847
      %v1008 = vpack.c.bf16 %v957, %v954
      %v1009 = vpack.c.bf16 %v859, %v855
      %v1010 = vpack.c.bf16 %v861, %v857
      %v1011 = vpack.c.bf16 %v965, %v962
      %v1012 = vpack.c.bf16 %v869, %v865
      %v1013 = vpack.c.bf16 %v871, %v867
      %v1014 = vpack.c.bf16 %v973, %v970
      %v1015 = vpack.c.bf16 %v879, %v875
      %v1016 = vpack.c.bf16 %v881, %v877
      %v1017 = vpack.c.bf16 %v981, %v978
      %v1018 = vpack.c.bf16 %v889, %v885
      %v1019 = vpack.c.bf16 %v891, %v887
      %v1020 = vpack.c.bf16 %v989, %v986
      %v1021 = vpack.c.bf16 %v899, %v895
      %v1022 = vpack.c.bf16 %v901, %v897
      %v1023 = vpack.c.bf16 %v997, %v994
      %v1032 = vunpack.c.l.b16 %v1000
      %v1033 = vunpack.c.h.b16 %v1000
      %v1034 = vunpack.c.l.b16 %v1003
      %v1035 = vunpack.c.h.b16 %v1003
      %v1036 = vunpack.c.l.b16 %v1006
      %v1037 = vunpack.c.h.b16 %v1006
      %v1038 = vunpack.c.l.b16 %v1009
      %v1039 = vunpack.c.h.b16 %v1009
      %v1040 = vunpack.c.l.b16 %v1012
      %v1041 = vunpack.c.h.b16 %v1012
      %v1042 = vunpack.c.l.b16 %v1015
      %v1043 = vunpack.c.h.b16 %v1015
      %v1044 = vunpack.c.l.b16 %v1018
      %v1045 = vunpack.c.h.b16 %v1018
      %v1046 = vunpack.c.l.b16 %v1021
      %v1047 = vunpack.c.h.b16 %v1021
      %v1048 = vpack.c.b16 %v1032, %v1032
      %v1049 = vpack.c.b16 %v1033, %v1033
      %v1050 = vpack.c.b16 %v1034, %v1034
      %v1051 = vpack.c.b16 %v1035, %v1035
      %v1052 = vpack.c.b16 %v1036, %v1036
      %v1053 = vpack.c.b16 %v1037, %v1037
      %v1054 = vpack.c.b16 %v1038, %v1038
      %v1055 = vpack.c.b16 %v1039, %v1039
      %v1056 = vpack.c.b16 %v1040, %v1040
      %v1057 = vpack.c.b16 %v1041, %v1041
      %v1058 = vpack.c.b16 %v1042, %v1042
      %v1059 = vpack.c.b16 %v1043, %v1043
      %v1060 = vpack.c.b16 %v1044, %v1044
      %v1061 = vpack.c.b16 %v1045, %v1045
      %v1062 = vpack.c.b16 %v1046, %v1046
      %v1063 = vpack.c.b16 %v1047, %v1047
      %vm1080 = vcmask 125952
      %1081 = vst.msk [vmem:[%s343] sm:$0xf] %vm1080, %v1048
      %1082 = vst.msk [vmem:[%s343 + $0x4] sm:$0xf] %vm1080, %v1049
      %1083 = vst.msk [vmem:[%s343 + $0x8] sm:$0xf] %vm1080, %v1050
      %1084 = vst.msk [vmem:[%s343 + $0xc] sm:$0xf] %vm1080, %v1051
      %1085 = vst.msk [vmem:[%s343 + $0x10] sm:$0xf] %vm1080, %v1052
      %1086 = vst.msk [vmem:[%s343 + $0x14] sm:$0xf] %vm1080, %v1053
      %1087 = vst.msk [vmem:[%s343 + $0x18] sm:$0xf] %vm1080, %v1054
      %1088 = vst.msk [vmem:[%s343 + $0x1c] sm:$0xf] %vm1080, %v1055
      %1089 = vst.msk [vmem:[%s343 + $0x20] sm:$0xf] %vm1080, %v1056
      %1090 = vst.msk [vmem:[%s343 + $0x24] sm:$0xf] %vm1080, %v1057
      %1091 = vst.msk [vmem:[%s343 + $0x28] sm:$0xf] %vm1080, %v1058
      %1092 = vst.msk [vmem:[%s343 + $0x2c] sm:$0xf] %vm1080, %v1059
      %1093 = vst.msk [vmem:[%s343 + $0x30] sm:$0xf] %vm1080, %v1060
      %1094 = vst.msk [vmem:[%s343 + $0x34] sm:$0xf] %vm1080, %v1061
      %1095 = vst.msk [vmem:[%s343 + $0x38] sm:$0xf] %vm1080, %v1062
      %1096 = vst.msk [vmem:[%s343 + $0x3c] sm:$0xf] %vm1080, %v1063
      %v1105 = vunpack.c.l.b16 %v1001
      %v1106 = vunpack.c.h.b16 %v1001
      %v1107 = vunpack.c.l.b16 %v1004
      %v1108 = vunpack.c.h.b16 %v1004
      %v1109 = vunpack.c.l.b16 %v1007
      %v1110 = vunpack.c.h.b16 %v1007
      %v1111 = vunpack.c.l.b16 %v1010
      %v1112 = vunpack.c.h.b16 %v1010
      %v1113 = vunpack.c.l.b16 %v1013
      %v1114 = vunpack.c.h.b16 %v1013
      %v1115 = vunpack.c.l.b16 %v1016
      %v1116 = vunpack.c.h.b16 %v1016
      %v1117 = vunpack.c.l.b16 %v1019
      %v1118 = vunpack.c.h.b16 %v1019
      %v1119 = vunpack.c.l.b16 %v1022
      %v1120 = vunpack.c.h.b16 %v1022
      %v1121 = vpack.c.b16 %v1105, %v1105
      %v1122 = vpack.c.b16 %v1106, %v1106
      %v1123 = vpack.c.b16 %v1107, %v1107
      %v1124 = vpack.c.b16 %v1108, %v1108
      %v1125 = vpack.c.b16 %v1109, %v1109
      %v1126 = vpack.c.b16 %v1110, %v1110
      %v1127 = vpack.c.b16 %v1111, %v1111
      %v1128 = vpack.c.b16 %v1112, %v1112
      %v1129 = vpack.c.b16 %v1113, %v1113
      %v1130 = vpack.c.b16 %v1114, %v1114
      %v1131 = vpack.c.b16 %v1115, %v1115
      %v1132 = vpack.c.b16 %v1116, %v1116
      %v1133 = vpack.c.b16 %v1117, %v1117
      %v1134 = vpack.c.b16 %v1118, %v1118
      %v1135 = vpack.c.b16 %v1119, %v1119
      %v1136 = vpack.c.b16 %v1120, %v1120
      %1153 = vst.msk [vmem:[%s353] sm:$0xf] %vm1080, %v1121
      %1154 = vst.msk [vmem:[%s353 + $0x4] sm:$0xf] %vm1080, %v1122
      %1155 = vst.msk [vmem:[%s353 + $0x8] sm:$0xf] %vm1080, %v1123
      %1156 = vst.msk [vmem:[%s353 + $0xc] sm:$0xf] %vm1080, %v1124
      %1157 = vst.msk [vmem:[%s353 + $0x10] sm:$0xf] %vm1080, %v1125
      %1158 = vst.msk [vmem:[%s353 + $0x14] sm:$0xf] %vm1080, %v1126
      %1159 = vst.msk [vmem:[%s353 + $0x18] sm:$0xf] %vm1080, %v1127
      %1160 = vst.msk [vmem:[%s353 + $0x1c] sm:$0xf] %vm1080, %v1128
      %1161 = vst.msk [vmem:[%s353 + $0x20] sm:$0xf] %vm1080, %v1129
      %1162 = vst.msk [vmem:[%s353 + $0x24] sm:$0xf] %vm1080, %v1130
      %1163 = vst.msk [vmem:[%s353 + $0x28] sm:$0xf] %vm1080, %v1131
      %1164 = vst.msk [vmem:[%s353 + $0x2c] sm:$0xf] %vm1080, %v1132
      %1165 = vst.msk [vmem:[%s353 + $0x30] sm:$0xf] %vm1080, %v1133
      %1166 = vst.msk [vmem:[%s353 + $0x34] sm:$0xf] %vm1080, %v1134
      %1167 = vst.msk [vmem:[%s353 + $0x38] sm:$0xf] %vm1080, %v1135
      %1168 = vst.msk [vmem:[%s353 + $0x3c] sm:$0xf] %vm1080, %v1136
      %v1177 = vunpack.c.l.b16 %v1002
      %v1178 = vunpack.c.h.b16 %v1002
      %v1179 = vunpack.c.l.b16 %v1005
      %v1180 = vunpack.c.h.b16 %v1005
      %v1181 = vunpack.c.l.b16 %v1008
      %v1182 = vunpack.c.h.b16 %v1008
      %v1183 = vunpack.c.l.b16 %v1011
      %v1184 = vunpack.c.h.b16 %v1011
      %v1185 = vunpack.c.l.b16 %v1014
      %v1186 = vunpack.c.h.b16 %v1014
      %v1187 = vunpack.c.l.b16 %v1017
      %v1188 = vunpack.c.h.b16 %v1017
      %v1189 = vunpack.c.l.b16 %v1020
      %v1190 = vunpack.c.h.b16 %v1020
      %v1191 = vunpack.c.l.b16 %v1023
      %v1192 = vunpack.c.h.b16 %v1023
      %v1193 = vpack.c.b16 %v1177, %v1177
      %v1194 = vpack.c.b16 %v1178, %v1178
      %v1195 = vpack.c.b16 %v1179, %v1179
      %v1196 = vpack.c.b16 %v1180, %v1180
      %v1197 = vpack.c.b16 %v1181, %v1181
      %v1198 = vpack.c.b16 %v1182, %v1182
      %v1199 = vpack.c.b16 %v1183, %v1183
      %v1200 = vpack.c.b16 %v1184, %v1184
      %v1201 = vpack.c.b16 %v1185, %v1185
      %v1202 = vpack.c.b16 %v1186, %v1186
      %v1203 = vpack.c.b16 %v1187, %v1187
      %v1204 = vpack.c.b16 %v1188, %v1188
      %v1205 = vpack.c.b16 %v1189, %v1189
      %v1206 = vpack.c.b16 %v1190, %v1190
      %v1207 = vpack.c.b16 %v1191, %v1191
      %v1208 = vpack.c.b16 %v1192, %v1192
      %1225 = vst.msk [vmem:[%s363] sm:$0xf] %vm1080, %v1193
      %1226 = vst.msk [vmem:[%s363 + $0x4] sm:$0xf] %vm1080, %v1194
      %1227 = vst.msk [vmem:[%s363 + $0x8] sm:$0xf] %vm1080, %v1195
      %1228 = vst.msk [vmem:[%s363 + $0xc] sm:$0xf] %vm1080, %v1196
      %1229 = vst.msk [vmem:[%s363 + $0x10] sm:$0xf] %vm1080, %v1197
      %1230 = vst.msk [vmem:[%s363 + $0x14] sm:$0xf] %vm1080, %v1198
      %1231 = vst.msk [vmem:[%s363 + $0x18] sm:$0xf] %vm1080, %v1199
      %1232 = vst.msk [vmem:[%s363 + $0x1c] sm:$0xf] %vm1080, %v1200
      %1233 = vst.msk [vmem:[%s363 + $0x20] sm:$0xf] %vm1080, %v1201
      %1234 = vst.msk [vmem:[%s363 + $0x24] sm:$0xf] %vm1080, %v1202
      %1235 = vst.msk [vmem:[%s363 + $0x28] sm:$0xf] %vm1080, %v1203
      %1236 = vst.msk [vmem:[%s363 + $0x2c] sm:$0xf] %vm1080, %v1204
      %1237 = vst.msk [vmem:[%s363 + $0x30] sm:$0xf] %vm1080, %v1205
      %1238 = vst.msk [vmem:[%s363 + $0x34] sm:$0xf] %vm1080, %v1206
      %1239 = vst.msk [vmem:[%s363 + $0x38] sm:$0xf] %vm1080, %v1207
      %1240 = vst.msk [vmem:[%s363 + $0x3c] sm:$0xf] %vm1080, %v1208
      %1241 = vrot.lane.b32.xlu0 %v1048, 112
      %v1242 = vpop.permute.xlu0 %1241
      %1243 = vrot.lane.b32.xlu0 %v1049, 112
      %v1244 = vpop.permute.xlu0 %1243
      %1245 = vrot.lane.b32.xlu0 %v1050, 112
      %v1246 = vpop.permute.xlu0 %1245
      %1247 = vrot.lane.b32.xlu0 %v1051, 112
      %v1248 = vpop.permute.xlu0 %1247
      %1249 = vrot.lane.b32.xlu0 %v1052, 112
      %v1250 = vpop.permute.xlu0 %1249
      %1251 = vrot.lane.b32.xlu0 %v1053, 112
      %v1252 = vpop.permute.xlu0 %1251
      %1253 = vrot.lane.b32.xlu0 %v1054, 112
      %v1254 = vpop.permute.xlu0 %1253
      %1255 = vrot.lane.b32.xlu0 %v1055, 112
      %v1256 = vpop.permute.xlu0 %1255
      %1257 = vrot.lane.b32.xlu0 %v1056, 112
      %v1258 = vpop.permute.xlu0 %1257
      %1259 = vrot.lane.b32.xlu0 %v1057, 112
      %v1260 = vpop.permute.xlu0 %1259
      %1261 = vrot.lane.b32.xlu0 %v1058, 112
      %v1262 = vpop.permute.xlu0 %1261
      %1263 = vrot.lane.b32.xlu0 %v1059, 112
      %v1264 = vpop.permute.xlu0 %1263
      %1265 = vrot.lane.b32.xlu0 %v1060, 112
      %v1266 = vpop.permute.xlu0 %1265
      %1267 = vrot.lane.b32.xlu0 %v1061, 112
      %v1268 = vpop.permute.xlu0 %1267
      %1269 = vrot.lane.b32.xlu0 %v1062, 112
      %v1270 = vpop.permute.xlu0 %1269
      %1271 = vrot.lane.b32.xlu0 %v1063, 112
      %v1272 = vpop.permute.xlu0 %1271
      %s1289 = scalar_lea.vmem %s343, 64
      %1290 = vst.msk [vmem:[%s1289] sm:$0xf] %vm1080, %v1242
      %1291 = vst.msk [vmem:[%s1289 + $0x4] sm:$0xf] %vm1080, %v1244
      %1292 = vst.msk [vmem:[%s1289 + $0x8] sm:$0xf] %vm1080, %v1246
      %1293 = vst.msk [vmem:[%s1289 + $0xc] sm:$0xf] %vm1080, %v1248
      %1294 = vst.msk [vmem:[%s1289 + $0x10] sm:$0xf] %vm1080, %v1250
      %1295 = vst.msk [vmem:[%s1289 + $0x14] sm:$0xf] %vm1080, %v1252
      %1296 = vst.msk [vmem:[%s1289 + $0x18] sm:$0xf] %vm1080, %v1254
      %1297 = vst.msk [vmem:[%s1289 + $0x1c] sm:$0xf] %vm1080, %v1256
      %1298 = vst.msk [vmem:[%s1289 + $0x20] sm:$0xf] %vm1080, %v1258
      %1299 = vst.msk [vmem:[%s1289 + $0x24] sm:$0xf] %vm1080, %v1260
      %1300 = vst.msk [vmem:[%s1289 + $0x28] sm:$0xf] %vm1080, %v1262
      %1301 = vst.msk [vmem:[%s1289 + $0x2c] sm:$0xf] %vm1080, %v1264
      %1302 = vst.msk [vmem:[%s1289 + $0x30] sm:$0xf] %vm1080, %v1266
      %1303 = vst.msk [vmem:[%s1289 + $0x34] sm:$0xf] %vm1080, %v1268
      %1304 = vst.msk [vmem:[%s1289 + $0x38] sm:$0xf] %vm1080, %v1270
      %1305 = vst.msk [vmem:[%s1289 + $0x3c] sm:$0xf] %vm1080, %v1272
      %1306 = vrot.lane.b32.xlu0 %v1121, 112
      %v1307 = vpop.permute.xlu0 %1306
      %1308 = vrot.lane.b32.xlu0 %v1122, 112
      %v1309 = vpop.permute.xlu0 %1308
      %1310 = vrot.lane.b32.xlu0 %v1123, 112
      %v1311 = vpop.permute.xlu0 %1310
      %1312 = vrot.lane.b32.xlu0 %v1124, 112
      %v1313 = vpop.permute.xlu0 %1312
      %1314 = vrot.lane.b32.xlu0 %v1125, 112
      %v1315 = vpop.permute.xlu0 %1314
      %1316 = vrot.lane.b32.xlu0 %v1126, 112
      %v1317 = vpop.permute.xlu0 %1316
      %1318 = vrot.lane.b32.xlu0 %v1127, 112
      %v1319 = vpop.permute.xlu0 %1318
      %1320 = vrot.lane.b32.xlu0 %v1128, 112
      %v1321 = vpop.permute.xlu0 %1320
      %1322 = vrot.lane.b32.xlu0 %v1129, 112
      %v1323 = vpop.permute.xlu0 %1322
      %1324 = vrot.lane.b32.xlu0 %v1130, 112
      %v1325 = vpop.permute.xlu0 %1324
      %1326 = vrot.lane.b32.xlu0 %v1131, 112
      %v1327 = vpop.permute.xlu0 %1326
      %1328 = vrot.lane.b32.xlu0 %v1132, 112
      %v1329 = vpop.permute.xlu0 %1328
      %1330 = vrot.lane.b32.xlu0 %v1133, 112
      %v1331 = vpop.permute.xlu0 %1330
      %1332 = vrot.lane.b32.xlu0 %v1134, 112
      %v1333 = vpop.permute.xlu0 %1332
      %1334 = vrot.lane.b32.xlu0 %v1135, 112
      %v1335 = vpop.permute.xlu0 %1334
      %1336 = vrot.lane.b32.xlu0 %v1136, 112
      %v1337 = vpop.permute.xlu0 %1336
      %s1354 = scalar_lea.vmem %s353, 64
      %1355 = vst.msk [vmem:[%s1354] sm:$0xf] %vm1080, %v1307
      %1356 = vst.msk [vmem:[%s1354 + $0x4] sm:$0xf] %vm1080, %v1309
      %1357 = vst.msk [vmem:[%s1354 + $0x8] sm:$0xf] %vm1080, %v1311
      %1358 = vst.msk [vmem:[%s1354 + $0xc] sm:$0xf] %vm1080, %v1313
      %1359 = vst.msk [vmem:[%s1354 + $0x10] sm:$0xf] %vm1080, %v1315
      %1360 = vst.msk [vmem:[%s1354 + $0x14] sm:$0xf] %vm1080, %v1317
      %1361 = vst.msk [vmem:[%s1354 + $0x18] sm:$0xf] %vm1080, %v1319
      %1362 = vst.msk [vmem:[%s1354 + $0x1c] sm:$0xf] %vm1080, %v1321
      %1363 = vst.msk [vmem:[%s1354 + $0x20] sm:$0xf] %vm1080, %v1323
      %1364 = vst.msk [vmem:[%s1354 + $0x24] sm:$0xf] %vm1080, %v1325
      %1365 = vst.msk [vmem:[%s1354 + $0x28] sm:$0xf] %vm1080, %v1327
      %1366 = vst.msk [vmem:[%s1354 + $0x2c] sm:$0xf] %vm1080, %v1329
      %1367 = vst.msk [vmem:[%s1354 + $0x30] sm:$0xf] %vm1080, %v1331
      %1368 = vst.msk [vmem:[%s1354 + $0x34] sm:$0xf] %vm1080, %v1333
      %1369 = vst.msk [vmem:[%s1354 + $0x38] sm:$0xf] %vm1080, %v1335
      %1370 = vst.msk [vmem:[%s1354 + $0x3c] sm:$0xf] %vm1080, %v1337
      %1371 = vrot.lane.b32.xlu0 %v1193, 112
      %v1372 = vpop.permute.xlu0 %1371
      %1373 = vrot.lane.b32.xlu0 %v1194, 112
      %v1374 = vpop.permute.xlu0 %1373
      %1375 = vrot.lane.b32.xlu0 %v1195, 112
      %v1376 = vpop.permute.xlu0 %1375
      %1377 = vrot.lane.b32.xlu0 %v1196, 112
      %v1378 = vpop.permute.xlu0 %1377
      %1379 = vrot.lane.b32.xlu0 %v1197, 112
      %v1380 = vpop.permute.xlu0 %1379
      %1381 = vrot.lane.b32.xlu0 %v1198, 112
      %v1382 = vpop.permute.xlu0 %1381
      %1383 = vrot.lane.b32.xlu0 %v1199, 112
      %v1384 = vpop.permute.xlu0 %1383
      %1385 = vrot.lane.b32.xlu0 %v1200, 112
      %v1386 = vpop.permute.xlu0 %1385
      %1387 = vrot.lane.b32.xlu0 %v1201, 112
      %v1388 = vpop.permute.xlu0 %1387
      %1389 = vrot.lane.b32.xlu0 %v1202, 112
      %v1390 = vpop.permute.xlu0 %1389
      %1391 = vrot.lane.b32.xlu0 %v1203, 112
      %v1392 = vpop.permute.xlu0 %1391
      %1393 = vrot.lane.b32.xlu0 %v1204, 112
      %v1394 = vpop.permute.xlu0 %1393
      %1395 = vrot.lane.b32.xlu0 %v1205, 112
      %v1396 = vpop.permute.xlu0 %1395
      %1397 = vrot.lane.b32.xlu0 %v1206, 112
      %v1398 = vpop.permute.xlu0 %1397
      %1399 = vrot.lane.b32.xlu0 %v1207, 112
      %v1400 = vpop.permute.xlu0 %1399
      %1401 = vrot.lane.b32.xlu0 %v1208, 112
      %v1402 = vpop.permute.xlu0 %1401
      %s1419 = scalar_lea.vmem %s363, 64
      %1420 = vst.msk [vmem:[%s1419] sm:$0xf] %vm1080, %v1372
      %1421 = vst.msk [vmem:[%s1419 + $0x4] sm:$0xf] %vm1080, %v1374
      %1422 = vst.msk [vmem:[%s1419 + $0x8] sm:$0xf] %vm1080, %v1376
      %1423 = vst.msk [vmem:[%s1419 + $0xc] sm:$0xf] %vm1080, %v1378
      %1424 = vst.msk [vmem:[%s1419 + $0x10] sm:$0xf] %vm1080, %v1380
      %1425 = vst.msk [vmem:[%s1419 + $0x14] sm:$0xf] %vm1080, %v1382
      %1426 = vst.msk [vmem:[%s1419 + $0x18] sm:$0xf] %vm1080, %v1384
      %1427 = vst.msk [vmem:[%s1419 + $0x1c] sm:$0xf] %vm1080, %v1386
      %1428 = vst.msk [vmem:[%s1419 + $0x20] sm:$0xf] %vm1080, %v1388
      %1429 = vst.msk [vmem:[%s1419 + $0x24] sm:$0xf] %vm1080, %v1390
      %1430 = vst.msk [vmem:[%s1419 + $0x28] sm:$0xf] %vm1080, %v1392
      %1431 = vst.msk [vmem:[%s1419 + $0x2c] sm:$0xf] %vm1080, %v1394
      %1432 = vst.msk [vmem:[%s1419 + $0x30] sm:$0xf] %vm1080, %v1396
      %1433 = vst.msk [vmem:[%s1419 + $0x34] sm:$0xf] %vm1080, %v1398
      %1434 = vst.msk [vmem:[%s1419 + $0x38] sm:$0xf] %vm1080, %v1400
      %1435 = vst.msk [vmem:[%s1419 + $0x3c] sm:$0xf] %vm1080, %v1402
      %1436 = vrot.lane.b32.xlu0 %v1048, 96
      %v1437 = vpop.permute.xlu0 %1436
      %1438 = vrot.lane.b32.xlu0 %v1049, 96
      %v1439 = vpop.permute.xlu0 %1438
      %1440 = vrot.lane.b32.xlu0 %v1050, 96
      %v1441 = vpop.permute.xlu0 %1440
      %1442 = vrot.lane.b32.xlu0 %v1051, 96
      %v1443 = vpop.permute.xlu0 %1442
      %1444 = vrot.lane.b32.xlu0 %v1052, 96
      %v1445 = vpop.permute.xlu0 %1444
      %1446 = vrot.lane.b32.xlu0 %v1053, 96
      %v1447 = vpop.permute.xlu0 %1446
      %1448 = vrot.lane.b32.xlu0 %v1054, 96
      %v1449 = vpop.permute.xlu0 %1448
      %1450 = vrot.lane.b32.xlu0 %v1055, 96
      %v1451 = vpop.permute.xlu0 %1450
      %1452 = vrot.lane.b32.xlu0 %v1056, 96
      %v1453 = vpop.permute.xlu0 %1452
      %1454 = vrot.lane.b32.xlu0 %v1057, 96
      %v1455 = vpop.permute.xlu0 %1454
      %1456 = vrot.lane.b32.xlu0 %v1058, 96
      %v1457 = vpop.permute.xlu0 %1456
      %1458 = vrot.lane.b32.xlu0 %v1059, 96
      %v1459 = vpop.permute.xlu0 %1458
      %1460 = vrot.lane.b32.xlu0 %v1060, 96
      %v1461 = vpop.permute.xlu0 %1460
      %1462 = vrot.lane.b32.xlu0 %v1061, 96
      %v1463 = vpop.permute.xlu0 %1462
      %1464 = vrot.lane.b32.xlu0 %v1062, 96
      %v1465 = vpop.permute.xlu0 %1464
      %1466 = vrot.lane.b32.xlu0 %v1063, 96
      %v1467 = vpop.permute.xlu0 %1466
      %s1484 = scalar_lea.vmem %s343, 128
      %1485 = vst.msk [vmem:[%s1484] sm:$0xf] %vm1080, %v1437
      %1486 = vst.msk [vmem:[%s1484 + $0x4] sm:$0xf] %vm1080, %v1439
      %1487 = vst.msk [vmem:[%s1484 + $0x8] sm:$0xf] %vm1080, %v1441
      %1488 = vst.msk [vmem:[%s1484 + $0xc] sm:$0xf] %vm1080, %v1443
      %1489 = vst.msk [vmem:[%s1484 + $0x10] sm:$0xf] %vm1080, %v1445
      %1490 = vst.msk [vmem:[%s1484 + $0x14] sm:$0xf] %vm1080, %v1447
      %1491 = vst.msk [vmem:[%s1484 + $0x18] sm:$0xf] %vm1080, %v1449
      %1492 = vst.msk [vmem:[%s1484 + $0x1c] sm:$0xf] %vm1080, %v1451
      %1493 = vst.msk [vmem:[%s1484 + $0x20] sm:$0xf] %vm1080, %v1453
      %1494 = vst.msk [vmem:[%s1484 + $0x24] sm:$0xf] %vm1080, %v1455
      %1495 = vst.msk [vmem:[%s1484 + $0x28] sm:$0xf] %vm1080, %v1457
      %1496 = vst.msk [vmem:[%s1484 + $0x2c] sm:$0xf] %vm1080, %v1459
      %1497 = vst.msk [vmem:[%s1484 + $0x30] sm:$0xf] %vm1080, %v1461
      %1498 = vst.msk [vmem:[%s1484 + $0x34] sm:$0xf] %vm1080, %v1463
      %1499 = vst.msk [vmem:[%s1484 + $0x38] sm:$0xf] %vm1080, %v1465
      %1500 = vst.msk [vmem:[%s1484 + $0x3c] sm:$0xf] %vm1080, %v1467
      %1501 = vrot.lane.b32.xlu0 %v1121, 96
      %v1502 = vpop.permute.xlu0 %1501
      %1503 = vrot.lane.b32.xlu0 %v1122, 96
      %v1504 = vpop.permute.xlu0 %1503
      %1505 = vrot.lane.b32.xlu0 %v1123, 96
      %v1506 = vpop.permute.xlu0 %1505
      %1507 = vrot.lane.b32.xlu0 %v1124, 96
      %v1508 = vpop.permute.xlu0 %1507
      %1509 = vrot.lane.b32.xlu0 %v1125, 96
      %v1510 = vpop.permute.xlu0 %1509
      %1511 = vrot.lane.b32.xlu0 %v1126, 96
      %v1512 = vpop.permute.xlu0 %1511
      %1513 = vrot.lane.b32.xlu0 %v1127, 96
      %v1514 = vpop.permute.xlu0 %1513
      %1515 = vrot.lane.b32.xlu0 %v1128, 96
      %v1516 = vpop.permute.xlu0 %1515
      %1517 = vrot.lane.b32.xlu0 %v1129, 96
      %v1518 = vpop.permute.xlu0 %1517
      %1519 = vrot.lane.b32.xlu0 %v1130, 96
      %v1520 = vpop.permute.xlu0 %1519
      %1521 = vrot.lane.b32.xlu0 %v1131, 96
      %v1522 = vpop.permute.xlu0 %1521
      %1523 = vrot.lane.b32.xlu0 %v1132, 96
      %v1524 = vpop.permute.xlu0 %1523
      %1525 = vrot.lane.b32.xlu0 %v1133, 96
      %v1526 = vpop.permute.xlu0 %1525
      %1527 = vrot.lane.b32.xlu0 %v1134, 96
      %v1528 = vpop.permute.xlu0 %1527
      %1529 = vrot.lane.b32.xlu0 %v1135, 96
      %v1530 = vpop.permute.xlu0 %1529
      %1531 = vrot.lane.b32.xlu0 %v1136, 96
      %v1532 = vpop.permute.xlu0 %1531
      %s1549 = scalar_lea.vmem %s353, 128
      %1550 = vst.msk [vmem:[%s1549] sm:$0xf] %vm1080, %v1502
      %1551 = vst.msk [vmem:[%s1549 + $0x4] sm:$0xf] %vm1080, %v1504
      %1552 = vst.msk [vmem:[%s1549 + $0x8] sm:$0xf] %vm1080, %v1506
      %1553 = vst.msk [vmem:[%s1549 + $0xc] sm:$0xf] %vm1080, %v1508
      %1554 = vst.msk [vmem:[%s1549 + $0x10] sm:$0xf] %vm1080, %v1510
      %1555 = vst.msk [vmem:[%s1549 + $0x14] sm:$0xf] %vm1080, %v1512
      %1556 = vst.msk [vmem:[%s1549 + $0x18] sm:$0xf] %vm1080, %v1514
      %1557 = vst.msk [vmem:[%s1549 + $0x1c] sm:$0xf] %vm1080, %v1516
      %1558 = vst.msk [vmem:[%s1549 + $0x20] sm:$0xf] %vm1080, %v1518
      %1559 = vst.msk [vmem:[%s1549 + $0x24] sm:$0xf] %vm1080, %v1520
      %1560 = vst.msk [vmem:[%s1549 + $0x28] sm:$0xf] %vm1080, %v1522
      %1561 = vst.msk [vmem:[%s1549 + $0x2c] sm:$0xf] %vm1080, %v1524
      %1562 = vst.msk [vmem:[%s1549 + $0x30] sm:$0xf] %vm1080, %v1526
      %1563 = vst.msk [vmem:[%s1549 + $0x34] sm:$0xf] %vm1080, %v1528
      %1564 = vst.msk [vmem:[%s1549 + $0x38] sm:$0xf] %vm1080, %v1530
      %1565 = vst.msk [vmem:[%s1549 + $0x3c] sm:$0xf] %vm1080, %v1532
      %1566 = vrot.lane.b32.xlu0 %v1193, 96
      %v1567 = vpop.permute.xlu0 %1566
      %1568 = vrot.lane.b32.xlu0 %v1194, 96
      %v1569 = vpop.permute.xlu0 %1568
      %1570 = vrot.lane.b32.xlu0 %v1195, 96
      %v1571 = vpop.permute.xlu0 %1570
      %1572 = vrot.lane.b32.xlu0 %v1196, 96
      %v1573 = vpop.permute.xlu0 %1572
      %1574 = vrot.lane.b32.xlu0 %v1197, 96
      %v1575 = vpop.permute.xlu0 %1574
      %1576 = vrot.lane.b32.xlu0 %v1198, 96
      %v1577 = vpop.permute.xlu0 %1576
      %1578 = vrot.lane.b32.xlu0 %v1199, 96
      %v1579 = vpop.permute.xlu0 %1578
      %1580 = vrot.lane.b32.xlu0 %v1200, 96
      %v1581 = vpop.permute.xlu0 %1580
      %1582 = vrot.lane.b32.xlu0 %v1201, 96
      %v1583 = vpop.permute.xlu0 %1582
      %1584 = vrot.lane.b32.xlu0 %v1202, 96
      %v1585 = vpop.permute.xlu0 %1584
      %1586 = vrot.lane.b32.xlu0 %v1203, 96
      %v1587 = vpop.permute.xlu0 %1586
      %1588 = vrot.lane.b32.xlu0 %v1204, 96
      %v1589 = vpop.permute.xlu0 %1588
      %1590 = vrot.lane.b32.xlu0 %v1205, 96
      %v1591 = vpop.permute.xlu0 %1590
      %1592 = vrot.lane.b32.xlu0 %v1206, 96
      %v1593 = vpop.permute.xlu0 %1592
      %1594 = vrot.lane.b32.xlu0 %v1207, 96
      %v1595 = vpop.permute.xlu0 %1594
      %1596 = vrot.lane.b32.xlu0 %v1208, 96
      %v1597 = vpop.permute.xlu0 %1596
      %s1614 = scalar_lea.vmem %s363, 128
      %1615 = vst.msk [vmem:[%s1614] sm:$0xf] %vm1080, %v1567
      %1616 = vst.msk [vmem:[%s1614 + $0x4] sm:$0xf] %vm1080, %v1569
      %1617 = vst.msk [vmem:[%s1614 + $0x8] sm:$0xf] %vm1080, %v1571
      %1618 = vst.msk [vmem:[%s1614 + $0xc] sm:$0xf] %vm1080, %v1573
      %1619 = vst.msk [vmem:[%s1614 + $0x10] sm:$0xf] %vm1080, %v1575
      %1620 = vst.msk [vmem:[%s1614 + $0x14] sm:$0xf] %vm1080, %v1577
      %1621 = vst.msk [vmem:[%s1614 + $0x18] sm:$0xf] %vm1080, %v1579
      %1622 = vst.msk [vmem:[%s1614 + $0x1c] sm:$0xf] %vm1080, %v1581
      %1623 = vst.msk [vmem:[%s1614 + $0x20] sm:$0xf] %vm1080, %v1583
      %1624 = vst.msk [vmem:[%s1614 + $0x24] sm:$0xf] %vm1080, %v1585
      %1625 = vst.msk [vmem:[%s1614 + $0x28] sm:$0xf] %vm1080, %v1587
      %1626 = vst.msk [vmem:[%s1614 + $0x2c] sm:$0xf] %vm1080, %v1589
      %1627 = vst.msk [vmem:[%s1614 + $0x30] sm:$0xf] %vm1080, %v1591
      %1628 = vst.msk [vmem:[%s1614 + $0x34] sm:$0xf] %vm1080, %v1593
      %1629 = vst.msk [vmem:[%s1614 + $0x38] sm:$0xf] %vm1080, %v1595
      %1630 = vst.msk [vmem:[%s1614 + $0x3c] sm:$0xf] %vm1080, %v1597
      %1631 = vrot.lane.b32.xlu0 %v1048, 80
      %v1632 = vpop.permute.xlu0 %1631
      %1633 = vrot.lane.b32.xlu0 %v1049, 80
      %v1634 = vpop.permute.xlu0 %1633
      %1635 = vrot.lane.b32.xlu0 %v1050, 80
      %v1636 = vpop.permute.xlu0 %1635
      %1637 = vrot.lane.b32.xlu0 %v1051, 80
      %v1638 = vpop.permute.xlu0 %1637
      %1639 = vrot.lane.b32.xlu0 %v1052, 80
      %v1640 = vpop.permute.xlu0 %1639
      %1641 = vrot.lane.b32.xlu0 %v1053, 80
      %v1642 = vpop.permute.xlu0 %1641
      %1643 = vrot.lane.b32.xlu0 %v1054, 80
      %v1644 = vpop.permute.xlu0 %1643
      %1645 = vrot.lane.b32.xlu0 %v1055, 80
      %v1646 = vpop.permute.xlu0 %1645
      %1647 = vrot.lane.b32.xlu0 %v1056, 80
      %v1648 = vpop.permute.xlu0 %1647
      %1649 = vrot.lane.b32.xlu0 %v1057, 80
      %v1650 = vpop.permute.xlu0 %1649
      %1651 = vrot.lane.b32.xlu0 %v1058, 80
      %v1652 = vpop.permute.xlu0 %1651
      %1653 = vrot.lane.b32.xlu0 %v1059, 80
      %v1654 = vpop.permute.xlu0 %1653
      %1655 = vrot.lane.b32.xlu0 %v1060, 80
      %v1656 = vpop.permute.xlu0 %1655
      %1657 = vrot.lane.b32.xlu0 %v1061, 80
      %v1658 = vpop.permute.xlu0 %1657
      %1659 = vrot.lane.b32.xlu0 %v1062, 80
      %v1660 = vpop.permute.xlu0 %1659
      %1661 = vrot.lane.b32.xlu0 %v1063, 80
      %v1662 = vpop.permute.xlu0 %1661
      %s1679 = scalar_lea.vmem %s343, 192
      %1680 = vst.msk [vmem:[%s1679] sm:$0xf] %vm1080, %v1632
      %1681 = vst.msk [vmem:[%s1679 + $0x4] sm:$0xf] %vm1080, %v1634
      %1682 = vst.msk [vmem:[%s1679 + $0x8] sm:$0xf] %vm1080, %v1636
      %1683 = vst.msk [vmem:[%s1679 + $0xc] sm:$0xf] %vm1080, %v1638
      %1684 = vst.msk [vmem:[%s1679 + $0x10] sm:$0xf] %vm1080, %v1640
      %1685 = vst.msk [vmem:[%s1679 + $0x14] sm:$0xf] %vm1080, %v1642
      %1686 = vst.msk [vmem:[%s1679 + $0x18] sm:$0xf] %vm1080, %v1644
      %1687 = vst.msk [vmem:[%s1679 + $0x1c] sm:$0xf] %vm1080, %v1646
      %1688 = vst.msk [vmem:[%s1679 + $0x20] sm:$0xf] %vm1080, %v1648
      %1689 = vst.msk [vmem:[%s1679 + $0x24] sm:$0xf] %vm1080, %v1650
      %1690 = vst.msk [vmem:[%s1679 + $0x28] sm:$0xf] %vm1080, %v1652
      %1691 = vst.msk [vmem:[%s1679 + $0x2c] sm:$0xf] %vm1080, %v1654
      %1692 = vst.msk [vmem:[%s1679 + $0x30] sm:$0xf] %vm1080, %v1656
      %1693 = vst.msk [vmem:[%s1679 + $0x34] sm:$0xf] %vm1080, %v1658
      %1694 = vst.msk [vmem:[%s1679 + $0x38] sm:$0xf] %vm1080, %v1660
      %1695 = vst.msk [vmem:[%s1679 + $0x3c] sm:$0xf] %vm1080, %v1662
      %1696 = vrot.lane.b32.xlu0 %v1121, 80
      %v1697 = vpop.permute.xlu0 %1696
      %1698 = vrot.lane.b32.xlu0 %v1122, 80
      %v1699 = vpop.permute.xlu0 %1698
      %1700 = vrot.lane.b32.xlu0 %v1123, 80
      %v1701 = vpop.permute.xlu0 %1700
      %1702 = vrot.lane.b32.xlu0 %v1124, 80
      %v1703 = vpop.permute.xlu0 %1702
      %1704 = vrot.lane.b32.xlu0 %v1125, 80
      %v1705 = vpop.permute.xlu0 %1704
      %1706 = vrot.lane.b32.xlu0 %v1126, 80
      %v1707 = vpop.permute.xlu0 %1706
      %1708 = vrot.lane.b32.xlu0 %v1127, 80
      %v1709 = vpop.permute.xlu0 %1708
      %1710 = vrot.lane.b32.xlu0 %v1128, 80
      %v1711 = vpop.permute.xlu0 %1710
      %1712 = vrot.lane.b32.xlu0 %v1129, 80
      %v1713 = vpop.permute.xlu0 %1712
      %1714 = vrot.lane.b32.xlu0 %v1130, 80
      %v1715 = vpop.permute.xlu0 %1714
      %1716 = vrot.lane.b32.xlu0 %v1131, 80
      %v1717 = vpop.permute.xlu0 %1716
      %1718 = vrot.lane.b32.xlu0 %v1132, 80
      %v1719 = vpop.permute.xlu0 %1718
      %1720 = vrot.lane.b32.xlu0 %v1133, 80
      %v1721 = vpop.permute.xlu0 %1720
      %1722 = vrot.lane.b32.xlu0 %v1134, 80
      %v1723 = vpop.permute.xlu0 %1722
      %1724 = vrot.lane.b32.xlu0 %v1135, 80
      %v1725 = vpop.permute.xlu0 %1724
      %1726 = vrot.lane.b32.xlu0 %v1136, 80
      %v1727 = vpop.permute.xlu0 %1726
      %s1744 = scalar_lea.vmem %s353, 192
      %1745 = vst.msk [vmem:[%s1744] sm:$0xf] %vm1080, %v1697
      %1746 = vst.msk [vmem:[%s1744 + $0x4] sm:$0xf] %vm1080, %v1699
      %1747 = vst.msk [vmem:[%s1744 + $0x8] sm:$0xf] %vm1080, %v1701
      %1748 = vst.msk [vmem:[%s1744 + $0xc] sm:$0xf] %vm1080, %v1703
      %1749 = vst.msk [vmem:[%s1744 + $0x10] sm:$0xf] %vm1080, %v1705
      %1750 = vst.msk [vmem:[%s1744 + $0x14] sm:$0xf] %vm1080, %v1707
      %1751 = vst.msk [vmem:[%s1744 + $0x18] sm:$0xf] %vm1080, %v1709
      %1752 = vst.msk [vmem:[%s1744 + $0x1c] sm:$0xf] %vm1080, %v1711
      %1753 = vst.msk [vmem:[%s1744 + $0x20] sm:$0xf] %vm1080, %v1713
      %1754 = vst.msk [vmem:[%s1744 + $0x24] sm:$0xf] %vm1080, %v1715
      %1755 = vst.msk [vmem:[%s1744 + $0x28] sm:$0xf] %vm1080, %v1717
      %1756 = vst.msk [vmem:[%s1744 + $0x2c] sm:$0xf] %vm1080, %v1719
      %1757 = vst.msk [vmem:[%s1744 + $0x30] sm:$0xf] %vm1080, %v1721
      %1758 = vst.msk [vmem:[%s1744 + $0x34] sm:$0xf] %vm1080, %v1723
      %1759 = vst.msk [vmem:[%s1744 + $0x38] sm:$0xf] %vm1080, %v1725
      %1760 = vst.msk [vmem:[%s1744 + $0x3c] sm:$0xf] %vm1080, %v1727
      %1761 = vrot.lane.b32.xlu0 %v1193, 80
      %v1762 = vpop.permute.xlu0 %1761
      %1763 = vrot.lane.b32.xlu0 %v1194, 80
      %v1764 = vpop.permute.xlu0 %1763
      %1765 = vrot.lane.b32.xlu0 %v1195, 80
      %v1766 = vpop.permute.xlu0 %1765
      %1767 = vrot.lane.b32.xlu0 %v1196, 80
      %v1768 = vpop.permute.xlu0 %1767
      %1769 = vrot.lane.b32.xlu0 %v1197, 80
      %v1770 = vpop.permute.xlu0 %1769
      %1771 = vrot.lane.b32.xlu0 %v1198, 80
      %v1772 = vpop.permute.xlu0 %1771
      %1773 = vrot.lane.b32.xlu0 %v1199, 80
      %v1774 = vpop.permute.xlu0 %1773
      %1775 = vrot.lane.b32.xlu0 %v1200, 80
      %v1776 = vpop.permute.xlu0 %1775
      %1777 = vrot.lane.b32.xlu0 %v1201, 80
      %v1778 = vpop.permute.xlu0 %1777
      %1779 = vrot.lane.b32.xlu0 %v1202, 80
      %v1780 = vpop.permute.xlu0 %1779
      %1781 = vrot.lane.b32.xlu0 %v1203, 80
      %v1782 = vpop.permute.xlu0 %1781
      %1783 = vrot.lane.b32.xlu0 %v1204, 80
      %v1784 = vpop.permute.xlu0 %1783
      %1785 = vrot.lane.b32.xlu0 %v1205, 80
      %v1786 = vpop.permute.xlu0 %1785
      %1787 = vrot.lane.b32.xlu0 %v1206, 80
      %v1788 = vpop.permute.xlu0 %1787
      %1789 = vrot.lane.b32.xlu0 %v1207, 80
      %v1790 = vpop.permute.xlu0 %1789
      %1791 = vrot.lane.b32.xlu0 %v1208, 80
      %v1792 = vpop.permute.xlu0 %1791
      %s1809 = scalar_lea.vmem %s363, 192
      %1810 = vst.msk [vmem:[%s1809] sm:$0xf] %vm1080, %v1762
      %1811 = vst.msk [vmem:[%s1809 + $0x4] sm:$0xf] %vm1080, %v1764
      %1812 = vst.msk [vmem:[%s1809 + $0x8] sm:$0xf] %vm1080, %v1766
      %1813 = vst.msk [vmem:[%s1809 + $0xc] sm:$0xf] %vm1080, %v1768
      %1814 = vst.msk [vmem:[%s1809 + $0x10] sm:$0xf] %vm1080, %v1770
      %1815 = vst.msk [vmem:[%s1809 + $0x14] sm:$0xf] %vm1080, %v1772
      %1816 = vst.msk [vmem:[%s1809 + $0x18] sm:$0xf] %vm1080, %v1774
      %1817 = vst.msk [vmem:[%s1809 + $0x1c] sm:$0xf] %vm1080, %v1776
      %1818 = vst.msk [vmem:[%s1809 + $0x20] sm:$0xf] %vm1080, %v1778
      %1819 = vst.msk [vmem:[%s1809 + $0x24] sm:$0xf] %vm1080, %v1780
      %1820 = vst.msk [vmem:[%s1809 + $0x28] sm:$0xf] %vm1080, %v1782
      %1821 = vst.msk [vmem:[%s1809 + $0x2c] sm:$0xf] %vm1080, %v1784
      %1822 = vst.msk [vmem:[%s1809 + $0x30] sm:$0xf] %vm1080, %v1786
      %1823 = vst.msk [vmem:[%s1809 + $0x34] sm:$0xf] %vm1080, %v1788
      %1824 = vst.msk [vmem:[%s1809 + $0x38] sm:$0xf] %vm1080, %v1790
      %1825 = vst.msk [vmem:[%s1809 + $0x3c] sm:$0xf] %vm1080, %v1792
      %1826 = vrot.lane.b32.xlu0 %v1048, 64
      %v1827 = vpop.permute.xlu0 %1826
      %1828 = vrot.lane.b32.xlu0 %v1049, 64
      %v1829 = vpop.permute.xlu0 %1828
      %1830 = vrot.lane.b32.xlu0 %v1050, 64
      %v1831 = vpop.permute.xlu0 %1830
      %1832 = vrot.lane.b32.xlu0 %v1051, 64
      %v1833 = vpop.permute.xlu0 %1832
      %1834 = vrot.lane.b32.xlu0 %v1052, 64
      %v1835 = vpop.permute.xlu0 %1834
      %1836 = vrot.lane.b32.xlu0 %v1053, 64
      %v1837 = vpop.permute.xlu0 %1836
      %1838 = vrot.lane.b32.xlu0 %v1054, 64
      %v1839 = vpop.permute.xlu0 %1838
      %1840 = vrot.lane.b32.xlu0 %v1055, 64
      %v1841 = vpop.permute.xlu0 %1840
      %1842 = vrot.lane.b32.xlu0 %v1056, 64
      %v1843 = vpop.permute.xlu0 %1842
      %1844 = vrot.lane.b32.xlu0 %v1057, 64
      %v1845 = vpop.permute.xlu0 %1844
      %1846 = vrot.lane.b32.xlu0 %v1058, 64
      %v1847 = vpop.permute.xlu0 %1846
      %1848 = vrot.lane.b32.xlu0 %v1059, 64
      %v1849 = vpop.permute.xlu0 %1848
      %1850 = vrot.lane.b32.xlu0 %v1060, 64
      %v1851 = vpop.permute.xlu0 %1850
      %1852 = vrot.lane.b32.xlu0 %v1061, 64
      %v1853 = vpop.permute.xlu0 %1852
      %1854 = vrot.lane.b32.xlu0 %v1062, 64
      %v1855 = vpop.permute.xlu0 %1854
      %1856 = vrot.lane.b32.xlu0 %v1063, 64
      %v1857 = vpop.permute.xlu0 %1856
      %s1874 = scalar_lea.vmem %s343, 256
      %1875 = vst.msk [vmem:[%s1874] sm:$0xf] %vm1080, %v1827
      %1876 = vst.msk [vmem:[%s1874 + $0x4] sm:$0xf] %vm1080, %v1829
      %1877 = vst.msk [vmem:[%s1874 + $0x8] sm:$0xf] %vm1080, %v1831
      %1878 = vst.msk [vmem:[%s1874 + $0xc] sm:$0xf] %vm1080, %v1833
      %1879 = vst.msk [vmem:[%s1874 + $0x10] sm:$0xf] %vm1080, %v1835
      %1880 = vst.msk [vmem:[%s1874 + $0x14] sm:$0xf] %vm1080, %v1837
      %1881 = vst.msk [vmem:[%s1874 + $0x18] sm:$0xf] %vm1080, %v1839
      %1882 = vst.msk [vmem:[%s1874 + $0x1c] sm:$0xf] %vm1080, %v1841
      %1883 = vst.msk [vmem:[%s1874 + $0x20] sm:$0xf] %vm1080, %v1843
      %1884 = vst.msk [vmem:[%s1874 + $0x24] sm:$0xf] %vm1080, %v1845
      %1885 = vst.msk [vmem:[%s1874 + $0x28] sm:$0xf] %vm1080, %v1847
      %1886 = vst.msk [vmem:[%s1874 + $0x2c] sm:$0xf] %vm1080, %v1849
      %1887 = vst.msk [vmem:[%s1874 + $0x30] sm:$0xf] %vm1080, %v1851
      %1888 = vst.msk [vmem:[%s1874 + $0x34] sm:$0xf] %vm1080, %v1853
      %1889 = vst.msk [vmem:[%s1874 + $0x38] sm:$0xf] %vm1080, %v1855
      %1890 = vst.msk [vmem:[%s1874 + $0x3c] sm:$0xf] %vm1080, %v1857
      %1891 = vrot.lane.b32.xlu0 %v1121, 64
      %v1892 = vpop.permute.xlu0 %1891
      %1893 = vrot.lane.b32.xlu0 %v1122, 64
      %v1894 = vpop.permute.xlu0 %1893
      %1895 = vrot.lane.b32.xlu0 %v1123, 64
      %v1896 = vpop.permute.xlu0 %1895
      %1897 = vrot.lane.b32.xlu0 %v1124, 64
      %v1898 = vpop.permute.xlu0 %1897
      %1899 = vrot.lane.b32.xlu0 %v1125, 64
      %v1900 = vpop.permute.xlu0 %1899
      %1901 = vrot.lane.b32.xlu0 %v1126, 64
      %v1902 = vpop.permute.xlu0 %1901
      %1903 = vrot.lane.b32.xlu0 %v1127, 64
      %v1904 = vpop.permute.xlu0 %1903
      %1905 = vrot.lane.b32.xlu0 %v1128, 64
      %v1906 = vpop.permute.xlu0 %1905
      %1907 = vrot.lane.b32.xlu0 %v1129, 64
      %v1908 = vpop.permute.xlu0 %1907
      %1909 = vrot.lane.b32.xlu0 %v1130, 64
      %v1910 = vpop.permute.xlu0 %1909
      %1911 = vrot.lane.b32.xlu0 %v1131, 64
      %v1912 = vpop.permute.xlu0 %1911
      %1913 = vrot.lane.b32.xlu0 %v1132, 64
      %v1914 = vpop.permute.xlu0 %1913
      %1915 = vrot.lane.b32.xlu0 %v1133, 64
      %v1916 = vpop.permute.xlu0 %1915
      %1917 = vrot.lane.b32.xlu0 %v1134, 64
      %v1918 = vpop.permute.xlu0 %1917
      %1919 = vrot.lane.b32.xlu0 %v1135, 64
      %v1920 = vpop.permute.xlu0 %1919
      %1921 = vrot.lane.b32.xlu0 %v1136, 64
      %v1922 = vpop.permute.xlu0 %1921
      %s1939 = scalar_lea.vmem %s353, 256
      %1940 = vst.msk [vmem:[%s1939] sm:$0xf] %vm1080, %v1892
      %1941 = vst.msk [vmem:[%s1939 + $0x4] sm:$0xf] %vm1080, %v1894
      %1942 = vst.msk [vmem:[%s1939 + $0x8] sm:$0xf] %vm1080, %v1896
      %1943 = vst.msk [vmem:[%s1939 + $0xc] sm:$0xf] %vm1080, %v1898
      %1944 = vst.msk [vmem:[%s1939 + $0x10] sm:$0xf] %vm1080, %v1900
      %1945 = vst.msk [vmem:[%s1939 + $0x14] sm:$0xf] %vm1080, %v1902
      %1946 = vst.msk [vmem:[%s1939 + $0x18] sm:$0xf] %vm1080, %v1904
      %1947 = vst.msk [vmem:[%s1939 + $0x1c] sm:$0xf] %vm1080, %v1906
      %1948 = vst.msk [vmem:[%s1939 + $0x20] sm:$0xf] %vm1080, %v1908
      %1949 = vst.msk [vmem:[%s1939 + $0x24] sm:$0xf] %vm1080, %v1910
      %1950 = vst.msk [vmem:[%s1939 + $0x28] sm:$0xf] %vm1080, %v1912
      %1951 = vst.msk [vmem:[%s1939 + $0x2c] sm:$0xf] %vm1080, %v1914
      %1952 = vst.msk [vmem:[%s1939 + $0x30] sm:$0xf] %vm1080, %v1916
      %1953 = vst.msk [vmem:[%s1939 + $0x34] sm:$0xf] %vm1080, %v1918
      %1954 = vst.msk [vmem:[%s1939 + $0x38] sm:$0xf] %vm1080, %v1920
      %1955 = vst.msk [vmem:[%s1939 + $0x3c] sm:$0xf] %vm1080, %v1922
      %1956 = vrot.lane.b32.xlu0 %v1193, 64
      %v1957 = vpop.permute.xlu0 %1956
      %1958 = vrot.lane.b32.xlu0 %v1194, 64
      %v1959 = vpop.permute.xlu0 %1958
      %1960 = vrot.lane.b32.xlu0 %v1195, 64
      %v1961 = vpop.permute.xlu0 %1960
      %1962 = vrot.lane.b32.xlu0 %v1196, 64
      %v1963 = vpop.permute.xlu0 %1962
      %1964 = vrot.lane.b32.xlu0 %v1197, 64
      %v1965 = vpop.permute.xlu0 %1964
      %1966 = vrot.lane.b32.xlu0 %v1198, 64
      %v1967 = vpop.permute.xlu0 %1966
      %1968 = vrot.lane.b32.xlu0 %v1199, 64
      %v1969 = vpop.permute.xlu0 %1968
      %1970 = vrot.lane.b32.xlu0 %v1200, 64
      %v1971 = vpop.permute.xlu0 %1970
      %1972 = vrot.lane.b32.xlu0 %v1201, 64
      %v1973 = vpop.permute.xlu0 %1972
      %1974 = vrot.lane.b32.xlu0 %v1202, 64
      %v1975 = vpop.permute.xlu0 %1974
      %1976 = vrot.lane.b32.xlu0 %v1203, 64
      %v1977 = vpop.permute.xlu0 %1976
      %1978 = vrot.lane.b32.xlu0 %v1204, 64
      %v1979 = vpop.permute.xlu0 %1978
      %1980 = vrot.lane.b32.xlu0 %v1205, 64
      %v1981 = vpop.permute.xlu0 %1980
      %1982 = vrot.lane.b32.xlu0 %v1206, 64
      %v1983 = vpop.permute.xlu0 %1982
      %1984 = vrot.lane.b32.xlu0 %v1207, 64
      %v1985 = vpop.permute.xlu0 %1984
      %1986 = vrot.lane.b32.xlu0 %v1208, 64
      %v1987 = vpop.permute.xlu0 %1986
      %s2004 = scalar_lea.vmem %s363, 256
      %2005 = vst.msk [vmem:[%s2004] sm:$0xf] %vm1080, %v1957
      %2006 = vst.msk [vmem:[%s2004 + $0x4] sm:$0xf] %vm1080, %v1959
      %2007 = vst.msk [vmem:[%s2004 + $0x8] sm:$0xf] %vm1080, %v1961
      %2008 = vst.msk [vmem:[%s2004 + $0xc] sm:$0xf] %vm1080, %v1963
      %2009 = vst.msk [vmem:[%s2004 + $0x10] sm:$0xf] %vm1080, %v1965
      %2010 = vst.msk [vmem:[%s2004 + $0x14] sm:$0xf] %vm1080, %v1967
      %2011 = vst.msk [vmem:[%s2004 + $0x18] sm:$0xf] %vm1080, %v1969
      %2012 = vst.msk [vmem:[%s2004 + $0x1c] sm:$0xf] %vm1080, %v1971
      %2013 = vst.msk [vmem:[%s2004 + $0x20] sm:$0xf] %vm1080, %v1973
      %2014 = vst.msk [vmem:[%s2004 + $0x24] sm:$0xf] %vm1080, %v1975
      %2015 = vst.msk [vmem:[%s2004 + $0x28] sm:$0xf] %vm1080, %v1977
      %2016 = vst.msk [vmem:[%s2004 + $0x2c] sm:$0xf] %vm1080, %v1979
      %2017 = vst.msk [vmem:[%s2004 + $0x30] sm:$0xf] %vm1080, %v1981
      %2018 = vst.msk [vmem:[%s2004 + $0x34] sm:$0xf] %vm1080, %v1983
      %2019 = vst.msk [vmem:[%s2004 + $0x38] sm:$0xf] %vm1080, %v1985
      %2020 = vst.msk [vmem:[%s2004 + $0x3c] sm:$0xf] %vm1080, %v1987
      %2021 = vrot.lane.b32.xlu0 %v1048, 48
      %v2022 = vpop.permute.xlu0 %2021
      %2023 = vrot.lane.b32.xlu0 %v1049, 48
      %v2024 = vpop.permute.xlu0 %2023
      %2025 = vrot.lane.b32.xlu0 %v1050, 48
      %v2026 = vpop.permute.xlu0 %2025
      %2027 = vrot.lane.b32.xlu0 %v1051, 48
      %v2028 = vpop.permute.xlu0 %2027
      %2029 = vrot.lane.b32.xlu0 %v1052, 48
      %v2030 = vpop.permute.xlu0 %2029
      %2031 = vrot.lane.b32.xlu0 %v1053, 48
      %v2032 = vpop.permute.xlu0 %2031
      %2033 = vrot.lane.b32.xlu0 %v1054, 48
      %v2034 = vpop.permute.xlu0 %2033
      %2035 = vrot.lane.b32.xlu0 %v1055, 48
      %v2036 = vpop.permute.xlu0 %2035
      %2037 = vrot.lane.b32.xlu0 %v1056, 48
      %v2038 = vpop.permute.xlu0 %2037
      %2039 = vrot.lane.b32.xlu0 %v1057, 48
      %v2040 = vpop.permute.xlu0 %2039
      %2041 = vrot.lane.b32.xlu0 %v1058, 48
      %v2042 = vpop.permute.xlu0 %2041
      %2043 = vrot.lane.b32.xlu0 %v1059, 48
      %v2044 = vpop.permute.xlu0 %2043
      %2045 = vrot.lane.b32.xlu0 %v1060, 48
      %v2046 = vpop.permute.xlu0 %2045
      %2047 = vrot.lane.b32.xlu0 %v1061, 48
      %v2048 = vpop.permute.xlu0 %2047
      %2049 = vrot.lane.b32.xlu0 %v1062, 48
      %v2050 = vpop.permute.xlu0 %2049
      %2051 = vrot.lane.b32.xlu0 %v1063, 48
      %v2052 = vpop.permute.xlu0 %2051
      %s2069 = scalar_lea.vmem %s343, 320
      %2070 = vst.msk [vmem:[%s2069] sm:$0xf] %vm1080, %v2022
      %2071 = vst.msk [vmem:[%s2069 + $0x4] sm:$0xf] %vm1080, %v2024
      %2072 = vst.msk [vmem:[%s2069 + $0x8] sm:$0xf] %vm1080, %v2026
      %2073 = vst.msk [vmem:[%s2069 + $0xc] sm:$0xf] %vm1080, %v2028
      %2074 = vst.msk [vmem:[%s2069 + $0x10] sm:$0xf] %vm1080, %v2030
      %2075 = vst.msk [vmem:[%s2069 + $0x14] sm:$0xf] %vm1080, %v2032
      %2076 = vst.msk [vmem:[%s2069 + $0x18] sm:$0xf] %vm1080, %v2034
      %2077 = vst.msk [vmem:[%s2069 + $0x1c] sm:$0xf] %vm1080, %v2036
      %2078 = vst.msk [vmem:[%s2069 + $0x20] sm:$0xf] %vm1080, %v2038
      %2079 = vst.msk [vmem:[%s2069 + $0x24] sm:$0xf] %vm1080, %v2040
      %2080 = vst.msk [vmem:[%s2069 + $0x28] sm:$0xf] %vm1080, %v2042
      %2081 = vst.msk [vmem:[%s2069 + $0x2c] sm:$0xf] %vm1080, %v2044
      %2082 = vst.msk [vmem:[%s2069 + $0x30] sm:$0xf] %vm1080, %v2046
      %2083 = vst.msk [vmem:[%s2069 + $0x34] sm:$0xf] %vm1080, %v2048
      %2084 = vst.msk [vmem:[%s2069 + $0x38] sm:$0xf] %vm1080, %v2050
      %2085 = vst.msk [vmem:[%s2069 + $0x3c] sm:$0xf] %vm1080, %v2052
      %2086 = vrot.lane.b32.xlu0 %v1121, 48
      %v2087 = vpop.permute.xlu0 %2086
      %2088 = vrot.lane.b32.xlu0 %v1122, 48
      %v2089 = vpop.permute.xlu0 %2088
      %2090 = vrot.lane.b32.xlu0 %v1123, 48
      %v2091 = vpop.permute.xlu0 %2090
      %2092 = vrot.lane.b32.xlu0 %v1124, 48
      %v2093 = vpop.permute.xlu0 %2092
      %2094 = vrot.lane.b32.xlu0 %v1125, 48
      %v2095 = vpop.permute.xlu0 %2094
      %2096 = vrot.lane.b32.xlu0 %v1126, 48
      %v2097 = vpop.permute.xlu0 %2096
      %2098 = vrot.lane.b32.xlu0 %v1127, 48
      %v2099 = vpop.permute.xlu0 %2098
      %2100 = vrot.lane.b32.xlu0 %v1128, 48
      %v2101 = vpop.permute.xlu0 %2100
      %2102 = vrot.lane.b32.xlu0 %v1129, 48
      %v2103 = vpop.permute.xlu0 %2102
      %2104 = vrot.lane.b32.xlu0 %v1130, 48
      %v2105 = vpop.permute.xlu0 %2104
      %2106 = vrot.lane.b32.xlu0 %v1131, 48
      %v2107 = vpop.permute.xlu0 %2106
      %2108 = vrot.lane.b32.xlu0 %v1132, 48
      %v2109 = vpop.permute.xlu0 %2108
      %2110 = vrot.lane.b32.xlu0 %v1133, 48
      %v2111 = vpop.permute.xlu0 %2110
      %2112 = vrot.lane.b32.xlu0 %v1134, 48
      %v2113 = vpop.permute.xlu0 %2112
      %2114 = vrot.lane.b32.xlu0 %v1135, 48
      %v2115 = vpop.permute.xlu0 %2114
      %2116 = vrot.lane.b32.xlu0 %v1136, 48
      %v2117 = vpop.permute.xlu0 %2116
      %s2134 = scalar_lea.vmem %s353, 320
      %2135 = vst.msk [vmem:[%s2134] sm:$0xf] %vm1080, %v2087
      %2136 = vst.msk [vmem:[%s2134 + $0x4] sm:$0xf] %vm1080, %v2089
      %2137 = vst.msk [vmem:[%s2134 + $0x8] sm:$0xf] %vm1080, %v2091
      %2138 = vst.msk [vmem:[%s2134 + $0xc] sm:$0xf] %vm1080, %v2093
      %2139 = vst.msk [vmem:[%s2134 + $0x10] sm:$0xf] %vm1080, %v2095
      %2140 = vst.msk [vmem:[%s2134 + $0x14] sm:$0xf] %vm1080, %v2097
      %2141 = vst.msk [vmem:[%s2134 + $0x18] sm:$0xf] %vm1080, %v2099
      %2142 = vst.msk [vmem:[%s2134 + $0x1c] sm:$0xf] %vm1080, %v2101
      %2143 = vst.msk [vmem:[%s2134 + $0x20] sm:$0xf] %vm1080, %v2103
      %2144 = vst.msk [vmem:[%s2134 + $0x24] sm:$0xf] %vm1080, %v2105
      %2145 = vst.msk [vmem:[%s2134 + $0x28] sm:$0xf] %vm1080, %v2107
      %2146 = vst.msk [vmem:[%s2134 + $0x2c] sm:$0xf] %vm1080, %v2109
      %2147 = vst.msk [vmem:[%s2134 + $0x30] sm:$0xf] %vm1080, %v2111
      %2148 = vst.msk [vmem:[%s2134 + $0x34] sm:$0xf] %vm1080, %v2113
      %2149 = vst.msk [vmem:[%s2134 + $0x38] sm:$0xf] %vm1080, %v2115
      %2150 = vst.msk [vmem:[%s2134 + $0x3c] sm:$0xf] %vm1080, %v2117
      %2151 = vrot.lane.b32.xlu0 %v1193, 48
      %v2152 = vpop.permute.xlu0 %2151
      %2153 = vrot.lane.b32.xlu0 %v1194, 48
      %v2154 = vpop.permute.xlu0 %2153
      %2155 = vrot.lane.b32.xlu0 %v1195, 48
      %v2156 = vpop.permute.xlu0 %2155
      %2157 = vrot.lane.b32.xlu0 %v1196, 48
      %v2158 = vpop.permute.xlu0 %2157
      %2159 = vrot.lane.b32.xlu0 %v1197, 48
      %v2160 = vpop.permute.xlu0 %2159
      %2161 = vrot.lane.b32.xlu0 %v1198, 48
      %v2162 = vpop.permute.xlu0 %2161
      %2163 = vrot.lane.b32.xlu0 %v1199, 48
      %v2164 = vpop.permute.xlu0 %2163
      %2165 = vrot.lane.b32.xlu0 %v1200, 48
      %v2166 = vpop.permute.xlu0 %2165
      %2167 = vrot.lane.b32.xlu0 %v1201, 48
      %v2168 = vpop.permute.xlu0 %2167
      %2169 = vrot.lane.b32.xlu0 %v1202, 48
      %v2170 = vpop.permute.xlu0 %2169
      %2171 = vrot.lane.b32.xlu0 %v1203, 48
      %v2172 = vpop.permute.xlu0 %2171
      %2173 = vrot.lane.b32.xlu0 %v1204, 48
      %v2174 = vpop.permute.xlu0 %2173
      %2175 = vrot.lane.b32.xlu0 %v1205, 48
      %v2176 = vpop.permute.xlu0 %2175
      %2177 = vrot.lane.b32.xlu0 %v1206, 48
      %v2178 = vpop.permute.xlu0 %2177
      %2179 = vrot.lane.b32.xlu0 %v1207, 48
      %v2180 = vpop.permute.xlu0 %2179
      %2181 = vrot.lane.b32.xlu0 %v1208, 48
      %v2182 = vpop.permute.xlu0 %2181
      %s2199 = scalar_lea.vmem %s363, 320
      %2200 = vst.msk [vmem:[%s2199] sm:$0xf] %vm1080, %v2152
      %2201 = vst.msk [vmem:[%s2199 + $0x4] sm:$0xf] %vm1080, %v2154
      %2202 = vst.msk [vmem:[%s2199 + $0x8] sm:$0xf] %vm1080, %v2156
      %2203 = vst.msk [vmem:[%s2199 + $0xc] sm:$0xf] %vm1080, %v2158
      %2204 = vst.msk [vmem:[%s2199 + $0x10] sm:$0xf] %vm1080, %v2160
      %2205 = vst.msk [vmem:[%s2199 + $0x14] sm:$0xf] %vm1080, %v2162
      %2206 = vst.msk [vmem:[%s2199 + $0x18] sm:$0xf] %vm1080, %v2164
      %2207 = vst.msk [vmem:[%s2199 + $0x1c] sm:$0xf] %vm1080, %v2166
      %2208 = vst.msk [vmem:[%s2199 + $0x20] sm:$0xf] %vm1080, %v2168
      %2209 = vst.msk [vmem:[%s2199 + $0x24] sm:$0xf] %vm1080, %v2170
      %2210 = vst.msk [vmem:[%s2199 + $0x28] sm:$0xf] %vm1080, %v2172
      %2211 = vst.msk [vmem:[%s2199 + $0x2c] sm:$0xf] %vm1080, %v2174
      %2212 = vst.msk [vmem:[%s2199 + $0x30] sm:$0xf] %vm1080, %v2176
      %2213 = vst.msk [vmem:[%s2199 + $0x34] sm:$0xf] %vm1080, %v2178
      %2214 = vst.msk [vmem:[%s2199 + $0x38] sm:$0xf] %vm1080, %v2180
      %2215 = vst.msk [vmem:[%s2199 + $0x3c] sm:$0xf] %vm1080, %v2182
      %2216 = vrot.lane.b32.xlu0 %v1048, 32
      %v2217 = vpop.permute.xlu0 %2216
      %2218 = vrot.lane.b32.xlu0 %v1049, 32
      %v2219 = vpop.permute.xlu0 %2218
      %2220 = vrot.lane.b32.xlu0 %v1050, 32
      %v2221 = vpop.permute.xlu0 %2220
      %2222 = vrot.lane.b32.xlu0 %v1051, 32
      %v2223 = vpop.permute.xlu0 %2222
      %2224 = vrot.lane.b32.xlu0 %v1052, 32
      %v2225 = vpop.permute.xlu0 %2224
      %2226 = vrot.lane.b32.xlu0 %v1053, 32
      %v2227 = vpop.permute.xlu0 %2226
      %2228 = vrot.lane.b32.xlu0 %v1054, 32
      %v2229 = vpop.permute.xlu0 %2228
      %2230 = vrot.lane.b32.xlu0 %v1055, 32
      %v2231 = vpop.permute.xlu0 %2230
      %2232 = vrot.lane.b32.xlu0 %v1056, 32
      %v2233 = vpop.permute.xlu0 %2232
      %2234 = vrot.lane.b32.xlu0 %v1057, 32
      %v2235 = vpop.permute.xlu0 %2234
      %2236 = vrot.lane.b32.xlu0 %v1058, 32
      %v2237 = vpop.permute.xlu0 %2236
      %2238 = vrot.lane.b32.xlu0 %v1059, 32
      %v2239 = vpop.permute.xlu0 %2238
      %2240 = vrot.lane.b32.xlu0 %v1060, 32
      %v2241 = vpop.permute.xlu0 %2240
      %2242 = vrot.lane.b32.xlu0 %v1061, 32
      %v2243 = vpop.permute.xlu0 %2242
      %2244 = vrot.lane.b32.xlu0 %v1062, 32
      %v2245 = vpop.permute.xlu0 %2244
      %2246 = vrot.lane.b32.xlu0 %v1063, 32
      %v2247 = vpop.permute.xlu0 %2246
      %s2264 = scalar_lea.vmem %s343, 384
      %2265 = vst.msk [vmem:[%s2264] sm:$0xf] %vm1080, %v2217
      %2266 = vst.msk [vmem:[%s2264 + $0x4] sm:$0xf] %vm1080, %v2219
      %2267 = vst.msk [vmem:[%s2264 + $0x8] sm:$0xf] %vm1080, %v2221
      %2268 = vst.msk [vmem:[%s2264 + $0xc] sm:$0xf] %vm1080, %v2223
      %2269 = vst.msk [vmem:[%s2264 + $0x10] sm:$0xf] %vm1080, %v2225
      %2270 = vst.msk [vmem:[%s2264 + $0x14] sm:$0xf] %vm1080, %v2227
      %2271 = vst.msk [vmem:[%s2264 + $0x18] sm:$0xf] %vm1080, %v2229
      %2272 = vst.msk [vmem:[%s2264 + $0x1c] sm:$0xf] %vm1080, %v2231
      %2273 = vst.msk [vmem:[%s2264 + $0x20] sm:$0xf] %vm1080, %v2233
      %2274 = vst.msk [vmem:[%s2264 + $0x24] sm:$0xf] %vm1080, %v2235
      %2275 = vst.msk [vmem:[%s2264 + $0x28] sm:$0xf] %vm1080, %v2237
      %2276 = vst.msk [vmem:[%s2264 + $0x2c] sm:$0xf] %vm1080, %v2239
      %2277 = vst.msk [vmem:[%s2264 + $0x30] sm:$0xf] %vm1080, %v2241
      %2278 = vst.msk [vmem:[%s2264 + $0x34] sm:$0xf] %vm1080, %v2243
      %2279 = vst.msk [vmem:[%s2264 + $0x38] sm:$0xf] %vm1080, %v2245
      %2280 = vst.msk [vmem:[%s2264 + $0x3c] sm:$0xf] %vm1080, %v2247
      %2281 = vrot.lane.b32.xlu0 %v1121, 32
      %v2282 = vpop.permute.xlu0 %2281
      %2283 = vrot.lane.b32.xlu0 %v1122, 32
      %v2284 = vpop.permute.xlu0 %2283
      %2285 = vrot.lane.b32.xlu0 %v1123, 32
      %v2286 = vpop.permute.xlu0 %2285
      %2287 = vrot.lane.b32.xlu0 %v1124, 32
      %v2288 = vpop.permute.xlu0 %2287
      %2289 = vrot.lane.b32.xlu0 %v1125, 32
      %v2290 = vpop.permute.xlu0 %2289
      %2291 = vrot.lane.b32.xlu0 %v1126, 32
      %v2292 = vpop.permute.xlu0 %2291
      %2293 = vrot.lane.b32.xlu0 %v1127, 32
      %v2294 = vpop.permute.xlu0 %2293
      %2295 = vrot.lane.b32.xlu0 %v1128, 32
      %v2296 = vpop.permute.xlu0 %2295
      %2297 = vrot.lane.b32.xlu0 %v1129, 32
      %v2298 = vpop.permute.xlu0 %2297
      %2299 = vrot.lane.b32.xlu0 %v1130, 32
      %v2300 = vpop.permute.xlu0 %2299
      %2301 = vrot.lane.b32.xlu0 %v1131, 32
      %v2302 = vpop.permute.xlu0 %2301
      %2303 = vrot.lane.b32.xlu0 %v1132, 32
      %v2304 = vpop.permute.xlu0 %2303
      %2305 = vrot.lane.b32.xlu0 %v1133, 32
      %v2306 = vpop.permute.xlu0 %2305
      %2307 = vrot.lane.b32.xlu0 %v1134, 32
      %v2308 = vpop.permute.xlu0 %2307
      %2309 = vrot.lane.b32.xlu0 %v1135, 32
      %v2310 = vpop.permute.xlu0 %2309
      %2311 = vrot.lane.b32.xlu0 %v1136, 32
      %v2312 = vpop.permute.xlu0 %2311
      %s2329 = scalar_lea.vmem %s353, 384
      %2330 = vst.msk [vmem:[%s2329] sm:$0xf] %vm1080, %v2282
      %2331 = vst.msk [vmem:[%s2329 + $0x4] sm:$0xf] %vm1080, %v2284
      %2332 = vst.msk [vmem:[%s2329 + $0x8] sm:$0xf] %vm1080, %v2286
      %2333 = vst.msk [vmem:[%s2329 + $0xc] sm:$0xf] %vm1080, %v2288
      %2334 = vst.msk [vmem:[%s2329 + $0x10] sm:$0xf] %vm1080, %v2290
      %2335 = vst.msk [vmem:[%s2329 + $0x14] sm:$0xf] %vm1080, %v2292
      %2336 = vst.msk [vmem:[%s2329 + $0x18] sm:$0xf] %vm1080, %v2294
      %2337 = vst.msk [vmem:[%s2329 + $0x1c] sm:$0xf] %vm1080, %v2296
      %2338 = vst.msk [vmem:[%s2329 + $0x20] sm:$0xf] %vm1080, %v2298
      %2339 = vst.msk [vmem:[%s2329 + $0x24] sm:$0xf] %vm1080, %v2300
      %2340 = vst.msk [vmem:[%s2329 + $0x28] sm:$0xf] %vm1080, %v2302
      %2341 = vst.msk [vmem:[%s2329 + $0x2c] sm:$0xf] %vm1080, %v2304
      %2342 = vst.msk [vmem:[%s2329 + $0x30] sm:$0xf] %vm1080, %v2306
      %2343 = vst.msk [vmem:[%s2329 + $0x34] sm:$0xf] %vm1080, %v2308
      %2344 = vst.msk [vmem:[%s2329 + $0x38] sm:$0xf] %vm1080, %v2310
      %2345 = vst.msk [vmem:[%s2329 + $0x3c] sm:$0xf] %vm1080, %v2312
      %2346 = vrot.lane.b32.xlu0 %v1193, 32
      %v2347 = vpop.permute.xlu0 %2346
      %2348 = vrot.lane.b32.xlu0 %v1194, 32
      %v2349 = vpop.permute.xlu0 %2348
      %2350 = vrot.lane.b32.xlu0 %v1195, 32
      %v2351 = vpop.permute.xlu0 %2350
      %2352 = vrot.lane.b32.xlu0 %v1196, 32
      %v2353 = vpop.permute.xlu0 %2352
      %2354 = vrot.lane.b32.xlu0 %v1197, 32
      %v2355 = vpop.permute.xlu0 %2354
      %2356 = vrot.lane.b32.xlu0 %v1198, 32
      %v2357 = vpop.permute.xlu0 %2356
      %2358 = vrot.lane.b32.xlu0 %v1199, 32
      %v2359 = vpop.permute.xlu0 %2358
      %2360 = vrot.lane.b32.xlu0 %v1200, 32
      %v2361 = vpop.permute.xlu0 %2360
      %2362 = vrot.lane.b32.xlu0 %v1201, 32
      %v2363 = vpop.permute.xlu0 %2362
      %2364 = vrot.lane.b32.xlu0 %v1202, 32
      %v2365 = vpop.permute.xlu0 %2364
      %2366 = vrot.lane.b32.xlu0 %v1203, 32
      %v2367 = vpop.permute.xlu0 %2366
      %2368 = vrot.lane.b32.xlu0 %v1204, 32
      %v2369 = vpop.permute.xlu0 %2368
      %2370 = vrot.lane.b32.xlu0 %v1205, 32
      %v2371 = vpop.permute.xlu0 %2370
      %2372 = vrot.lane.b32.xlu0 %v1206, 32
      %v2373 = vpop.permute.xlu0 %2372
      %2374 = vrot.lane.b32.xlu0 %v1207, 32
      %v2375 = vpop.permute.xlu0 %2374
      %2376 = vrot.lane.b32.xlu0 %v1208, 32
      %v2377 = vpop.permute.xlu0 %2376
      %s2394 = scalar_lea.vmem %s363, 384
      %2395 = vst.msk [vmem:[%s2394] sm:$0xf] %vm1080, %v2347
      %2396 = vst.msk [vmem:[%s2394 + $0x4] sm:$0xf] %vm1080, %v2349
      %2397 = vst.msk [vmem:[%s2394 + $0x8] sm:$0xf] %vm1080, %v2351
      %2398 = vst.msk [vmem:[%s2394 + $0xc] sm:$0xf] %vm1080, %v2353
      %2399 = vst.msk [vmem:[%s2394 + $0x10] sm:$0xf] %vm1080, %v2355
      %2400 = vst.msk [vmem:[%s2394 + $0x14] sm:$0xf] %vm1080, %v2357
      %2401 = vst.msk [vmem:[%s2394 + $0x18] sm:$0xf] %vm1080, %v2359
      %2402 = vst.msk [vmem:[%s2394 + $0x1c] sm:$0xf] %vm1080, %v2361
      %2403 = vst.msk [vmem:[%s2394 + $0x20] sm:$0xf] %vm1080, %v2363
      %2404 = vst.msk [vmem:[%s2394 + $0x24] sm:$0xf] %vm1080, %v2365
      %2405 = vst.msk [vmem:[%s2394 + $0x28] sm:$0xf] %vm1080, %v2367
      %2406 = vst.msk [vmem:[%s2394 + $0x2c] sm:$0xf] %vm1080, %v2369
      %2407 = vst.msk [vmem:[%s2394 + $0x30] sm:$0xf] %vm1080, %v2371
      %2408 = vst.msk [vmem:[%s2394 + $0x34] sm:$0xf] %vm1080, %v2373
      %2409 = vst.msk [vmem:[%s2394 + $0x38] sm:$0xf] %vm1080, %v2375
      %2410 = vst.msk [vmem:[%s2394 + $0x3c] sm:$0xf] %vm1080, %v2377
      %2411 = vrot.lane.b32.xlu0 %v1048, 16
      %v2412 = vpop.permute.xlu0 %2411
      %2413 = vrot.lane.b32.xlu0 %v1049, 16
      %v2414 = vpop.permute.xlu0 %2413
      %2415 = vrot.lane.b32.xlu0 %v1050, 16
      %v2416 = vpop.permute.xlu0 %2415
      %2417 = vrot.lane.b32.xlu0 %v1051, 16
      %v2418 = vpop.permute.xlu0 %2417
      %2419 = vrot.lane.b32.xlu0 %v1052, 16
      %v2420 = vpop.permute.xlu0 %2419
      %2421 = vrot.lane.b32.xlu0 %v1053, 16
      %v2422 = vpop.permute.xlu0 %2421
      %2423 = vrot.lane.b32.xlu0 %v1054, 16
      %v2424 = vpop.permute.xlu0 %2423
      %2425 = vrot.lane.b32.xlu0 %v1055, 16
      %v2426 = vpop.permute.xlu0 %2425
      %2427 = vrot.lane.b32.xlu0 %v1056, 16
      %v2428 = vpop.permute.xlu0 %2427
      %2429 = vrot.lane.b32.xlu0 %v1057, 16
      %v2430 = vpop.permute.xlu0 %2429
      %2431 = vrot.lane.b32.xlu0 %v1058, 16
      %v2432 = vpop.permute.xlu0 %2431
      %2433 = vrot.lane.b32.xlu0 %v1059, 16
      %v2434 = vpop.permute.xlu0 %2433
      %2435 = vrot.lane.b32.xlu0 %v1060, 16
      %v2436 = vpop.permute.xlu0 %2435
      %2437 = vrot.lane.b32.xlu0 %v1061, 16
      %v2438 = vpop.permute.xlu0 %2437
      %2439 = vrot.lane.b32.xlu0 %v1062, 16
      %v2440 = vpop.permute.xlu0 %2439
      %2441 = vrot.lane.b32.xlu0 %v1063, 16
      %v2442 = vpop.permute.xlu0 %2441
      %s2459 = scalar_lea.vmem %s343, 448
      %2460 = vst.msk [vmem:[%s2459] sm:$0xf] %vm1080, %v2412
      %2461 = vst.msk [vmem:[%s2459 + $0x4] sm:$0xf] %vm1080, %v2414
      %2462 = vst.msk [vmem:[%s2459 + $0x8] sm:$0xf] %vm1080, %v2416
      %2463 = vst.msk [vmem:[%s2459 + $0xc] sm:$0xf] %vm1080, %v2418
      %2464 = vst.msk [vmem:[%s2459 + $0x10] sm:$0xf] %vm1080, %v2420
      %2465 = vst.msk [vmem:[%s2459 + $0x14] sm:$0xf] %vm1080, %v2422
      %2466 = vst.msk [vmem:[%s2459 + $0x18] sm:$0xf] %vm1080, %v2424
      %2467 = vst.msk [vmem:[%s2459 + $0x1c] sm:$0xf] %vm1080, %v2426
      %2468 = vst.msk [vmem:[%s2459 + $0x20] sm:$0xf] %vm1080, %v2428
      %2469 = vst.msk [vmem:[%s2459 + $0x24] sm:$0xf] %vm1080, %v2430
      %2470 = vst.msk [vmem:[%s2459 + $0x28] sm:$0xf] %vm1080, %v2432
      %2471 = vst.msk [vmem:[%s2459 + $0x2c] sm:$0xf] %vm1080, %v2434
      %2472 = vst.msk [vmem:[%s2459 + $0x30] sm:$0xf] %vm1080, %v2436
      %2473 = vst.msk [vmem:[%s2459 + $0x34] sm:$0xf] %vm1080, %v2438
      %2474 = vst.msk [vmem:[%s2459 + $0x38] sm:$0xf] %vm1080, %v2440
      %2475 = vst.msk [vmem:[%s2459 + $0x3c] sm:$0xf] %vm1080, %v2442
      %2476 = vrot.lane.b32.xlu0 %v1121, 16
      %v2477 = vpop.permute.xlu0 %2476
      %2478 = vrot.lane.b32.xlu0 %v1122, 16
      %v2479 = vpop.permute.xlu0 %2478
      %2480 = vrot.lane.b32.xlu0 %v1123, 16
      %v2481 = vpop.permute.xlu0 %2480
      %2482 = vrot.lane.b32.xlu0 %v1124, 16
      %v2483 = vpop.permute.xlu0 %2482
      %2484 = vrot.lane.b32.xlu0 %v1125, 16
      %v2485 = vpop.permute.xlu0 %2484
      %2486 = vrot.lane.b32.xlu0 %v1126, 16
      %v2487 = vpop.permute.xlu0 %2486
      %2488 = vrot.lane.b32.xlu0 %v1127, 16
      %v2489 = vpop.permute.xlu0 %2488
      %2490 = vrot.lane.b32.xlu0 %v1128, 16
      %v2491 = vpop.permute.xlu0 %2490
      %2492 = vrot.lane.b32.xlu0 %v1129, 16
      %v2493 = vpop.permute.xlu0 %2492
      %2494 = vrot.lane.b32.xlu0 %v1130, 16
      %v2495 = vpop.permute.xlu0 %2494
      %2496 = vrot.lane.b32.xlu0 %v1131, 16
      %v2497 = vpop.permute.xlu0 %2496
      %2498 = vrot.lane.b32.xlu0 %v1132, 16
      %v2499 = vpop.permute.xlu0 %2498
      %2500 = vrot.lane.b32.xlu0 %v1133, 16
      %v2501 = vpop.permute.xlu0 %2500
      %2502 = vrot.lane.b32.xlu0 %v1134, 16
      %v2503 = vpop.permute.xlu0 %2502
      %2504 = vrot.lane.b32.xlu0 %v1135, 16
      %v2505 = vpop.permute.xlu0 %2504
      %2506 = vrot.lane.b32.xlu0 %v1136, 16
      %v2507 = vpop.permute.xlu0 %2506
      %s2524 = scalar_lea.vmem %s353, 448
      %2525 = vst.msk [vmem:[%s2524] sm:$0xf] %vm1080, %v2477
      %2526 = vst.msk [vmem:[%s2524 + $0x4] sm:$0xf] %vm1080, %v2479
      %2527 = vst.msk [vmem:[%s2524 + $0x8] sm:$0xf] %vm1080, %v2481
      %2528 = vst.msk [vmem:[%s2524 + $0xc] sm:$0xf] %vm1080, %v2483
      %2529 = vst.msk [vmem:[%s2524 + $0x10] sm:$0xf] %vm1080, %v2485
      %2530 = vst.msk [vmem:[%s2524 + $0x14] sm:$0xf] %vm1080, %v2487
      %2531 = vst.msk [vmem:[%s2524 + $0x18] sm:$0xf] %vm1080, %v2489
      %2532 = vst.msk [vmem:[%s2524 + $0x1c] sm:$0xf] %vm1080, %v2491
      %2533 = vst.msk [vmem:[%s2524 + $0x20] sm:$0xf] %vm1080, %v2493
      %2534 = vst.msk [vmem:[%s2524 + $0x24] sm:$0xf] %vm1080, %v2495
      %2535 = vst.msk [vmem:[%s2524 + $0x28] sm:$0xf] %vm1080, %v2497
      %2536 = vst.msk [vmem:[%s2524 + $0x2c] sm:$0xf] %vm1080, %v2499
      %2537 = vst.msk [vmem:[%s2524 + $0x30] sm:$0xf] %vm1080, %v2501
      %2538 = vst.msk [vmem:[%s2524 + $0x34] sm:$0xf] %vm1080, %v2503
      %2539 = vst.msk [vmem:[%s2524 + $0x38] sm:$0xf] %vm1080, %v2505
      %2540 = vst.msk [vmem:[%s2524 + $0x3c] sm:$0xf] %vm1080, %v2507
      %2541 = vrot.lane.b32.xlu0 %v1193, 16
      %v2542 = vpop.permute.xlu0 %2541
      %2543 = vrot.lane.b32.xlu0 %v1194, 16
      %v2544 = vpop.permute.xlu0 %2543
      %2545 = vrot.lane.b32.xlu0 %v1195, 16
      %v2546 = vpop.permute.xlu0 %2545
      %2547 = vrot.lane.b32.xlu0 %v1196, 16
      %v2548 = vpop.permute.xlu0 %2547
      %2549 = vrot.lane.b32.xlu0 %v1197, 16
      %v2550 = vpop.permute.xlu0 %2549
      %2551 = vrot.lane.b32.xlu0 %v1198, 16
      %v2552 = vpop.permute.xlu0 %2551
      %2553 = vrot.lane.b32.xlu0 %v1199, 16
      %v2554 = vpop.permute.xlu0 %2553
      %2555 = vrot.lane.b32.xlu0 %v1200, 16
      %v2556 = vpop.permute.xlu0 %2555
      %2557 = vrot.lane.b32.xlu0 %v1201, 16
      %v2558 = vpop.permute.xlu0 %2557
      %2559 = vrot.lane.b32.xlu0 %v1202, 16
      %v2560 = vpop.permute.xlu0 %2559
      %2561 = vrot.lane.b32.xlu0 %v1203, 16
      %v2562 = vpop.permute.xlu0 %2561
      %2563 = vrot.lane.b32.xlu0 %v1204, 16
      %v2564 = vpop.permute.xlu0 %2563
      %2565 = vrot.lane.b32.xlu0 %v1205, 16
      %v2566 = vpop.permute.xlu0 %2565
      %2567 = vrot.lane.b32.xlu0 %v1206, 16
      %v2568 = vpop.permute.xlu0 %2567
      %2569 = vrot.lane.b32.xlu0 %v1207, 16
      %v2570 = vpop.permute.xlu0 %2569
      %2571 = vrot.lane.b32.xlu0 %v1208, 16
      %v2572 = vpop.permute.xlu0 %2571
      %s2589 = scalar_lea.vmem %s363, 448
      %2590 = vst.msk [vmem:[%s2589] sm:$0xf] %vm1080, %v2542
      %2591 = vst.msk [vmem:[%s2589 + $0x4] sm:$0xf] %vm1080, %v2544
      %2592 = vst.msk [vmem:[%s2589 + $0x8] sm:$0xf] %vm1080, %v2546
      %2593 = vst.msk [vmem:[%s2589 + $0xc] sm:$0xf] %vm1080, %v2548
      %2594 = vst.msk [vmem:[%s2589 + $0x10] sm:$0xf] %vm1080, %v2550
      %2595 = vst.msk [vmem:[%s2589 + $0x14] sm:$0xf] %vm1080, %v2552
      %2596 = vst.msk [vmem:[%s2589 + $0x18] sm:$0xf] %vm1080, %v2554
      %2597 = vst.msk [vmem:[%s2589 + $0x1c] sm:$0xf] %vm1080, %v2556
      %2598 = vst.msk [vmem:[%s2589 + $0x20] sm:$0xf] %vm1080, %v2558
      %2599 = vst.msk [vmem:[%s2589 + $0x24] sm:$0xf] %vm1080, %v2560
      %2600 = vst.msk [vmem:[%s2589 + $0x28] sm:$0xf] %vm1080, %v2562
      %2601 = vst.msk [vmem:[%s2589 + $0x2c] sm:$0xf] %vm1080, %v2564
      %2602 = vst.msk [vmem:[%s2589 + $0x30] sm:$0xf] %vm1080, %v2566
      %2603 = vst.msk [vmem:[%s2589 + $0x34] sm:$0xf] %vm1080, %v2568
      %2604 = vst.msk [vmem:[%s2589 + $0x38] sm:$0xf] %vm1080, %v2570
      %2605 = vst.msk [vmem:[%s2589 + $0x3c] sm:$0xf] %vm1080, %v2572
      %s2606 = smul.u32 16, %s24
      %p2607 = scmp.lt.s32.totalorder %s23, 1
      %s2608 = scalar_select %p2607, %s23, 1
      %p2609 = scmp.lt.s32.totalorder %s2606, 15
      %s2610 = scalar_select %p2609, %s2606, 15
      %s2611 = smul.addr %s2608, 128
      %s2612 = sadd.s32 %s2610, %s2611
      %s2613 = smul.addr %s2612, 4
      %s2614 = scalar_lea.vmem %s5, %s2613
      %s2615 = smul.u32 16, %s24
      %p2616 = scmp.lt.s32.totalorder %s23, 1
      %s2617 = scalar_select %p2616, %s23, 1
      %p2618 = scmp.lt.s32.totalorder %s2615, 15
      %s2619 = scalar_select %p2618, %s2615, 15
      %s2620 = smul.addr %s2617, 128
      %s2621 = sadd.s32 %s2619, %s2620
      %s2622 = smul.addr %s2621, 4
      %s2623 = scalar_lea.vmem %s6, %s2622
      %s2624 = smul.u32 16, %s24
      %p2625 = scmp.lt.s32.totalorder %s23, 1
      %s2626 = scalar_select %p2625, %s23, 1
      %p2627 = scmp.lt.s32.totalorder %s2624, 15
      %s2628 = scalar_select %p2627, %s2624, 15
      %s2629 = smul.addr %s2626, 128
      %s2630 = sadd.s32 %s2628, %s2629
      %s2631 = smul.addr %s2630, 4
      %s2632 = scalar_lea.vmem %s7, %s2631
      // Predicated region
      $region41: #{run.2} parent=39 // pred_check
        %p2633 = pneg %p163
      $region42: #{run.2} parent=39 // pred_check_branch
        %2635 = sbr.rel (%p2633) target = $region44
      $region43: #{run.2} parent=39 // pred_region
        %s2636 = smul.u32 16, %s24
      $region44: #{run.2} parent=39 // pred_fallthru
        _
      // Predicated region
      $region45: #{run.2} parent=39 // pred_check
        %p2637 = pneg %p191
      $region46: #{run.2} parent=39 // pred_check_branch
        %2639 = sbr.rel (%p2637) target = $region48
      $region47: #{run.2} parent=39 // pred_region
        %s2640 = smul.u32 16, %s24
      $region48: #{run.2} parent=39 // pred_fallthru
        _
      // Predicated region
      $region49: #{run.2} parent=39 // pred_check
        %p2641 = pneg %p219
      $region50: #{run.2} parent=39 // pred_check_branch
        %2643 = sbr.rel (%p2641) target = $region52
      $region51: #{run.2} parent=39 // pred_region
        %s2644 = smul.u32 16, %s24
      $region52: #{run.2} parent=39 // pred_fallthru
        _
    $region40: #{run.2} parent=5 // pred_fallthru
      _
    %p2645 = scmp.le.s32.totalorder 2, %s14
    // Predicated region
    $region53: #{run.2} parent=5 // pred_check
      %p2646 = pneg %p2645
    $region54: #{run.2} parent=5 // pred_check_branch
      %2648 = sbr.rel (%p2646) target = $region56
    $region55: #{run.2} parent=5 // pred_region
      %s2649 = ssub.s32 %s14, 2
      // Predicated region
      $region57: #{run.2} parent=55 // pred_check
        %p2650 = pneg %p169
      $region58: #{run.2} parent=55 // pred_check_branch
        %2652 = sbr.rel (%p2650) target = $region60
      $region59: #{run.2} parent=55 // pred_region
        %s2653 = smul.u32 16, %s26
        %p2654 = scmp.lt.s32.totalorder %s25, 1
        %s2655 = scalar_select %p2654, %s25, 1
        %p2656 = scmp.lt.s32.totalorder %s2653, 15
        %s2657 = scalar_select %p2656, %s2653, 15
        %s2658 = smul.addr %s2655, 128
        %s2659 = sadd.s32 %s2657, %s2658
        %s2660 = smul.addr %s2659, 4
        %s2661 = scalar_lea.vmem %s5, %s2660
      $region60: #{run.2} parent=55 // pred_fallthru
        _
      // Predicated region
      $region61: #{run.2} parent=55 // pred_check
        %p2662 = pneg %p197
      $region62: #{run.2} parent=55 // pred_check_branch
        %2664 = sbr.rel (%p2662) target = $region64
      $region63: #{run.2} parent=55 // pred_region
        %s2665 = smul.u32 16, %s26
        %p2666 = scmp.lt.s32.totalorder %s25, 1
        %s2667 = scalar_select %p2666, %s25, 1
        %p2668 = scmp.lt.s32.totalorder %s2665, 15
        %s2669 = scalar_select %p2668, %s2665, 15
        %s2670 = smul.addr %s2667, 128
        %s2671 = sadd.s32 %s2669, %s2670
        %s2672 = smul.addr %s2671, 4
        %s2673 = scalar_lea.vmem %s6, %s2672
      $region64: #{run.2} parent=55 // pred_fallthru
        _
      // Predicated region
      $region65: #{run.2} parent=55 // pred_check
        %p2674 = pneg %p225
      $region66: #{run.2} parent=55 // pred_check_branch
        %2676 = sbr.rel (%p2674) target = $region68
      $region67: #{run.2} parent=55 // pred_region
        %s2677 = smul.u32 16, %s26
        %p2678 = scmp.lt.s32.totalorder %s25, 1
        %s2679 = scalar_select %p2678, %s25, 1
        %p2680 = scmp.lt.s32.totalorder %s2677, 15
        %s2681 = scalar_select %p2680, %s2677, 15
        %s2682 = smul.addr %s2679, 128
        %s2683 = sadd.s32 %s2681, %s2682
        %s2684 = smul.addr %s2683, 4
        %s2685 = scalar_lea.vmem %s7, %s2684
      $region68: #{run.2} parent=55 // pred_fallthru
        _
    $region56: #{run.2} parent=5 // pred_fallthru
      _
  $region6: #{run.2} parent=0 // loop_footer
    %s18 = sadd.s32 1, %s14
  $region7: #{run.2} parent=0 // loop_footer_branch
    %13 = sbr.rel target = $region3
  $region8: #{run.2} parent=0 // loop_exit
    _

</llo_original>
